<compile_context>
chip_gen: v7x
topology: tpu7x:2x2x1
jax: 0.10.0
libtpu: 0.0.40
codegen_flags: <defaults>
</compile_context>

<pallas_src>
import numpy as np
import jax
import jax.numpy as jnp
from jax.experimental import pallas as pl
from jax.experimental.pallas import tpu as pltpu


def _stable_sigmoid(v):
    # sigmoid(v) == 0.5 * (tanh(v/2) + 1): single EUP op, no exp overflow.
    return 0.5 * (jnp.tanh(0.5 * v) + 1.0)


def _make_convgru_kernel(H, W, Chid, Cin):
    HW = H * W
    bf16 = jnp.bfloat16

    def im2col(v):
        """v: (H, W, C) bf16 -> (H*W, 9*C) bf16 slab for a 3x3 SAME conv.

        Shifts are done at the value level with zero fill: 2 one-sublane column
        shifts and 2 outer-dim row shifts per tensor, lane-aligned channel
        concats, and a layout-preserving (H, W)->(H*W) collapse (W multiple of
        the bf16 sublane tile at these sizes).  Channel order is
        (ky, kx, cin), matching w.reshape(9*C, Cout).
        """
        C = v.shape[-1]
        zc = jnp.zeros((H, 1, C), v.dtype)
        left = jnp.concatenate([zc, v[:, :W - 1, :]], axis=1)    # col x-1 (kx=0)
        right = jnp.concatenate([v[:, 1:, :], zc], axis=1)       # col x+1 (kx=2)
        s = jnp.concatenate([left, v, right], axis=-1)           # (H, W, 3C)
        zr = jnp.zeros((1, W, 3 * C), v.dtype)
        up = jnp.concatenate([zr, s[:H - 1]], axis=0)            # row y-1 (ky=0)
        down = jnp.concatenate([s[1:], zr], axis=0)              # row y+1 (ky=2)
        return jnp.concatenate([up, s, down], axis=-1).reshape(HW, 9 * C)

    def kernel(h_ref, x_ref, cz_ref, cr_ref, cq_ref,
               wzr_h_ref, wx_ref, wq_h_ref, ball_ref, o_ref):
        h3 = h_ref[0]                                   # (H, W, Chid) f32
        hb = h3.astype(bf16)                            # cast once per tensor
        xb = x_ref[0].astype(bf16)

        col_x = im2col(xb)                              # (HW, 9*Cin), reused
        col_h = im2col(hb)                              # (HW, 9*Chid)
        hf = h3.reshape(HW, Chid)

        # One fused x-side matmul feeding all three convs ([z | r | q] along
        # Cout), biases folded in.
        x_all = jnp.dot(col_x, wx_ref[...],
                        preferred_element_type=jnp.float32) + ball_ref[...]

        # convz + convr share the [h, x] input: one stacked big-K h-side dot.
        zr = jnp.dot(col_h, wzr_h_ref[...],
                     preferred_element_type=jnp.float32) + x_all[:, :2 * Chid]
        z = _stable_sigmoid(zr[:, :Chid] + cz_ref[0].reshape(HW, Chid))
        r = _stable_sigmoid(zr[:, Chid:] + cr_ref[0].reshape(HW, Chid))

        # convq([r*h, x]): rebuild only the h-side slab; x-side contribution
        # (incl. bq) already sits in x_all[:, 2*Chid:].
        col_rh = im2col((r * hf).astype(bf16).reshape(H, W, Chid))
        qpre = jnp.dot(col_rh, wq_h_ref[...],
                       preferred_element_type=jnp.float32) + x_all[:, 2 * Chid:]
        q = jnp.tanh(qpre + cq_ref[0].reshape(HW, Chid))

        h_new = hf + z * (q - hf)                       # == (1 - z)*h + z*q
        o_ref[0] = h_new.reshape(H, W, Chid)

    return kernel


def conv_gru(params, h, cz, cr, cq, *x_list):
    """Fused ConvGRU forward.  NHWC activations, HWIO weights.

    params: dict with 'wz','bz','wr','br','wq','bq'; each w is
    (3, 3, hidden+input, hidden), each b is (hidden,).
    """
    x = x_list[0] if len(x_list) == 1 else jnp.concatenate(x_list, axis=-1)
    N, H, W, Chid = h.shape
    Cin = x.shape[-1]
    bf16 = jnp.bfloat16

    # Weight prep (tiny, runs once under jit): split along Cin into h-/x-parts,
    # stack z|r along Cout for the h side and z|r|q for the x side, flatten
    # taps to (9*C, Cout), cast to bf16.  Biases stacked as [bz|br|bq].
    def split(w):
        return w[:, :, :Chid, :], w[:, :, Chid:, :]

    wz_h, wz_x = split(params['wz'])
    wr_h, wr_x = split(params['wr'])
    wq_h, wq_x = split(params['wq'])
    wzr_h = jnp.concatenate([wz_h, wr_h], -1).reshape(9 * Chid, 2 * Chid).astype(bf16)
    wx_all = jnp.concatenate([wz_x, wr_x, wq_x], -1).reshape(9 * Cin, 3 * Chid).astype(bf16)
    wq_hf = wq_h.reshape(9 * Chid, Chid).astype(bf16)
    ball = jnp.concatenate([params['bz'], params['br'], params['bq']]
                           ).reshape(1, 3 * Chid).astype(jnp.float32)

    flops = int(2 * N * H * W * 9 * (Chid + Cin) * 3 * Chid)
    transcendentals = int(3 * N * H * W * Chid)
    bytes_accessed = int(4 * (2 * h.size + x.size + cz.size + cr.size + cq.size)
                         + 2 * (wzr_h.size + wx_all.size + wq_hf.size)
                         + 4 * ball.size)

    def act_spec(c):
        return pl.BlockSpec((1, H, W, c), lambda n: (n, 0, 0, 0))

    def full2d(rows, cols):
        return pl.BlockSpec((rows, cols), lambda n: (0, 0))

    grid_spec = pltpu.PrefetchScalarGridSpec(
        num_scalar_prefetch=0,
        grid=(N,),
        in_specs=[
            act_spec(Chid),                 # h
            act_spec(Cin),                  # x
            act_spec(Chid),                 # cz
            act_spec(Chid),                 # cr
            act_spec(Chid),                 # cq
            full2d(9 * Chid, 2 * Chid),     # wzr_h   (z|r stacked, h part)
            full2d(9 * Cin, 3 * Chid),      # wx_all  (z|r|q stacked, x part)
            full2d(9 * Chid, Chid),         # wq_h
            full2d(1, 3 * Chid),            # ball    (bz|br|bq)
        ],
        out_specs=act_spec(Chid),
    )

    return pl.pallas_call(
        _make_convgru_kernel(H, W, Chid, Cin),
        out_shape=jax.ShapeDtypeStruct((N, H, W, Chid), jnp.float32),
        grid_spec=grid_spec,
        compiler_params=pltpu.CompilerParams(
            dimension_semantics=("parallel",),
            vmem_limit_bytes=32 * 1024 * 1024),
        cost_estimate=pl.CostEstimate(flops=flops,
                                      transcendentals=transcendentals,
                                      bytes_accessed=bytes_accessed),
    )(h, x, cz, cr, cq, wzr_h, wx_all, wq_hf, ball)


# ------------------------- plain-JAX reference (check) ------------------------

def conv_gru_reference(params, h, cz, cr, cq, *x_list):
    """XLA reference with the same bf16 matmul inputs / f32 accumulation."""
    x = x_list[0] if len(x_list) == 1 else jnp.concatenate(x_list, axis=-1)

    def conv(inp, w, b):
        y = jax.lax.conv_general_dilated(
            inp.astype(jnp.bfloat16), w.astype(jnp.bfloat16),
            window_strides=(1, 1), padding=((1, 1), (1, 1)),
            dimension_numbers=('NHWC', 'HWIO', 'NHWC'),
            preferred_element_type=jnp.float32)
        return y + b

    hx = jnp.concatenate([h, x], axis=-1)
    z = jax.nn.sigmoid(conv(hx, params['wz'], params['bz']) + cz)
    r = jax.nn.sigmoid(conv(hx, params['wr'], params['br']) + cr)
    q = jnp.tanh(conv(jnp.concatenate([r * h, x], axis=-1),
                      params['wq'], params['bq']) + cq)
    return (1.0 - z) * h + z * q


# ------------------------- deterministic parameters ---------------------------

def init_convgru_params(key, hidden_dim, input_dim):
    cin = hidden_dim + input_dim

    def conv_init(k):
        k1, k2 = jax.random.split(k)
        bound = 1.0 / np.sqrt(9 * cin)
        w = jax.random.uniform(k1, (3, 3, cin, hidden_dim), jnp.float32, -bound, bound)
        b = jax.random.uniform(k2, (hidden_dim,), jnp.float32, -bound, bound)
        return w, b

    kz, kr, kq = jax.random.split(key, 3)
    wz, bz = conv_init(kz)
    wr, br = conv_init(kr)
    wq, bq = conv_init(kq)
    return dict(wz=wz, bz=bz, wr=wr, br=br, wq=wq, bq=bq)


# ------------------------------------ main -------------------------------------

if __name__ == "__main__":
    key = jax.random.PRNGKey(0)
    N, H, W = 2, 16, 16
    hidden_dim, cx = 128, 64            # x_list = two 64-channel context tensors
    input_dim = 2 * cx

    ks = jax.random.split(key, 8)
    params = init_convgru_params(ks[0], hidden_dim, input_dim)
    h = jax.random.normal(ks[1], (N, H, W, hidden_dim), jnp.float32)
    cz = 0.1 * jax.random.normal(ks[2], (N, H, W, hidden_dim), jnp.float32)
    cr = 0.1 * jax.random.normal(ks[3], (N, H, W, hidden_dim), jnp.float32)
    cq = 0.1 * jax.random.normal(ks[4], (N, H, W, hidden_dim), jnp.float32)
    x1 = jax.random.normal(ks[5], (N, H, W, cx), jnp.float32)
    x2 = jax.random.normal(ks[6], (N, H, W, cx), jnp.float32)

    h_new = jax.jit(conv_gru)(params, h, cz, cr, cq, x1, x2)
    jax.block_until_ready(h_new)

    ref = jax.jit(conv_gru_reference)(params, h, cz, cr, cq, x1, x2)
    jax.block_until_ready(ref)

    assert h_new.shape == (N, H, W, hidden_dim)
    assert h_new.dtype == jnp.float32
    assert bool(jnp.isfinite(h_new).all())
    np.testing.assert_allclose(np.asarray(h_new), np.asarray(ref),
                               rtol=1e-2, atol=1e-2)
    print("KERNEL_OK")
</pallas_src>

<mosaic_0001>
module attributes {stable_mosaic.version = 11 : i64} {
  func.func @kernel(%arg0: i32, %arg1: memref<1x16x16x128xf32, #tpu.memory_space<vmem>>, %arg2: memref<1x16x16x128xf32, #tpu.memory_space<vmem>>, %arg3: memref<1x16x16x128xf32, #tpu.memory_space<vmem>>, %arg4: memref<1x16x16x128xf32, #tpu.memory_space<vmem>>, %arg5: memref<1x16x16x128xf32, #tpu.memory_space<vmem>>, %arg6: memref<1152x256xbf16, #tpu.memory_space<vmem>>, %arg7: memref<1152x384xbf16, #tpu.memory_space<vmem>>, %arg8: memref<1152x128xbf16, #tpu.memory_space<vmem>>, %arg9: memref<1x384xf32, #tpu.memory_space<vmem>>, %arg10: memref<1x16x16x128xf32, #tpu.memory_space<vmem>>) attributes {dimension_semantics = [#tpu.dimension_semantics<parallel>], iteration_bounds = array<i64: 2>, scalar_prefetch = 0 : i64, scratch_operands = 0 : i64, tpu.core_type = #tpu.core_type<tc>, window_params = [{transform_indices = @transform_0, window_bounds = array<i64: 1, 16, 16, 128>}, {transform_indices = @transform_1, window_bounds = array<i64: 1, 16, 16, 128>}, {transform_indices = @transform_2, window_bounds = array<i64: 1, 16, 16, 128>}, {transform_indices = @transform_3, window_bounds = array<i64: 1, 16, 16, 128>}, {transform_indices = @transform_4, window_bounds = array<i64: 1, 16, 16, 128>}, {pipeline_mode = #tpu.pipeline_mode<synchronous>, transform_indices = @transform_5, window_bounds = array<i64: 1152, 256>}, {pipeline_mode = #tpu.pipeline_mode<synchronous>, transform_indices = @transform_6, window_bounds = array<i64: 1152, 384>}, {pipeline_mode = #tpu.pipeline_mode<synchronous>, transform_indices = @transform_7, window_bounds = array<i64: 1152, 128>}, {pipeline_mode = #tpu.pipeline_mode<synchronous>, transform_indices = @transform_8, window_bounds = array<i64: 1, 384>}, {transform_indices = @transform_9, window_bounds = array<i64: 1, 16, 16, 128>}]} {
    %c0 = arith.constant 0 : index
    %c0_0 = arith.constant 0 : index
    %c0_1 = arith.constant 0 : index
    %c0_2 = arith.constant 0 : index
    %0 = vector.load %arg1[%c0, %c0_0, %c0_1, %c0_2] : memref<1x16x16x128xf32, #tpu.memory_space<vmem>>, vector<1x16x16x128xf32>
    %1 = vector.shape_cast %0 : vector<1x16x16x128xf32> to vector<16x16x128xf32>
    %2 = arith.truncf %1 : vector<16x16x128xf32> to vector<16x16x128xbf16>
    %c0_3 = arith.constant 0 : index
    %c0_4 = arith.constant 0 : index
    %c0_5 = arith.constant 0 : index
    %c0_6 = arith.constant 0 : index
    %3 = vector.load %arg2[%c0_3, %c0_4, %c0_5, %c0_6] : memref<1x16x16x128xf32, #tpu.memory_space<vmem>>, vector<1x16x16x128xf32>
    %4 = vector.shape_cast %3 : vector<1x16x16x128xf32> to vector<16x16x128xf32>
    %5 = arith.truncf %4 : vector<16x16x128xf32> to vector<16x16x128xbf16>
    %cst = arith.constant 0.000000e+00 : bf16
    %6 = vector.broadcast %cst : bf16 to vector<16x1x128xbf16>
    %7 = vector.extract_strided_slice %5 {offsets = [0, 0, 0], sizes = [16, 15, 128], strides = [1, 1, 1]} : vector<16x16x128xbf16> to vector<16x15x128xbf16>
    %8 = tpu.concatenate %6, %7 in 1 : vector<16x1x128xbf16>, vector<16x15x128xbf16> -> vector<16x16x128xbf16>
    %9 = vector.extract_strided_slice %5 {offsets = [0, 1, 0], sizes = [16, 15, 128], strides = [1, 1, 1]} : vector<16x16x128xbf16> to vector<16x15x128xbf16>
    %10 = tpu.concatenate %9, %6 in 1 : vector<16x15x128xbf16>, vector<16x1x128xbf16> -> vector<16x16x128xbf16>
    %11 = tpu.concatenate %8, %5, %10 in 2 : vector<16x16x128xbf16>, vector<16x16x128xbf16>, vector<16x16x128xbf16> -> vector<16x16x384xbf16>
    %cst_7 = arith.constant 0.000000e+00 : bf16
    %12 = vector.broadcast %cst_7 : bf16 to vector<1x16x384xbf16>
    %13 = vector.extract_strided_slice %11 {offsets = [0, 0, 0], sizes = [15, 16, 384], strides = [1, 1, 1]} : vector<16x16x384xbf16> to vector<15x16x384xbf16>
    %14 = tpu.concatenate %12, %13 in 0 : vector<1x16x384xbf16>, vector<15x16x384xbf16> -> vector<16x16x384xbf16>
    %15 = vector.extract_strided_slice %11 {offsets = [1, 0, 0], sizes = [15, 16, 384], strides = [1, 1, 1]} : vector<16x16x384xbf16> to vector<15x16x384xbf16>
    %16 = tpu.concatenate %15, %12 in 0 : vector<15x16x384xbf16>, vector<1x16x384xbf16> -> vector<16x16x384xbf16>
    %17 = tpu.concatenate %14, %11, %16 in 2 : vector<16x16x384xbf16>, vector<16x16x384xbf16>, vector<16x16x384xbf16> -> vector<16x16x1152xbf16>
    %18 = vector.shape_cast %17 : vector<16x16x1152xbf16> to vector<256x1152xbf16>
    %cst_8 = arith.constant 0.000000e+00 : bf16
    %19 = vector.broadcast %cst_8 : bf16 to vector<16x1x128xbf16>
    %20 = vector.extract_strided_slice %2 {offsets = [0, 0, 0], sizes = [16, 15, 128], strides = [1, 1, 1]} : vector<16x16x128xbf16> to vector<16x15x128xbf16>
    %21 = tpu.concatenate %19, %20 in 1 : vector<16x1x128xbf16>, vector<16x15x128xbf16> -> vector<16x16x128xbf16>
    %22 = vector.extract_strided_slice %2 {offsets = [0, 1, 0], sizes = [16, 15, 128], strides = [1, 1, 1]} : vector<16x16x128xbf16> to vector<16x15x128xbf16>
    %23 = tpu.concatenate %22, %19 in 1 : vector<16x15x128xbf16>, vector<16x1x128xbf16> -> vector<16x16x128xbf16>
    %24 = tpu.concatenate %21, %2, %23 in 2 : vector<16x16x128xbf16>, vector<16x16x128xbf16>, vector<16x16x128xbf16> -> vector<16x16x384xbf16>
    %cst_9 = arith.constant 0.000000e+00 : bf16
    %25 = vector.broadcast %cst_9 : bf16 to vector<1x16x384xbf16>
    %26 = vector.extract_strided_slice %24 {offsets = [0, 0, 0], sizes = [15, 16, 384], strides = [1, 1, 1]} : vector<16x16x384xbf16> to vector<15x16x384xbf16>
    %27 = tpu.concatenate %25, %26 in 0 : vector<1x16x384xbf16>, vector<15x16x384xbf16> -> vector<16x16x384xbf16>
    %28 = vector.extract_strided_slice %24 {offsets = [1, 0, 0], sizes = [15, 16, 384], strides = [1, 1, 1]} : vector<16x16x384xbf16> to vector<15x16x384xbf16>
    %29 = tpu.concatenate %28, %25 in 0 : vector<15x16x384xbf16>, vector<1x16x384xbf16> -> vector<16x16x384xbf16>
    %30 = tpu.concatenate %27, %24, %29 in 2 : vector<16x16x384xbf16>, vector<16x16x384xbf16>, vector<16x16x384xbf16> -> vector<16x16x1152xbf16>
    %31 = vector.shape_cast %30 : vector<16x16x1152xbf16> to vector<256x1152xbf16>
    %32 = vector.shape_cast %1 : vector<16x16x128xf32> to vector<256x128xf32>
    %c0_10 = arith.constant 0 : index
    %c0_11 = arith.constant 0 : index
    %33 = vector.load %arg7[%c0_10, %c0_11] : memref<1152x384xbf16, #tpu.memory_space<vmem>>, vector<1152x384xbf16>
    %cst_12 = arith.constant dense<0.000000e+00> : vector<256x384xf32>
    %34 = tpu.matmul %18, %33, %cst_12 {dimension_numbers = #tpu.dot_dimension_numbers<[1], [0], [0], [1], [0, 0, 1, 1], [], []>} : vector<256x1152xbf16>, vector<1152x384xbf16>, vector<256x384xf32> -> vector<256x384xf32>
    %c0_13 = arith.constant 0 : index
    %c0_14 = arith.constant 0 : index
    %35 = vector.load %arg9[%c0_13, %c0_14] : memref<1x384xf32, #tpu.memory_space<vmem>>, vector<1x384xf32>
    %36 = vector.broadcast %35 : vector<1x384xf32> to vector<256x384xf32>
    %37 = arith.addf %34, %36 : vector<256x384xf32>
    %c0_15 = arith.constant 0 : index
    %c0_16 = arith.constant 0 : index
    %38 = vector.load %arg6[%c0_15, %c0_16] : memref<1152x256xbf16, #tpu.memory_space<vmem>>, vector<1152x256xbf16>
    %cst_17 = arith.constant dense<0.000000e+00> : vector<256x256xf32>
    %39 = tpu.matmul %31, %38, %cst_17 {dimension_numbers = #tpu.dot_dimension_numbers<[1], [0], [0], [1], [0, 0, 1, 1], [], []>} : vector<256x1152xbf16>, vector<1152x256xbf16>, vector<256x256xf32> -> vector<256x256xf32>
    %40 = vector.extract_strided_slice %37 {offsets = [0, 0], sizes = [256, 256], strides = [1, 1]} : vector<256x384xf32> to vector<256x256xf32>
    %41 = arith.addf %39, %40 : vector<256x256xf32>
    %42 = vector.extract_strided_slice %41 {offsets = [0, 0], sizes = [256, 128], strides = [1, 1]} : vector<256x256xf32> to vector<256x128xf32>
    %c0_18 = arith.constant 0 : index
    %c0_19 = arith.constant 0 : index
    %c0_20 = arith.constant 0 : index
    %c0_21 = arith.constant 0 : index
    %43 = vector.load %arg3[%c0_18, %c0_19, %c0_20, %c0_21] : memref<1x16x16x128xf32, #tpu.memory_space<vmem>>, vector<1x16x16x128xf32>
    %44 = vector.shape_cast %43 : vector<1x16x16x128xf32> to vector<16x16x128xf32>
    %45 = vector.shape_cast %44 : vector<16x16x128xf32> to vector<256x128xf32>
    %46 = arith.addf %42, %45 : vector<256x128xf32>
    %cst_22 = arith.constant 5.000000e-01 : f32
    %47 = vector.broadcast %cst_22 : f32 to vector<256x128xf32>
    %48 = arith.mulf %47, %46 : vector<256x128xf32>
    %49 = math.tanh %48 : vector<256x128xf32>
    %cst_23 = arith.constant 1.000000e+00 : f32
    %50 = vector.broadcast %cst_23 : f32 to vector<256x128xf32>
    %51 = arith.addf %49, %50 : vector<256x128xf32>
    %cst_24 = arith.constant 5.000000e-01 : f32
    %52 = vector.broadcast %cst_24 : f32 to vector<256x128xf32>
    %53 = arith.mulf %52, %51 : vector<256x128xf32>
    %54 = vector.extract_strided_slice %41 {offsets = [0, 128], sizes = [256, 128], strides = [1, 1]} : vector<256x256xf32> to vector<256x128xf32>
    %c0_25 = arith.constant 0 : index
    %c0_26 = arith.constant 0 : index
    %c0_27 = arith.constant 0 : index
    %c0_28 = arith.constant 0 : index
    %55 = vector.load %arg4[%c0_25, %c0_26, %c0_27, %c0_28] : memref<1x16x16x128xf32, #tpu.memory_space<vmem>>, vector<1x16x16x128xf32>
    %56 = vector.shape_cast %55 : vector<1x16x16x128xf32> to vector<16x16x128xf32>
    %57 = vector.shape_cast %56 : vector<16x16x128xf32> to vector<256x128xf32>
    %58 = arith.addf %54, %57 : vector<256x128xf32>
    %cst_29 = arith.constant 5.000000e-01 : f32
    %59 = vector.broadcast %cst_29 : f32 to vector<256x128xf32>
    %60 = arith.mulf %59, %58 : vector<256x128xf32>
    %61 = math.tanh %60 : vector<256x128xf32>
    %cst_30 = arith.constant 1.000000e+00 : f32
    %62 = vector.broadcast %cst_30 : f32 to vector<256x128xf32>
    %63 = arith.addf %61, %62 : vector<256x128xf32>
    %cst_31 = arith.constant 5.000000e-01 : f32
    %64 = vector.broadcast %cst_31 : f32 to vector<256x128xf32>
    %65 = arith.mulf %64, %63 : vector<256x128xf32>
    %66 = arith.mulf %65, %32 : vector<256x128xf32>
    %67 = arith.truncf %66 : vector<256x128xf32> to vector<256x128xbf16>
    %68 = vector.shape_cast %67 : vector<256x128xbf16> to vector<16x16x128xbf16>
    %cst_32 = arith.constant 0.000000e+00 : bf16
    %69 = vector.broadcast %cst_32 : bf16 to vector<16x1x128xbf16>
    %70 = vector.extract_strided_slice %68 {offsets = [0, 0, 0], sizes = [16, 15, 128], strides = [1, 1, 1]} : vector<16x16x128xbf16> to vector<16x15x128xbf16>
    %71 = tpu.concatenate %69, %70 in 1 : vector<16x1x128xbf16>, vector<16x15x128xbf16> -> vector<16x16x128xbf16>
    %72 = vector.extract_strided_slice %68 {offsets = [0, 1, 0], sizes = [16, 15, 128], strides = [1, 1, 1]} : vector<16x16x128xbf16> to vector<16x15x128xbf16>
    %73 = tpu.concatenate %72, %69 in 1 : vector<16x15x128xbf16>, vector<16x1x128xbf16> -> vector<16x16x128xbf16>
    %74 = tpu.concatenate %71, %68, %73 in 2 : vector<16x16x128xbf16>, vector<16x16x128xbf16>, vector<16x16x128xbf16> -> vector<16x16x384xbf16>
    %cst_33 = arith.constant 0.000000e+00 : bf16
    %75 = vector.broadcast %cst_33 : bf16 to vector<1x16x384xbf16>
    %76 = vector.extract_strided_slice %74 {offsets = [0, 0, 0], sizes = [15, 16, 384], strides = [1, 1, 1]} : vector<16x16x384xbf16> to vector<15x16x384xbf16>
    %77 = tpu.concatenate %75, %76 in 0 : vector<1x16x384xbf16>, vector<15x16x384xbf16> -> vector<16x16x384xbf16>
    %78 = vector.extract_strided_slice %74 {offsets = [1, 0, 0], sizes = [15, 16, 384], strides = [1, 1, 1]} : vector<16x16x384xbf16> to vector<15x16x384xbf16>
    %79 = tpu.concatenate %78, %75 in 0 : vector<15x16x384xbf16>, vector<1x16x384xbf16> -> vector<16x16x384xbf16>
    %80 = tpu.concatenate %77, %74, %79 in 2 : vector<16x16x384xbf16>, vector<16x16x384xbf16>, vector<16x16x384xbf16> -> vector<16x16x1152xbf16>
    %81 = vector.shape_cast %80 : vector<16x16x1152xbf16> to vector<256x1152xbf16>
    %c0_34 = arith.constant 0 : index
    %c0_35 = arith.constant 0 : index
    %82 = vector.load %arg8[%c0_34, %c0_35] : memref<1152x128xbf16, #tpu.memory_space<vmem>>, vector<1152x128xbf16>
    %cst_36 = arith.constant dense<0.000000e+00> : vector<256x128xf32>
    %83 = tpu.matmul %81, %82, %cst_36 {dimension_numbers = #tpu.dot_dimension_numbers<[1], [0], [0], [1], [0, 0, 1, 1], [], []>} : vector<256x1152xbf16>, vector<1152x128xbf16>, vector<256x128xf32> -> vector<256x128xf32>
    %84 = vector.extract_strided_slice %37 {offsets = [0, 256], sizes = [256, 128], strides = [1, 1]} : vector<256x384xf32> to vector<256x128xf32>
    %85 = arith.addf %83, %84 : vector<256x128xf32>
    %c0_37 = arith.constant 0 : index
    %c0_38 = arith.constant 0 : index
    %c0_39 = arith.constant 0 : index
    %c0_40 = arith.constant 0 : index
    %86 = vector.load %arg5[%c0_37, %c0_38, %c0_39, %c0_40] : memref<1x16x16x128xf32, #tpu.memory_space<vmem>>, vector<1x16x16x128xf32>
    %87 = vector.shape_cast %86 : vector<1x16x16x128xf32> to vector<16x16x128xf32>
    %88 = vector.shape_cast %87 : vector<16x16x128xf32> to vector<256x128xf32>
    %89 = arith.addf %85, %88 : vector<256x128xf32>
    %90 = math.tanh %89 : vector<256x128xf32>
    %91 = arith.subf %90, %32 : vector<256x128xf32>
    %92 = arith.mulf %53, %91 : vector<256x128xf32>
    %93 = arith.addf %32, %92 : vector<256x128xf32>
    %94 = vector.shape_cast %93 : vector<256x128xf32> to vector<16x16x128xf32>
    %c0_41 = arith.constant 0 : index
    %c0_42 = arith.constant 0 : index
    %c0_43 = arith.constant 0 : index
    %c0_44 = arith.constant 0 : index
    %95 = vector.load %arg10[%c0_41, %c0_42, %c0_43, %c0_44] : memref<1x16x16x128xf32, #tpu.memory_space<vmem>>, vector<1x16x16x128xf32>
    %96 = vector.shape_cast %95 : vector<1x16x16x128xf32> to vector<16x16x128xf32>
    %97 = vector.shape_cast %94 : vector<16x16x128xf32> to vector<1x16x16x128xf32>
    tpu.vector_store %arg10[%c0_41, %c0_42, %c0_43, %c0_44], %97 {strides = array<i32>} : memref<1x16x16x128xf32, #tpu.memory_space<vmem>>, vector<1x16x16x128xf32>,
    return
  }
  func.func @transform_0(%arg0: i32) -> (i32, i32, i32, i32) {
    %c0_i32 = arith.constant 0 : i32
    %c0_i32_0 = arith.constant 0 : i32
    %c0_i32_1 = arith.constant 0 : i32
    %c0_i32_2 = arith.constant 0 : i32
    return %arg0, %c0_i32, %c0_i32_0, %c0_i32_1 : i32, i32, i32, i32
  }
  func.func @transform_1(%arg0: i32) -> (i32, i32, i32, i32) {
    %c0_i32 = arith.constant 0 : i32
    %c0_i32_0 = arith.constant 0 : i32
    %c0_i32_1 = arith.constant 0 : i32
    %c0_i32_2 = arith.constant 0 : i32
    return %arg0, %c0_i32, %c0_i32_0, %c0_i32_1 : i32, i32, i32, i32
  }
  func.func @transform_2(%arg0: i32) -> (i32, i32, i32, i32) {
    %c0_i32 = arith.constant 0 : i32
    %c0_i32_0 = arith.constant 0 : i32
    %c0_i32_1 = arith.constant 0 : i32
    %c0_i32_2 = arith.constant 0 : i32
    return %arg0, %c0_i32, %c0_i32_0, %c0_i32_1 : i32, i32, i32, i32
  }
  func.func @transform_3(%arg0: i32) -> (i32, i32, i32, i32) {
    %c0_i32 = arith.constant 0 : i32
    %c0_i32_0 = arith.constant 0 : i32
    %c0_i32_1 = arith.constant 0 : i32
    %c0_i32_2 = arith.constant 0 : i32
    return %arg0, %c0_i32, %c0_i32_0, %c0_i32_1 : i32, i32, i32, i32
  }
  func.func @transform_4(%arg0: i32) -> (i32, i32, i32, i32) {
    %c0_i32 = arith.constant 0 : i32
    %c0_i32_0 = arith.constant 0 : i32
    %c0_i32_1 = arith.constant 0 : i32
    %c0_i32_2 = arith.constant 0 : i32
    return %arg0, %c0_i32, %c0_i32_0, %c0_i32_1 : i32, i32, i32, i32
  }
  func.func @transform_5(%arg0: i32) -> (i32, i32) {
    %c0_i32 = arith.constant 0 : i32
    %c0_i32_0 = arith.constant 0 : i32
    %c0_i32_1 = arith.constant 0 : i32
    return %c0_i32, %c0_i32_0 : i32, i32
  }
  func.func @transform_6(%arg0: i32) -> (i32, i32) {
    %c0_i32 = arith.constant 0 : i32
    %c0_i32_0 = arith.constant 0 : i32
    %c0_i32_1 = arith.constant 0 : i32
    return %c0_i32, %c0_i32_0 : i32, i32
  }
  func.func @transform_7(%arg0: i32) -> (i32, i32) {
    %c0_i32 = arith.constant 0 : i32
    %c0_i32_0 = arith.constant 0 : i32
    %c0_i32_1 = arith.constant 0 : i32
    return %c0_i32, %c0_i32_0 : i32, i32
  }
  func.func @transform_8(%arg0: i32) -> (i32, i32) {
    %c0_i32 = arith.constant 0 : i32
    %c0_i32_0 = arith.constant 0 : i32
    %c0_i32_1 = arith.constant 0 : i32
    return %c0_i32, %c0_i32_0 : i32, i32
  }
  func.func @transform_9(%arg0: i32) -> (i32, i32, i32, i32) {
    %c0_i32 = arith.constant 0 : i32
    %c0_i32_0 = arith.constant 0 : i32
    %c0_i32_1 = arith.constant 0 : i32
    %c0_i32_2 = arith.constant 0 : i32
    return %arg0, %c0_i32, %c0_i32_0, %c0_i32_1 : i32, i32, i32, i32
  }
}

</mosaic_0001>

<llo_original>
// kernel: conv_gru.1
$region0: #{conv_gru.1}
  #allocation0 [shape = 'u32[]', space=smem, size = 0x4, offset = 0x4, fixed_abs, tag = 'smem constant byte address 0x4 - core index']
  #allocation1 [shape = 'u32[144,128]{1,0:T(1,128)}', space=vmem, size = 0x12000, scoped, tag = 'internal scratch']
  %s0 = inlined_call_operand.vmem [shape: f32[2,16,16,128], index: 0, kind: input, shape index: {}]
  %s1 = inlined_call_operand.vmem [shape: f32[2,16,16,128], index: 1, kind: input, shape index: {}]
  %s2 = inlined_call_operand.vmem [shape: f32[2,16,16,128], index: 2, kind: input, shape index: {}]
  %s3 = inlined_call_operand.vmem [shape: f32[2,16,16,128], index: 3, kind: input, shape index: {}]
  %s4 = inlined_call_operand.vmem [shape: f32[2,16,16,128], index: 4, kind: input, shape index: {}]
  %s5 = inlined_call_operand.vmem [shape: bf16[1152,256], index: 5, kind: input, shape index: {}]
  %s6 = inlined_call_operand.vmem [shape: bf16[1152,384], index: 6, kind: input, shape index: {}]
  %s7 = inlined_call_operand.vmem [shape: bf16[1152,128], index: 7, kind: input, shape index: {}]
  %s8 = inlined_call_operand.vmem [shape: f32[1,384], index: 8, kind: input, shape index: {}]
  %s9 = inlined_call_operand.hbm [shape: f32[2,16,16,128], index: 9, kind: output, shape index: {}]
  %s10 = sld [smem:[#allocation0]]
  $region69: #{conv_gru.1} parent=0
    _
  %s12 = ssub.s32 1, %s10
  %s13 = scalar_select 0, %s12, %s10
  $region1: #{conv_gru.1} parent=0
    #allocation2 [shape = 'u8[262144]{0}', space=vmem, size = 0x40000, scoped, tag = 'output window, operand 0']
    #allocation3 [shape = 's32[2]{0}', space=sflag, size = 0x8, scoped, tag = 'scoped memory for conv_gru.1']
    %14 = vsyncpa [#allocation3], 0
    %s15 = scalar_lea.sflag [#allocation3], 1
    %16 = vsyncpa %s15, 0
    loop: start=0, step=1, limit=4
    $region2: #{conv_gru.1} parent=1 // loop_pre_header
      _
    $region3: #{conv_gru.1} parent=1 // loop_header
      %s18 = sphi 0, %s22
      %p19 = scmp.ge.s32.totalorder %s18, 4
      %s28 = sphi 0, %s30
      %s31 = sphi 0, %s28
      %s32 = sphi 0, %s31
      %s48 = sphi 0, %s32
      %s54 = sphi 0, %s56
      %s57 = sphi 0, %s54
      %s58 = sphi 0, %s57
      %s74 = sphi 0, %s58
      %s80 = sphi 0, %s82
      %s83 = sphi 0, %s80
      %s84 = sphi 0, %s83
      %s100 = sphi 0, %s84
      %s106 = sphi 0, %s108
      %s109 = sphi 0, %s106
      %s110 = sphi 0, %s109
      %s126 = sphi 0, %s110
      %s132 = sphi 0, %s134
      %s135 = sphi 0, %s132
      %s136 = sphi 0, %s135
      %s152 = sphi 0, %s136
      %s156 = sphi 0, %s156
      %s158 = sphi 0, %s156
      %s159 = sphi 0, %s158
      %s173 = sphi 0, %s159
      %s177 = sphi 0, %s177
      %s179 = sphi 0, %s177
      %s180 = sphi 0, %s179
      %s194 = sphi 0, %s180
      %s198 = sphi 0, %s198
      %s200 = sphi 0, %s198
      %s201 = sphi 0, %s200
      %s215 = sphi 0, %s201
      %s219 = sphi 0, %s219
      %s221 = sphi 0, %s219
      %s222 = sphi 0, %s221
      %s236 = sphi 0, %s222
      %s242 = sphi 0, %s244
      %s245 = sphi 0, %s242
      %s246 = sphi 0, %s245
      %s262 = sphi 0, %s246
    $region4: #{conv_gru.1} parent=1 // loop_header_branch
      %21 = sbr.rel (%p19) target = $region8
    $region5: #{conv_gru.1} parent=1 // loop_body
      %s23 = ssub.s32 %s18, 1
      %s24 = ssub.s32 %s18, 2
      %s25 = sadd.s32 %s18, 1
      %s26 = ssub.s32 %s18, %s25
      %p27 = scmp.eq.s32.totalorder %s26, 0
      %s29 = sadd.s32 %s28, 1
      %s30 = scalar_select %p27, %s28, %s29
      %p33 = pneg %p27
      %p34 = scmp.eq.s32.totalorder %s18, 1
      %p35 = por %p33, %p34
      %p36 = scmp.ne.s32.totalorder %s28, %s31
      %p37 = scmp.eq.s32.totalorder %s18, 0
      %p38 = por %p36, %p37
      %p39 = scmp.ne.s32.totalorder %s28, %s31
      %p40 = scmp.eq.s32.totalorder %s23, 1
      %p41 = por %p39, %p40
      %p42 = scmp.ne.s32.totalorder %s31, %s32
      %p43 = scmp.eq.s32.totalorder %s23, 0
      %p44 = por %p42, %p43
      %p45 = scmp.ne.s32.totalorder %s31, %s32
      %p46 = scmp.eq.s32.totalorder %s24, 1
      %p47 = por %p45, %p46
      %p49 = scmp.ne.s32.totalorder %s32, %s48
      %p50 = scmp.eq.s32.totalorder %s24, 0
      %p51 = por %p49, %p50
      %s52 = ssub.s32 %s18, %s25
      %p53 = scmp.eq.s32.totalorder %s52, 0
      %s55 = sadd.s32 %s54, 1
      %s56 = scalar_select %p53, %s54, %s55
      %p59 = pneg %p53
      %p60 = scmp.eq.s32.totalorder %s18, 1
      %p61 = por %p59, %p60
      %p62 = scmp.ne.s32.totalorder %s54, %s57
      %p63 = scmp.eq.s32.totalorder %s18, 0
      %p64 = por %p62, %p63
      %p65 = scmp.ne.s32.totalorder %s54, %s57
      %p66 = scmp.eq.s32.totalorder %s23, 1
      %p67 = por %p65, %p66
      %p68 = scmp.ne.s32.totalorder %s57, %s58
      %p69 = scmp.eq.s32.totalorder %s23, 0
      %p70 = por %p68, %p69
      %p71 = scmp.ne.s32.totalorder %s57, %s58
      %p72 = scmp.eq.s32.totalorder %s24, 1
      %p73 = por %p71, %p72
      %p75 = scmp.ne.s32.totalorder %s58, %s74
      %p76 = scmp.eq.s32.totalorder %s24, 0
      %p77 = por %p75, %p76
      %s78 = ssub.s32 %s18, %s25
      %p79 = scmp.eq.s32.totalorder %s78, 0
      %s81 = sadd.s32 %s80, 1
      %s82 = scalar_select %p79, %s80, %s81
      %p85 = pneg %p79
      %p86 = scmp.eq.s32.totalorder %s18, 1
      %p87 = por %p85, %p86
      %p88 = scmp.ne.s32.totalorder %s80, %s83
      %p89 = scmp.eq.s32.totalorder %s18, 0
      %p90 = por %p88, %p89
      %p91 = scmp.ne.s32.totalorder %s80, %s83
      %p92 = scmp.eq.s32.totalorder %s23, 1
      %p93 = por %p91, %p92
      %p94 = scmp.ne.s32.totalorder %s83, %s84
      %p95 = scmp.eq.s32.totalorder %s23, 0
      %p96 = por %p94, %p95
      %p97 = scmp.ne.s32.totalorder %s83, %s84
      %p98 = scmp.eq.s32.totalorder %s24, 1
      %p99 = por %p97, %p98
      %p101 = scmp.ne.s32.totalorder %s84, %s100
      %p102 = scmp.eq.s32.totalorder %s24, 0
      %p103 = por %p101, %p102
      %s104 = ssub.s32 %s18, %s25
      %p105 = scmp.eq.s32.totalorder %s104, 0
      %s107 = sadd.s32 %s106, 1
      %s108 = scalar_select %p105, %s106, %s107
      %p111 = pneg %p105
      %p112 = scmp.eq.s32.totalorder %s18, 1
      %p113 = por %p111, %p112
      %p114 = scmp.ne.s32.totalorder %s106, %s109
      %p115 = scmp.eq.s32.totalorder %s18, 0
      %p116 = por %p114, %p115
      %p117 = scmp.ne.s32.totalorder %s106, %s109
      %p118 = scmp.eq.s32.totalorder %s23, 1
      %p119 = por %p117, %p118
      %p120 = scmp.ne.s32.totalorder %s109, %s110
      %p121 = scmp.eq.s32.totalorder %s23, 0
      %p122 = por %p120, %p121
      %p123 = scmp.ne.s32.totalorder %s109, %s110
      %p124 = scmp.eq.s32.totalorder %s24, 1
      %p125 = por %p123, %p124
      %p127 = scmp.ne.s32.totalorder %s110, %s126
      %p128 = scmp.eq.s32.totalorder %s24, 0
      %p129 = por %p127, %p128
      %s130 = ssub.s32 %s18, %s25
      %p131 = scmp.eq.s32.totalorder %s130, 0
      %s133 = sadd.s32 %s132, 1
      %s134 = scalar_select %p131, %s132, %s133
      %p137 = pneg %p131
      %p138 = scmp.eq.s32.totalorder %s18, 1
      %p139 = por %p137, %p138
      %p140 = scmp.ne.s32.totalorder %s132, %s135
      %p141 = scmp.eq.s32.totalorder %s18, 0
      %p142 = por %p140, %p141
      %p143 = scmp.ne.s32.totalorder %s132, %s135
      %p144 = scmp.eq.s32.totalorder %s23, 1
      %p145 = por %p143, %p144
      %p146 = scmp.ne.s32.totalorder %s135, %s136
      %p147 = scmp.eq.s32.totalorder %s23, 0
      %p148 = por %p146, %p147
      %p149 = scmp.ne.s32.totalorder %s135, %s136
      %p150 = scmp.eq.s32.totalorder %s24, 1
      %p151 = por %p149, %p150
      %p153 = scmp.ne.s32.totalorder %s136, %s152
      %p154 = scmp.eq.s32.totalorder %s24, 0
      %p155 = por %p153, %p154
      %s157 = sadd.s32 %s156, 1
      %p160 = scmp.eq.s32.totalorder %s18, 1
      %p161 = scmp.ne.s32.totalorder %s156, %s158
      %p162 = scmp.eq.s32.totalorder %s18, 0
      %p163 = por %p161, %p162
      %p164 = scmp.ne.s32.totalorder %s156, %s158
      %p165 = scmp.eq.s32.totalorder %s23, 1
      %p166 = por %p164, %p165
      %p167 = scmp.ne.s32.totalorder %s158, %s159
      %p168 = scmp.eq.s32.totalorder %s23, 0
      %p169 = por %p167, %p168
      %p170 = scmp.ne.s32.totalorder %s158, %s159
      %p171 = scmp.eq.s32.totalorder %s24, 1
      %p172 = por %p170, %p171
      %p174 = scmp.ne.s32.totalorder %s159, %s173
      %p175 = scmp.eq.s32.totalorder %s24, 0
      %p176 = por %p174, %p175
      %s178 = sadd.s32 %s177, 1
      %p181 = scmp.eq.s32.totalorder %s18, 1
      %p182 = scmp.ne.s32.totalorder %s177, %s179
      %p183 = scmp.eq.s32.totalorder %s18, 0
      %p184 = por %p182, %p183
      %p185 = scmp.ne.s32.totalorder %s177, %s179
      %p186 = scmp.eq.s32.totalorder %s23, 1
      %p187 = por %p185, %p186
      %p188 = scmp.ne.s32.totalorder %s179, %s180
      %p189 = scmp.eq.s32.totalorder %s23, 0
      %p190 = por %p188, %p189
      %p191 = scmp.ne.s32.totalorder %s179, %s180
      %p192 = scmp.eq.s32.totalorder %s24, 1
      %p193 = por %p191, %p192
      %p195 = scmp.ne.s32.totalorder %s180, %s194
      %p196 = scmp.eq.s32.totalorder %s24, 0
      %p197 = por %p195, %p196
      %s199 = sadd.s32 %s198, 1
      %p202 = scmp.eq.s32.totalorder %s18, 1
      %p203 = scmp.ne.s32.totalorder %s198, %s200
      %p204 = scmp.eq.s32.totalorder %s18, 0
      %p205 = por %p203, %p204
      %p206 = scmp.ne.s32.totalorder %s198, %s200
      %p207 = scmp.eq.s32.totalorder %s23, 1
      %p208 = por %p206, %p207
      %p209 = scmp.ne.s32.totalorder %s200, %s201
      %p210 = scmp.eq.s32.totalorder %s23, 0
      %p211 = por %p209, %p210
      %p212 = scmp.ne.s32.totalorder %s200, %s201
      %p213 = scmp.eq.s32.totalorder %s24, 1
      %p214 = por %p212, %p213
      %p216 = scmp.ne.s32.totalorder %s201, %s215
      %p217 = scmp.eq.s32.totalorder %s24, 0
      %p218 = por %p216, %p217
      %s220 = sadd.s32 %s219, 1
      %p223 = scmp.eq.s32.totalorder %s18, 1
      %p224 = scmp.ne.s32.totalorder %s219, %s221
      %p225 = scmp.eq.s32.totalorder %s18, 0
      %p226 = por %p224, %p225
      %p227 = scmp.ne.s32.totalorder %s219, %s221
      %p228 = scmp.eq.s32.totalorder %s23, 1
      %p229 = por %p227, %p228
      %p230 = scmp.ne.s32.totalorder %s221, %s222
      %p231 = scmp.eq.s32.totalorder %s23, 0
      %p232 = por %p230, %p231
      %p233 = scmp.ne.s32.totalorder %s221, %s222
      %p234 = scmp.eq.s32.totalorder %s24, 1
      %p235 = por %p233, %p234
      %p237 = scmp.ne.s32.totalorder %s222, %s236
      %p238 = scmp.eq.s32.totalorder %s24, 0
      %p239 = por %p237, %p238
      %s240 = ssub.s32 %s18, %s25
      %p241 = scmp.eq.s32.totalorder %s240, 0
      %s243 = sadd.s32 %s242, 1
      %s244 = scalar_select %p241, %s242, %s243
      %p247 = pneg %p241
      %p248 = scmp.eq.s32.totalorder %s18, 1
      %p249 = por %p247, %p248
      %p250 = scmp.ne.s32.totalorder %s242, %s245
      %p251 = scmp.eq.s32.totalorder %s18, 0
      %p252 = por %p250, %p251
      %p253 = scmp.ne.s32.totalorder %s242, %s245
      %p254 = scmp.eq.s32.totalorder %s23, 1
      %p255 = por %p253, %p254
      %p256 = scmp.ne.s32.totalorder %s245, %s246
      %p257 = scmp.eq.s32.totalorder %s23, 0
      %p258 = por %p256, %p257
      %p259 = scmp.ne.s32.totalorder %s245, %s246
      %p260 = scmp.eq.s32.totalorder %s24, 1
      %p261 = por %p259, %p260
      %p263 = scmp.ne.s32.totalorder %s246, %s262
      %p264 = scmp.eq.s32.totalorder %s24, 0
      %p265 = por %p263, %p264
      %p266 = scmp.le.s32.totalorder 1, %s18
      %p267 = scmp.lt.s32.totalorder %s18, 3
      %p268 = pnand %p266, %p267
      %p269 = pneg %p268
      // Predicated region
      $region9: #{conv_gru.1} parent=5 // pred_check
        _
      $region10: #{conv_gru.1} parent=5 // pred_check_branch
        %271 = sbr.rel (%p268) target = $region12
      $region11: #{conv_gru.1} parent=5 // pred_region
        %s272 = ssub.s32 %s18, 1
        // Predicated region
        $region13: #{conv_gru.1} parent=11 // pred_check
          %p273 = pneg %p169
        $region14: #{conv_gru.1} parent=11 // pred_check_branch
          %275 = sbr.rel (%p273) target = $region16
        $region15: #{conv_gru.1} parent=11 // pred_region
          _
        $region16: #{conv_gru.1} parent=11 // pred_fallthru
          _
        // Predicated region
        $region17: #{conv_gru.1} parent=11 // pred_check
          %p276 = pneg %p190
        $region18: #{conv_gru.1} parent=11 // pred_check_branch
          %278 = sbr.rel (%p276) target = $region20
        $region19: #{conv_gru.1} parent=11 // pred_region
          _
        $region20: #{conv_gru.1} parent=11 // pred_fallthru
          _
        // Predicated region
        $region21: #{conv_gru.1} parent=11 // pred_check
          %p279 = pneg %p211
        $region22: #{conv_gru.1} parent=11 // pred_check_branch
          %281 = sbr.rel (%p279) target = $region24
        $region23: #{conv_gru.1} parent=11 // pred_region
          _
        $region24: #{conv_gru.1} parent=11 // pred_fallthru
          _
        // Predicated region
        $region25: #{conv_gru.1} parent=11 // pred_check
          %p282 = pneg %p232
        $region26: #{conv_gru.1} parent=11 // pred_check_branch
          %284 = sbr.rel (%p282) target = $region28
        $region27: #{conv_gru.1} parent=11 // pred_region
          _
        $region28: #{conv_gru.1} parent=11 // pred_fallthru
          _
      $region12: #{conv_gru.1} parent=5 // pred_fallthru
        _
      %p285 = scmp.lt.s32.totalorder %s18, 2
      // Predicated region
      $region29: #{conv_gru.1} parent=5 // pred_check
        %p286 = pneg %p285
      $region30: #{conv_gru.1} parent=5 // pred_check_branch
        %288 = sbr.rel (%p286) target = $region32
      $region31: #{conv_gru.1} parent=5 // pred_region
        // Predicated region
        $region33: #{conv_gru.1} parent=31 // pred_check
          %p289 = pneg %p38
        $region34: #{conv_gru.1} parent=31 // pred_check_branch
          %291 = sbr.rel (%p289) target = $region36
        $region35: #{conv_gru.1} parent=31 // pred_region
          %p292 = scmp.lt.s32.totalorder %s18, 1
          %s293 = scalar_select %p292, %s18, 1
          %s294 = smul.addr %s293, 32
          %s295 = smul.addr %s294, 8
          %s296 = scalar_lea.vmem %s0, %s295
        $region36: #{conv_gru.1} parent=31 // pred_fallthru
          _
        // Predicated region
        $region37: #{conv_gru.1} parent=31 // pred_check
          %p297 = pneg %p64
        $region38: #{conv_gru.1} parent=31 // pred_check_branch
          %299 = sbr.rel (%p297) target = $region40
        $region39: #{conv_gru.1} parent=31 // pred_region
          %p300 = scmp.lt.s32.totalorder %s18, 1
          %s301 = scalar_select %p300, %s18, 1
          %s302 = smul.addr %s301, 32
          %s303 = smul.addr %s302, 8
          %s304 = scalar_lea.vmem %s1, %s303
        $region40: #{conv_gru.1} parent=31 // pred_fallthru
          _
        // Predicated region
        $region41: #{conv_gru.1} parent=31 // pred_check
          %p305 = pneg %p90
        $region42: #{conv_gru.1} parent=31 // pred_check_branch
          %307 = sbr.rel (%p305) target = $region44
        $region43: #{conv_gru.1} parent=31 // pred_region
          %p308 = scmp.lt.s32.totalorder %s18, 1
          %s309 = scalar_select %p308, %s18, 1
          %s310 = smul.addr %s309, 32
          %s311 = smul.addr %s310, 8
          %s312 = scalar_lea.vmem %s2, %s311
        $region44: #{conv_gru.1} parent=31 // pred_fallthru
          _
        // Predicated region
        $region45: #{conv_gru.1} parent=31 // pred_check
          %p313 = pneg %p116
        $region46: #{conv_gru.1} parent=31 // pred_check_branch
          %315 = sbr.rel (%p313) target = $region48
        $region47: #{conv_gru.1} parent=31 // pred_region
          %p316 = scmp.lt.s32.totalorder %s18, 1
          %s317 = scalar_select %p316, %s18, 1
          %s318 = smul.addr %s317, 32
          %s319 = smul.addr %s318, 8
          %s320 = scalar_lea.vmem %s3, %s319
        $region48: #{conv_gru.1} parent=31 // pred_fallthru
          _
        // Predicated region
        $region49: #{conv_gru.1} parent=31 // pred_check
          %p321 = pneg %p142
        $region50: #{conv_gru.1} parent=31 // pred_check_branch
          %323 = sbr.rel (%p321) target = $region52
        $region51: #{conv_gru.1} parent=31 // pred_region
          %p324 = scmp.lt.s32.totalorder %s18, 1
          %s325 = scalar_select %p324, %s18, 1
          %s326 = smul.addr %s325, 32
          %s327 = smul.addr %s326, 8
          %s328 = scalar_lea.vmem %s4, %s327
        $region52: #{conv_gru.1} parent=31 // pred_fallthru
          _
      $region32: #{conv_gru.1} parent=5 // pred_fallthru
        _
      %p329 = scmp.le.s32.totalorder 1, %s18
      %p330 = scmp.lt.s32.totalorder %s18, 3
      %p331 = pnand %p329, %p330
      %p332 = pneg %p331
      // Predicated region
      $region53: #{conv_gru.1} parent=5 // pred_check
        _
      $region54: #{conv_gru.1} parent=5 // pred_check_branch
        %334 = sbr.rel (%p331) target = $region56
      $region55: #{conv_gru.1} parent=5 // pred_region
        %s335 = ssub.s32 %s18, 1
        %p336 = scmp.lt.s32.totalorder %s23, 1
        %s337 = scalar_select %p336, %s23, 1
        %s338 = smul.addr %s337, 32
        %s339 = smul.addr %s338, 8
        %s340 = scalar_lea.vmem %s0, %s339
        %p341 = pneg %p44
        %p342 = pneg %p41
        %p343 = scmp.lt.s32.totalorder %s23, 1
        %s344 = scalar_select %p343, %s23, 1
        %s345 = smul.addr %s344, 32
        %s346 = smul.addr %s345, 8
        %s347 = scalar_lea.vmem %s1, %s346
        %p348 = pneg %p70
        %p349 = pneg %p67
        %p350 = scmp.lt.s32.totalorder %s23, 1
        %s351 = scalar_select %p350, %s23, 1
        %s352 = smul.addr %s351, 32
        %s353 = smul.addr %s352, 8
        %s354 = scalar_lea.vmem %s2, %s353
        %p355 = pneg %p96
        %p356 = pneg %p93
        %p357 = scmp.lt.s32.totalorder %s23, 1
        %s358 = scalar_select %p357, %s23, 1
        %s359 = smul.addr %s358, 32
        %s360 = smul.addr %s359, 8
        %s361 = scalar_lea.vmem %s3, %s360
        %p362 = pneg %p122
        %p363 = pneg %p119
        %p364 = scmp.lt.s32.totalorder %s23, 1
        %s365 = scalar_select %p364, %s23, 1
        %s366 = smul.addr %s365, 32
        %s367 = smul.addr %s366, 8
        %s368 = scalar_lea.vmem %s4, %s367
        %p369 = pneg %p148
        %p370 = pneg %p145
        %p371 = pneg %p169
        %p372 = pneg %p166
        %p373 = pneg %p190
        %p374 = pneg %p187
        %p375 = pneg %p211
        %p376 = pneg %p208
        %p377 = pneg %p232
        %p378 = pneg %p229
        %p379 = pneg %p258
        %p380 = pneg %p255
        %s381 = sand.u32 %s245, 1
        %s382 = scalar_lea.sflag [#allocation3], %s381
        %s383 = sand.u32 %s245, 1
        %s384 = smul.addr %s383, 256
        %s385 = scalar_lea.vmem [#allocation2], %s384
        %p386 = scmp.lt.s32.totalorder %s23, 1
        %s387 = scalar_select %p386, %s23, 1
        %s388 = smul.addr %s387, 32
        %s389 = smul.addr %s388, 8
        %s390 = scalar_lea.vmem %s0, %s389
        %p391 = scmp.lt.s32.totalorder %s23, 1
        %s392 = scalar_select %p391, %s23, 1
        %s393 = smul.addr %s392, 32
        %s394 = smul.addr %s393, 8
        %s395 = scalar_lea.vmem %s1, %s394
        %p396 = scmp.lt.s32.totalorder %s23, 1
        %s397 = scalar_select %p396, %s23, 1
        %s398 = smul.addr %s397, 32
        %s399 = smul.addr %s398, 8
        %s400 = scalar_lea.vmem %s2, %s399
        %p401 = scmp.lt.s32.totalorder %s23, 1
        %s402 = scalar_select %p401, %s23, 1
        %s403 = smul.addr %s402, 32
        %s404 = smul.addr %s403, 8
        %s405 = scalar_lea.vmem %s3, %s404
        %p406 = scmp.lt.s32.totalorder %s23, 1
        %s407 = scalar_select %p406, %s23, 1
        %s408 = smul.addr %s407, 32
        %s409 = smul.addr %s408, 8
        %s410 = scalar_lea.vmem %s4, %s409
        %v412 = vld [vmem:[%s390] sm:$0xff]
        %v413 = vld [vmem:[%s390 + $0x8] sm:$0xff]
        %v414 = vld [vmem:[%s390 + $0x10] sm:$0xff]
        %v415 = vld [vmem:[%s390 + $0x18] sm:$0xff]
        %v416 = vld [vmem:[%s390 + $0x20] sm:$0xff]
        %v417 = vld [vmem:[%s390 + $0x28] sm:$0xff]
        %v418 = vld [vmem:[%s390 + $0x30] sm:$0xff]
        %v419 = vld [vmem:[%s390 + $0x38] sm:$0xff]
        %v420 = vld [vmem:[%s390 + $0x40] sm:$0xff]
        %v421 = vld [vmem:[%s390 + $0x48] sm:$0xff]
        %v422 = vld [vmem:[%s390 + $0x50] sm:$0xff]
        %v423 = vld [vmem:[%s390 + $0x58] sm:$0xff]
        %v424 = vld [vmem:[%s390 + $0x60] sm:$0xff]
        %v425 = vld [vmem:[%s390 + $0x68] sm:$0xff]
        %v426 = vld [vmem:[%s390 + $0x70] sm:$0xff]
        %v427 = vld [vmem:[%s390 + $0x78] sm:$0xff]
        %v428 = vld [vmem:[%s390 + $0x80] sm:$0xff]
        %v429 = vld [vmem:[%s390 + $0x88] sm:$0xff]
        %v430 = vld [vmem:[%s390 + $0x90] sm:$0xff]
        %v431 = vld [vmem:[%s390 + $0x98] sm:$0xff]
        %v432 = vld [vmem:[%s390 + $0xa0] sm:$0xff]
        %v433 = vld [vmem:[%s390 + $0xa8] sm:$0xff]
        %v434 = vld [vmem:[%s390 + $0xb0] sm:$0xff]
        %v435 = vld [vmem:[%s390 + $0xb8] sm:$0xff]
        %v436 = vld [vmem:[%s390 + $0xc0] sm:$0xff]
        %v437 = vld [vmem:[%s390 + $0xc8] sm:$0xff]
        %v438 = vld [vmem:[%s390 + $0xd0] sm:$0xff]
        %v439 = vld [vmem:[%s390 + $0xd8] sm:$0xff]
        %v440 = vld [vmem:[%s390 + $0xe0] sm:$0xff]
        %v441 = vld [vmem:[%s390 + $0xe8] sm:$0xff]
        %v442 = vld [vmem:[%s390 + $0xf0] sm:$0xff]
        %v443 = vld [vmem:[%s390 + $0xf8] sm:$0xff]
        %v444 = vpack.c.bf16 %v413, %v412
        %v445 = vpack.c.bf16 %v415, %v414
        %v446 = vpack.c.bf16 %v417, %v416
        %v447 = vpack.c.bf16 %v419, %v418
        %v448 = vpack.c.bf16 %v421, %v420
        %v449 = vpack.c.bf16 %v423, %v422
        %v450 = vpack.c.bf16 %v425, %v424
        %v451 = vpack.c.bf16 %v427, %v426
        %v452 = vpack.c.bf16 %v429, %v428
        %v453 = vpack.c.bf16 %v431, %v430
        %v454 = vpack.c.bf16 %v433, %v432
        %v455 = vpack.c.bf16 %v435, %v434
        %v456 = vpack.c.bf16 %v437, %v436
        %v457 = vpack.c.bf16 %v439, %v438
        %v458 = vpack.c.bf16 %v441, %v440
        %v459 = vpack.c.bf16 %v443, %v442
        %v460 = vld [vmem:[%s395] sm:$0xff]
        %v461 = vld [vmem:[%s395 + $0x8] sm:$0xff]
        %v462 = vld [vmem:[%s395 + $0x10] sm:$0xff]
        %v463 = vld [vmem:[%s395 + $0x18] sm:$0xff]
        %v464 = vld [vmem:[%s395 + $0x20] sm:$0xff]
        %v465 = vld [vmem:[%s395 + $0x28] sm:$0xff]
        %v466 = vld [vmem:[%s395 + $0x30] sm:$0xff]
        %v467 = vld [vmem:[%s395 + $0x38] sm:$0xff]
        %v468 = vld [vmem:[%s395 + $0x40] sm:$0xff]
        %v469 = vld [vmem:[%s395 + $0x48] sm:$0xff]
        %v470 = vld [vmem:[%s395 + $0x50] sm:$0xff]
        %v471 = vld [vmem:[%s395 + $0x58] sm:$0xff]
        %v472 = vld [vmem:[%s395 + $0x60] sm:$0xff]
        %v473 = vld [vmem:[%s395 + $0x68] sm:$0xff]
        %v474 = vld [vmem:[%s395 + $0x70] sm:$0xff]
        %v475 = vld [vmem:[%s395 + $0x78] sm:$0xff]
        %v476 = vld [vmem:[%s395 + $0x80] sm:$0xff]
        %v477 = vld [vmem:[%s395 + $0x88] sm:$0xff]
        %v478 = vld [vmem:[%s395 + $0x90] sm:$0xff]
        %v479 = vld [vmem:[%s395 + $0x98] sm:$0xff]
        %v480 = vld [vmem:[%s395 + $0xa0] sm:$0xff]
        %v481 = vld [vmem:[%s395 + $0xa8] sm:$0xff]
        %v482 = vld [vmem:[%s395 + $0xb0] sm:$0xff]
        %v483 = vld [vmem:[%s395 + $0xb8] sm:$0xff]
        %v484 = vld [vmem:[%s395 + $0xc0] sm:$0xff]
        %v485 = vld [vmem:[%s395 + $0xc8] sm:$0xff]
        %v486 = vld [vmem:[%s395 + $0xd0] sm:$0xff]
        %v487 = vld [vmem:[%s395 + $0xd8] sm:$0xff]
        %v488 = vld [vmem:[%s395 + $0xe0] sm:$0xff]
        %v489 = vld [vmem:[%s395 + $0xe8] sm:$0xff]
        %v490 = vld [vmem:[%s395 + $0xf0] sm:$0xff]
        %v491 = vld [vmem:[%s395 + $0xf8] sm:$0xff]
        %v492 = vpack.c.bf16 %v461, %v460
        %v493 = vpack.c.bf16 %v463, %v462
        %v494 = vpack.c.bf16 %v465, %v464
        %v495 = vpack.c.bf16 %v467, %v466
        %v496 = vpack.c.bf16 %v469, %v468
        %v497 = vpack.c.bf16 %v471, %v470
        %v498 = vpack.c.bf16 %v473, %v472
        %v499 = vpack.c.bf16 %v475, %v474
        %v500 = vpack.c.bf16 %v477, %v476
        %v501 = vpack.c.bf16 %v479, %v478
        %v502 = vpack.c.bf16 %v481, %v480
        %v503 = vpack.c.bf16 %v483, %v482
        %v504 = vpack.c.bf16 %v485, %v484
        %v505 = vpack.c.bf16 %v487, %v486
        %v506 = vpack.c.bf16 %v489, %v488
        %v507 = vpack.c.bf16 %v491, %v490
        %v509 = vshrl.u32 %v492, 16
        %v511 = vrot.slane %v509, 7
        %v512 = vshll.u32 %v492, 16
        %v514 = vor.u32 %v511, %v512
        %v516 = vshrl.u32 %v493, 16
        %v518 = vrot.slane %v516, 7
        %v519 = vshll.u32 %v493, 16
        %v521 = vor.u32 %v518, %v519
        %v523 = vshrl.u32 %v494, 16
        %v525 = vrot.slane %v523, 7
        %v526 = vshll.u32 %v494, 16
        %v528 = vor.u32 %v525, %v526
        %v530 = vshrl.u32 %v495, 16
        %v532 = vrot.slane %v530, 7
        %v533 = vshll.u32 %v495, 16
        %v535 = vor.u32 %v532, %v533
        %v537 = vshrl.u32 %v496, 16
        %v539 = vrot.slane %v537, 7
        %v540 = vshll.u32 %v496, 16
        %v542 = vor.u32 %v539, %v540
        %v544 = vshrl.u32 %v497, 16
        %v546 = vrot.slane %v544, 7
        %v547 = vshll.u32 %v497, 16
        %v549 = vor.u32 %v546, %v547
        %v551 = vshrl.u32 %v498, 16
        %v553 = vrot.slane %v551, 7
        %v554 = vshll.u32 %v498, 16
        %v556 = vor.u32 %v553, %v554
        %v558 = vshrl.u32 %v499, 16
        %v560 = vrot.slane %v558, 7
        %v561 = vshll.u32 %v499, 16
        %v563 = vor.u32 %v560, %v561
        %v565 = vshrl.u32 %v500, 16
        %v567 = vrot.slane %v565, 7
        %v568 = vshll.u32 %v500, 16
        %v570 = vor.u32 %v567, %v568
        %v572 = vshrl.u32 %v501, 16
        %v574 = vrot.slane %v572, 7
        %v575 = vshll.u32 %v501, 16
        %v577 = vor.u32 %v574, %v575
        %v579 = vshrl.u32 %v502, 16
        %v581 = vrot.slane %v579, 7
        %v582 = vshll.u32 %v502, 16
        %v584 = vor.u32 %v581, %v582
        %v586 = vshrl.u32 %v503, 16
        %v588 = vrot.slane %v586, 7
        %v589 = vshll.u32 %v503, 16
        %v591 = vor.u32 %v588, %v589
        %v593 = vshrl.u32 %v504, 16
        %v595 = vrot.slane %v593, 7
        %v596 = vshll.u32 %v504, 16
        %v598 = vor.u32 %v595, %v596
        %v600 = vshrl.u32 %v505, 16
        %v602 = vrot.slane %v600, 7
        %v603 = vshll.u32 %v505, 16
        %v605 = vor.u32 %v602, %v603
        %v607 = vshrl.u32 %v506, 16
        %v609 = vrot.slane %v607, 7
        %v610 = vshll.u32 %v506, 16
        %v612 = vor.u32 %v609, %v610
        %v614 = vshrl.u32 %v507, 16
        %v616 = vrot.slane %v614, 7
        %v617 = vshll.u32 %v507, 16
        %v619 = vor.u32 %v616, %v617
        %vm636 = vcmask 1040384
        %vm637 = vsmask.f32 256
        %vm638 = vmand %vm636, %vm637
        %v639 = vsel %vm638, 0, %v514
        %v640 = vsel %vm638, 0, %v521
        %v641 = vsel %vm638, 0, %v528
        %v642 = vsel %vm638, 0, %v535
        %v643 = vsel %vm638, 0, %v542
        %v644 = vsel %vm638, 0, %v549
        %v645 = vsel %vm638, 0, %v556
        %v646 = vsel %vm638, 0, %v563
        %v647 = vsel %vm638, 0, %v570
        %v648 = vsel %vm638, 0, %v577
        %v649 = vsel %vm638, 0, %v584
        %v650 = vsel %vm638, 0, %v591
        %v651 = vsel %vm638, 0, %v598
        %v652 = vsel %vm638, 0, %v605
        %v653 = vsel %vm638, 0, %v612
        %v654 = vsel %vm638, 0, %v619
        %v655 = vrot.slane %v512, 1
        %v656 = vor.u32 %v509, %v655
        %v657 = vrot.slane %v519, 1
        %v658 = vor.u32 %v516, %v657
        %v659 = vrot.slane %v526, 1
        %v660 = vor.u32 %v523, %v659
        %v661 = vrot.slane %v533, 1
        %v662 = vor.u32 %v530, %v661
        %v663 = vrot.slane %v540, 1
        %v664 = vor.u32 %v537, %v663
        %v665 = vrot.slane %v547, 1
        %v666 = vor.u32 %v544, %v665
        %v667 = vrot.slane %v554, 1
        %v668 = vor.u32 %v551, %v667
        %v669 = vrot.slane %v561, 1
        %v670 = vor.u32 %v558, %v669
        %v671 = vrot.slane %v568, 1
        %v672 = vor.u32 %v565, %v671
        %v673 = vrot.slane %v575, 1
        %v674 = vor.u32 %v572, %v673
        %v675 = vrot.slane %v582, 1
        %v676 = vor.u32 %v579, %v675
        %v677 = vrot.slane %v589, 1
        %v678 = vor.u32 %v586, %v677
        %v679 = vrot.slane %v596, 1
        %v680 = vor.u32 %v593, %v679
        %v681 = vrot.slane %v603, 1
        %v682 = vor.u32 %v600, %v681
        %v683 = vrot.slane %v610, 1
        %v684 = vor.u32 %v607, %v683
        %v685 = vrot.slane %v617, 1
        %v686 = vor.u32 %v614, %v685
        %vm703 = vcmask 1047552
        %vm704 = vsmask.f32 7424
        %vm705 = vmand %vm703, %vm704
        %v706 = vsel %vm705, %v656, 0
        %v707 = vsel %vm705, %v658, 0
        %v708 = vsel %vm705, %v660, 0
        %v709 = vsel %vm705, %v662, 0
        %v710 = vsel %vm705, %v664, 0
        %v711 = vsel %vm705, %v666, 0
        %v712 = vsel %vm705, %v668, 0
        %v713 = vsel %vm705, %v670, 0
        %v714 = vsel %vm705, %v672, 0
        %v715 = vsel %vm705, %v674, 0
        %v716 = vsel %vm705, %v676, 0
        %v717 = vsel %vm705, %v678, 0
        %v718 = vsel %vm705, %v680, 0
        %v719 = vsel %vm705, %v682, 0
        %v720 = vsel %vm705, %v684, 0
        %v721 = vsel %vm705, %v686, 0
        %v723 = vshrl.u32 %v444, 16
        %v725 = vrot.slane %v723, 7
        %v726 = vshll.u32 %v444, 16
        %v728 = vor.u32 %v725, %v726
        %v730 = vshrl.u32 %v445, 16
        %v732 = vrot.slane %v730, 7
        %v733 = vshll.u32 %v445, 16
        %v735 = vor.u32 %v732, %v733
        %v737 = vshrl.u32 %v446, 16
        %v739 = vrot.slane %v737, 7
        %v740 = vshll.u32 %v446, 16
        %v742 = vor.u32 %v739, %v740
        %v744 = vshrl.u32 %v447, 16
        %v746 = vrot.slane %v744, 7
        %v747 = vshll.u32 %v447, 16
        %v749 = vor.u32 %v746, %v747
        %v751 = vshrl.u32 %v448, 16
        %v753 = vrot.slane %v751, 7
        %v754 = vshll.u32 %v448, 16
        %v756 = vor.u32 %v753, %v754
        %v758 = vshrl.u32 %v449, 16
        %v760 = vrot.slane %v758, 7
        %v761 = vshll.u32 %v449, 16
        %v763 = vor.u32 %v760, %v761
        %v765 = vshrl.u32 %v450, 16
        %v767 = vrot.slane %v765, 7
        %v768 = vshll.u32 %v450, 16
        %v770 = vor.u32 %v767, %v768
        %v772 = vshrl.u32 %v451, 16
        %v774 = vrot.slane %v772, 7
        %v775 = vshll.u32 %v451, 16
        %v777 = vor.u32 %v774, %v775
        %v779 = vshrl.u32 %v452, 16
        %v781 = vrot.slane %v779, 7
        %v782 = vshll.u32 %v452, 16
        %v784 = vor.u32 %v781, %v782
        %v786 = vshrl.u32 %v453, 16
        %v788 = vrot.slane %v786, 7
        %v789 = vshll.u32 %v453, 16
        %v791 = vor.u32 %v788, %v789
        %v793 = vshrl.u32 %v454, 16
        %v795 = vrot.slane %v793, 7
        %v796 = vshll.u32 %v454, 16
        %v798 = vor.u32 %v795, %v796
        %v800 = vshrl.u32 %v455, 16
        %v802 = vrot.slane %v800, 7
        %v803 = vshll.u32 %v455, 16
        %v805 = vor.u32 %v802, %v803
        %v807 = vshrl.u32 %v456, 16
        %v809 = vrot.slane %v807, 7
        %v810 = vshll.u32 %v456, 16
        %v812 = vor.u32 %v809, %v810
        %v814 = vshrl.u32 %v457, 16
        %v816 = vrot.slane %v814, 7
        %v817 = vshll.u32 %v457, 16
        %v819 = vor.u32 %v816, %v817
        %v821 = vshrl.u32 %v458, 16
        %v823 = vrot.slane %v821, 7
        %v824 = vshll.u32 %v458, 16
        %v826 = vor.u32 %v823, %v824
        %v828 = vshrl.u32 %v459, 16
        %v830 = vrot.slane %v828, 7
        %v831 = vshll.u32 %v459, 16
        %v833 = vor.u32 %v830, %v831
        %v850 = vsel %vm638, 0, %v728
        %v851 = vsel %vm638, 0, %v735
        %v852 = vsel %vm638, 0, %v742
        %v853 = vsel %vm638, 0, %v749
        %v854 = vsel %vm638, 0, %v756
        %v855 = vsel %vm638, 0, %v763
        %v856 = vsel %vm638, 0, %v770
        %v857 = vsel %vm638, 0, %v777
        %v858 = vsel %vm638, 0, %v784
        %v859 = vsel %vm638, 0, %v791
        %v860 = vsel %vm638, 0, %v798
        %v861 = vsel %vm638, 0, %v805
        %v862 = vsel %vm638, 0, %v812
        %v863 = vsel %vm638, 0, %v819
        %v864 = vsel %vm638, 0, %v826
        %v865 = vsel %vm638, 0, %v833
        %v866 = vrot.slane %v726, 1
        %v867 = vor.u32 %v723, %v866
        %v868 = vrot.slane %v733, 1
        %v869 = vor.u32 %v730, %v868
        %v870 = vrot.slane %v740, 1
        %v871 = vor.u32 %v737, %v870
        %v872 = vrot.slane %v747, 1
        %v873 = vor.u32 %v744, %v872
        %v874 = vrot.slane %v754, 1
        %v875 = vor.u32 %v751, %v874
        %v876 = vrot.slane %v761, 1
        %v877 = vor.u32 %v758, %v876
        %v878 = vrot.slane %v768, 1
        %v879 = vor.u32 %v765, %v878
        %v880 = vrot.slane %v775, 1
        %v881 = vor.u32 %v772, %v880
        %v882 = vrot.slane %v782, 1
        %v883 = vor.u32 %v779, %v882
        %v884 = vrot.slane %v789, 1
        %v885 = vor.u32 %v786, %v884
        %v886 = vrot.slane %v796, 1
        %v887 = vor.u32 %v793, %v886
        %v888 = vrot.slane %v803, 1
        %v889 = vor.u32 %v800, %v888
        %v890 = vrot.slane %v810, 1
        %v891 = vor.u32 %v807, %v890
        %v892 = vrot.slane %v817, 1
        %v893 = vor.u32 %v814, %v892
        %v894 = vrot.slane %v824, 1
        %v895 = vor.u32 %v821, %v894
        %v896 = vrot.slane %v831, 1
        %v897 = vor.u32 %v828, %v896
        %v914 = vsel %vm705, %v867, 0
        %v915 = vsel %vm705, %v869, 0
        %v916 = vsel %vm705, %v871, 0
        %v917 = vsel %vm705, %v873, 0
        %v918 = vsel %vm705, %v875, 0
        %v919 = vsel %vm705, %v877, 0
        %v920 = vsel %vm705, %v879, 0
        %v921 = vsel %vm705, %v881, 0
        %v922 = vsel %vm705, %v883, 0
        %v923 = vsel %vm705, %v885, 0
        %v924 = vsel %vm705, %v887, 0
        %v925 = vsel %vm705, %v889, 0
        %v926 = vsel %vm705, %v891, 0
        %v927 = vsel %vm705, %v893, 0
        %v928 = vsel %vm705, %v895, 0
        %v929 = vsel %vm705, %v897, 0
        %v930 = vld [vmem:[%s6] sm:$0xff]
        %v931 = vld [vmem:[%s6 + $0x8] sm:$0xf]
        %v932 = vld [vmem:[%s6 + $0xc] sm:$0xff]
        %v933 = vld [vmem:[%s6 + $0x14] sm:$0xf]
        %v934 = vld [vmem:[%s6 + $0x18] sm:$0xff]
        %v935 = vld [vmem:[%s6 + $0x20] sm:$0xf]
        %v936 = vld [vmem:[%s6 + $0x24] sm:$0xff]
        %v937 = vld [vmem:[%s6 + $0x2c] sm:$0xf]
        %v938 = vld [vmem:[%s6 + $0x30] sm:$0xff]
        %v939 = vld [vmem:[%s6 + $0x38] sm:$0xf]
        %v940 = vld [vmem:[%s6 + $0x3c] sm:$0xff]
        %v941 = vld [vmem:[%s6 + $0x44] sm:$0xf]
        %v942 = vld [vmem:[%s6 + $0x48] sm:$0xff]
        %v943 = vld [vmem:[%s6 + $0x50] sm:$0xf]
        %v944 = vld [vmem:[%s6 + $0x54] sm:$0xff]
        %v945 = vld [vmem:[%s6 + $0x5c] sm:$0xf]
        %v946 = vld [vmem:[%s6 + $0x60] sm:$0xff]
        %v947 = vld [vmem:[%s6 + $0x68] sm:$0xf]
        %v948 = vld [vmem:[%s6 + $0x6c] sm:$0xff]
        %v949 = vld [vmem:[%s6 + $0x74] sm:$0xf]
        %v950 = vld [vmem:[%s6 + $0x78] sm:$0xff]
        %v951 = vld [vmem:[%s6 + $0x80] sm:$0xf]
        %v952 = vld [vmem:[%s6 + $0x84] sm:$0xff]
        %v953 = vld [vmem:[%s6 + $0x8c] sm:$0xf]
        %v954 = vld [vmem:[%s6 + $0x90] sm:$0xff]
        %v955 = vld [vmem:[%s6 + $0x98] sm:$0xf]
        %v956 = vld [vmem:[%s6 + $0x9c] sm:$0xff]
        %v957 = vld [vmem:[%s6 + $0xa4] sm:$0xf]
        %v958 = vld [vmem:[%s6 + $0xa8] sm:$0xff]
        %v959 = vld [vmem:[%s6 + $0xb0] sm:$0xf]
        %v960 = vld [vmem:[%s6 + $0xb4] sm:$0xff]
        %v961 = vld [vmem:[%s6 + $0xbc] sm:$0xf]
        %v962 = vld [vmem:[%s6 + $0xc0] sm:$0xff]
        %v963 = vld [vmem:[%s6 + $0xc8] sm:$0xf]
        %v964 = vld [vmem:[%s6 + $0xcc] sm:$0xff]
        %v965 = vld [vmem:[%s6 + $0xd4] sm:$0xf]
        %v966 = vld [vmem:[%s6 + $0xd8] sm:$0xff]
        %v967 = vld [vmem:[%s6 + $0xe0] sm:$0xf]
        %v968 = vld [vmem:[%s6 + $0xe4] sm:$0xff]
        %v969 = vld [vmem:[%s6 + $0xec] sm:$0xf]
        %v970 = vld [vmem:[%s6 + $0xf0] sm:$0xff]
        %v971 = vld [vmem:[%s6 + $0xf8] sm:$0xf]
        %v972 = vld [vmem:[%s6 + $0xfc] sm:$0xff]
        %v973 = vld [vmem:[%s6 + $0x104] sm:$0xf]
        %v974 = vld [vmem:[%s6 + $0x108] sm:$0xff]
        %v975 = vld [vmem:[%s6 + $0x110] sm:$0xf]
        %v976 = vld [vmem:[%s6 + $0x114] sm:$0xff]
        %v977 = vld [vmem:[%s6 + $0x11c] sm:$0xf]
        %v978 = vld [vmem:[%s6 + $0x120] sm:$0xff]
        %v979 = vld [vmem:[%s6 + $0x128] sm:$0xf]
        %v980 = vld [vmem:[%s6 + $0x12c] sm:$0xff]
        %v981 = vld [vmem:[%s6 + $0x134] sm:$0xf]
        %v982 = vld [vmem:[%s6 + $0x138] sm:$0xff]
        %v983 = vld [vmem:[%s6 + $0x140] sm:$0xf]
        %v984 = vld [vmem:[%s6 + $0x144] sm:$0xff]
        %v985 = vld [vmem:[%s6 + $0x14c] sm:$0xf]
        %v986 = vld [vmem:[%s6 + $0x150] sm:$0xff]
        %v987 = vld [vmem:[%s6 + $0x158] sm:$0xf]
        %v988 = vld [vmem:[%s6 + $0x15c] sm:$0xff]
        %v989 = vld [vmem:[%s6 + $0x164] sm:$0xf]
        %v990 = vld [vmem:[%s6 + $0x168] sm:$0xff]
        %v991 = vld [vmem:[%s6 + $0x170] sm:$0xf]
        %v992 = vld [vmem:[%s6 + $0x174] sm:$0xff]
        %v993 = vld [vmem:[%s6 + $0x17c] sm:$0xf]
        %v994 = vld [vmem:[%s6 + $0x180] sm:$0xff]
        %v995 = vld [vmem:[%s6 + $0x188] sm:$0xf]
        %v996 = vld [vmem:[%s6 + $0x18c] sm:$0xff]
        %v997 = vld [vmem:[%s6 + $0x194] sm:$0xf]
        %v998 = vld [vmem:[%s6 + $0x198] sm:$0xff]
        %v999 = vld [vmem:[%s6 + $0x1a0] sm:$0xf]
        %v1000 = vld [vmem:[%s6 + $0x1a4] sm:$0xff]
        %v1001 = vld [vmem:[%s6 + $0x1ac] sm:$0xf]
        %v1002 = vld [vmem:[%s6 + $0x1b0] sm:$0xff]
        %v1003 = vld [vmem:[%s6 + $0x1b8] sm:$0xf]
        %v1004 = vld [vmem:[%s6 + $0x1bc] sm:$0xff]
        %v1005 = vld [vmem:[%s6 + $0x1c4] sm:$0xf]
        %v1006 = vld [vmem:[%s6 + $0x1c8] sm:$0xff]
        %v1007 = vld [vmem:[%s6 + $0x1d0] sm:$0xf]
        %v1008 = vld [vmem:[%s6 + $0x1d4] sm:$0xff]
        %v1009 = vld [vmem:[%s6 + $0x1dc] sm:$0xf]
        %v1010 = vld [vmem:[%s6 + $0x1e0] sm:$0xff]
        %v1011 = vld [vmem:[%s6 + $0x1e8] sm:$0xf]
        %v1012 = vld [vmem:[%s6 + $0x1ec] sm:$0xff]
        %v1013 = vld [vmem:[%s6 + $0x1f4] sm:$0xf]
        %v1014 = vld [vmem:[%s6 + $0x1f8] sm:$0xff]
        %v1015 = vld [vmem:[%s6 + $0x200] sm:$0xf]
        %v1016 = vld [vmem:[%s6 + $0x204] sm:$0xff]
        %v1017 = vld [vmem:[%s6 + $0x20c] sm:$0xf]
        %v1018 = vld [vmem:[%s6 + $0x210] sm:$0xff]
        %v1019 = vld [vmem:[%s6 + $0x218] sm:$0xf]
        %v1020 = vld [vmem:[%s6 + $0x21c] sm:$0xff]
        %v1021 = vld [vmem:[%s6 + $0x224] sm:$0xf]
        %v1022 = vld [vmem:[%s6 + $0x228] sm:$0xff]
        %v1023 = vld [vmem:[%s6 + $0x230] sm:$0xf]
        %v1024 = vld [vmem:[%s6 + $0x234] sm:$0xff]
        %v1025 = vld [vmem:[%s6 + $0x23c] sm:$0xf]
        %v1026 = vld [vmem:[%s6 + $0x240] sm:$0xff]
        %v1027 = vld [vmem:[%s6 + $0x248] sm:$0xf]
        %v1028 = vld [vmem:[%s6 + $0x24c] sm:$0xff]
        %v1029 = vld [vmem:[%s6 + $0x254] sm:$0xf]
        %v1030 = vld [vmem:[%s6 + $0x258] sm:$0xff]
        %v1031 = vld [vmem:[%s6 + $0x260] sm:$0xf]
        %v1032 = vld [vmem:[%s6 + $0x264] sm:$0xff]
        %v1033 = vld [vmem:[%s6 + $0x26c] sm:$0xf]
        %v1034 = vld [vmem:[%s6 + $0x270] sm:$0xff]
        %v1035 = vld [vmem:[%s6 + $0x278] sm:$0xf]
        %v1036 = vld [vmem:[%s6 + $0x27c] sm:$0xff]
        %v1037 = vld [vmem:[%s6 + $0x284] sm:$0xf]
        %v1038 = vld [vmem:[%s6 + $0x288] sm:$0xff]
        %v1039 = vld [vmem:[%s6 + $0x290] sm:$0xf]
        %v1040 = vld [vmem:[%s6 + $0x294] sm:$0xff]
        %v1041 = vld [vmem:[%s6 + $0x29c] sm:$0xf]
        %v1042 = vld [vmem:[%s6 + $0x2a0] sm:$0xff]
        %v1043 = vld [vmem:[%s6 + $0x2a8] sm:$0xf]
        %v1044 = vld [vmem:[%s6 + $0x2ac] sm:$0xff]
        %v1045 = vld [vmem:[%s6 + $0x2b4] sm:$0xf]
        %v1046 = vld [vmem:[%s6 + $0x2b8] sm:$0xff]
        %v1047 = vld [vmem:[%s6 + $0x2c0] sm:$0xf]
        %v1048 = vld [vmem:[%s6 + $0x2c4] sm:$0xff]
        %v1049 = vld [vmem:[%s6 + $0x2cc] sm:$0xf]
        %v1050 = vld [vmem:[%s6 + $0x2d0] sm:$0xff]
        %v1051 = vld [vmem:[%s6 + $0x2d8] sm:$0xf]
        %v1052 = vld [vmem:[%s6 + $0x2dc] sm:$0xff]
        %v1053 = vld [vmem:[%s6 + $0x2e4] sm:$0xf]
        %v1054 = vld [vmem:[%s6 + $0x2e8] sm:$0xff]
        %v1055 = vld [vmem:[%s6 + $0x2f0] sm:$0xf]
        %v1056 = vld [vmem:[%s6 + $0x2f4] sm:$0xff]
        %v1057 = vld [vmem:[%s6 + $0x2fc] sm:$0xf]
        %v1058 = vld [vmem:[%s6 + $0x300] sm:$0xff]
        %v1059 = vld [vmem:[%s6 + $0x308] sm:$0xf]
        %v1060 = vld [vmem:[%s6 + $0x30c] sm:$0xff]
        %v1061 = vld [vmem:[%s6 + $0x314] sm:$0xf]
        %v1062 = vld [vmem:[%s6 + $0x318] sm:$0xff]
        %v1063 = vld [vmem:[%s6 + $0x320] sm:$0xf]
        %v1064 = vld [vmem:[%s6 + $0x324] sm:$0xff]
        %v1065 = vld [vmem:[%s6 + $0x32c] sm:$0xf]
        %v1066 = vld [vmem:[%s6 + $0x330] sm:$0xff]
        %v1067 = vld [vmem:[%s6 + $0x338] sm:$0xf]
        %v1068 = vld [vmem:[%s6 + $0x33c] sm:$0xff]
        %v1069 = vld [vmem:[%s6 + $0x344] sm:$0xf]
        %v1070 = vld [vmem:[%s6 + $0x348] sm:$0xff]
        %v1071 = vld [vmem:[%s6 + $0x350] sm:$0xf]
        %v1072 = vld [vmem:[%s6 + $0x354] sm:$0xff]
        %v1073 = vld [vmem:[%s6 + $0x35c] sm:$0xf]
        %v1074 = vld [vmem:[%s6 + $0x360] sm:$0xff]
        %v1075 = vld [vmem:[%s6 + $0x368] sm:$0xf]
        %v1076 = vld [vmem:[%s6 + $0x36c] sm:$0xff]
        %v1077 = vld [vmem:[%s6 + $0x374] sm:$0xf]
        %v1078 = vld [vmem:[%s6 + $0x378] sm:$0xff]
        %v1079 = vld [vmem:[%s6 + $0x380] sm:$0xf]
        %v1080 = vld [vmem:[%s6 + $0x384] sm:$0xff]
        %v1081 = vld [vmem:[%s6 + $0x38c] sm:$0xf]
        %v1082 = vld [vmem:[%s6 + $0x390] sm:$0xff]
        %v1083 = vld [vmem:[%s6 + $0x398] sm:$0xf]
        %v1084 = vld [vmem:[%s6 + $0x39c] sm:$0xff]
        %v1085 = vld [vmem:[%s6 + $0x3a4] sm:$0xf]
        %v1086 = vld [vmem:[%s6 + $0x3a8] sm:$0xff]
        %v1087 = vld [vmem:[%s6 + $0x3b0] sm:$0xf]
        %v1088 = vld [vmem:[%s6 + $0x3b4] sm:$0xff]
        %v1089 = vld [vmem:[%s6 + $0x3bc] sm:$0xf]
        %v1090 = vld [vmem:[%s6 + $0x3c0] sm:$0xff]
        %v1091 = vld [vmem:[%s6 + $0x3c8] sm:$0xf]
        %v1092 = vld [vmem:[%s6 + $0x3cc] sm:$0xff]
        %v1093 = vld [vmem:[%s6 + $0x3d4] sm:$0xf]
        %v1094 = vld [vmem:[%s6 + $0x3d8] sm:$0xff]
        %v1095 = vld [vmem:[%s6 + $0x3e0] sm:$0xf]
        %v1096 = vld [vmem:[%s6 + $0x3e4] sm:$0xff]
        %v1097 = vld [vmem:[%s6 + $0x3ec] sm:$0xf]
        %v1098 = vld [vmem:[%s6 + $0x3f0] sm:$0xff]
        %v1099 = vld [vmem:[%s6 + $0x3f8] sm:$0xf]
        %v1100 = vld [vmem:[%s6 + $0x3fc] sm:$0xff]
        %v1101 = vld [vmem:[%s6 + $0x404] sm:$0xf]
        %v1102 = vld [vmem:[%s6 + $0x408] sm:$0xff]
        %v1103 = vld [vmem:[%s6 + $0x410] sm:$0xf]
        %v1104 = vld [vmem:[%s6 + $0x414] sm:$0xff]
        %v1105 = vld [vmem:[%s6 + $0x41c] sm:$0xf]
        %v1106 = vld [vmem:[%s6 + $0x420] sm:$0xff]
        %v1107 = vld [vmem:[%s6 + $0x428] sm:$0xf]
        %v1108 = vld [vmem:[%s6 + $0x42c] sm:$0xff]
        %v1109 = vld [vmem:[%s6 + $0x434] sm:$0xf]
        %v1110 = vld [vmem:[%s6 + $0x438] sm:$0xff]
        %v1111 = vld [vmem:[%s6 + $0x440] sm:$0xf]
        %v1112 = vld [vmem:[%s6 + $0x444] sm:$0xff]
        %v1113 = vld [vmem:[%s6 + $0x44c] sm:$0xf]
        %v1114 = vld [vmem:[%s6 + $0x450] sm:$0xff]
        %v1115 = vld [vmem:[%s6 + $0x458] sm:$0xf]
        %v1116 = vld [vmem:[%s6 + $0x45c] sm:$0xff]
        %v1117 = vld [vmem:[%s6 + $0x464] sm:$0xf]
        %v1118 = vld [vmem:[%s6 + $0x468] sm:$0xff]
        %v1119 = vld [vmem:[%s6 + $0x470] sm:$0xf]
        %v1120 = vld [vmem:[%s6 + $0x474] sm:$0xff]
        %v1121 = vld [vmem:[%s6 + $0x47c] sm:$0xf]
        %v1122 = vld [vmem:[%s6 + $0x480] sm:$0xff]
        %v1123 = vld [vmem:[%s6 + $0x488] sm:$0xf]
        %v1124 = vld [vmem:[%s6 + $0x48c] sm:$0xff]
        %v1125 = vld [vmem:[%s6 + $0x494] sm:$0xf]
        %v1126 = vld [vmem:[%s6 + $0x498] sm:$0xff]
        %v1127 = vld [vmem:[%s6 + $0x4a0] sm:$0xf]
        %v1128 = vld [vmem:[%s6 + $0x4a4] sm:$0xff]
        %v1129 = vld [vmem:[%s6 + $0x4ac] sm:$0xf]
        %v1130 = vld [vmem:[%s6 + $0x4b0] sm:$0xff]
        %v1131 = vld [vmem:[%s6 + $0x4b8] sm:$0xf]
        %v1132 = vld [vmem:[%s6 + $0x4bc] sm:$0xff]
        %v1133 = vld [vmem:[%s6 + $0x4c4] sm:$0xf]
        %v1134 = vld [vmem:[%s6 + $0x4c8] sm:$0xff]
        %v1135 = vld [vmem:[%s6 + $0x4d0] sm:$0xf]
        %v1136 = vld [vmem:[%s6 + $0x4d4] sm:$0xff]
        %v1137 = vld [vmem:[%s6 + $0x4dc] sm:$0xf]
        %v1138 = vld [vmem:[%s6 + $0x4e0] sm:$0xff]
        %v1139 = vld [vmem:[%s6 + $0x4e8] sm:$0xf]
        %v1140 = vld [vmem:[%s6 + $0x4ec] sm:$0xff]
        %v1141 = vld [vmem:[%s6 + $0x4f4] sm:$0xf]
        %v1142 = vld [vmem:[%s6 + $0x4f8] sm:$0xff]
        %v1143 = vld [vmem:[%s6 + $0x500] sm:$0xf]
        %v1144 = vld [vmem:[%s6 + $0x504] sm:$0xff]
        %v1145 = vld [vmem:[%s6 + $0x50c] sm:$0xf]
        %v1146 = vld [vmem:[%s6 + $0x510] sm:$0xff]
        %v1147 = vld [vmem:[%s6 + $0x518] sm:$0xf]
        %v1148 = vld [vmem:[%s6 + $0x51c] sm:$0xff]
        %v1149 = vld [vmem:[%s6 + $0x524] sm:$0xf]
        %v1150 = vld [vmem:[%s6 + $0x528] sm:$0xff]
        %v1151 = vld [vmem:[%s6 + $0x530] sm:$0xf]
        %v1152 = vld [vmem:[%s6 + $0x534] sm:$0xff]
        %v1153 = vld [vmem:[%s6 + $0x53c] sm:$0xf]
        %v1154 = vld [vmem:[%s6 + $0x540] sm:$0xff]
        %v1155 = vld [vmem:[%s6 + $0x548] sm:$0xf]
        %v1156 = vld [vmem:[%s6 + $0x54c] sm:$0xff]
        %v1157 = vld [vmem:[%s6 + $0x554] sm:$0xf]
        %v1158 = vld [vmem:[%s6 + $0x558] sm:$0xff]
        %v1159 = vld [vmem:[%s6 + $0x560] sm:$0xf]
        %v1160 = vld [vmem:[%s6 + $0x564] sm:$0xff]
        %v1161 = vld [vmem:[%s6 + $0x56c] sm:$0xf]
        %v1162 = vld [vmem:[%s6 + $0x570] sm:$0xff]
        %v1163 = vld [vmem:[%s6 + $0x578] sm:$0xf]
        %v1164 = vld [vmem:[%s6 + $0x57c] sm:$0xff]
        %v1165 = vld [vmem:[%s6 + $0x584] sm:$0xf]
        %v1166 = vld [vmem:[%s6 + $0x588] sm:$0xff]
        %v1167 = vld [vmem:[%s6 + $0x590] sm:$0xf]
        %v1168 = vld [vmem:[%s6 + $0x594] sm:$0xff]
        %v1169 = vld [vmem:[%s6 + $0x59c] sm:$0xf]
        %v1170 = vld [vmem:[%s6 + $0x5a0] sm:$0xff]
        %v1171 = vld [vmem:[%s6 + $0x5a8] sm:$0xf]
        %v1172 = vld [vmem:[%s6 + $0x5ac] sm:$0xff]
        %v1173 = vld [vmem:[%s6 + $0x5b4] sm:$0xf]
        %v1174 = vld [vmem:[%s6 + $0x5b8] sm:$0xff]
        %v1175 = vld [vmem:[%s6 + $0x5c0] sm:$0xf]
        %v1176 = vld [vmem:[%s6 + $0x5c4] sm:$0xff]
        %v1177 = vld [vmem:[%s6 + $0x5cc] sm:$0xf]
        %v1178 = vld [vmem:[%s6 + $0x5d0] sm:$0xff]
        %v1179 = vld [vmem:[%s6 + $0x5d8] sm:$0xf]
        %v1180 = vld [vmem:[%s6 + $0x5dc] sm:$0xff]
        %v1181 = vld [vmem:[%s6 + $0x5e4] sm:$0xf]
        %v1182 = vld [vmem:[%s6 + $0x5e8] sm:$0xff]
        %v1183 = vld [vmem:[%s6 + $0x5f0] sm:$0xf]
        %v1184 = vld [vmem:[%s6 + $0x5f4] sm:$0xff]
        %v1185 = vld [vmem:[%s6 + $0x5fc] sm:$0xf]
        %v1186 = vld [vmem:[%s6 + $0x600] sm:$0xff]
        %v1187 = vld [vmem:[%s6 + $0x608] sm:$0xf]
        %v1188 = vld [vmem:[%s6 + $0x60c] sm:$0xff]
        %v1189 = vld [vmem:[%s6 + $0x614] sm:$0xf]
        %v1190 = vld [vmem:[%s6 + $0x618] sm:$0xff]
        %v1191 = vld [vmem:[%s6 + $0x620] sm:$0xf]
        %v1192 = vld [vmem:[%s6 + $0x624] sm:$0xff]
        %v1193 = vld [vmem:[%s6 + $0x62c] sm:$0xf]
        %v1194 = vld [vmem:[%s6 + $0x630] sm:$0xff]
        %v1195 = vld [vmem:[%s6 + $0x638] sm:$0xf]
        %v1196 = vld [vmem:[%s6 + $0x63c] sm:$0xff]
        %v1197 = vld [vmem:[%s6 + $0x644] sm:$0xf]
        %v1198 = vld [vmem:[%s6 + $0x648] sm:$0xff]
        %v1199 = vld [vmem:[%s6 + $0x650] sm:$0xf]
        %v1200 = vld [vmem:[%s6 + $0x654] sm:$0xff]
        %v1201 = vld [vmem:[%s6 + $0x65c] sm:$0xf]
        %v1202 = vld [vmem:[%s6 + $0x660] sm:$0xff]
        %v1203 = vld [vmem:[%s6 + $0x668] sm:$0xf]
        %v1204 = vld [vmem:[%s6 + $0x66c] sm:$0xff]
        %v1205 = vld [vmem:[%s6 + $0x674] sm:$0xf]
        %v1206 = vld [vmem:[%s6 + $0x678] sm:$0xff]
        %v1207 = vld [vmem:[%s6 + $0x680] sm:$0xf]
        %v1208 = vld [vmem:[%s6 + $0x684] sm:$0xff]
        %v1209 = vld [vmem:[%s6 + $0x68c] sm:$0xf]
        %v1210 = vld [vmem:[%s6 + $0x690] sm:$0xff]
        %v1211 = vld [vmem:[%s6 + $0x698] sm:$0xf]
        %v1212 = vld [vmem:[%s6 + $0x69c] sm:$0xff]
        %v1213 = vld [vmem:[%s6 + $0x6a4] sm:$0xf]
        %v1214 = vld [vmem:[%s6 + $0x6a8] sm:$0xff]
        %v1215 = vld [vmem:[%s6 + $0x6b0] sm:$0xf]
        %v1216 = vld [vmem:[%s6 + $0x6b4] sm:$0xff]
        %v1217 = vld [vmem:[%s6 + $0x6bc] sm:$0xf]
        %v1218 = vld [vmem:[%s8] sm:$0x7]
        %v1220 = vlaneseq
        %v1221 = vshrl.u32 %v1220, 7
        %v1222 = vsub.s32 0, %v1221
        %v1223 = vrot.slane %v1218, %v1222
        %v1224 = vlaneseq
        %v1225 = vshrl.u32 %v1224, 7
        %v1226 = vsub.s32 1, %v1225
        %v1227 = vrot.slane %v1218, %v1226
        %v1228 = vlaneseq
        %v1229 = vshrl.u32 %v1228, 7
        %v1230 = vsub.s32 2, %v1229
        %v1231 = vrot.slane %v1218, %v1230
        %v1523 = vunpack.c.l.b16 %v930
        %v1524 = vunpack.c.h.b16 %v930
        %v1525 = vunpack.c.l.b16 %v931
        %v1526 = vunpack.c.l.b16 %v932
        %v1527 = vunpack.c.h.b16 %v932
        %v1528 = vunpack.c.l.b16 %v933
        %v1529 = vunpack.c.l.b16 %v934
        %v1530 = vunpack.c.h.b16 %v934
        %v1531 = vunpack.c.l.b16 %v935
        %v1532 = vunpack.c.l.b16 %v936
        %v1533 = vunpack.c.h.b16 %v936
        %v1534 = vunpack.c.l.b16 %v937
        %v1535 = vunpack.c.l.b16 %v938
        %v1536 = vunpack.c.h.b16 %v938
        %v1537 = vunpack.c.l.b16 %v939
        %v1538 = vunpack.c.l.b16 %v940
        %v1539 = vunpack.c.h.b16 %v940
        %v1540 = vunpack.c.l.b16 %v941
        %v1541 = vunpack.c.l.b16 %v942
        %v1542 = vunpack.c.h.b16 %v942
        %v1543 = vunpack.c.l.b16 %v943
        %v1544 = vunpack.c.l.b16 %v944
        %v1545 = vunpack.c.h.b16 %v944
        %v1546 = vunpack.c.l.b16 %v945
        %v1547 = vunpack.c.l.b16 %v946
        %v1548 = vunpack.c.h.b16 %v946
        %v1549 = vunpack.c.l.b16 %v947
        %v1550 = vunpack.c.l.b16 %v948
        %v1551 = vunpack.c.h.b16 %v948
        %v1552 = vunpack.c.l.b16 %v949
        %v1553 = vunpack.c.l.b16 %v950
        %v1554 = vunpack.c.h.b16 %v950
        %v1555 = vunpack.c.l.b16 %v951
        %v1556 = vunpack.c.l.b16 %v952
        %v1557 = vunpack.c.h.b16 %v952
        %v1558 = vunpack.c.l.b16 %v953
        %v1559 = vunpack.c.l.b16 %v954
        %v1560 = vunpack.c.h.b16 %v954
        %v1561 = vunpack.c.l.b16 %v955
        %v1562 = vunpack.c.l.b16 %v956
        %v1563 = vunpack.c.h.b16 %v956
        %v1564 = vunpack.c.l.b16 %v957
        %v1565 = vunpack.c.l.b16 %v958
        %v1566 = vunpack.c.h.b16 %v958
        %v1567 = vunpack.c.l.b16 %v959
        %v1568 = vunpack.c.l.b16 %v960
        %v1569 = vunpack.c.h.b16 %v960
        %v1570 = vunpack.c.l.b16 %v961
        %v1571 = vunpack.c.l.b16 %v962
        %v1572 = vunpack.c.h.b16 %v962
        %v1573 = vunpack.c.l.b16 %v963
        %v1574 = vunpack.c.l.b16 %v964
        %v1575 = vunpack.c.h.b16 %v964
        %v1576 = vunpack.c.l.b16 %v965
        %v1577 = vunpack.c.l.b16 %v966
        %v1578 = vunpack.c.h.b16 %v966
        %v1579 = vunpack.c.l.b16 %v967
        %v1580 = vunpack.c.l.b16 %v968
        %v1581 = vunpack.c.h.b16 %v968
        %v1582 = vunpack.c.l.b16 %v969
        %v1583 = vunpack.c.l.b16 %v970
        %v1584 = vunpack.c.h.b16 %v970
        %v1585 = vunpack.c.l.b16 %v971
        %v1586 = vunpack.c.l.b16 %v972
        %v1587 = vunpack.c.h.b16 %v972
        %v1588 = vunpack.c.l.b16 %v973
        %v1589 = vunpack.c.l.b16 %v974
        %v1590 = vunpack.c.h.b16 %v974
        %v1591 = vunpack.c.l.b16 %v975
        %v1592 = vunpack.c.l.b16 %v976
        %v1593 = vunpack.c.h.b16 %v976
        %v1594 = vunpack.c.l.b16 %v977
        %v1595 = vunpack.c.l.b16 %v978
        %v1596 = vunpack.c.h.b16 %v978
        %v1597 = vunpack.c.l.b16 %v979
        %v1598 = vunpack.c.l.b16 %v980
        %v1599 = vunpack.c.h.b16 %v980
        %v1600 = vunpack.c.l.b16 %v981
        %v1601 = vunpack.c.l.b16 %v982
        %v1602 = vunpack.c.h.b16 %v982
        %v1603 = vunpack.c.l.b16 %v983
        %v1604 = vunpack.c.l.b16 %v984
        %v1605 = vunpack.c.h.b16 %v984
        %v1606 = vunpack.c.l.b16 %v985
        %v1607 = vunpack.c.l.b16 %v986
        %v1608 = vunpack.c.h.b16 %v986
        %v1609 = vunpack.c.l.b16 %v987
        %v1610 = vunpack.c.l.b16 %v988
        %v1611 = vunpack.c.h.b16 %v988
        %v1612 = vunpack.c.l.b16 %v989
        %v1613 = vunpack.c.l.b16 %v990
        %v1614 = vunpack.c.h.b16 %v990
        %v1615 = vunpack.c.l.b16 %v991
        %v1616 = vunpack.c.l.b16 %v992
        %v1617 = vunpack.c.h.b16 %v992
        %v1618 = vunpack.c.l.b16 %v993
        %v1619 = vunpack.c.l.b16 %v994
        %v1620 = vunpack.c.h.b16 %v994
        %v1621 = vunpack.c.l.b16 %v995
        %v1622 = vunpack.c.l.b16 %v996
        %v1623 = vunpack.c.h.b16 %v996
        %v1624 = vunpack.c.l.b16 %v997
        %v1625 = vunpack.c.l.b16 %v998
        %v1626 = vunpack.c.h.b16 %v998
        %v1627 = vunpack.c.l.b16 %v999
        %v1628 = vunpack.c.l.b16 %v1000
        %v1629 = vunpack.c.h.b16 %v1000
        %v1630 = vunpack.c.l.b16 %v1001
        %v1631 = vunpack.c.l.b16 %v1002
        %v1632 = vunpack.c.h.b16 %v1002
        %v1633 = vunpack.c.l.b16 %v1003
        %v1634 = vunpack.c.l.b16 %v1004
        %v1635 = vunpack.c.h.b16 %v1004
        %v1636 = vunpack.c.l.b16 %v1005
        %v1637 = vunpack.c.l.b16 %v1006
        %v1638 = vunpack.c.h.b16 %v1006
        %v1639 = vunpack.c.l.b16 %v1007
        %v1640 = vunpack.c.l.b16 %v1008
        %v1641 = vunpack.c.h.b16 %v1008
        %v1642 = vunpack.c.l.b16 %v1009
        %v1643 = vunpack.c.l.b16 %v1010
        %v1644 = vunpack.c.h.b16 %v1010
        %v1645 = vunpack.c.l.b16 %v1011
        %v1646 = vunpack.c.l.b16 %v1012
        %v1647 = vunpack.c.h.b16 %v1012
        %v1648 = vunpack.c.l.b16 %v1013
        %v1649 = vunpack.c.l.b16 %v1014
        %v1650 = vunpack.c.h.b16 %v1014
        %v1651 = vunpack.c.l.b16 %v1015
        %v1652 = vunpack.c.l.b16 %v1016
        %v1653 = vunpack.c.h.b16 %v1016
        %v1654 = vunpack.c.l.b16 %v1017
        %v1655 = vunpack.c.l.b16 %v1018
        %v1656 = vunpack.c.h.b16 %v1018
        %v1657 = vunpack.c.l.b16 %v1019
        %v1658 = vunpack.c.l.b16 %v1020
        %v1659 = vunpack.c.h.b16 %v1020
        %v1660 = vunpack.c.l.b16 %v1021
        %v1661 = vunpack.c.l.b16 %v1022
        %v1662 = vunpack.c.h.b16 %v1022
        %v1663 = vunpack.c.l.b16 %v1023
        %v1664 = vunpack.c.l.b16 %v1024
        %v1665 = vunpack.c.h.b16 %v1024
        %v1666 = vunpack.c.l.b16 %v1025
        %v1667 = vunpack.c.l.b16 %v1026
        %v1668 = vunpack.c.h.b16 %v1026
        %v1669 = vunpack.c.l.b16 %v1027
        %v1670 = vunpack.c.l.b16 %v1028
        %v1671 = vunpack.c.h.b16 %v1028
        %v1672 = vunpack.c.l.b16 %v1029
        %v1673 = vunpack.c.l.b16 %v1030
        %v1674 = vunpack.c.h.b16 %v1030
        %v1675 = vunpack.c.l.b16 %v1031
        %v1676 = vunpack.c.l.b16 %v1032
        %v1677 = vunpack.c.h.b16 %v1032
        %v1678 = vunpack.c.l.b16 %v1033
        %v1679 = vunpack.c.l.b16 %v1034
        %v1680 = vunpack.c.h.b16 %v1034
        %v1681 = vunpack.c.l.b16 %v1035
        %v1682 = vunpack.c.l.b16 %v1036
        %v1683 = vunpack.c.h.b16 %v1036
        %v1684 = vunpack.c.l.b16 %v1037
        %v1685 = vunpack.c.l.b16 %v1038
        %v1686 = vunpack.c.h.b16 %v1038
        %v1687 = vunpack.c.l.b16 %v1039
        %v1688 = vunpack.c.l.b16 %v1040
        %v1689 = vunpack.c.h.b16 %v1040
        %v1690 = vunpack.c.l.b16 %v1041
        %v1691 = vunpack.c.l.b16 %v1042
        %v1692 = vunpack.c.h.b16 %v1042
        %v1693 = vunpack.c.l.b16 %v1043
        %v1694 = vunpack.c.l.b16 %v1044
        %v1695 = vunpack.c.h.b16 %v1044
        %v1696 = vunpack.c.l.b16 %v1045
        %v1697 = vunpack.c.l.b16 %v1046
        %v1698 = vunpack.c.h.b16 %v1046
        %v1699 = vunpack.c.l.b16 %v1047
        %v1700 = vunpack.c.l.b16 %v1048
        %v1701 = vunpack.c.h.b16 %v1048
        %v1702 = vunpack.c.l.b16 %v1049
        %v1703 = vunpack.c.l.b16 %v1050
        %v1704 = vunpack.c.h.b16 %v1050
        %v1705 = vunpack.c.l.b16 %v1051
        %v1706 = vunpack.c.l.b16 %v1052
        %v1707 = vunpack.c.h.b16 %v1052
        %v1708 = vunpack.c.l.b16 %v1053
        %v1709 = vunpack.c.l.b16 %v1054
        %v1710 = vunpack.c.h.b16 %v1054
        %v1711 = vunpack.c.l.b16 %v1055
        %v1712 = vunpack.c.l.b16 %v1056
        %v1713 = vunpack.c.h.b16 %v1056
        %v1714 = vunpack.c.l.b16 %v1057
        %v1715 = vunpack.c.l.b16 %v1058
        %v1716 = vunpack.c.h.b16 %v1058
        %v1717 = vunpack.c.l.b16 %v1059
        %v1718 = vunpack.c.l.b16 %v1060
        %v1719 = vunpack.c.h.b16 %v1060
        %v1720 = vunpack.c.l.b16 %v1061
        %v1721 = vunpack.c.l.b16 %v1062
        %v1722 = vunpack.c.h.b16 %v1062
        %v1723 = vunpack.c.l.b16 %v1063
        %v1724 = vunpack.c.l.b16 %v1064
        %v1725 = vunpack.c.h.b16 %v1064
        %v1726 = vunpack.c.l.b16 %v1065
        %v1727 = vunpack.c.l.b16 %v1066
        %v1728 = vunpack.c.h.b16 %v1066
        %v1729 = vunpack.c.l.b16 %v1067
        %v1730 = vunpack.c.l.b16 %v1068
        %v1731 = vunpack.c.h.b16 %v1068
        %v1732 = vunpack.c.l.b16 %v1069
        %v1733 = vunpack.c.l.b16 %v1070
        %v1734 = vunpack.c.h.b16 %v1070
        %v1735 = vunpack.c.l.b16 %v1071
        %v1736 = vunpack.c.l.b16 %v1072
        %v1737 = vunpack.c.h.b16 %v1072
        %v1738 = vunpack.c.l.b16 %v1073
        %v1739 = vunpack.c.l.b16 %v1074
        %v1740 = vunpack.c.h.b16 %v1074
        %v1741 = vunpack.c.l.b16 %v1075
        %v1742 = vunpack.c.l.b16 %v1076
        %v1743 = vunpack.c.h.b16 %v1076
        %v1744 = vunpack.c.l.b16 %v1077
        %v1745 = vunpack.c.l.b16 %v1078
        %v1746 = vunpack.c.h.b16 %v1078
        %v1747 = vunpack.c.l.b16 %v1079
        %v1748 = vunpack.c.l.b16 %v1080
        %v1749 = vunpack.c.h.b16 %v1080
        %v1750 = vunpack.c.l.b16 %v1081
        %v1751 = vunpack.c.l.b16 %v1082
        %v1752 = vunpack.c.h.b16 %v1082
        %v1753 = vunpack.c.l.b16 %v1083
        %v1754 = vunpack.c.l.b16 %v1084
        %v1755 = vunpack.c.h.b16 %v1084
        %v1756 = vunpack.c.l.b16 %v1085
        %v1757 = vunpack.c.l.b16 %v1086
        %v1758 = vunpack.c.h.b16 %v1086
        %v1759 = vunpack.c.l.b16 %v1087
        %v1760 = vunpack.c.l.b16 %v1088
        %v1761 = vunpack.c.h.b16 %v1088
        %v1762 = vunpack.c.l.b16 %v1089
        %v1763 = vunpack.c.l.b16 %v1090
        %v1764 = vunpack.c.h.b16 %v1090
        %v1765 = vunpack.c.l.b16 %v1091
        %v1766 = vunpack.c.l.b16 %v1092
        %v1767 = vunpack.c.h.b16 %v1092
        %v1768 = vunpack.c.l.b16 %v1093
        %v1769 = vunpack.c.l.b16 %v1094
        %v1770 = vunpack.c.h.b16 %v1094
        %v1771 = vunpack.c.l.b16 %v1095
        %v1772 = vunpack.c.l.b16 %v1096
        %v1773 = vunpack.c.h.b16 %v1096
        %v1774 = vunpack.c.l.b16 %v1097
        %v1775 = vunpack.c.l.b16 %v1098
        %v1776 = vunpack.c.h.b16 %v1098
        %v1777 = vunpack.c.l.b16 %v1099
        %v1778 = vunpack.c.l.b16 %v1100
        %v1779 = vunpack.c.h.b16 %v1100
        %v1780 = vunpack.c.l.b16 %v1101
        %v1781 = vunpack.c.l.b16 %v1102
        %v1782 = vunpack.c.h.b16 %v1102
        %v1783 = vunpack.c.l.b16 %v1103
        %v1784 = vunpack.c.l.b16 %v1104
        %v1785 = vunpack.c.h.b16 %v1104
        %v1786 = vunpack.c.l.b16 %v1105
        %v1787 = vunpack.c.l.b16 %v1106
        %v1788 = vunpack.c.h.b16 %v1106
        %v1789 = vunpack.c.l.b16 %v1107
        %v1790 = vunpack.c.l.b16 %v1108
        %v1791 = vunpack.c.h.b16 %v1108
        %v1792 = vunpack.c.l.b16 %v1109
        %v1793 = vunpack.c.l.b16 %v1110
        %v1794 = vunpack.c.h.b16 %v1110
        %v1795 = vunpack.c.l.b16 %v1111
        %v1796 = vunpack.c.l.b16 %v1112
        %v1797 = vunpack.c.h.b16 %v1112
        %v1798 = vunpack.c.l.b16 %v1113
        %v1799 = vunpack.c.l.b16 %v1114
        %v1800 = vunpack.c.h.b16 %v1114
        %v1801 = vunpack.c.l.b16 %v1115
        %v1802 = vunpack.c.l.b16 %v1116
        %v1803 = vunpack.c.h.b16 %v1116
        %v1804 = vunpack.c.l.b16 %v1117
        %v1805 = vunpack.c.l.b16 %v1118
        %v1806 = vunpack.c.h.b16 %v1118
        %v1807 = vunpack.c.l.b16 %v1119
        %v1808 = vunpack.c.l.b16 %v1120
        %v1809 = vunpack.c.h.b16 %v1120
        %v1810 = vunpack.c.l.b16 %v1121
        %v1811 = vunpack.c.l.b16 %v1122
        %v1812 = vunpack.c.h.b16 %v1122
        %v1813 = vunpack.c.l.b16 %v1123
        %v1814 = vunpack.c.l.b16 %v1124
        %v1815 = vunpack.c.h.b16 %v1124
        %v1816 = vunpack.c.l.b16 %v1125
        %v1817 = vunpack.c.l.b16 %v1126
        %v1818 = vunpack.c.h.b16 %v1126
        %v1819 = vunpack.c.l.b16 %v1127
        %v1820 = vunpack.c.l.b16 %v1128
        %v1821 = vunpack.c.h.b16 %v1128
        %v1822 = vunpack.c.l.b16 %v1129
        %v1823 = vunpack.c.l.b16 %v1130
        %v1824 = vunpack.c.h.b16 %v1130
        %v1825 = vunpack.c.l.b16 %v1131
        %v1826 = vunpack.c.l.b16 %v1132
        %v1827 = vunpack.c.h.b16 %v1132
        %v1828 = vunpack.c.l.b16 %v1133
        %v1829 = vunpack.c.l.b16 %v1134
        %v1830 = vunpack.c.h.b16 %v1134
        %v1831 = vunpack.c.l.b16 %v1135
        %v1832 = vunpack.c.l.b16 %v1136
        %v1833 = vunpack.c.h.b16 %v1136
        %v1834 = vunpack.c.l.b16 %v1137
        %v1835 = vunpack.c.l.b16 %v1138
        %v1836 = vunpack.c.h.b16 %v1138
        %v1837 = vunpack.c.l.b16 %v1139
        %v1838 = vunpack.c.l.b16 %v1140
        %v1839 = vunpack.c.h.b16 %v1140
        %v1840 = vunpack.c.l.b16 %v1141
        %v1841 = vunpack.c.l.b16 %v1142
        %v1842 = vunpack.c.h.b16 %v1142
        %v1843 = vunpack.c.l.b16 %v1143
        %v1844 = vunpack.c.l.b16 %v1144
        %v1845 = vunpack.c.h.b16 %v1144
        %v1846 = vunpack.c.l.b16 %v1145
        %v1847 = vunpack.c.l.b16 %v1146
        %v1848 = vunpack.c.h.b16 %v1146
        %v1849 = vunpack.c.l.b16 %v1147
        %v1850 = vunpack.c.l.b16 %v1148
        %v1851 = vunpack.c.h.b16 %v1148
        %v1852 = vunpack.c.l.b16 %v1149
        %v1853 = vunpack.c.l.b16 %v1150
        %v1854 = vunpack.c.h.b16 %v1150
        %v1855 = vunpack.c.l.b16 %v1151
        %v1856 = vunpack.c.l.b16 %v1152
        %v1857 = vunpack.c.h.b16 %v1152
        %v1858 = vunpack.c.l.b16 %v1153
        %v1859 = vunpack.c.l.b16 %v1154
        %v1860 = vunpack.c.h.b16 %v1154
        %v1861 = vunpack.c.l.b16 %v1155
        %v1862 = vunpack.c.l.b16 %v1156
        %v1863 = vunpack.c.h.b16 %v1156
        %v1864 = vunpack.c.l.b16 %v1157
        %v1865 = vunpack.c.l.b16 %v1158
        %v1866 = vunpack.c.h.b16 %v1158
        %v1867 = vunpack.c.l.b16 %v1159
        %v1868 = vunpack.c.l.b16 %v1160
        %v1869 = vunpack.c.h.b16 %v1160
        %v1870 = vunpack.c.l.b16 %v1161
        %v1871 = vunpack.c.l.b16 %v1162
        %v1872 = vunpack.c.h.b16 %v1162
        %v1873 = vunpack.c.l.b16 %v1163
        %v1874 = vunpack.c.l.b16 %v1164
        %v1875 = vunpack.c.h.b16 %v1164
        %v1876 = vunpack.c.l.b16 %v1165
        %v1877 = vunpack.c.l.b16 %v1166
        %v1878 = vunpack.c.h.b16 %v1166
        %v1879 = vunpack.c.l.b16 %v1167
        %v1880 = vunpack.c.l.b16 %v1168
        %v1881 = vunpack.c.h.b16 %v1168
        %v1882 = vunpack.c.l.b16 %v1169
        %v1883 = vunpack.c.l.b16 %v1170
        %v1884 = vunpack.c.h.b16 %v1170
        %v1885 = vunpack.c.l.b16 %v1171
        %v1886 = vunpack.c.l.b16 %v1172
        %v1887 = vunpack.c.h.b16 %v1172
        %v1888 = vunpack.c.l.b16 %v1173
        %v1889 = vunpack.c.l.b16 %v1174
        %v1890 = vunpack.c.h.b16 %v1174
        %v1891 = vunpack.c.l.b16 %v1175
        %v1892 = vunpack.c.l.b16 %v1176
        %v1893 = vunpack.c.h.b16 %v1176
        %v1894 = vunpack.c.l.b16 %v1177
        %v1895 = vunpack.c.l.b16 %v1178
        %v1896 = vunpack.c.h.b16 %v1178
        %v1897 = vunpack.c.l.b16 %v1179
        %v1898 = vunpack.c.l.b16 %v1180
        %v1899 = vunpack.c.h.b16 %v1180
        %v1900 = vunpack.c.l.b16 %v1181
        %v1901 = vunpack.c.l.b16 %v1182
        %v1902 = vunpack.c.h.b16 %v1182
        %v1903 = vunpack.c.l.b16 %v1183
        %v1904 = vunpack.c.l.b16 %v1184
        %v1905 = vunpack.c.h.b16 %v1184
        %v1906 = vunpack.c.l.b16 %v1185
        %v1907 = vunpack.c.l.b16 %v1186
        %v1908 = vunpack.c.h.b16 %v1186
        %v1909 = vunpack.c.l.b16 %v1187
        %v1910 = vunpack.c.l.b16 %v1188
        %v1911 = vunpack.c.h.b16 %v1188
        %v1912 = vunpack.c.l.b16 %v1189
        %v1913 = vunpack.c.l.b16 %v1190
        %v1914 = vunpack.c.h.b16 %v1190
        %v1915 = vunpack.c.l.b16 %v1191
        %v1916 = vunpack.c.l.b16 %v1192
        %v1917 = vunpack.c.h.b16 %v1192
        %v1918 = vunpack.c.l.b16 %v1193
        %v1919 = vunpack.c.l.b16 %v1194
        %v1920 = vunpack.c.h.b16 %v1194
        %v1921 = vunpack.c.l.b16 %v1195
        %v1922 = vunpack.c.l.b16 %v1196
        %v1923 = vunpack.c.h.b16 %v1196
        %v1924 = vunpack.c.l.b16 %v1197
        %v1925 = vunpack.c.l.b16 %v1198
        %v1926 = vunpack.c.h.b16 %v1198
        %v1927 = vunpack.c.l.b16 %v1199
        %v1928 = vunpack.c.l.b16 %v1200
        %v1929 = vunpack.c.h.b16 %v1200
        %v1930 = vunpack.c.l.b16 %v1201
        %v1931 = vunpack.c.l.b16 %v1202
        %v1932 = vunpack.c.h.b16 %v1202
        %v1933 = vunpack.c.l.b16 %v1203
        %v1934 = vunpack.c.l.b16 %v1204
        %v1935 = vunpack.c.h.b16 %v1204
        %v1936 = vunpack.c.l.b16 %v1205
        %v1937 = vunpack.c.l.b16 %v1206
        %v1938 = vunpack.c.h.b16 %v1206
        %v1939 = vunpack.c.l.b16 %v1207
        %v1940 = vunpack.c.l.b16 %v1208
        %v1941 = vunpack.c.h.b16 %v1208
        %v1942 = vunpack.c.l.b16 %v1209
        %v1943 = vunpack.c.l.b16 %v1210
        %v1944 = vunpack.c.h.b16 %v1210
        %v1945 = vunpack.c.l.b16 %v1211
        %v1946 = vunpack.c.l.b16 %v1212
        %v1947 = vunpack.c.h.b16 %v1212
        %v1948 = vunpack.c.l.b16 %v1213
        %v1949 = vunpack.c.l.b16 %v1214
        %v1950 = vunpack.c.h.b16 %v1214
        %v1951 = vunpack.c.l.b16 %v1215
        %v1952 = vunpack.c.l.b16 %v1216
        %v1953 = vunpack.c.h.b16 %v1216
        %v1954 = vunpack.c.l.b16 %v1217
        %v1955 = vpack.c.b16 %v1526, %v1523
        %v1956 = vpack.c.b16 %v1527, %v1524
        %v1957 = vpack.c.b16 %v1528, %v1525
        %v1958 = vpack.c.b16 %v1532, %v1529
        %v1959 = vpack.c.b16 %v1533, %v1530
        %v1960 = vpack.c.b16 %v1534, %v1531
        %v1961 = vpack.c.b16 %v1538, %v1535
        %v1962 = vpack.c.b16 %v1539, %v1536
        %v1963 = vpack.c.b16 %v1540, %v1537
        %v1964 = vpack.c.b16 %v1544, %v1541
        %v1965 = vpack.c.b16 %v1545, %v1542
        %v1966 = vpack.c.b16 %v1546, %v1543
        %v1967 = vpack.c.b16 %v1550, %v1547
        %v1968 = vpack.c.b16 %v1551, %v1548
        %v1969 = vpack.c.b16 %v1552, %v1549
        %v1970 = vpack.c.b16 %v1556, %v1553
        %v1971 = vpack.c.b16 %v1557, %v1554
        %v1972 = vpack.c.b16 %v1558, %v1555
        %v1973 = vpack.c.b16 %v1562, %v1559
        %v1974 = vpack.c.b16 %v1563, %v1560
        %v1975 = vpack.c.b16 %v1564, %v1561
        %v1976 = vpack.c.b16 %v1568, %v1565
        %v1977 = vpack.c.b16 %v1569, %v1566
        %v1978 = vpack.c.b16 %v1570, %v1567
        %v1979 = vpack.c.b16 %v1574, %v1571
        %v1980 = vpack.c.b16 %v1575, %v1572
        %v1981 = vpack.c.b16 %v1576, %v1573
        %v1982 = vpack.c.b16 %v1580, %v1577
        %v1983 = vpack.c.b16 %v1581, %v1578
        %v1984 = vpack.c.b16 %v1582, %v1579
        %v1985 = vpack.c.b16 %v1586, %v1583
        %v1986 = vpack.c.b16 %v1587, %v1584
        %v1987 = vpack.c.b16 %v1588, %v1585
        %v1988 = vpack.c.b16 %v1592, %v1589
        %v1989 = vpack.c.b16 %v1593, %v1590
        %v1990 = vpack.c.b16 %v1594, %v1591
        %v1991 = vpack.c.b16 %v1598, %v1595
        %v1992 = vpack.c.b16 %v1599, %v1596
        %v1993 = vpack.c.b16 %v1600, %v1597
        %v1994 = vpack.c.b16 %v1604, %v1601
        %v1995 = vpack.c.b16 %v1605, %v1602
        %v1996 = vpack.c.b16 %v1606, %v1603
        %v1997 = vpack.c.b16 %v1610, %v1607
        %v1998 = vpack.c.b16 %v1611, %v1608
        %v1999 = vpack.c.b16 %v1612, %v1609
        %v2000 = vpack.c.b16 %v1616, %v1613
        %v2001 = vpack.c.b16 %v1617, %v1614
        %v2002 = vpack.c.b16 %v1618, %v1615
        %v2003 = vpack.c.b16 %v1622, %v1619
        %v2004 = vpack.c.b16 %v1623, %v1620
        %v2005 = vpack.c.b16 %v1624, %v1621
        %v2006 = vpack.c.b16 %v1628, %v1625
        %v2007 = vpack.c.b16 %v1629, %v1626
        %v2008 = vpack.c.b16 %v1630, %v1627
        %v2009 = vpack.c.b16 %v1634, %v1631
        %v2010 = vpack.c.b16 %v1635, %v1632
        %v2011 = vpack.c.b16 %v1636, %v1633
        %v2012 = vpack.c.b16 %v1640, %v1637
        %v2013 = vpack.c.b16 %v1641, %v1638
        %v2014 = vpack.c.b16 %v1642, %v1639
        %v2015 = vpack.c.b16 %v1646, %v1643
        %v2016 = vpack.c.b16 %v1647, %v1644
        %v2017 = vpack.c.b16 %v1648, %v1645
        %v2018 = vpack.c.b16 %v1652, %v1649
        %v2019 = vpack.c.b16 %v1653, %v1650
        %v2020 = vpack.c.b16 %v1654, %v1651
        %v2021 = vpack.c.b16 %v1658, %v1655
        %v2022 = vpack.c.b16 %v1659, %v1656
        %v2023 = vpack.c.b16 %v1660, %v1657
        %v2024 = vpack.c.b16 %v1664, %v1661
        %v2025 = vpack.c.b16 %v1665, %v1662
        %v2026 = vpack.c.b16 %v1666, %v1663
        %v2027 = vpack.c.b16 %v1670, %v1667
        %v2028 = vpack.c.b16 %v1671, %v1668
        %v2029 = vpack.c.b16 %v1672, %v1669
        %v2030 = vpack.c.b16 %v1676, %v1673
        %v2031 = vpack.c.b16 %v1677, %v1674
        %v2032 = vpack.c.b16 %v1678, %v1675
        %v2033 = vpack.c.b16 %v1682, %v1679
        %v2034 = vpack.c.b16 %v1683, %v1680
        %v2035 = vpack.c.b16 %v1684, %v1681
        %v2036 = vpack.c.b16 %v1688, %v1685
        %v2037 = vpack.c.b16 %v1689, %v1686
        %v2038 = vpack.c.b16 %v1690, %v1687
        %v2039 = vpack.c.b16 %v1694, %v1691
        %v2040 = vpack.c.b16 %v1695, %v1692
        %v2041 = vpack.c.b16 %v1696, %v1693
        %v2042 = vpack.c.b16 %v1700, %v1697
        %v2043 = vpack.c.b16 %v1701, %v1698
        %v2044 = vpack.c.b16 %v1702, %v1699
        %v2045 = vpack.c.b16 %v1706, %v1703
        %v2046 = vpack.c.b16 %v1707, %v1704
        %v2047 = vpack.c.b16 %v1708, %v1705
        %v2048 = vpack.c.b16 %v1712, %v1709
        %v2049 = vpack.c.b16 %v1713, %v1710
        %v2050 = vpack.c.b16 %v1714, %v1711
        %v2051 = vpack.c.b16 %v1718, %v1715
        %v2052 = vpack.c.b16 %v1719, %v1716
        %v2053 = vpack.c.b16 %v1720, %v1717
        %v2054 = vpack.c.b16 %v1724, %v1721
        %v2055 = vpack.c.b16 %v1725, %v1722
        %v2056 = vpack.c.b16 %v1726, %v1723
        %v2057 = vpack.c.b16 %v1730, %v1727
        %v2058 = vpack.c.b16 %v1731, %v1728
        %v2059 = vpack.c.b16 %v1732, %v1729
        %v2060 = vpack.c.b16 %v1736, %v1733
        %v2061 = vpack.c.b16 %v1737, %v1734
        %v2062 = vpack.c.b16 %v1738, %v1735
        %v2063 = vpack.c.b16 %v1742, %v1739
        %v2064 = vpack.c.b16 %v1743, %v1740
        %v2065 = vpack.c.b16 %v1744, %v1741
        %v2066 = vpack.c.b16 %v1748, %v1745
        %v2067 = vpack.c.b16 %v1749, %v1746
        %v2068 = vpack.c.b16 %v1750, %v1747
        %v2069 = vpack.c.b16 %v1754, %v1751
        %v2070 = vpack.c.b16 %v1755, %v1752
        %v2071 = vpack.c.b16 %v1756, %v1753
        %v2072 = vpack.c.b16 %v1760, %v1757
        %v2073 = vpack.c.b16 %v1761, %v1758
        %v2074 = vpack.c.b16 %v1762, %v1759
        %v2075 = vpack.c.b16 %v1766, %v1763
        %v2076 = vpack.c.b16 %v1767, %v1764
        %v2077 = vpack.c.b16 %v1768, %v1765
        %v2078 = vpack.c.b16 %v1772, %v1769
        %v2079 = vpack.c.b16 %v1773, %v1770
        %v2080 = vpack.c.b16 %v1774, %v1771
        %v2081 = vpack.c.b16 %v1778, %v1775
        %v2082 = vpack.c.b16 %v1779, %v1776
        %v2083 = vpack.c.b16 %v1780, %v1777
        %v2084 = vpack.c.b16 %v1784, %v1781
        %v2085 = vpack.c.b16 %v1785, %v1782
        %v2086 = vpack.c.b16 %v1786, %v1783
        %v2087 = vpack.c.b16 %v1790, %v1787
        %v2088 = vpack.c.b16 %v1791, %v1788
        %v2089 = vpack.c.b16 %v1792, %v1789
        %v2090 = vpack.c.b16 %v1796, %v1793
        %v2091 = vpack.c.b16 %v1797, %v1794
        %v2092 = vpack.c.b16 %v1798, %v1795
        %v2093 = vpack.c.b16 %v1802, %v1799
        %v2094 = vpack.c.b16 %v1803, %v1800
        %v2095 = vpack.c.b16 %v1804, %v1801
        %v2096 = vpack.c.b16 %v1808, %v1805
        %v2097 = vpack.c.b16 %v1809, %v1806
        %v2098 = vpack.c.b16 %v1810, %v1807
        %v2099 = vpack.c.b16 %v1814, %v1811
        %v2100 = vpack.c.b16 %v1815, %v1812
        %v2101 = vpack.c.b16 %v1816, %v1813
        %v2102 = vpack.c.b16 %v1820, %v1817
        %v2103 = vpack.c.b16 %v1821, %v1818
        %v2104 = vpack.c.b16 %v1822, %v1819
        %v2105 = vpack.c.b16 %v1826, %v1823
        %v2106 = vpack.c.b16 %v1827, %v1824
        %v2107 = vpack.c.b16 %v1828, %v1825
        %v2108 = vpack.c.b16 %v1832, %v1829
        %v2109 = vpack.c.b16 %v1833, %v1830
        %v2110 = vpack.c.b16 %v1834, %v1831
        %v2111 = vpack.c.b16 %v1838, %v1835
        %v2112 = vpack.c.b16 %v1839, %v1836
        %v2113 = vpack.c.b16 %v1840, %v1837
        %v2114 = vpack.c.b16 %v1844, %v1841
        %v2115 = vpack.c.b16 %v1845, %v1842
        %v2116 = vpack.c.b16 %v1846, %v1843
        %v2117 = vpack.c.b16 %v1850, %v1847
        %v2118 = vpack.c.b16 %v1851, %v1848
        %v2119 = vpack.c.b16 %v1852, %v1849
        %v2120 = vpack.c.b16 %v1856, %v1853
        %v2121 = vpack.c.b16 %v1857, %v1854
        %v2122 = vpack.c.b16 %v1858, %v1855
        %v2123 = vpack.c.b16 %v1862, %v1859
        %v2124 = vpack.c.b16 %v1863, %v1860
        %v2125 = vpack.c.b16 %v1864, %v1861
        %v2126 = vpack.c.b16 %v1868, %v1865
        %v2127 = vpack.c.b16 %v1869, %v1866
        %v2128 = vpack.c.b16 %v1870, %v1867
        %v2129 = vpack.c.b16 %v1874, %v1871
        %v2130 = vpack.c.b16 %v1875, %v1872
        %v2131 = vpack.c.b16 %v1876, %v1873
        %v2132 = vpack.c.b16 %v1880, %v1877
        %v2133 = vpack.c.b16 %v1881, %v1878
        %v2134 = vpack.c.b16 %v1882, %v1879
        %v2135 = vpack.c.b16 %v1886, %v1883
        %v2136 = vpack.c.b16 %v1887, %v1884
        %v2137 = vpack.c.b16 %v1888, %v1885
        %v2138 = vpack.c.b16 %v1892, %v1889
        %v2139 = vpack.c.b16 %v1893, %v1890
        %v2140 = vpack.c.b16 %v1894, %v1891
        %v2141 = vpack.c.b16 %v1898, %v1895
        %v2142 = vpack.c.b16 %v1899, %v1896
        %v2143 = vpack.c.b16 %v1900, %v1897
        %v2144 = vpack.c.b16 %v1904, %v1901
        %v2145 = vpack.c.b16 %v1905, %v1902
        %v2146 = vpack.c.b16 %v1906, %v1903
        %v2147 = vpack.c.b16 %v1910, %v1907
        %v2148 = vpack.c.b16 %v1911, %v1908
        %v2149 = vpack.c.b16 %v1912, %v1909
        %v2150 = vpack.c.b16 %v1916, %v1913
        %v2151 = vpack.c.b16 %v1917, %v1914
        %v2152 = vpack.c.b16 %v1918, %v1915
        %v2153 = vpack.c.b16 %v1922, %v1919
        %v2154 = vpack.c.b16 %v1923, %v1920
        %v2155 = vpack.c.b16 %v1924, %v1921
        %v2156 = vpack.c.b16 %v1928, %v1925
        %v2157 = vpack.c.b16 %v1929, %v1926
        %v2158 = vpack.c.b16 %v1930, %v1927
        %v2159 = vpack.c.b16 %v1934, %v1931
        %v2160 = vpack.c.b16 %v1935, %v1932
        %v2161 = vpack.c.b16 %v1936, %v1933
        %v2162 = vpack.c.b16 %v1940, %v1937
        %v2163 = vpack.c.b16 %v1941, %v1938
        %v2164 = vpack.c.b16 %v1942, %v1939
        %v2165 = vpack.c.b16 %v1946, %v1943
        %v2166 = vpack.c.b16 %v1947, %v1944
        %v2167 = vpack.c.b16 %v1948, %v1945
        %v2168 = vpack.c.b16 %v1952, %v1949
        %v2169 = vpack.c.b16 %v1953, %v1950
        %v2170 = vpack.c.b16 %v1954, %v1951
        %2387 = vmatprep.subr.bf16.mxu0 %v1956
        %2388 = vmatpush1.bf16.msra.mxu0 %v1955
        %2389 = vmatprep.subr.bf16.mxu0 %v1959
        %2390 = vmatpush1.bf16.msra.mxu0 %v1958
        %2391 = vmatprep.subr.bf16.mxu0 %v1962
        %2392 = vmatpush1.bf16.msra.mxu0 %v1961
        %2393 = vmatprep.subr.bf16.mxu0 %v1965
        %2394 = vmatpush1.bf16.msra.mxu0 %v1964
        %2395 = vmatprep.subr.bf16.mxu0 %v1968
        %2396 = vmatpush1.bf16.msra.mxu0 %v1967
        %2397 = vmatprep.subr.bf16.mxu0 %v1971
        %2398 = vmatpush1.bf16.msra.mxu0 %v1970
        %2399 = vmatprep.subr.bf16.mxu0 %v1974
        %2400 = vmatpush1.bf16.msra.mxu0 %v1973
        %2401 = vmatprep.subr.bf16.mxu0 %v1977
        %2402 = vmatpush1.bf16.msra.mxu0 %v1976
        %2403 = vmatprep.subr.bf16.mxu0 %v1980
        %2404 = vmatpush1.bf16.msra.mxu0 %v1979
        %2405 = vmatprep.subr.bf16.mxu0 %v1983
        %2406 = vmatpush1.bf16.msra.mxu0 %v1982
        %2407 = vmatprep.subr.bf16.mxu0 %v1986
        %2408 = vmatpush1.bf16.msra.mxu0 %v1985
        %2409 = vmatprep.subr.bf16.mxu0 %v1989
        %2410 = vmatpush1.bf16.msra.mxu0 %v1988
        %2411 = vmatprep.subr.bf16.mxu0 %v1992
        %2412 = vmatpush1.bf16.msra.mxu0 %v1991
        %2413 = vmatprep.subr.bf16.mxu0 %v1995
        %2414 = vmatpush1.bf16.msra.mxu0 %v1994
        %2415 = vmatprep.subr.bf16.mxu0 %v1998
        %2416 = vmatpush1.bf16.msra.mxu0 %v1997
        %2417 = vmatprep.subr.bf16.mxu0 %v2001
        %2418 = vmatpush1.bf16.msra.mxu0 %v2000
        %2419 = vmatprep.mubr.bf16.mxu0 0
        %2420 = vmatmul.mubr.bf16.gmra.mrb[0].mxu0 0
        %v2421 = vpop.f32.mrb[0].mxu0
        %v2422 = vadd.f32 %v1223, %v2421
        %v2423 = vpop.f32.mrb[0].mxu0
        %v2424 = vadd.f32 %v1227, %v2423
        %v2425 = vpop.f32.mrb[0].mxu0
        %v2426 = vadd.f32 %v1223, %v2425
        %v2427 = vpop.f32.mrb[0].mxu0
        %v2428 = vadd.f32 %v1227, %v2427
        %2429 = vmatprep.mubr.bf16.mxu0 %v492
        %2430 = vmatmul.mubr.bf16.gmra.mrb[0].mxu0 %v639
        %v2431 = vpop.f32.mrb[0].mxu0
        %v2432 = vadd.f32 %v1223, %v2431
        %v2433 = vpop.f32.mrb[0].mxu0
        %v2434 = vadd.f32 %v1227, %v2433
        %v2435 = vpop.f32.mrb[0].mxu0
        %v2436 = vadd.f32 %v1223, %v2435
        %v2437 = vpop.f32.mrb[0].mxu0
        %v2438 = vadd.f32 %v1227, %v2437
        %2439 = vmatprep.mubr.bf16.mxu0 %v493
        %2440 = vmatmul.mubr.bf16.gmra.mrb[0].mxu0 %v640
        %v2441 = vpop.f32.mrb[0].mxu0
        %v2442 = vadd.f32 %v1223, %v2441
        %v2443 = vpop.f32.mrb[0].mxu0
        %v2444 = vadd.f32 %v1227, %v2443
        %v2445 = vpop.f32.mrb[0].mxu0
        %v2446 = vadd.f32 %v1223, %v2445
        %v2447 = vpop.f32.mrb[0].mxu0
        %v2448 = vadd.f32 %v1227, %v2447
        %2449 = vmatprep.mubr.bf16.mxu0 %v494
        %2450 = vmatmul.mubr.bf16.gmra.mrb[0].mxu0 %v641
        %v2451 = vpop.f32.mrb[0].mxu0
        %v2452 = vadd.f32 %v1223, %v2451
        %v2453 = vpop.f32.mrb[0].mxu0
        %v2454 = vadd.f32 %v1227, %v2453
        %v2455 = vpop.f32.mrb[0].mxu0
        %v2456 = vadd.f32 %v1223, %v2455
        %v2457 = vpop.f32.mrb[0].mxu0
        %v2458 = vadd.f32 %v1227, %v2457
        %2459 = vmatprep.mubr.bf16.mxu0 %v495
        %2460 = vmatmul.mubr.bf16.gmra.mrb[0].mxu0 %v642
        %v2461 = vpop.f32.mrb[0].mxu0
        %v2462 = vadd.f32 %v1223, %v2461
        %v2463 = vpop.f32.mrb[0].mxu0
        %v2464 = vadd.f32 %v1227, %v2463
        %v2465 = vpop.f32.mrb[0].mxu0
        %v2466 = vadd.f32 %v1223, %v2465
        %v2467 = vpop.f32.mrb[0].mxu0
        %v2468 = vadd.f32 %v1227, %v2467
        %2469 = vmatprep.mubr.bf16.mxu0 %v496
        %2470 = vmatmul.mubr.bf16.gmra.mrb[0].mxu0 %v643
        %v2471 = vpop.f32.mrb[0].mxu0
        %v2472 = vadd.f32 %v1223, %v2471
        %v2473 = vpop.f32.mrb[0].mxu0
        %v2474 = vadd.f32 %v1227, %v2473
        %v2475 = vpop.f32.mrb[0].mxu0
        %v2476 = vadd.f32 %v1223, %v2475
        %v2477 = vpop.f32.mrb[0].mxu0
        %v2478 = vadd.f32 %v1227, %v2477
        %2479 = vmatprep.mubr.bf16.mxu0 %v497
        %2480 = vmatmul.mubr.bf16.gmra.mrb[0].mxu0 %v644
        %v2481 = vpop.f32.mrb[0].mxu0
        %v2482 = vadd.f32 %v1223, %v2481
        %v2483 = vpop.f32.mrb[0].mxu0
        %v2484 = vadd.f32 %v1227, %v2483
        %v2485 = vpop.f32.mrb[0].mxu0
        %v2486 = vadd.f32 %v1223, %v2485
        %v2487 = vpop.f32.mrb[0].mxu0
        %v2488 = vadd.f32 %v1227, %v2487
        %2489 = vmatprep.mubr.bf16.mxu0 %v498
        %2490 = vmatmul.mubr.bf16.gmra.mrb[0].mxu0 %v645
        %v2491 = vpop.f32.mrb[0].mxu0
        %v2492 = vadd.f32 %v1223, %v2491
        %v2493 = vpop.f32.mrb[0].mxu0
        %v2494 = vadd.f32 %v1227, %v2493
        %v2495 = vpop.f32.mrb[0].mxu0
        %v2496 = vadd.f32 %v1223, %v2495
        %v2497 = vpop.f32.mrb[0].mxu0
        %v2498 = vadd.f32 %v1227, %v2497
        %2499 = vmatprep.mubr.bf16.mxu0 %v499
        %2500 = vmatmul.mubr.bf16.gmra.mrb[0].mxu0 %v646
        %v2501 = vpop.f32.mrb[0].mxu0
        %v2502 = vadd.f32 %v1223, %v2501
        %v2503 = vpop.f32.mrb[0].mxu0
        %v2504 = vadd.f32 %v1227, %v2503
        %v2505 = vpop.f32.mrb[0].mxu0
        %v2506 = vadd.f32 %v1223, %v2505
        %v2507 = vpop.f32.mrb[0].mxu0
        %v2508 = vadd.f32 %v1227, %v2507
        %2509 = vmatprep.mubr.bf16.mxu0 %v500
        %2510 = vmatmul.mubr.bf16.gmra.mrb[0].mxu0 %v647
        %v2511 = vpop.f32.mrb[0].mxu0
        %v2512 = vadd.f32 %v1223, %v2511
        %v2513 = vpop.f32.mrb[0].mxu0
        %v2514 = vadd.f32 %v1227, %v2513
        %v2515 = vpop.f32.mrb[0].mxu0
        %v2516 = vadd.f32 %v1223, %v2515
        %v2517 = vpop.f32.mrb[0].mxu0
        %v2518 = vadd.f32 %v1227, %v2517
        %2519 = vmatprep.mubr.bf16.mxu0 %v501
        %2520 = vmatmul.mubr.bf16.gmra.mrb[0].mxu0 %v648
        %v2521 = vpop.f32.mrb[0].mxu0
        %v2522 = vadd.f32 %v1223, %v2521
        %v2523 = vpop.f32.mrb[0].mxu0
        %v2524 = vadd.f32 %v1227, %v2523
        %v2525 = vpop.f32.mrb[0].mxu0
        %v2526 = vadd.f32 %v1223, %v2525
        %v2527 = vpop.f32.mrb[0].mxu0
        %v2528 = vadd.f32 %v1227, %v2527
        %2529 = vmatprep.mubr.bf16.mxu0 %v502
        %2530 = vmatmul.mubr.bf16.gmra.mrb[0].mxu0 %v649
        %v2531 = vpop.f32.mrb[0].mxu0
        %v2532 = vadd.f32 %v1223, %v2531
        %v2533 = vpop.f32.mrb[0].mxu0
        %v2534 = vadd.f32 %v1227, %v2533
        %v2535 = vpop.f32.mrb[0].mxu0
        %v2536 = vadd.f32 %v1223, %v2535
        %v2537 = vpop.f32.mrb[0].mxu0
        %v2538 = vadd.f32 %v1227, %v2537
        %2539 = vmatprep.mubr.bf16.mxu0 %v503
        %2540 = vmatmul.mubr.bf16.gmra.mrb[0].mxu0 %v650
        %v2541 = vpop.f32.mrb[0].mxu0
        %v2542 = vadd.f32 %v1223, %v2541
        %v2543 = vpop.f32.mrb[0].mxu0
        %v2544 = vadd.f32 %v1227, %v2543
        %v2545 = vpop.f32.mrb[0].mxu0
        %v2546 = vadd.f32 %v1223, %v2545
        %v2547 = vpop.f32.mrb[0].mxu0
        %v2548 = vadd.f32 %v1227, %v2547
        %2549 = vmatprep.mubr.bf16.mxu0 %v504
        %2550 = vmatmul.mubr.bf16.gmra.mrb[0].mxu0 %v651
        %v2551 = vpop.f32.mrb[0].mxu0
        %v2552 = vadd.f32 %v1223, %v2551
        %v2553 = vpop.f32.mrb[0].mxu0
        %v2554 = vadd.f32 %v1227, %v2553
        %v2555 = vpop.f32.mrb[0].mxu0
        %v2556 = vadd.f32 %v1223, %v2555
        %v2557 = vpop.f32.mrb[0].mxu0
        %v2558 = vadd.f32 %v1227, %v2557
        %2559 = vmatprep.mubr.bf16.mxu0 %v505
        %2560 = vmatmul.mubr.bf16.gmra.mrb[0].mxu0 %v652
        %v2561 = vpop.f32.mrb[0].mxu0
        %v2562 = vadd.f32 %v1223, %v2561
        %v2563 = vpop.f32.mrb[0].mxu0
        %v2564 = vadd.f32 %v1227, %v2563
        %v2565 = vpop.f32.mrb[0].mxu0
        %v2566 = vadd.f32 %v1223, %v2565
        %v2567 = vpop.f32.mrb[0].mxu0
        %v2568 = vadd.f32 %v1227, %v2567
        %2569 = vmatprep.mubr.bf16.mxu0 %v506
        %2570 = vmatmul.mubr.bf16.gmra.mrb[0].mxu0 %v653
        %v2571 = vpop.f32.mrb[0].mxu0
        %v2572 = vadd.f32 %v1223, %v2571
        %v2573 = vpop.f32.mrb[0].mxu0
        %v2574 = vadd.f32 %v1227, %v2573
        %v2575 = vpop.f32.mrb[0].mxu0
        %v2576 = vadd.f32 %v1223, %v2575
        %v2577 = vpop.f32.mrb[0].mxu0
        %v2578 = vadd.f32 %v1227, %v2577
        %2579 = vdwg.mxu0
        %2580 = vmatprep.subr.bf16.mxu0 %v2004
        %2581 = vmatpush1.bf16.msra.mxu0 %v2003
        %2582 = vmatprep.subr.bf16.mxu0 %v2007
        %2583 = vmatpush1.bf16.msra.mxu0 %v2006
        %2584 = vmatprep.subr.bf16.mxu0 %v2010
        %2585 = vmatpush1.bf16.msra.mxu0 %v2009
        %2586 = vmatprep.subr.bf16.mxu0 %v2013
        %2587 = vmatpush1.bf16.msra.mxu0 %v2012
        %2588 = vmatprep.subr.bf16.mxu0 %v2016
        %2589 = vmatpush1.bf16.msra.mxu0 %v2015
        %2590 = vmatprep.subr.bf16.mxu0 %v2019
        %2591 = vmatpush1.bf16.msra.mxu0 %v2018
        %2592 = vmatprep.subr.bf16.mxu0 %v2022
        %2593 = vmatpush1.bf16.msra.mxu0 %v2021
        %2594 = vmatprep.subr.bf16.mxu0 %v2025
        %2595 = vmatpush1.bf16.msra.mxu0 %v2024
        %2596 = vmatprep.subr.bf16.mxu0 %v2028
        %2597 = vmatpush1.bf16.msra.mxu0 %v2027
        %2598 = vmatprep.subr.bf16.mxu0 %v2031
        %2599 = vmatpush1.bf16.msra.mxu0 %v2030
        %2600 = vmatprep.subr.bf16.mxu0 %v2034
        %2601 = vmatpush1.bf16.msra.mxu0 %v2033
        %2602 = vmatprep.subr.bf16.mxu0 %v2037
        %2603 = vmatpush1.bf16.msra.mxu0 %v2036
        %2604 = vmatprep.subr.bf16.mxu0 %v2040
        %2605 = vmatpush1.bf16.msra.mxu0 %v2039
        %2606 = vmatprep.subr.bf16.mxu0 %v2043
        %2607 = vmatpush1.bf16.msra.mxu0 %v2042
        %2608 = vmatprep.subr.bf16.mxu0 %v2046
        %2609 = vmatpush1.bf16.msra.mxu0 %v2045
        %2610 = vmatprep.subr.bf16.mxu0 %v2049
        %2611 = vmatpush1.bf16.msra.mxu0 %v2048
        %2612 = vmatprep.mubr.bf16.mxu0 %v639
        %2613 = vmatmul.mubr.bf16.gmra.mrb[0].mxu0 0
        %v2614 = vpop.f32.mrb[0].mxu0
        %v2615 = vadd.f32 %v2422, %v2614
        %v2616 = vpop.f32.mrb[0].mxu0
        %v2617 = vadd.f32 %v2424, %v2616
        %v2618 = vpop.f32.mrb[0].mxu0
        %v2619 = vadd.f32 %v2426, %v2618
        %v2620 = vpop.f32.mrb[0].mxu0
        %v2621 = vadd.f32 %v2428, %v2620
        %2622 = vmatprep.mubr.bf16.mxu0 %v640
        %2623 = vmatmul.mubr.bf16.gmra.mrb[0].mxu0 %v706
        %v2624 = vpop.f32.mrb[0].mxu0
        %v2625 = vadd.f32 %v2432, %v2624
        %v2626 = vpop.f32.mrb[0].mxu0
        %v2627 = vadd.f32 %v2434, %v2626
        %v2628 = vpop.f32.mrb[0].mxu0
        %v2629 = vadd.f32 %v2436, %v2628
        %v2630 = vpop.f32.mrb[0].mxu0
        %v2631 = vadd.f32 %v2438, %v2630
        %2632 = vmatprep.mubr.bf16.mxu0 %v641
        %2633 = vmatmul.mubr.bf16.gmra.mrb[0].mxu0 %v707
        %v2634 = vpop.f32.mrb[0].mxu0
        %v2635 = vadd.f32 %v2442, %v2634
        %v2636 = vpop.f32.mrb[0].mxu0
        %v2637 = vadd.f32 %v2444, %v2636
        %v2638 = vpop.f32.mrb[0].mxu0
        %v2639 = vadd.f32 %v2446, %v2638
        %v2640 = vpop.f32.mrb[0].mxu0
        %v2641 = vadd.f32 %v2448, %v2640
        %2642 = vmatprep.mubr.bf16.mxu0 %v642
        %2643 = vmatmul.mubr.bf16.gmra.mrb[0].mxu0 %v708
        %v2644 = vpop.f32.mrb[0].mxu0
        %v2645 = vadd.f32 %v2452, %v2644
        %v2646 = vpop.f32.mrb[0].mxu0
        %v2647 = vadd.f32 %v2454, %v2646
        %v2648 = vpop.f32.mrb[0].mxu0
        %v2649 = vadd.f32 %v2456, %v2648
        %v2650 = vpop.f32.mrb[0].mxu0
        %v2651 = vadd.f32 %v2458, %v2650
        %2652 = vmatprep.mubr.bf16.mxu0 %v643
        %2653 = vmatmul.mubr.bf16.gmra.mrb[0].mxu0 %v709
        %v2654 = vpop.f32.mrb[0].mxu0
        %v2655 = vadd.f32 %v2462, %v2654
        %v2656 = vpop.f32.mrb[0].mxu0
        %v2657 = vadd.f32 %v2464, %v2656
        %v2658 = vpop.f32.mrb[0].mxu0
        %v2659 = vadd.f32 %v2466, %v2658
        %v2660 = vpop.f32.mrb[0].mxu0
        %v2661 = vadd.f32 %v2468, %v2660
        %2662 = vmatprep.mubr.bf16.mxu0 %v644
        %2663 = vmatmul.mubr.bf16.gmra.mrb[0].mxu0 %v710
        %v2664 = vpop.f32.mrb[0].mxu0
        %v2665 = vadd.f32 %v2472, %v2664
        %v2666 = vpop.f32.mrb[0].mxu0
        %v2667 = vadd.f32 %v2474, %v2666
        %v2668 = vpop.f32.mrb[0].mxu0
        %v2669 = vadd.f32 %v2476, %v2668
        %v2670 = vpop.f32.mrb[0].mxu0
        %v2671 = vadd.f32 %v2478, %v2670
        %2672 = vmatprep.mubr.bf16.mxu0 %v645
        %2673 = vmatmul.mubr.bf16.gmra.mrb[0].mxu0 %v711
        %v2674 = vpop.f32.mrb[0].mxu0
        %v2675 = vadd.f32 %v2482, %v2674
        %v2676 = vpop.f32.mrb[0].mxu0
        %v2677 = vadd.f32 %v2484, %v2676
        %v2678 = vpop.f32.mrb[0].mxu0
        %v2679 = vadd.f32 %v2486, %v2678
        %v2680 = vpop.f32.mrb[0].mxu0
        %v2681 = vadd.f32 %v2488, %v2680
        %2682 = vmatprep.mubr.bf16.mxu0 %v646
        %2683 = vmatmul.mubr.bf16.gmra.mrb[0].mxu0 %v712
        %v2684 = vpop.f32.mrb[0].mxu0
        %v2685 = vadd.f32 %v2492, %v2684
        %v2686 = vpop.f32.mrb[0].mxu0
        %v2687 = vadd.f32 %v2494, %v2686
        %v2688 = vpop.f32.mrb[0].mxu0
        %v2689 = vadd.f32 %v2496, %v2688
        %v2690 = vpop.f32.mrb[0].mxu0
        %v2691 = vadd.f32 %v2498, %v2690
        %2692 = vmatprep.mubr.bf16.mxu0 %v647
        %2693 = vmatmul.mubr.bf16.gmra.mrb[0].mxu0 %v713
        %v2694 = vpop.f32.mrb[0].mxu0
        %v2695 = vadd.f32 %v2502, %v2694
        %v2696 = vpop.f32.mrb[0].mxu0
        %v2697 = vadd.f32 %v2504, %v2696
        %v2698 = vpop.f32.mrb[0].mxu0
        %v2699 = vadd.f32 %v2506, %v2698
        %v2700 = vpop.f32.mrb[0].mxu0
        %v2701 = vadd.f32 %v2508, %v2700
        %2702 = vmatprep.mubr.bf16.mxu0 %v648
        %2703 = vmatmul.mubr.bf16.gmra.mrb[0].mxu0 %v714
        %v2704 = vpop.f32.mrb[0].mxu0
        %v2705 = vadd.f32 %v2512, %v2704
        %v2706 = vpop.f32.mrb[0].mxu0
        %v2707 = vadd.f32 %v2514, %v2706
        %v2708 = vpop.f32.mrb[0].mxu0
        %v2709 = vadd.f32 %v2516, %v2708
        %v2710 = vpop.f32.mrb[0].mxu0
        %v2711 = vadd.f32 %v2518, %v2710
        %2712 = vmatprep.mubr.bf16.mxu0 %v649
        %2713 = vmatmul.mubr.bf16.gmra.mrb[0].mxu0 %v715
        %v2714 = vpop.f32.mrb[0].mxu0
        %v2715 = vadd.f32 %v2522, %v2714
        %v2716 = vpop.f32.mrb[0].mxu0
        %v2717 = vadd.f32 %v2524, %v2716
        %v2718 = vpop.f32.mrb[0].mxu0
        %v2719 = vadd.f32 %v2526, %v2718
        %v2720 = vpop.f32.mrb[0].mxu0
        %v2721 = vadd.f32 %v2528, %v2720
        %2722 = vmatprep.mubr.bf16.mxu0 %v650
        %2723 = vmatmul.mubr.bf16.gmra.mrb[0].mxu0 %v716
        %v2724 = vpop.f32.mrb[0].mxu0
        %v2725 = vadd.f32 %v2532, %v2724
        %v2726 = vpop.f32.mrb[0].mxu0
        %v2727 = vadd.f32 %v2534, %v2726
        %v2728 = vpop.f32.mrb[0].mxu0
        %v2729 = vadd.f32 %v2536, %v2728
        %v2730 = vpop.f32.mrb[0].mxu0
        %v2731 = vadd.f32 %v2538, %v2730
        %2732 = vmatprep.mubr.bf16.mxu0 %v651
        %2733 = vmatmul.mubr.bf16.gmra.mrb[0].mxu0 %v717
        %v2734 = vpop.f32.mrb[0].mxu0
        %v2735 = vadd.f32 %v2542, %v2734
        %v2736 = vpop.f32.mrb[0].mxu0
        %v2737 = vadd.f32 %v2544, %v2736
        %v2738 = vpop.f32.mrb[0].mxu0
        %v2739 = vadd.f32 %v2546, %v2738
        %v2740 = vpop.f32.mrb[0].mxu0
        %v2741 = vadd.f32 %v2548, %v2740
        %2742 = vmatprep.mubr.bf16.mxu0 %v652
        %2743 = vmatmul.mubr.bf16.gmra.mrb[0].mxu0 %v718
        %v2744 = vpop.f32.mrb[0].mxu0
        %v2745 = vadd.f32 %v2552, %v2744
        %v2746 = vpop.f32.mrb[0].mxu0
        %v2747 = vadd.f32 %v2554, %v2746
        %v2748 = vpop.f32.mrb[0].mxu0
        %v2749 = vadd.f32 %v2556, %v2748
        %v2750 = vpop.f32.mrb[0].mxu0
        %v2751 = vadd.f32 %v2558, %v2750
        %2752 = vmatprep.mubr.bf16.mxu0 %v653
        %2753 = vmatmul.mubr.bf16.gmra.mrb[0].mxu0 %v719
        %v2754 = vpop.f32.mrb[0].mxu0
        %v2755 = vadd.f32 %v2562, %v2754
        %v2756 = vpop.f32.mrb[0].mxu0
        %v2757 = vadd.f32 %v2564, %v2756
        %v2758 = vpop.f32.mrb[0].mxu0
        %v2759 = vadd.f32 %v2566, %v2758
        %v2760 = vpop.f32.mrb[0].mxu0
        %v2761 = vadd.f32 %v2568, %v2760
        %2762 = vmatprep.mubr.bf16.mxu0 %v654
        %2763 = vmatmul.mubr.bf16.gmra.mrb[0].mxu0 %v720
        %v2764 = vpop.f32.mrb[0].mxu0
        %v2765 = vadd.f32 %v2572, %v2764
        %v2766 = vpop.f32.mrb[0].mxu0
        %v2767 = vadd.f32 %v2574, %v2766
        %v2768 = vpop.f32.mrb[0].mxu0
        %v2769 = vadd.f32 %v2576, %v2768
        %v2770 = vpop.f32.mrb[0].mxu0
        %v2771 = vadd.f32 %v2578, %v2770
        %2772 = vdwg.mxu0
        %2773 = vmatprep.subr.bf16.mxu0 %v2052
        %2774 = vmatpush1.bf16.msra.mxu0 %v2051
        %2775 = vmatprep.subr.bf16.mxu0 %v2055
        %2776 = vmatpush1.bf16.msra.mxu0 %v2054
        %2777 = vmatprep.subr.bf16.mxu0 %v2058
        %2778 = vmatpush1.bf16.msra.mxu0 %v2057
        %2779 = vmatprep.subr.bf16.mxu0 %v2061
        %2780 = vmatpush1.bf16.msra.mxu0 %v2060
        %2781 = vmatprep.subr.bf16.mxu0 %v2064
        %2782 = vmatpush1.bf16.msra.mxu0 %v2063
        %2783 = vmatprep.subr.bf16.mxu0 %v2067
        %2784 = vmatpush1.bf16.msra.mxu0 %v2066
        %2785 = vmatprep.subr.bf16.mxu0 %v2070
        %2786 = vmatpush1.bf16.msra.mxu0 %v2069
        %2787 = vmatprep.subr.bf16.mxu0 %v2073
        %2788 = vmatpush1.bf16.msra.mxu0 %v2072
        %2789 = vmatprep.subr.bf16.mxu0 %v2076
        %2790 = vmatpush1.bf16.msra.mxu0 %v2075
        %2791 = vmatprep.subr.bf16.mxu0 %v2079
        %2792 = vmatpush1.bf16.msra.mxu0 %v2078
        %2793 = vmatprep.subr.bf16.mxu0 %v2082
        %2794 = vmatpush1.bf16.msra.mxu0 %v2081
        %2795 = vmatprep.subr.bf16.mxu0 %v2085
        %2796 = vmatpush1.bf16.msra.mxu0 %v2084
        %2797 = vmatprep.subr.bf16.mxu0 %v2088
        %2798 = vmatpush1.bf16.msra.mxu0 %v2087
        %2799 = vmatprep.subr.bf16.mxu0 %v2091
        %2800 = vmatpush1.bf16.msra.mxu0 %v2090
        %2801 = vmatprep.subr.bf16.mxu0 %v2094
        %2802 = vmatpush1.bf16.msra.mxu0 %v2093
        %2803 = vmatprep.subr.bf16.mxu0 %v2097
        %2804 = vmatpush1.bf16.msra.mxu0 %v2096
        %2805 = vmatprep.mubr.bf16.mxu0 %v706
        %2806 = vmatmul.mubr.bf16.gmra.mrb[0].mxu0 %v492
        %v2807 = vpop.f32.mrb[0].mxu0
        %v2808 = vadd.f32 %v2615, %v2807
        %v2809 = vpop.f32.mrb[0].mxu0
        %v2810 = vadd.f32 %v2617, %v2809
        %v2811 = vpop.f32.mrb[0].mxu0
        %v2812 = vadd.f32 %v2619, %v2811
        %v2813 = vpop.f32.mrb[0].mxu0
        %v2814 = vadd.f32 %v2621, %v2813
        %2815 = vmatprep.mubr.bf16.mxu0 %v707
        %2816 = vmatmul.mubr.bf16.gmra.mrb[0].mxu0 %v493
        %v2817 = vpop.f32.mrb[0].mxu0
        %v2818 = vadd.f32 %v2625, %v2817
        %v2819 = vpop.f32.mrb[0].mxu0
        %v2820 = vadd.f32 %v2627, %v2819
        %v2821 = vpop.f32.mrb[0].mxu0
        %v2822 = vadd.f32 %v2629, %v2821
        %v2823 = vpop.f32.mrb[0].mxu0
        %v2824 = vadd.f32 %v2631, %v2823
        %2825 = vmatprep.mubr.bf16.mxu0 %v708
        %2826 = vmatmul.mubr.bf16.gmra.mrb[0].mxu0 %v494
        %v2827 = vpop.f32.mrb[0].mxu0
        %v2828 = vadd.f32 %v2635, %v2827
        %v2829 = vpop.f32.mrb[0].mxu0
        %v2830 = vadd.f32 %v2637, %v2829
        %v2831 = vpop.f32.mrb[0].mxu0
        %v2832 = vadd.f32 %v2639, %v2831
        %v2833 = vpop.f32.mrb[0].mxu0
        %v2834 = vadd.f32 %v2641, %v2833
        %2835 = vmatprep.mubr.bf16.mxu0 %v709
        %2836 = vmatmul.mubr.bf16.gmra.mrb[0].mxu0 %v495
        %v2837 = vpop.f32.mrb[0].mxu0
        %v2838 = vadd.f32 %v2645, %v2837
        %v2839 = vpop.f32.mrb[0].mxu0
        %v2840 = vadd.f32 %v2647, %v2839
        %v2841 = vpop.f32.mrb[0].mxu0
        %v2842 = vadd.f32 %v2649, %v2841
        %v2843 = vpop.f32.mrb[0].mxu0
        %v2844 = vadd.f32 %v2651, %v2843
        %2845 = vmatprep.mubr.bf16.mxu0 %v710
        %2846 = vmatmul.mubr.bf16.gmra.mrb[0].mxu0 %v496
        %v2847 = vpop.f32.mrb[0].mxu0
        %v2848 = vadd.f32 %v2655, %v2847
        %v2849 = vpop.f32.mrb[0].mxu0
        %v2850 = vadd.f32 %v2657, %v2849
        %v2851 = vpop.f32.mrb[0].mxu0
        %v2852 = vadd.f32 %v2659, %v2851
        %v2853 = vpop.f32.mrb[0].mxu0
        %v2854 = vadd.f32 %v2661, %v2853
        %2855 = vmatprep.mubr.bf16.mxu0 %v711
        %2856 = vmatmul.mubr.bf16.gmra.mrb[0].mxu0 %v497
        %v2857 = vpop.f32.mrb[0].mxu0
        %v2858 = vadd.f32 %v2665, %v2857
        %v2859 = vpop.f32.mrb[0].mxu0
        %v2860 = vadd.f32 %v2667, %v2859
        %v2861 = vpop.f32.mrb[0].mxu0
        %v2862 = vadd.f32 %v2669, %v2861
        %v2863 = vpop.f32.mrb[0].mxu0
        %v2864 = vadd.f32 %v2671, %v2863
        %2865 = vmatprep.mubr.bf16.mxu0 %v712
        %2866 = vmatmul.mubr.bf16.gmra.mrb[0].mxu0 %v498
        %v2867 = vpop.f32.mrb[0].mxu0
        %v2868 = vadd.f32 %v2675, %v2867
        %v2869 = vpop.f32.mrb[0].mxu0
        %v2870 = vadd.f32 %v2677, %v2869
        %v2871 = vpop.f32.mrb[0].mxu0
        %v2872 = vadd.f32 %v2679, %v2871
        %v2873 = vpop.f32.mrb[0].mxu0
        %v2874 = vadd.f32 %v2681, %v2873
        %2875 = vmatprep.mubr.bf16.mxu0 %v713
        %2876 = vmatmul.mubr.bf16.gmra.mrb[0].mxu0 %v499
        %v2877 = vpop.f32.mrb[0].mxu0
        %v2878 = vadd.f32 %v2685, %v2877
        %v2879 = vpop.f32.mrb[0].mxu0
        %v2880 = vadd.f32 %v2687, %v2879
        %v2881 = vpop.f32.mrb[0].mxu0
        %v2882 = vadd.f32 %v2689, %v2881
        %v2883 = vpop.f32.mrb[0].mxu0
        %v2884 = vadd.f32 %v2691, %v2883
        %2885 = vmatprep.mubr.bf16.mxu0 %v714
        %2886 = vmatmul.mubr.bf16.gmra.mrb[0].mxu0 %v500
        %v2887 = vpop.f32.mrb[0].mxu0
        %v2888 = vadd.f32 %v2695, %v2887
        %v2889 = vpop.f32.mrb[0].mxu0
        %v2890 = vadd.f32 %v2697, %v2889
        %v2891 = vpop.f32.mrb[0].mxu0
        %v2892 = vadd.f32 %v2699, %v2891
        %v2893 = vpop.f32.mrb[0].mxu0
        %v2894 = vadd.f32 %v2701, %v2893
        %2895 = vmatprep.mubr.bf16.mxu0 %v715
        %2896 = vmatmul.mubr.bf16.gmra.mrb[0].mxu0 %v501
        %v2897 = vpop.f32.mrb[0].mxu0
        %v2898 = vadd.f32 %v2705, %v2897
        %v2899 = vpop.f32.mrb[0].mxu0
        %v2900 = vadd.f32 %v2707, %v2899
        %v2901 = vpop.f32.mrb[0].mxu0
        %v2902 = vadd.f32 %v2709, %v2901
        %v2903 = vpop.f32.mrb[0].mxu0
        %v2904 = vadd.f32 %v2711, %v2903
        %2905 = vmatprep.mubr.bf16.mxu0 %v716
        %2906 = vmatmul.mubr.bf16.gmra.mrb[0].mxu0 %v502
        %v2907 = vpop.f32.mrb[0].mxu0
        %v2908 = vadd.f32 %v2715, %v2907
        %v2909 = vpop.f32.mrb[0].mxu0
        %v2910 = vadd.f32 %v2717, %v2909
        %v2911 = vpop.f32.mrb[0].mxu0
        %v2912 = vadd.f32 %v2719, %v2911
        %v2913 = vpop.f32.mrb[0].mxu0
        %v2914 = vadd.f32 %v2721, %v2913
        %2915 = vmatprep.mubr.bf16.mxu0 %v717
        %2916 = vmatmul.mubr.bf16.gmra.mrb[0].mxu0 %v503
        %v2917 = vpop.f32.mrb[0].mxu0
        %v2918 = vadd.f32 %v2725, %v2917
        %v2919 = vpop.f32.mrb[0].mxu0
        %v2920 = vadd.f32 %v2727, %v2919
        %v2921 = vpop.f32.mrb[0].mxu0
        %v2922 = vadd.f32 %v2729, %v2921
        %v2923 = vpop.f32.mrb[0].mxu0
        %v2924 = vadd.f32 %v2731, %v2923
        %2925 = vmatprep.mubr.bf16.mxu0 %v718
        %2926 = vmatmul.mubr.bf16.gmra.mrb[0].mxu0 %v504
        %v2927 = vpop.f32.mrb[0].mxu0
        %v2928 = vadd.f32 %v2735, %v2927
        %v2929 = vpop.f32.mrb[0].mxu0
        %v2930 = vadd.f32 %v2737, %v2929
        %v2931 = vpop.f32.mrb[0].mxu0
        %v2932 = vadd.f32 %v2739, %v2931
        %v2933 = vpop.f32.mrb[0].mxu0
        %v2934 = vadd.f32 %v2741, %v2933
        %2935 = vmatprep.mubr.bf16.mxu0 %v719
        %2936 = vmatmul.mubr.bf16.gmra.mrb[0].mxu0 %v505
        %v2937 = vpop.f32.mrb[0].mxu0
        %v2938 = vadd.f32 %v2745, %v2937
        %v2939 = vpop.f32.mrb[0].mxu0
        %v2940 = vadd.f32 %v2747, %v2939
        %v2941 = vpop.f32.mrb[0].mxu0
        %v2942 = vadd.f32 %v2749, %v2941
        %v2943 = vpop.f32.mrb[0].mxu0
        %v2944 = vadd.f32 %v2751, %v2943
        %2945 = vmatprep.mubr.bf16.mxu0 %v720
        %2946 = vmatmul.mubr.bf16.gmra.mrb[0].mxu0 %v506
        %v2947 = vpop.f32.mrb[0].mxu0
        %v2948 = vadd.f32 %v2755, %v2947
        %v2949 = vpop.f32.mrb[0].mxu0
        %v2950 = vadd.f32 %v2757, %v2949
        %v2951 = vpop.f32.mrb[0].mxu0
        %v2952 = vadd.f32 %v2759, %v2951
        %v2953 = vpop.f32.mrb[0].mxu0
        %v2954 = vadd.f32 %v2761, %v2953
        %2955 = vmatprep.mubr.bf16.mxu0 %v721
        %2956 = vmatmul.mubr.bf16.gmra.mrb[0].mxu0 %v507
        %v2957 = vpop.f32.mrb[0].mxu0
        %v2958 = vadd.f32 %v2765, %v2957
        %v2959 = vpop.f32.mrb[0].mxu0
        %v2960 = vadd.f32 %v2767, %v2959
        %v2961 = vpop.f32.mrb[0].mxu0
        %v2962 = vadd.f32 %v2769, %v2961
        %v2963 = vpop.f32.mrb[0].mxu0
        %v2964 = vadd.f32 %v2771, %v2963
        %2965 = vdwg.mxu0
        %2966 = vmatprep.subr.bf16.mxu0 %v2100
        %2967 = vmatpush1.bf16.msra.mxu0 %v2099
        %2968 = vmatprep.subr.bf16.mxu0 %v2103
        %2969 = vmatpush1.bf16.msra.mxu0 %v2102
        %2970 = vmatprep.subr.bf16.mxu0 %v2106
        %2971 = vmatpush1.bf16.msra.mxu0 %v2105
        %2972 = vmatprep.subr.bf16.mxu0 %v2109
        %2973 = vmatpush1.bf16.msra.mxu0 %v2108
        %2974 = vmatprep.subr.bf16.mxu0 %v2112
        %2975 = vmatpush1.bf16.msra.mxu0 %v2111
        %2976 = vmatprep.subr.bf16.mxu0 %v2115
        %2977 = vmatpush1.bf16.msra.mxu0 %v2114
        %2978 = vmatprep.subr.bf16.mxu0 %v2118
        %2979 = vmatpush1.bf16.msra.mxu0 %v2117
        %2980 = vmatprep.subr.bf16.mxu0 %v2121
        %2981 = vmatpush1.bf16.msra.mxu0 %v2120
        %2982 = vmatprep.subr.bf16.mxu0 %v2124
        %2983 = vmatpush1.bf16.msra.mxu0 %v2123
        %2984 = vmatprep.subr.bf16.mxu0 %v2127
        %2985 = vmatpush1.bf16.msra.mxu0 %v2126
        %2986 = vmatprep.subr.bf16.mxu0 %v2130
        %2987 = vmatpush1.bf16.msra.mxu0 %v2129
        %2988 = vmatprep.subr.bf16.mxu0 %v2133
        %2989 = vmatpush1.bf16.msra.mxu0 %v2132
        %2990 = vmatprep.subr.bf16.mxu0 %v2136
        %2991 = vmatpush1.bf16.msra.mxu0 %v2135
        %2992 = vmatprep.subr.bf16.mxu0 %v2139
        %2993 = vmatpush1.bf16.msra.mxu0 %v2138
        %2994 = vmatprep.subr.bf16.mxu0 %v2142
        %2995 = vmatpush1.bf16.msra.mxu0 %v2141
        %2996 = vmatprep.subr.bf16.mxu0 %v2145
        %2997 = vmatpush1.bf16.msra.mxu0 %v2144
        %2998 = vmatprep.mubr.bf16.mxu0 %v493
        %2999 = vmatmul.mubr.bf16.gmra.mrb[0].mxu0 %v640
        %v3000 = vpop.f32.mrb[0].mxu0
        %v3001 = vadd.f32 %v2808, %v3000
        %v3002 = vpop.f32.mrb[0].mxu0
        %v3003 = vadd.f32 %v2810, %v3002
        %v3004 = vpop.f32.mrb[0].mxu0
        %v3005 = vadd.f32 %v2812, %v3004
        %v3006 = vpop.f32.mrb[0].mxu0
        %v3007 = vadd.f32 %v2814, %v3006
        %3008 = vmatprep.mubr.bf16.mxu0 %v494
        %3009 = vmatmul.mubr.bf16.gmra.mrb[0].mxu0 %v641
        %v3010 = vpop.f32.mrb[0].mxu0
        %v3011 = vadd.f32 %v2818, %v3010
        %v3012 = vpop.f32.mrb[0].mxu0
        %v3013 = vadd.f32 %v2820, %v3012
        %v3014 = vpop.f32.mrb[0].mxu0
        %v3015 = vadd.f32 %v2822, %v3014
        %v3016 = vpop.f32.mrb[0].mxu0
        %v3017 = vadd.f32 %v2824, %v3016
        %3018 = vmatprep.mubr.bf16.mxu0 %v495
        %3019 = vmatmul.mubr.bf16.gmra.mrb[0].mxu0 %v642
        %v3020 = vpop.f32.mrb[0].mxu0
        %v3021 = vadd.f32 %v2828, %v3020
        %v3022 = vpop.f32.mrb[0].mxu0
        %v3023 = vadd.f32 %v2830, %v3022
        %v3024 = vpop.f32.mrb[0].mxu0
        %v3025 = vadd.f32 %v2832, %v3024
        %v3026 = vpop.f32.mrb[0].mxu0
        %v3027 = vadd.f32 %v2834, %v3026
        %3028 = vmatprep.mubr.bf16.mxu0 %v496
        %3029 = vmatmul.mubr.bf16.gmra.mrb[0].mxu0 %v643
        %v3030 = vpop.f32.mrb[0].mxu0
        %v3031 = vadd.f32 %v2838, %v3030
        %v3032 = vpop.f32.mrb[0].mxu0
        %v3033 = vadd.f32 %v2840, %v3032
        %v3034 = vpop.f32.mrb[0].mxu0
        %v3035 = vadd.f32 %v2842, %v3034
        %v3036 = vpop.f32.mrb[0].mxu0
        %v3037 = vadd.f32 %v2844, %v3036
        %3038 = vmatprep.mubr.bf16.mxu0 %v497
        %3039 = vmatmul.mubr.bf16.gmra.mrb[0].mxu0 %v644
        %v3040 = vpop.f32.mrb[0].mxu0
        %v3041 = vadd.f32 %v2848, %v3040
        %v3042 = vpop.f32.mrb[0].mxu0
        %v3043 = vadd.f32 %v2850, %v3042
        %v3044 = vpop.f32.mrb[0].mxu0
        %v3045 = vadd.f32 %v2852, %v3044
        %v3046 = vpop.f32.mrb[0].mxu0
        %v3047 = vadd.f32 %v2854, %v3046
        %3048 = vmatprep.mubr.bf16.mxu0 %v498
        %3049 = vmatmul.mubr.bf16.gmra.mrb[0].mxu0 %v645
        %v3050 = vpop.f32.mrb[0].mxu0
        %v3051 = vadd.f32 %v2858, %v3050
        %v3052 = vpop.f32.mrb[0].mxu0
        %v3053 = vadd.f32 %v2860, %v3052
        %v3054 = vpop.f32.mrb[0].mxu0
        %v3055 = vadd.f32 %v2862, %v3054
        %v3056 = vpop.f32.mrb[0].mxu0
        %v3057 = vadd.f32 %v2864, %v3056
        %3058 = vmatprep.mubr.bf16.mxu0 %v499
        %3059 = vmatmul.mubr.bf16.gmra.mrb[0].mxu0 %v646
        %v3060 = vpop.f32.mrb[0].mxu0
        %v3061 = vadd.f32 %v2868, %v3060
        %v3062 = vpop.f32.mrb[0].mxu0
        %v3063 = vadd.f32 %v2870, %v3062
        %v3064 = vpop.f32.mrb[0].mxu0
        %v3065 = vadd.f32 %v2872, %v3064
        %v3066 = vpop.f32.mrb[0].mxu0
        %v3067 = vadd.f32 %v2874, %v3066
        %3068 = vmatprep.mubr.bf16.mxu0 %v500
        %3069 = vmatmul.mubr.bf16.gmra.mrb[0].mxu0 %v647
        %v3070 = vpop.f32.mrb[0].mxu0
        %v3071 = vadd.f32 %v2878, %v3070
        %v3072 = vpop.f32.mrb[0].mxu0
        %v3073 = vadd.f32 %v2880, %v3072
        %v3074 = vpop.f32.mrb[0].mxu0
        %v3075 = vadd.f32 %v2882, %v3074
        %v3076 = vpop.f32.mrb[0].mxu0
        %v3077 = vadd.f32 %v2884, %v3076
        %3078 = vmatprep.mubr.bf16.mxu0 %v501
        %3079 = vmatmul.mubr.bf16.gmra.mrb[0].mxu0 %v648
        %v3080 = vpop.f32.mrb[0].mxu0
        %v3081 = vadd.f32 %v2888, %v3080
        %v3082 = vpop.f32.mrb[0].mxu0
        %v3083 = vadd.f32 %v2890, %v3082
        %v3084 = vpop.f32.mrb[0].mxu0
        %v3085 = vadd.f32 %v2892, %v3084
        %v3086 = vpop.f32.mrb[0].mxu0
        %v3087 = vadd.f32 %v2894, %v3086
        %3088 = vmatprep.mubr.bf16.mxu0 %v502
        %3089 = vmatmul.mubr.bf16.gmra.mrb[0].mxu0 %v649
        %v3090 = vpop.f32.mrb[0].mxu0
        %v3091 = vadd.f32 %v2898, %v3090
        %v3092 = vpop.f32.mrb[0].mxu0
        %v3093 = vadd.f32 %v2900, %v3092
        %v3094 = vpop.f32.mrb[0].mxu0
        %v3095 = vadd.f32 %v2902, %v3094
        %v3096 = vpop.f32.mrb[0].mxu0
        %v3097 = vadd.f32 %v2904, %v3096
        %3098 = vmatprep.mubr.bf16.mxu0 %v503
        %3099 = vmatmul.mubr.bf16.gmra.mrb[0].mxu0 %v650
        %v3100 = vpop.f32.mrb[0].mxu0
        %v3101 = vadd.f32 %v2908, %v3100
        %v3102 = vpop.f32.mrb[0].mxu0
        %v3103 = vadd.f32 %v2910, %v3102
        %v3104 = vpop.f32.mrb[0].mxu0
        %v3105 = vadd.f32 %v2912, %v3104
        %v3106 = vpop.f32.mrb[0].mxu0
        %v3107 = vadd.f32 %v2914, %v3106
        %3108 = vmatprep.mubr.bf16.mxu0 %v504
        %3109 = vmatmul.mubr.bf16.gmra.mrb[0].mxu0 %v651
        %v3110 = vpop.f32.mrb[0].mxu0
        %v3111 = vadd.f32 %v2918, %v3110
        %v3112 = vpop.f32.mrb[0].mxu0
        %v3113 = vadd.f32 %v2920, %v3112
        %v3114 = vpop.f32.mrb[0].mxu0
        %v3115 = vadd.f32 %v2922, %v3114
        %v3116 = vpop.f32.mrb[0].mxu0
        %v3117 = vadd.f32 %v2924, %v3116
        %3118 = vmatprep.mubr.bf16.mxu0 %v505
        %3119 = vmatmul.mubr.bf16.gmra.mrb[0].mxu0 %v652
        %v3120 = vpop.f32.mrb[0].mxu0
        %v3121 = vadd.f32 %v2928, %v3120
        %v3122 = vpop.f32.mrb[0].mxu0
        %v3123 = vadd.f32 %v2930, %v3122
        %v3124 = vpop.f32.mrb[0].mxu0
        %v3125 = vadd.f32 %v2932, %v3124
        %v3126 = vpop.f32.mrb[0].mxu0
        %v3127 = vadd.f32 %v2934, %v3126
        %3128 = vmatprep.mubr.bf16.mxu0 %v506
        %3129 = vmatmul.mubr.bf16.gmra.mrb[0].mxu0 %v653
        %v3130 = vpop.f32.mrb[0].mxu0
        %v3131 = vadd.f32 %v2938, %v3130
        %v3132 = vpop.f32.mrb[0].mxu0
        %v3133 = vadd.f32 %v2940, %v3132
        %v3134 = vpop.f32.mrb[0].mxu0
        %v3135 = vadd.f32 %v2942, %v3134
        %v3136 = vpop.f32.mrb[0].mxu0
        %v3137 = vadd.f32 %v2944, %v3136
        %3138 = vmatprep.mubr.bf16.mxu0 %v507
        %3139 = vmatmul.mubr.bf16.gmra.mrb[0].mxu0 %v654
        %v3140 = vpop.f32.mrb[0].mxu0
        %v3141 = vadd.f32 %v2948, %v3140
        %v3142 = vpop.f32.mrb[0].mxu0
        %v3143 = vadd.f32 %v2950, %v3142
        %v3144 = vpop.f32.mrb[0].mxu0
        %v3145 = vadd.f32 %v2952, %v3144
        %v3146 = vpop.f32.mrb[0].mxu0
        %v3147 = vadd.f32 %v2954, %v3146
        %3148 = vmatprep.mubr.bf16.mxu0 0
        %3149 = vmatmul.mubr.bf16.gmra.mrb[0].mxu0 0
        %v3150 = vpop.f32.mrb[0].mxu0
        %v3151 = vadd.f32 %v2958, %v3150
        %v3152 = vpop.f32.mrb[0].mxu0
        %v3153 = vadd.f32 %v2960, %v3152
        %v3154 = vpop.f32.mrb[0].mxu0
        %v3155 = vadd.f32 %v2962, %v3154
        %v3156 = vpop.f32.mrb[0].mxu0
        %v3157 = vadd.f32 %v2964, %v3156
        %3158 = vdwg.mxu0
        %3159 = vmatprep.subr.bf16.mxu0 %v2148
        %3160 = vmatpush1.bf16.msra.mxu0 %v2147
        %3161 = vmatprep.subr.bf16.mxu0 %v2151
        %3162 = vmatpush1.bf16.msra.mxu0 %v2150
        %3163 = vmatprep.subr.bf16.mxu0 %v2154
        %3164 = vmatpush1.bf16.msra.mxu0 %v2153
        %3165 = vmatprep.subr.bf16.mxu0 %v2157
        %3166 = vmatpush1.bf16.msra.mxu0 %v2156
        %3167 = vmatprep.subr.bf16.mxu0 %v2160
        %3168 = vmatpush1.bf16.msra.mxu0 %v2159
        %3169 = vmatprep.subr.bf16.mxu0 %v2163
        %3170 = vmatpush1.bf16.msra.mxu0 %v2162
        %3171 = vmatprep.subr.bf16.mxu0 %v2166
        %3172 = vmatpush1.bf16.msra.mxu0 %v2165
        %3173 = vmatprep.subr.bf16.mxu0 %v2169
        %3174 = vmatpush1.bf16.msra.mxu0 %v2168
        %3175 = vmatprep.subr.bf16.mxu0 0
        %3176 = vmatpush1.bf16.msra.mxu0 0
        %3177 = vmatprep.subr.bf16.mxu0 0
        %3178 = vmatpush1.bf16.msra.mxu0 0
        %3179 = vmatprep.subr.bf16.mxu0 0
        %3180 = vmatpush1.bf16.msra.mxu0 0
        %3181 = vmatprep.subr.bf16.mxu0 0
        %3182 = vmatpush1.bf16.msra.mxu0 0
        %3183 = vmatprep.subr.bf16.mxu0 0
        %3184 = vmatpush1.bf16.msra.mxu0 0
        %3185 = vmatprep.subr.bf16.mxu0 0
        %3186 = vmatpush1.bf16.msra.mxu0 0
        %3187 = vmatprep.subr.bf16.mxu0 0
        %3188 = vmatpush1.bf16.msra.mxu0 0
        %3189 = vmatprep.subr.bf16.mxu0 0
        %3190 = vmatpush1.bf16.msra.mxu0 0
        %3191 = vmatprep.mubr.bf16.mxu0 0
        %3192 = vmatmul.mubr.bf16.gmra.mrb[0].mxu0 %v707
        %v3193 = vpop.f32.mrb[0].mxu0
        %v3194 = vadd.f32 %v3001, %v3193
        %v3195 = vpop.f32.mrb[0].mxu0
        %v3196 = vadd.f32 %v3003, %v3195
        %v3197 = vpop.f32.mrb[0].mxu0
        %v3198 = vadd.f32 %v3005, %v3197
        %v3199 = vpop.f32.mrb[0].mxu0
        %v3200 = vadd.f32 %v3007, %v3199
        %3201 = vmatprep.mubr.bf16.mxu0 0
        %3202 = vmatmul.mubr.bf16.gmra.mrb[0].mxu0 %v708
        %v3203 = vpop.f32.mrb[0].mxu0
        %v3204 = vadd.f32 %v3011, %v3203
        %v3205 = vpop.f32.mrb[0].mxu0
        %v3206 = vadd.f32 %v3013, %v3205
        %v3207 = vpop.f32.mrb[0].mxu0
        %v3208 = vadd.f32 %v3015, %v3207
        %v3209 = vpop.f32.mrb[0].mxu0
        %v3210 = vadd.f32 %v3017, %v3209
        %3211 = vmatprep.mubr.bf16.mxu0 0
        %3212 = vmatmul.mubr.bf16.gmra.mrb[0].mxu0 %v709
        %v3213 = vpop.f32.mrb[0].mxu0
        %v3214 = vadd.f32 %v3021, %v3213
        %v3215 = vpop.f32.mrb[0].mxu0
        %v3216 = vadd.f32 %v3023, %v3215
        %v3217 = vpop.f32.mrb[0].mxu0
        %v3218 = vadd.f32 %v3025, %v3217
        %v3219 = vpop.f32.mrb[0].mxu0
        %v3220 = vadd.f32 %v3027, %v3219
        %3221 = vmatprep.mubr.bf16.mxu0 0
        %3222 = vmatmul.mubr.bf16.gmra.mrb[0].mxu0 %v710
        %v3223 = vpop.f32.mrb[0].mxu0
        %v3224 = vadd.f32 %v3031, %v3223
        %v3225 = vpop.f32.mrb[0].mxu0
        %v3226 = vadd.f32 %v3033, %v3225
        %v3227 = vpop.f32.mrb[0].mxu0
        %v3228 = vadd.f32 %v3035, %v3227
        %v3229 = vpop.f32.mrb[0].mxu0
        %v3230 = vadd.f32 %v3037, %v3229
        %3231 = vmatprep.mubr.bf16.mxu0 0
        %3232 = vmatmul.mubr.bf16.gmra.mrb[0].mxu0 %v711
        %v3233 = vpop.f32.mrb[0].mxu0
        %v3234 = vadd.f32 %v3041, %v3233
        %v3235 = vpop.f32.mrb[0].mxu0
        %v3236 = vadd.f32 %v3043, %v3235
        %v3237 = vpop.f32.mrb[0].mxu0
        %v3238 = vadd.f32 %v3045, %v3237
        %v3239 = vpop.f32.mrb[0].mxu0
        %v3240 = vadd.f32 %v3047, %v3239
        %3241 = vmatprep.mubr.bf16.mxu0 0
        %3242 = vmatmul.mubr.bf16.gmra.mrb[0].mxu0 %v712
        %v3243 = vpop.f32.mrb[0].mxu0
        %v3244 = vadd.f32 %v3051, %v3243
        %v3245 = vpop.f32.mrb[0].mxu0
        %v3246 = vadd.f32 %v3053, %v3245
        %v3247 = vpop.f32.mrb[0].mxu0
        %v3248 = vadd.f32 %v3055, %v3247
        %v3249 = vpop.f32.mrb[0].mxu0
        %v3250 = vadd.f32 %v3057, %v3249
        %3251 = vmatprep.mubr.bf16.mxu0 0
        %3252 = vmatmul.mubr.bf16.gmra.mrb[0].mxu0 %v713
        %v3253 = vpop.f32.mrb[0].mxu0
        %v3254 = vadd.f32 %v3061, %v3253
        %v3255 = vpop.f32.mrb[0].mxu0
        %v3256 = vadd.f32 %v3063, %v3255
        %v3257 = vpop.f32.mrb[0].mxu0
        %v3258 = vadd.f32 %v3065, %v3257
        %v3259 = vpop.f32.mrb[0].mxu0
        %v3260 = vadd.f32 %v3067, %v3259
        %3261 = vmatprep.mubr.bf16.mxu0 0
        %3262 = vmatmul.mubr.bf16.gmra.mrb[0].mxu0 %v714
        %v3263 = vpop.f32.mrb[0].mxu0
        %v3264 = vadd.f32 %v3071, %v3263
        %v3265 = vpop.f32.mrb[0].mxu0
        %v3266 = vadd.f32 %v3073, %v3265
        %v3267 = vpop.f32.mrb[0].mxu0
        %v3268 = vadd.f32 %v3075, %v3267
        %v3269 = vpop.f32.mrb[0].mxu0
        %v3270 = vadd.f32 %v3077, %v3269
        %3271 = vmatprep.mubr.bf16.mxu0 0
        %3272 = vmatmul.mubr.bf16.gmra.mrb[0].mxu0 %v715
        %v3273 = vpop.f32.mrb[0].mxu0
        %v3274 = vadd.f32 %v3081, %v3273
        %v3275 = vpop.f32.mrb[0].mxu0
        %v3276 = vadd.f32 %v3083, %v3275
        %v3277 = vpop.f32.mrb[0].mxu0
        %v3278 = vadd.f32 %v3085, %v3277
        %v3279 = vpop.f32.mrb[0].mxu0
        %v3280 = vadd.f32 %v3087, %v3279
        %3281 = vmatprep.mubr.bf16.mxu0 0
        %3282 = vmatmul.mubr.bf16.gmra.mrb[0].mxu0 %v716
        %v3283 = vpop.f32.mrb[0].mxu0
        %v3284 = vadd.f32 %v3091, %v3283
        %v3285 = vpop.f32.mrb[0].mxu0
        %v3286 = vadd.f32 %v3093, %v3285
        %v3287 = vpop.f32.mrb[0].mxu0
        %v3288 = vadd.f32 %v3095, %v3287
        %v3289 = vpop.f32.mrb[0].mxu0
        %v3290 = vadd.f32 %v3097, %v3289
        %3291 = vmatprep.mubr.bf16.mxu0 0
        %3292 = vmatmul.mubr.bf16.gmra.mrb[0].mxu0 %v717
        %v3293 = vpop.f32.mrb[0].mxu0
        %v3294 = vadd.f32 %v3101, %v3293
        %v3295 = vpop.f32.mrb[0].mxu0
        %v3296 = vadd.f32 %v3103, %v3295
        %v3297 = vpop.f32.mrb[0].mxu0
        %v3298 = vadd.f32 %v3105, %v3297
        %v3299 = vpop.f32.mrb[0].mxu0
        %v3300 = vadd.f32 %v3107, %v3299
        %3301 = vmatprep.mubr.bf16.mxu0 0
        %3302 = vmatmul.mubr.bf16.gmra.mrb[0].mxu0 %v718
        %v3303 = vpop.f32.mrb[0].mxu0
        %v3304 = vadd.f32 %v3111, %v3303
        %v3305 = vpop.f32.mrb[0].mxu0
        %v3306 = vadd.f32 %v3113, %v3305
        %v3307 = vpop.f32.mrb[0].mxu0
        %v3308 = vadd.f32 %v3115, %v3307
        %v3309 = vpop.f32.mrb[0].mxu0
        %v3310 = vadd.f32 %v3117, %v3309
        %3311 = vmatprep.mubr.bf16.mxu0 0
        %3312 = vmatmul.mubr.bf16.gmra.mrb[0].mxu0 %v719
        %v3313 = vpop.f32.mrb[0].mxu0
        %v3314 = vadd.f32 %v3121, %v3313
        %v3315 = vpop.f32.mrb[0].mxu0
        %v3316 = vadd.f32 %v3123, %v3315
        %v3317 = vpop.f32.mrb[0].mxu0
        %v3318 = vadd.f32 %v3125, %v3317
        %v3319 = vpop.f32.mrb[0].mxu0
        %v3320 = vadd.f32 %v3127, %v3319
        %3321 = vmatprep.mubr.bf16.mxu0 0
        %3322 = vmatmul.mubr.bf16.gmra.mrb[0].mxu0 %v720
        %v3323 = vpop.f32.mrb[0].mxu0
        %v3324 = vadd.f32 %v3131, %v3323
        %v3325 = vpop.f32.mrb[0].mxu0
        %v3326 = vadd.f32 %v3133, %v3325
        %v3327 = vpop.f32.mrb[0].mxu0
        %v3328 = vadd.f32 %v3135, %v3327
        %v3329 = vpop.f32.mrb[0].mxu0
        %v3330 = vadd.f32 %v3137, %v3329
        %3331 = vmatprep.mubr.bf16.mxu0 0
        %3332 = vmatmul.mubr.bf16.gmra.mrb[0].mxu0 %v721
        %v3333 = vpop.f32.mrb[0].mxu0
        %v3334 = vadd.f32 %v3141, %v3333
        %v3335 = vpop.f32.mrb[0].mxu0
        %v3336 = vadd.f32 %v3143, %v3335
        %v3337 = vpop.f32.mrb[0].mxu0
        %v3338 = vadd.f32 %v3145, %v3337
        %v3339 = vpop.f32.mrb[0].mxu0
        %v3340 = vadd.f32 %v3147, %v3339
        %3341 = vmatprep.mubr.bf16.mxu0 0
        %3342 = vmatmul.mubr.bf16.gmra.mrb[0].mxu0 0
        %v3343 = vpop.f32.mrb[0].mxu0
        %v3344 = vadd.f32 %v3151, %v3343
        %v3345 = vpop.f32.mrb[0].mxu0
        %v3346 = vadd.f32 %v3153, %v3345
        %v3347 = vpop.f32.mrb[0].mxu0
        %v3348 = vadd.f32 %v3155, %v3347
        %v3349 = vpop.f32.mrb[0].mxu0
        %v3350 = vadd.f32 %v3157, %v3349
        %3351 = vdwg.mxu0
        %3352 = vmatprep.subr.bf16.mxu0 0
        %3353 = vmatpush1.bf16.msra.mxu0 %v1957
        %3354 = vmatprep.subr.bf16.mxu0 0
        %3355 = vmatpush1.bf16.msra.mxu0 %v1960
        %3356 = vmatprep.subr.bf16.mxu0 0
        %3357 = vmatpush1.bf16.msra.mxu0 %v1963
        %3358 = vmatprep.subr.bf16.mxu0 0
        %3359 = vmatpush1.bf16.msra.mxu0 %v1966
        %3360 = vmatprep.subr.bf16.mxu0 0
        %3361 = vmatpush1.bf16.msra.mxu0 %v1969
        %3362 = vmatprep.subr.bf16.mxu0 0
        %3363 = vmatpush1.bf16.msra.mxu0 %v1972
        %3364 = vmatprep.subr.bf16.mxu0 0
        %3365 = vmatpush1.bf16.msra.mxu0 %v1975
        %3366 = vmatprep.subr.bf16.mxu0 0
        %3367 = vmatpush1.bf16.msra.mxu0 %v1978
        %3368 = vmatprep.subr.bf16.mxu0 0
        %3369 = vmatpush1.bf16.msra.mxu0 %v1981
        %3370 = vmatprep.subr.bf16.mxu0 0
        %3371 = vmatpush1.bf16.msra.mxu0 %v1984
        %3372 = vmatprep.subr.bf16.mxu0 0
        %3373 = vmatpush1.bf16.msra.mxu0 %v1987
        %3374 = vmatprep.subr.bf16.mxu0 0
        %3375 = vmatpush1.bf16.msra.mxu0 %v1990
        %3376 = vmatprep.subr.bf16.mxu0 0
        %3377 = vmatpush1.bf16.msra.mxu0 %v1993
        %3378 = vmatprep.subr.bf16.mxu0 0
        %3379 = vmatpush1.bf16.msra.mxu0 %v1996
        %3380 = vmatprep.subr.bf16.mxu0 0
        %3381 = vmatpush1.bf16.msra.mxu0 %v1999
        %3382 = vmatprep.subr.bf16.mxu0 0
        %3383 = vmatpush1.bf16.msra.mxu0 %v2002
        %3384 = vmatprep.mubr.bf16.mxu0 0
        %3385 = vmatmul.mubr.bf16.gmra.mrb[0].mxu0 0
        %v3386 = vpop.f32.mrb[0].mxu0
        %v3387 = vadd.f32 %v1231, %v3386
        %v3388 = vpop.f32.mrb[0].mxu0
        %v3389 = vpop.f32.mrb[0].mxu0
        %v3390 = vadd.f32 %v1231, %v3389
        %v3391 = vpop.f32.mrb[0].mxu0
        %3392 = vmatprep.mubr.bf16.mxu0 %v492
        %3393 = vmatmul.mubr.bf16.gmra.mrb[0].mxu0 %v639
        %v3394 = vpop.f32.mrb[0].mxu0
        %v3395 = vadd.f32 %v1231, %v3394
        %v3396 = vpop.f32.mrb[0].mxu0
        %v3397 = vpop.f32.mrb[0].mxu0
        %v3398 = vadd.f32 %v1231, %v3397
        %v3399 = vpop.f32.mrb[0].mxu0
        %3400 = vmatprep.mubr.bf16.mxu0 %v493
        %3401 = vmatmul.mubr.bf16.gmra.mrb[0].mxu0 %v640
        %v3402 = vpop.f32.mrb[0].mxu0
        %v3403 = vadd.f32 %v1231, %v3402
        %v3404 = vpop.f32.mrb[0].mxu0
        %v3405 = vpop.f32.mrb[0].mxu0
        %v3406 = vadd.f32 %v1231, %v3405
        %v3407 = vpop.f32.mrb[0].mxu0
        %3408 = vmatprep.mubr.bf16.mxu0 %v494
        %3409 = vmatmul.mubr.bf16.gmra.mrb[0].mxu0 %v641
        %v3410 = vpop.f32.mrb[0].mxu0
        %v3411 = vadd.f32 %v1231, %v3410
        %v3412 = vpop.f32.mrb[0].mxu0
        %v3413 = vpop.f32.mrb[0].mxu0
        %v3414 = vadd.f32 %v1231, %v3413
        %v3415 = vpop.f32.mrb[0].mxu0
        %3416 = vmatprep.mubr.bf16.mxu0 %v495
        %3417 = vmatmul.mubr.bf16.gmra.mrb[0].mxu0 %v642
        %v3418 = vpop.f32.mrb[0].mxu0
        %v3419 = vadd.f32 %v1231, %v3418
        %v3420 = vpop.f32.mrb[0].mxu0
        %v3421 = vpop.f32.mrb[0].mxu0
        %v3422 = vadd.f32 %v1231, %v3421
        %v3423 = vpop.f32.mrb[0].mxu0
        %3424 = vmatprep.mubr.bf16.mxu0 %v496
        %3425 = vmatmul.mubr.bf16.gmra.mrb[0].mxu0 %v643
        %v3426 = vpop.f32.mrb[0].mxu0
        %v3427 = vadd.f32 %v1231, %v3426
        %v3428 = vpop.f32.mrb[0].mxu0
        %v3429 = vpop.f32.mrb[0].mxu0
        %v3430 = vadd.f32 %v1231, %v3429
        %v3431 = vpop.f32.mrb[0].mxu0
        %3432 = vmatprep.mubr.bf16.mxu0 %v497
        %3433 = vmatmul.mubr.bf16.gmra.mrb[0].mxu0 %v644
        %v3434 = vpop.f32.mrb[0].mxu0
        %v3435 = vadd.f32 %v1231, %v3434
        %v3436 = vpop.f32.mrb[0].mxu0
        %v3437 = vpop.f32.mrb[0].mxu0
        %v3438 = vadd.f32 %v1231, %v3437
        %v3439 = vpop.f32.mrb[0].mxu0
        %3440 = vmatprep.mubr.bf16.mxu0 %v498
        %3441 = vmatmul.mubr.bf16.gmra.mrb[0].mxu0 %v645
        %v3442 = vpop.f32.mrb[0].mxu0
        %v3443 = vadd.f32 %v1231, %v3442
        %v3444 = vpop.f32.mrb[0].mxu0
        %v3445 = vpop.f32.mrb[0].mxu0
        %v3446 = vadd.f32 %v1231, %v3445
        %v3447 = vpop.f32.mrb[0].mxu0
        %3448 = vmatprep.mubr.bf16.mxu0 %v499
        %3449 = vmatmul.mubr.bf16.gmra.mrb[0].mxu0 %v646
        %v3450 = vpop.f32.mrb[0].mxu0
        %v3451 = vadd.f32 %v1231, %v3450
        %v3452 = vpop.f32.mrb[0].mxu0
        %v3453 = vpop.f32.mrb[0].mxu0
        %v3454 = vadd.f32 %v1231, %v3453
        %v3455 = vpop.f32.mrb[0].mxu0
        %3456 = vmatprep.mubr.bf16.mxu0 %v500
        %3457 = vmatmul.mubr.bf16.gmra.mrb[0].mxu0 %v647
        %v3458 = vpop.f32.mrb[0].mxu0
        %v3459 = vadd.f32 %v1231, %v3458
        %v3460 = vpop.f32.mrb[0].mxu0
        %v3461 = vpop.f32.mrb[0].mxu0
        %v3462 = vadd.f32 %v1231, %v3461
        %v3463 = vpop.f32.mrb[0].mxu0
        %3464 = vmatprep.mubr.bf16.mxu0 %v501
        %3465 = vmatmul.mubr.bf16.gmra.mrb[0].mxu0 %v648
        %v3466 = vpop.f32.mrb[0].mxu0
        %v3467 = vadd.f32 %v1231, %v3466
        %v3468 = vpop.f32.mrb[0].mxu0
        %v3469 = vpop.f32.mrb[0].mxu0
        %v3470 = vadd.f32 %v1231, %v3469
        %v3471 = vpop.f32.mrb[0].mxu0
        %3472 = vmatprep.mubr.bf16.mxu0 %v502
        %3473 = vmatmul.mubr.bf16.gmra.mrb[0].mxu0 %v649
        %v3474 = vpop.f32.mrb[0].mxu0
        %v3475 = vadd.f32 %v1231, %v3474
        %v3476 = vpop.f32.mrb[0].mxu0
        %v3477 = vpop.f32.mrb[0].mxu0
        %v3478 = vadd.f32 %v1231, %v3477
        %v3479 = vpop.f32.mrb[0].mxu0
        %3480 = vmatprep.mubr.bf16.mxu0 %v503
        %3481 = vmatmul.mubr.bf16.gmra.mrb[0].mxu0 %v650
        %v3482 = vpop.f32.mrb[0].mxu0
        %v3483 = vadd.f32 %v1231, %v3482
        %v3484 = vpop.f32.mrb[0].mxu0
        %v3485 = vpop.f32.mrb[0].mxu0
        %v3486 = vadd.f32 %v1231, %v3485
        %v3487 = vpop.f32.mrb[0].mxu0
        %3488 = vmatprep.mubr.bf16.mxu0 %v504
        %3489 = vmatmul.mubr.bf16.gmra.mrb[0].mxu0 %v651
        %v3490 = vpop.f32.mrb[0].mxu0
        %v3491 = vadd.f32 %v1231, %v3490
        %v3492 = vpop.f32.mrb[0].mxu0
        %v3493 = vpop.f32.mrb[0].mxu0
        %v3494 = vadd.f32 %v1231, %v3493
        %v3495 = vpop.f32.mrb[0].mxu0
        %3496 = vmatprep.mubr.bf16.mxu0 %v505
        %3497 = vmatmul.mubr.bf16.gmra.mrb[0].mxu0 %v652
        %v3498 = vpop.f32.mrb[0].mxu0
        %v3499 = vadd.f32 %v1231, %v3498
        %v3500 = vpop.f32.mrb[0].mxu0
        %v3501 = vpop.f32.mrb[0].mxu0
        %v3502 = vadd.f32 %v1231, %v3501
        %v3503 = vpop.f32.mrb[0].mxu0
        %3504 = vmatprep.mubr.bf16.mxu0 %v506
        %3505 = vmatmul.mubr.bf16.gmra.mrb[0].mxu0 %v653
        %v3506 = vpop.f32.mrb[0].mxu0
        %v3507 = vadd.f32 %v1231, %v3506
        %v3508 = vpop.f32.mrb[0].mxu0
        %v3509 = vpop.f32.mrb[0].mxu0
        %v3510 = vadd.f32 %v1231, %v3509
        %v3511 = vpop.f32.mrb[0].mxu0
        %3512 = vdwg.mxu0
        %3513 = vmatprep.subr.bf16.mxu0 0
        %3514 = vmatpush1.bf16.msra.mxu0 %v2005
        %3515 = vmatprep.subr.bf16.mxu0 0
        %3516 = vmatpush1.bf16.msra.mxu0 %v2008
        %3517 = vmatprep.subr.bf16.mxu0 0
        %3518 = vmatpush1.bf16.msra.mxu0 %v2011
        %3519 = vmatprep.subr.bf16.mxu0 0
        %3520 = vmatpush1.bf16.msra.mxu0 %v2014
        %3521 = vmatprep.subr.bf16.mxu0 0
        %3522 = vmatpush1.bf16.msra.mxu0 %v2017
        %3523 = vmatprep.subr.bf16.mxu0 0
        %3524 = vmatpush1.bf16.msra.mxu0 %v2020
        %3525 = vmatprep.subr.bf16.mxu0 0
        %3526 = vmatpush1.bf16.msra.mxu0 %v2023
        %3527 = vmatprep.subr.bf16.mxu0 0
        %3528 = vmatpush1.bf16.msra.mxu0 %v2026
        %3529 = vmatprep.subr.bf16.mxu0 0
        %3530 = vmatpush1.bf16.msra.mxu0 %v2029
        %3531 = vmatprep.subr.bf16.mxu0 0
        %3532 = vmatpush1.bf16.msra.mxu0 %v2032
        %3533 = vmatprep.subr.bf16.mxu0 0
        %3534 = vmatpush1.bf16.msra.mxu0 %v2035
        %3535 = vmatprep.subr.bf16.mxu0 0
        %3536 = vmatpush1.bf16.msra.mxu0 %v2038
        %3537 = vmatprep.subr.bf16.mxu0 0
        %3538 = vmatpush1.bf16.msra.mxu0 %v2041
        %3539 = vmatprep.subr.bf16.mxu0 0
        %3540 = vmatpush1.bf16.msra.mxu0 %v2044
        %3541 = vmatprep.subr.bf16.mxu0 0
        %3542 = vmatpush1.bf16.msra.mxu0 %v2047
        %3543 = vmatprep.subr.bf16.mxu0 0
        %3544 = vmatpush1.bf16.msra.mxu0 %v2050
        %3545 = vmatprep.mubr.bf16.mxu0 %v639
        %3546 = vmatmul.mubr.bf16.gmra.mrb[0].mxu0 0
        %v3547 = vpop.f32.mrb[0].mxu0
        %v3548 = vadd.f32 %v3387, %v3547
        %v3549 = vpop.f32.mrb[0].mxu0
        %v3550 = vpop.f32.mrb[0].mxu0
        %v3551 = vadd.f32 %v3390, %v3550
        %v3552 = vpop.f32.mrb[0].mxu0
        %3553 = vmatprep.mubr.bf16.mxu0 %v640
        %3554 = vmatmul.mubr.bf16.gmra.mrb[0].mxu0 %v706
        %v3555 = vpop.f32.mrb[0].mxu0
        %v3556 = vadd.f32 %v3395, %v3555
        %v3557 = vpop.f32.mrb[0].mxu0
        %v3558 = vpop.f32.mrb[0].mxu0
        %v3559 = vadd.f32 %v3398, %v3558
        %v3560 = vpop.f32.mrb[0].mxu0
        %3561 = vmatprep.mubr.bf16.mxu0 %v641
        %3562 = vmatmul.mubr.bf16.gmra.mrb[0].mxu0 %v707
        %v3563 = vpop.f32.mrb[0].mxu0
        %v3564 = vadd.f32 %v3403, %v3563
        %v3565 = vpop.f32.mrb[0].mxu0
        %v3566 = vpop.f32.mrb[0].mxu0
        %v3567 = vadd.f32 %v3406, %v3566
        %v3568 = vpop.f32.mrb[0].mxu0
        %3569 = vmatprep.mubr.bf16.mxu0 %v642
        %3570 = vmatmul.mubr.bf16.gmra.mrb[0].mxu0 %v708
        %v3571 = vpop.f32.mrb[0].mxu0
        %v3572 = vadd.f32 %v3411, %v3571
        %v3573 = vpop.f32.mrb[0].mxu0
        %v3574 = vpop.f32.mrb[0].mxu0
        %v3575 = vadd.f32 %v3414, %v3574
        %v3576 = vpop.f32.mrb[0].mxu0
        %3577 = vmatprep.mubr.bf16.mxu0 %v643
        %3578 = vmatmul.mubr.bf16.gmra.mrb[0].mxu0 %v709
        %v3579 = vpop.f32.mrb[0].mxu0
        %v3580 = vadd.f32 %v3419, %v3579
        %v3581 = vpop.f32.mrb[0].mxu0
        %v3582 = vpop.f32.mrb[0].mxu0
        %v3583 = vadd.f32 %v3422, %v3582
        %v3584 = vpop.f32.mrb[0].mxu0
        %3585 = vmatprep.mubr.bf16.mxu0 %v644
        %3586 = vmatmul.mubr.bf16.gmra.mrb[0].mxu0 %v710
        %v3587 = vpop.f32.mrb[0].mxu0
        %v3588 = vadd.f32 %v3427, %v3587
        %v3589 = vpop.f32.mrb[0].mxu0
        %v3590 = vpop.f32.mrb[0].mxu0
        %v3591 = vadd.f32 %v3430, %v3590
        %v3592 = vpop.f32.mrb[0].mxu0
        %3593 = vmatprep.mubr.bf16.mxu0 %v645
        %3594 = vmatmul.mubr.bf16.gmra.mrb[0].mxu0 %v711
        %v3595 = vpop.f32.mrb[0].mxu0
        %v3596 = vadd.f32 %v3435, %v3595
        %v3597 = vpop.f32.mrb[0].mxu0
        %v3598 = vpop.f32.mrb[0].mxu0
        %v3599 = vadd.f32 %v3438, %v3598
        %v3600 = vpop.f32.mrb[0].mxu0
        %3601 = vmatprep.mubr.bf16.mxu0 %v646
        %3602 = vmatmul.mubr.bf16.gmra.mrb[0].mxu0 %v712
        %v3603 = vpop.f32.mrb[0].mxu0
        %v3604 = vadd.f32 %v3443, %v3603
        %v3605 = vpop.f32.mrb[0].mxu0
        %v3606 = vpop.f32.mrb[0].mxu0
        %v3607 = vadd.f32 %v3446, %v3606
        %v3608 = vpop.f32.mrb[0].mxu0
        %3609 = vmatprep.mubr.bf16.mxu0 %v647
        %3610 = vmatmul.mubr.bf16.gmra.mrb[0].mxu0 %v713
        %v3611 = vpop.f32.mrb[0].mxu0
        %v3612 = vadd.f32 %v3451, %v3611
        %v3613 = vpop.f32.mrb[0].mxu0
        %v3614 = vpop.f32.mrb[0].mxu0
        %v3615 = vadd.f32 %v3454, %v3614
        %v3616 = vpop.f32.mrb[0].mxu0
        %3617 = vmatprep.mubr.bf16.mxu0 %v648
        %3618 = vmatmul.mubr.bf16.gmra.mrb[0].mxu0 %v714
        %v3619 = vpop.f32.mrb[0].mxu0
        %v3620 = vadd.f32 %v3459, %v3619
        %v3621 = vpop.f32.mrb[0].mxu0
        %v3622 = vpop.f32.mrb[0].mxu0
        %v3623 = vadd.f32 %v3462, %v3622
        %v3624 = vpop.f32.mrb[0].mxu0
        %3625 = vmatprep.mubr.bf16.mxu0 %v649
        %3626 = vmatmul.mubr.bf16.gmra.mrb[0].mxu0 %v715
        %v3627 = vpop.f32.mrb[0].mxu0
        %v3628 = vadd.f32 %v3467, %v3627
        %v3629 = vpop.f32.mrb[0].mxu0
        %v3630 = vpop.f32.mrb[0].mxu0
        %v3631 = vadd.f32 %v3470, %v3630
        %v3632 = vpop.f32.mrb[0].mxu0
        %3633 = vmatprep.mubr.bf16.mxu0 %v650
        %3634 = vmatmul.mubr.bf16.gmra.mrb[0].mxu0 %v716
        %v3635 = vpop.f32.mrb[0].mxu0
        %v3636 = vadd.f32 %v3475, %v3635
        %v3637 = vpop.f32.mrb[0].mxu0
        %v3638 = vpop.f32.mrb[0].mxu0
        %v3639 = vadd.f32 %v3478, %v3638
        %v3640 = vpop.f32.mrb[0].mxu0
        %3641 = vmatprep.mubr.bf16.mxu0 %v651
        %3642 = vmatmul.mubr.bf16.gmra.mrb[0].mxu0 %v717
        %v3643 = vpop.f32.mrb[0].mxu0
        %v3644 = vadd.f32 %v3483, %v3643
        %v3645 = vpop.f32.mrb[0].mxu0
        %v3646 = vpop.f32.mrb[0].mxu0
        %v3647 = vadd.f32 %v3486, %v3646
        %v3648 = vpop.f32.mrb[0].mxu0
        %3649 = vmatprep.mubr.bf16.mxu0 %v652
        %3650 = vmatmul.mubr.bf16.gmra.mrb[0].mxu0 %v718
        %v3651 = vpop.f32.mrb[0].mxu0
        %v3652 = vadd.f32 %v3491, %v3651
        %v3653 = vpop.f32.mrb[0].mxu0
        %v3654 = vpop.f32.mrb[0].mxu0
        %v3655 = vadd.f32 %v3494, %v3654
        %v3656 = vpop.f32.mrb[0].mxu0
        %3657 = vmatprep.mubr.bf16.mxu0 %v653
        %3658 = vmatmul.mubr.bf16.gmra.mrb[0].mxu0 %v719
        %v3659 = vpop.f32.mrb[0].mxu0
        %v3660 = vadd.f32 %v3499, %v3659
        %v3661 = vpop.f32.mrb[0].mxu0
        %v3662 = vpop.f32.mrb[0].mxu0
        %v3663 = vadd.f32 %v3502, %v3662
        %v3664 = vpop.f32.mrb[0].mxu0
        %3665 = vmatprep.mubr.bf16.mxu0 %v654
        %3666 = vmatmul.mubr.bf16.gmra.mrb[0].mxu0 %v720
        %v3667 = vpop.f32.mrb[0].mxu0
        %v3668 = vadd.f32 %v3507, %v3667
        %v3669 = vpop.f32.mrb[0].mxu0
        %v3670 = vpop.f32.mrb[0].mxu0
        %v3671 = vadd.f32 %v3510, %v3670
        %v3672 = vpop.f32.mrb[0].mxu0
        %3673 = vdwg.mxu0
        %3674 = vmatprep.subr.bf16.mxu0 0
        %3675 = vmatpush1.bf16.msra.mxu0 %v2053
        %3676 = vmatprep.subr.bf16.mxu0 0
        %3677 = vmatpush1.bf16.msra.mxu0 %v2056
        %3678 = vmatprep.subr.bf16.mxu0 0
        %3679 = vmatpush1.bf16.msra.mxu0 %v2059
        %3680 = vmatprep.subr.bf16.mxu0 0
        %3681 = vmatpush1.bf16.msra.mxu0 %v2062
        %3682 = vmatprep.subr.bf16.mxu0 0
        %3683 = vmatpush1.bf16.msra.mxu0 %v2065
        %3684 = vmatprep.subr.bf16.mxu0 0
        %3685 = vmatpush1.bf16.msra.mxu0 %v2068
        %3686 = vmatprep.subr.bf16.mxu0 0
        %3687 = vmatpush1.bf16.msra.mxu0 %v2071
        %3688 = vmatprep.subr.bf16.mxu0 0
        %3689 = vmatpush1.bf16.msra.mxu0 %v2074
        %3690 = vmatprep.subr.bf16.mxu0 0
        %3691 = vmatpush1.bf16.msra.mxu0 %v2077
        %3692 = vmatprep.subr.bf16.mxu0 0
        %3693 = vmatpush1.bf16.msra.mxu0 %v2080
        %3694 = vmatprep.subr.bf16.mxu0 0
        %3695 = vmatpush1.bf16.msra.mxu0 %v2083
        %3696 = vmatprep.subr.bf16.mxu0 0
        %3697 = vmatpush1.bf16.msra.mxu0 %v2086
        %3698 = vmatprep.subr.bf16.mxu0 0
        %3699 = vmatpush1.bf16.msra.mxu0 %v2089
        %3700 = vmatprep.subr.bf16.mxu0 0
        %3701 = vmatpush1.bf16.msra.mxu0 %v2092
        %3702 = vmatprep.subr.bf16.mxu0 0
        %3703 = vmatpush1.bf16.msra.mxu0 %v2095
        %3704 = vmatprep.subr.bf16.mxu0 0
        %3705 = vmatpush1.bf16.msra.mxu0 %v2098
        %3706 = vmatprep.mubr.bf16.mxu0 %v706
        %3707 = vmatmul.mubr.bf16.gmra.mrb[0].mxu0 %v492
        %v3708 = vpop.f32.mrb[0].mxu0
        %v3709 = vadd.f32 %v3548, %v3708
        %v3710 = vpop.f32.mrb[0].mxu0
        %v3711 = vpop.f32.mrb[0].mxu0
        %v3712 = vadd.f32 %v3551, %v3711
        %v3713 = vpop.f32.mrb[0].mxu0
        %3714 = vmatprep.mubr.bf16.mxu0 %v707
        %3715 = vmatmul.mubr.bf16.gmra.mrb[0].mxu0 %v493
        %v3716 = vpop.f32.mrb[0].mxu0
        %v3717 = vadd.f32 %v3556, %v3716
        %v3718 = vpop.f32.mrb[0].mxu0
        %v3719 = vpop.f32.mrb[0].mxu0
        %v3720 = vadd.f32 %v3559, %v3719
        %v3721 = vpop.f32.mrb[0].mxu0
        %3722 = vmatprep.mubr.bf16.mxu0 %v708
        %3723 = vmatmul.mubr.bf16.gmra.mrb[0].mxu0 %v494
        %v3724 = vpop.f32.mrb[0].mxu0
        %v3725 = vadd.f32 %v3564, %v3724
        %v3726 = vpop.f32.mrb[0].mxu0
        %v3727 = vpop.f32.mrb[0].mxu0
        %v3728 = vadd.f32 %v3567, %v3727
        %v3729 = vpop.f32.mrb[0].mxu0
        %3730 = vmatprep.mubr.bf16.mxu0 %v709
        %3731 = vmatmul.mubr.bf16.gmra.mrb[0].mxu0 %v495
        %v3732 = vpop.f32.mrb[0].mxu0
        %v3733 = vadd.f32 %v3572, %v3732
        %v3734 = vpop.f32.mrb[0].mxu0
        %v3735 = vpop.f32.mrb[0].mxu0
        %v3736 = vadd.f32 %v3575, %v3735
        %v3737 = vpop.f32.mrb[0].mxu0
        %3738 = vmatprep.mubr.bf16.mxu0 %v710
        %3739 = vmatmul.mubr.bf16.gmra.mrb[0].mxu0 %v496
        %v3740 = vpop.f32.mrb[0].mxu0
        %v3741 = vadd.f32 %v3580, %v3740
        %v3742 = vpop.f32.mrb[0].mxu0
        %v3743 = vpop.f32.mrb[0].mxu0
        %v3744 = vadd.f32 %v3583, %v3743
        %v3745 = vpop.f32.mrb[0].mxu0
        %3746 = vmatprep.mubr.bf16.mxu0 %v711
        %3747 = vmatmul.mubr.bf16.gmra.mrb[0].mxu0 %v497
        %v3748 = vpop.f32.mrb[0].mxu0
        %v3749 = vadd.f32 %v3588, %v3748
        %v3750 = vpop.f32.mrb[0].mxu0
        %v3751 = vpop.f32.mrb[0].mxu0
        %v3752 = vadd.f32 %v3591, %v3751
        %v3753 = vpop.f32.mrb[0].mxu0
        %3754 = vmatprep.mubr.bf16.mxu0 %v712
        %3755 = vmatmul.mubr.bf16.gmra.mrb[0].mxu0 %v498
        %v3756 = vpop.f32.mrb[0].mxu0
        %v3757 = vadd.f32 %v3596, %v3756
        %v3758 = vpop.f32.mrb[0].mxu0
        %v3759 = vpop.f32.mrb[0].mxu0
        %v3760 = vadd.f32 %v3599, %v3759
        %v3761 = vpop.f32.mrb[0].mxu0
        %3762 = vmatprep.mubr.bf16.mxu0 %v713
        %3763 = vmatmul.mubr.bf16.gmra.mrb[0].mxu0 %v499
        %v3764 = vpop.f32.mrb[0].mxu0
        %v3765 = vadd.f32 %v3604, %v3764
        %v3766 = vpop.f32.mrb[0].mxu0
        %v3767 = vpop.f32.mrb[0].mxu0
        %v3768 = vadd.f32 %v3607, %v3767
        %v3769 = vpop.f32.mrb[0].mxu0
        %3770 = vmatprep.mubr.bf16.mxu0 %v714
        %3771 = vmatmul.mubr.bf16.gmra.mrb[0].mxu0 %v500
        %v3772 = vpop.f32.mrb[0].mxu0
        %v3773 = vadd.f32 %v3612, %v3772
        %v3774 = vpop.f32.mrb[0].mxu0
        %v3775 = vpop.f32.mrb[0].mxu0
        %v3776 = vadd.f32 %v3615, %v3775
        %v3777 = vpop.f32.mrb[0].mxu0
        %3778 = vmatprep.mubr.bf16.mxu0 %v715
        %3779 = vmatmul.mubr.bf16.gmra.mrb[0].mxu0 %v501
        %v3780 = vpop.f32.mrb[0].mxu0
        %v3781 = vadd.f32 %v3620, %v3780
        %v3782 = vpop.f32.mrb[0].mxu0
        %v3783 = vpop.f32.mrb[0].mxu0
        %v3784 = vadd.f32 %v3623, %v3783
        %v3785 = vpop.f32.mrb[0].mxu0
        %3786 = vmatprep.mubr.bf16.mxu0 %v716
        %3787 = vmatmul.mubr.bf16.gmra.mrb[0].mxu0 %v502
        %v3788 = vpop.f32.mrb[0].mxu0
        %v3789 = vadd.f32 %v3628, %v3788
        %v3790 = vpop.f32.mrb[0].mxu0
        %v3791 = vpop.f32.mrb[0].mxu0
        %v3792 = vadd.f32 %v3631, %v3791
        %v3793 = vpop.f32.mrb[0].mxu0
        %3794 = vmatprep.mubr.bf16.mxu0 %v717
        %3795 = vmatmul.mubr.bf16.gmra.mrb[0].mxu0 %v503
        %v3796 = vpop.f32.mrb[0].mxu0
        %v3797 = vadd.f32 %v3636, %v3796
        %v3798 = vpop.f32.mrb[0].mxu0
        %v3799 = vpop.f32.mrb[0].mxu0
        %v3800 = vadd.f32 %v3639, %v3799
        %v3801 = vpop.f32.mrb[0].mxu0
        %3802 = vmatprep.mubr.bf16.mxu0 %v718
        %3803 = vmatmul.mubr.bf16.gmra.mrb[0].mxu0 %v504
        %v3804 = vpop.f32.mrb[0].mxu0
        %v3805 = vadd.f32 %v3644, %v3804
        %v3806 = vpop.f32.mrb[0].mxu0
        %v3807 = vpop.f32.mrb[0].mxu0
        %v3808 = vadd.f32 %v3647, %v3807
        %v3809 = vpop.f32.mrb[0].mxu0
        %3810 = vmatprep.mubr.bf16.mxu0 %v719
        %3811 = vmatmul.mubr.bf16.gmra.mrb[0].mxu0 %v505
        %v3812 = vpop.f32.mrb[0].mxu0
        %v3813 = vadd.f32 %v3652, %v3812
        %v3814 = vpop.f32.mrb[0].mxu0
        %v3815 = vpop.f32.mrb[0].mxu0
        %v3816 = vadd.f32 %v3655, %v3815
        %v3817 = vpop.f32.mrb[0].mxu0
        %3818 = vmatprep.mubr.bf16.mxu0 %v720
        %3819 = vmatmul.mubr.bf16.gmra.mrb[0].mxu0 %v506
        %v3820 = vpop.f32.mrb[0].mxu0
        %v3821 = vadd.f32 %v3660, %v3820
        %v3822 = vpop.f32.mrb[0].mxu0
        %v3823 = vpop.f32.mrb[0].mxu0
        %v3824 = vadd.f32 %v3663, %v3823
        %v3825 = vpop.f32.mrb[0].mxu0
        %3826 = vmatprep.mubr.bf16.mxu0 %v721
        %3827 = vmatmul.mubr.bf16.gmra.mrb[0].mxu0 %v507
        %v3828 = vpop.f32.mrb[0].mxu0
        %v3829 = vadd.f32 %v3668, %v3828
        %v3830 = vpop.f32.mrb[0].mxu0
        %v3831 = vpop.f32.mrb[0].mxu0
        %v3832 = vadd.f32 %v3671, %v3831
        %v3833 = vpop.f32.mrb[0].mxu0
        %3834 = vdwg.mxu0
        %3835 = vmatprep.subr.bf16.mxu0 0
        %3836 = vmatpush1.bf16.msra.mxu0 %v2101
        %3837 = vmatprep.subr.bf16.mxu0 0
        %3838 = vmatpush1.bf16.msra.mxu0 %v2104
        %3839 = vmatprep.subr.bf16.mxu0 0
        %3840 = vmatpush1.bf16.msra.mxu0 %v2107
        %3841 = vmatprep.subr.bf16.mxu0 0
        %3842 = vmatpush1.bf16.msra.mxu0 %v2110
        %3843 = vmatprep.subr.bf16.mxu0 0
        %3844 = vmatpush1.bf16.msra.mxu0 %v2113
        %3845 = vmatprep.subr.bf16.mxu0 0
        %3846 = vmatpush1.bf16.msra.mxu0 %v2116
        %3847 = vmatprep.subr.bf16.mxu0 0
        %3848 = vmatpush1.bf16.msra.mxu0 %v2119
        %3849 = vmatprep.subr.bf16.mxu0 0
        %3850 = vmatpush1.bf16.msra.mxu0 %v2122
        %3851 = vmatprep.subr.bf16.mxu0 0
        %3852 = vmatpush1.bf16.msra.mxu0 %v2125
        %3853 = vmatprep.subr.bf16.mxu0 0
        %3854 = vmatpush1.bf16.msra.mxu0 %v2128
        %3855 = vmatprep.subr.bf16.mxu0 0
        %3856 = vmatpush1.bf16.msra.mxu0 %v2131
        %3857 = vmatprep.subr.bf16.mxu0 0
        %3858 = vmatpush1.bf16.msra.mxu0 %v2134
        %3859 = vmatprep.subr.bf16.mxu0 0
        %3860 = vmatpush1.bf16.msra.mxu0 %v2137
        %3861 = vmatprep.subr.bf16.mxu0 0
        %3862 = vmatpush1.bf16.msra.mxu0 %v2140
        %3863 = vmatprep.subr.bf16.mxu0 0
        %3864 = vmatpush1.bf16.msra.mxu0 %v2143
        %3865 = vmatprep.subr.bf16.mxu0 0
        %3866 = vmatpush1.bf16.msra.mxu0 %v2146
        %3867 = vmatprep.mubr.bf16.mxu0 %v493
        %3868 = vmatmul.mubr.bf16.gmra.mrb[0].mxu0 %v640
        %v3869 = vpop.f32.mrb[0].mxu0
        %v3870 = vadd.f32 %v3709, %v3869
        %v3871 = vpop.f32.mrb[0].mxu0
        %v3872 = vpop.f32.mrb[0].mxu0
        %v3873 = vadd.f32 %v3712, %v3872
        %v3874 = vpop.f32.mrb[0].mxu0
        %3875 = vmatprep.mubr.bf16.mxu0 %v494
        %3876 = vmatmul.mubr.bf16.gmra.mrb[0].mxu0 %v641
        %v3877 = vpop.f32.mrb[0].mxu0
        %v3878 = vadd.f32 %v3717, %v3877
        %v3879 = vpop.f32.mrb[0].mxu0
        %v3880 = vpop.f32.mrb[0].mxu0
        %v3881 = vadd.f32 %v3720, %v3880
        %v3882 = vpop.f32.mrb[0].mxu0
        %3883 = vmatprep.mubr.bf16.mxu0 %v495
        %3884 = vmatmul.mubr.bf16.gmra.mrb[0].mxu0 %v642
        %v3885 = vpop.f32.mrb[0].mxu0
        %v3886 = vadd.f32 %v3725, %v3885
        %v3887 = vpop.f32.mrb[0].mxu0
        %v3888 = vpop.f32.mrb[0].mxu0
        %v3889 = vadd.f32 %v3728, %v3888
        %v3890 = vpop.f32.mrb[0].mxu0
        %3891 = vmatprep.mubr.bf16.mxu0 %v496
        %3892 = vmatmul.mubr.bf16.gmra.mrb[0].mxu0 %v643
        %v3893 = vpop.f32.mrb[0].mxu0
        %v3894 = vadd.f32 %v3733, %v3893
        %v3895 = vpop.f32.mrb[0].mxu0
        %v3896 = vpop.f32.mrb[0].mxu0
        %v3897 = vadd.f32 %v3736, %v3896
        %v3898 = vpop.f32.mrb[0].mxu0
        %3899 = vmatprep.mubr.bf16.mxu0 %v497
        %3900 = vmatmul.mubr.bf16.gmra.mrb[0].mxu0 %v644
        %v3901 = vpop.f32.mrb[0].mxu0
        %v3902 = vadd.f32 %v3741, %v3901
        %v3903 = vpop.f32.mrb[0].mxu0
        %v3904 = vpop.f32.mrb[0].mxu0
        %v3905 = vadd.f32 %v3744, %v3904
        %v3906 = vpop.f32.mrb[0].mxu0
        %3907 = vmatprep.mubr.bf16.mxu0 %v498
        %3908 = vmatmul.mubr.bf16.gmra.mrb[0].mxu0 %v645
        %v3909 = vpop.f32.mrb[0].mxu0
        %v3910 = vadd.f32 %v3749, %v3909
        %v3911 = vpop.f32.mrb[0].mxu0
        %v3912 = vpop.f32.mrb[0].mxu0
        %v3913 = vadd.f32 %v3752, %v3912
        %v3914 = vpop.f32.mrb[0].mxu0
        %3915 = vmatprep.mubr.bf16.mxu0 %v499
        %3916 = vmatmul.mubr.bf16.gmra.mrb[0].mxu0 %v646
        %v3917 = vpop.f32.mrb[0].mxu0
        %v3918 = vadd.f32 %v3757, %v3917
        %v3919 = vpop.f32.mrb[0].mxu0
        %v3920 = vpop.f32.mrb[0].mxu0
        %v3921 = vadd.f32 %v3760, %v3920
        %v3922 = vpop.f32.mrb[0].mxu0
        %3923 = vmatprep.mubr.bf16.mxu0 %v500
        %3924 = vmatmul.mubr.bf16.gmra.mrb[0].mxu0 %v647
        %v3925 = vpop.f32.mrb[0].mxu0
        %v3926 = vadd.f32 %v3765, %v3925
        %v3927 = vpop.f32.mrb[0].mxu0
        %v3928 = vpop.f32.mrb[0].mxu0
        %v3929 = vadd.f32 %v3768, %v3928
        %v3930 = vpop.f32.mrb[0].mxu0
        %3931 = vmatprep.mubr.bf16.mxu0 %v501
        %3932 = vmatmul.mubr.bf16.gmra.mrb[0].mxu0 %v648
        %v3933 = vpop.f32.mrb[0].mxu0
        %v3934 = vadd.f32 %v3773, %v3933
        %v3935 = vpop.f32.mrb[0].mxu0
        %v3936 = vpop.f32.mrb[0].mxu0
        %v3937 = vadd.f32 %v3776, %v3936
        %v3938 = vpop.f32.mrb[0].mxu0
        %3939 = vmatprep.mubr.bf16.mxu0 %v502
        %3940 = vmatmul.mubr.bf16.gmra.mrb[0].mxu0 %v649
        %v3941 = vpop.f32.mrb[0].mxu0
        %v3942 = vadd.f32 %v3781, %v3941
        %v3943 = vpop.f32.mrb[0].mxu0
        %v3944 = vpop.f32.mrb[0].mxu0
        %v3945 = vadd.f32 %v3784, %v3944
        %v3946 = vpop.f32.mrb[0].mxu0
        %3947 = vmatprep.mubr.bf16.mxu0 %v503
        %3948 = vmatmul.mubr.bf16.gmra.mrb[0].mxu0 %v650
        %v3949 = vpop.f32.mrb[0].mxu0
        %v3950 = vadd.f32 %v3789, %v3949
        %v3951 = vpop.f32.mrb[0].mxu0
        %v3952 = vpop.f32.mrb[0].mxu0
        %v3953 = vadd.f32 %v3792, %v3952
        %v3954 = vpop.f32.mrb[0].mxu0
        %3955 = vmatprep.mubr.bf16.mxu0 %v504
        %3956 = vmatmul.mubr.bf16.gmra.mrb[0].mxu0 %v651
        %v3957 = vpop.f32.mrb[0].mxu0
        %v3958 = vadd.f32 %v3797, %v3957
        %v3959 = vpop.f32.mrb[0].mxu0
        %v3960 = vpop.f32.mrb[0].mxu0
        %v3961 = vadd.f32 %v3800, %v3960
        %v3962 = vpop.f32.mrb[0].mxu0
        %3963 = vmatprep.mubr.bf16.mxu0 %v505
        %3964 = vmatmul.mubr.bf16.gmra.mrb[0].mxu0 %v652
        %v3965 = vpop.f32.mrb[0].mxu0
        %v3966 = vadd.f32 %v3805, %v3965
        %v3967 = vpop.f32.mrb[0].mxu0
        %v3968 = vpop.f32.mrb[0].mxu0
        %v3969 = vadd.f32 %v3808, %v3968
        %v3970 = vpop.f32.mrb[0].mxu0
        %3971 = vmatprep.mubr.bf16.mxu0 %v506
        %3972 = vmatmul.mubr.bf16.gmra.mrb[0].mxu0 %v653
        %v3973 = vpop.f32.mrb[0].mxu0
        %v3974 = vadd.f32 %v3813, %v3973
        %v3975 = vpop.f32.mrb[0].mxu0
        %v3976 = vpop.f32.mrb[0].mxu0
        %v3977 = vadd.f32 %v3816, %v3976
        %v3978 = vpop.f32.mrb[0].mxu0
        %3979 = vmatprep.mubr.bf16.mxu0 %v507
        %3980 = vmatmul.mubr.bf16.gmra.mrb[0].mxu0 %v654
        %v3981 = vpop.f32.mrb[0].mxu0
        %v3982 = vadd.f32 %v3821, %v3981
        %v3983 = vpop.f32.mrb[0].mxu0
        %v3984 = vpop.f32.mrb[0].mxu0
        %v3985 = vadd.f32 %v3824, %v3984
        %v3986 = vpop.f32.mrb[0].mxu0
        %3987 = vmatprep.mubr.bf16.mxu0 0
        %3988 = vmatmul.mubr.bf16.gmra.mrb[0].mxu0 0
        %v3989 = vpop.f32.mrb[0].mxu0
        %v3990 = vadd.f32 %v3829, %v3989
        %v3991 = vpop.f32.mrb[0].mxu0
        %v3992 = vpop.f32.mrb[0].mxu0
        %v3993 = vadd.f32 %v3832, %v3992
        %v3994 = vpop.f32.mrb[0].mxu0
        %3995 = vdwg.mxu0
        %3996 = vmatprep.subr.bf16.mxu0 0
        %3997 = vmatpush1.bf16.msra.mxu0 %v2149
        %3998 = vmatprep.subr.bf16.mxu0 0
        %3999 = vmatpush1.bf16.msra.mxu0 %v2152
        %4000 = vmatprep.subr.bf16.mxu0 0
        %4001 = vmatpush1.bf16.msra.mxu0 %v2155
        %4002 = vmatprep.subr.bf16.mxu0 0
        %4003 = vmatpush1.bf16.msra.mxu0 %v2158
        %4004 = vmatprep.subr.bf16.mxu0 0
        %4005 = vmatpush1.bf16.msra.mxu0 %v2161
        %4006 = vmatprep.subr.bf16.mxu0 0
        %4007 = vmatpush1.bf16.msra.mxu0 %v2164
        %4008 = vmatprep.subr.bf16.mxu0 0
        %4009 = vmatpush1.bf16.msra.mxu0 %v2167
        %4010 = vmatprep.subr.bf16.mxu0 0
        %4011 = vmatpush1.bf16.msra.mxu0 %v2170
        %4012 = vmatprep.subr.bf16.mxu0 0
        %4013 = vmatpush1.bf16.msra.mxu0 0
        %4014 = vmatprep.subr.bf16.mxu0 0
        %4015 = vmatpush1.bf16.msra.mxu0 0
        %4016 = vmatprep.subr.bf16.mxu0 0
        %4017 = vmatpush1.bf16.msra.mxu0 0
        %4018 = vmatprep.subr.bf16.mxu0 0
        %4019 = vmatpush1.bf16.msra.mxu0 0
        %4020 = vmatprep.subr.bf16.mxu0 0
        %4021 = vmatpush1.bf16.msra.mxu0 0
        %4022 = vmatprep.subr.bf16.mxu0 0
        %4023 = vmatpush1.bf16.msra.mxu0 0
        %4024 = vmatprep.subr.bf16.mxu0 0
        %4025 = vmatpush1.bf16.msra.mxu0 0
        %4026 = vmatprep.subr.bf16.mxu0 0
        %4027 = vmatpush1.bf16.msra.mxu0 0
        %4028 = vmatprep.mubr.bf16.mxu0 0
        %4029 = vmatmul.mubr.bf16.gmra.mrb[0].mxu0 %v707
        %v4030 = vpop.f32.mrb[0].mxu0
        %v4031 = vadd.f32 %v3870, %v4030
        %v4032 = vpop.f32.mrb[0].mxu0
        %v4033 = vpop.f32.mrb[0].mxu0
        %v4034 = vadd.f32 %v3873, %v4033
        %v4035 = vpop.f32.mrb[0].mxu0
        %4036 = vmatprep.mubr.bf16.mxu0 0
        %4037 = vmatmul.mubr.bf16.gmra.mrb[0].mxu0 %v708
        %v4038 = vpop.f32.mrb[0].mxu0
        %v4039 = vadd.f32 %v3878, %v4038
        %v4040 = vpop.f32.mrb[0].mxu0
        %v4041 = vpop.f32.mrb[0].mxu0
        %v4042 = vadd.f32 %v3881, %v4041
        %v4043 = vpop.f32.mrb[0].mxu0
        %4044 = vmatprep.mubr.bf16.mxu0 0
        %4045 = vmatmul.mubr.bf16.gmra.mrb[0].mxu0 %v709
        %v4046 = vpop.f32.mrb[0].mxu0
        %v4047 = vadd.f32 %v3886, %v4046
        %v4048 = vpop.f32.mrb[0].mxu0
        %v4049 = vpop.f32.mrb[0].mxu0
        %v4050 = vadd.f32 %v3889, %v4049
        %v4051 = vpop.f32.mrb[0].mxu0
        %4052 = vmatprep.mubr.bf16.mxu0 0
        %4053 = vmatmul.mubr.bf16.gmra.mrb[0].mxu0 %v710
        %v4054 = vpop.f32.mrb[0].mxu0
        %v4055 = vadd.f32 %v3894, %v4054
        %v4056 = vpop.f32.mrb[0].mxu0
        %v4057 = vpop.f32.mrb[0].mxu0
        %v4058 = vadd.f32 %v3897, %v4057
        %v4059 = vpop.f32.mrb[0].mxu0
        %4060 = vmatprep.mubr.bf16.mxu0 0
        %4061 = vmatmul.mubr.bf16.gmra.mrb[0].mxu0 %v711
        %v4062 = vpop.f32.mrb[0].mxu0
        %v4063 = vadd.f32 %v3902, %v4062
        %v4064 = vpop.f32.mrb[0].mxu0
        %v4065 = vpop.f32.mrb[0].mxu0
        %v4066 = vadd.f32 %v3905, %v4065
        %v4067 = vpop.f32.mrb[0].mxu0
        %4068 = vmatprep.mubr.bf16.mxu0 0
        %4069 = vmatmul.mubr.bf16.gmra.mrb[0].mxu0 %v712
        %v4070 = vpop.f32.mrb[0].mxu0
        %v4071 = vadd.f32 %v3910, %v4070
        %v4072 = vpop.f32.mrb[0].mxu0
        %v4073 = vpop.f32.mrb[0].mxu0
        %v4074 = vadd.f32 %v3913, %v4073
        %v4075 = vpop.f32.mrb[0].mxu0
        %4076 = vmatprep.mubr.bf16.mxu0 0
        %4077 = vmatmul.mubr.bf16.gmra.mrb[0].mxu0 %v713
        %v4078 = vpop.f32.mrb[0].mxu0
        %v4079 = vadd.f32 %v3918, %v4078
        %v4080 = vpop.f32.mrb[0].mxu0
        %v4081 = vpop.f32.mrb[0].mxu0
        %v4082 = vadd.f32 %v3921, %v4081
        %v4083 = vpop.f32.mrb[0].mxu0
        %4084 = vmatprep.mubr.bf16.mxu0 0
        %4085 = vmatmul.mubr.bf16.gmra.mrb[0].mxu0 %v714
        %v4086 = vpop.f32.mrb[0].mxu0
        %v4087 = vadd.f32 %v3926, %v4086
        %v4088 = vpop.f32.mrb[0].mxu0
        %v4089 = vpop.f32.mrb[0].mxu0
        %v4090 = vadd.f32 %v3929, %v4089
        %v4091 = vpop.f32.mrb[0].mxu0
        %4092 = vmatprep.mubr.bf16.mxu0 0
        %4093 = vmatmul.mubr.bf16.gmra.mrb[0].mxu0 %v715
        %v4094 = vpop.f32.mrb[0].mxu0
        %v4095 = vadd.f32 %v3934, %v4094
        %v4096 = vpop.f32.mrb[0].mxu0
        %v4097 = vpop.f32.mrb[0].mxu0
        %v4098 = vadd.f32 %v3937, %v4097
        %v4099 = vpop.f32.mrb[0].mxu0
        %4100 = vmatprep.mubr.bf16.mxu0 0
        %4101 = vmatmul.mubr.bf16.gmra.mrb[0].mxu0 %v716
        %v4102 = vpop.f32.mrb[0].mxu0
        %v4103 = vadd.f32 %v3942, %v4102
        %v4104 = vpop.f32.mrb[0].mxu0
        %v4105 = vpop.f32.mrb[0].mxu0
        %v4106 = vadd.f32 %v3945, %v4105
        %v4107 = vpop.f32.mrb[0].mxu0
        %4108 = vmatprep.mubr.bf16.mxu0 0
        %4109 = vmatmul.mubr.bf16.gmra.mrb[0].mxu0 %v717
        %v4110 = vpop.f32.mrb[0].mxu0
        %v4111 = vadd.f32 %v3950, %v4110
        %v4112 = vpop.f32.mrb[0].mxu0
        %v4113 = vpop.f32.mrb[0].mxu0
        %v4114 = vadd.f32 %v3953, %v4113
        %v4115 = vpop.f32.mrb[0].mxu0
        %4116 = vmatprep.mubr.bf16.mxu0 0
        %4117 = vmatmul.mubr.bf16.gmra.mrb[0].mxu0 %v718
        %v4118 = vpop.f32.mrb[0].mxu0
        %v4119 = vadd.f32 %v3958, %v4118
        %v4120 = vpop.f32.mrb[0].mxu0
        %v4121 = vpop.f32.mrb[0].mxu0
        %v4122 = vadd.f32 %v3961, %v4121
        %v4123 = vpop.f32.mrb[0].mxu0
        %4124 = vmatprep.mubr.bf16.mxu0 0
        %4125 = vmatmul.mubr.bf16.gmra.mrb[0].mxu0 %v719
        %v4126 = vpop.f32.mrb[0].mxu0
        %v4127 = vadd.f32 %v3966, %v4126
        %v4128 = vpop.f32.mrb[0].mxu0
        %v4129 = vpop.f32.mrb[0].mxu0
        %v4130 = vadd.f32 %v3969, %v4129
        %v4131 = vpop.f32.mrb[0].mxu0
        %4132 = vmatprep.mubr.bf16.mxu0 0
        %4133 = vmatmul.mubr.bf16.gmra.mrb[0].mxu0 %v720
        %v4134 = vpop.f32.mrb[0].mxu0
        %v4135 = vadd.f32 %v3974, %v4134
        %v4136 = vpop.f32.mrb[0].mxu0
        %v4137 = vpop.f32.mrb[0].mxu0
        %v4138 = vadd.f32 %v3977, %v4137
        %v4139 = vpop.f32.mrb[0].mxu0
        %4140 = vmatprep.mubr.bf16.mxu0 0
        %4141 = vmatmul.mubr.bf16.gmra.mrb[0].mxu0 %v721
        %v4142 = vpop.f32.mrb[0].mxu0
        %v4143 = vadd.f32 %v3982, %v4142
        %v4144 = vpop.f32.mrb[0].mxu0
        %v4145 = vpop.f32.mrb[0].mxu0
        %v4146 = vadd.f32 %v3985, %v4145
        %v4147 = vpop.f32.mrb[0].mxu0
        %4148 = vmatprep.mubr.bf16.mxu0 0
        %4149 = vmatmul.mubr.bf16.gmra.mrb[0].mxu0 0
        %v4150 = vpop.f32.mrb[0].mxu0
        %v4151 = vadd.f32 %v3990, %v4150
        %v4152 = vpop.f32.mrb[0].mxu0
        %v4153 = vpop.f32.mrb[0].mxu0
        %v4154 = vadd.f32 %v3993, %v4153
        %v4155 = vpop.f32.mrb[0].mxu0
        %4156 = vdwg.mxu0
        %v4157 = vld [vmem:[%s5] sm:$0xff]
        %v4158 = vld [vmem:[%s5 + $0x8] sm:$0xff]
        %v4159 = vld [vmem:[%s5 + $0x10] sm:$0xff]
        %v4160 = vld [vmem:[%s5 + $0x18] sm:$0xff]
        %v4161 = vld [vmem:[%s5 + $0x20] sm:$0xff]
        %v4162 = vld [vmem:[%s5 + $0x28] sm:$0xff]
        %v4163 = vld [vmem:[%s5 + $0x30] sm:$0xff]
        %v4164 = vld [vmem:[%s5 + $0x38] sm:$0xff]
        %v4165 = vld [vmem:[%s5 + $0x40] sm:$0xff]
        %v4166 = vld [vmem:[%s5 + $0x48] sm:$0xff]
        %v4167 = vld [vmem:[%s5 + $0x50] sm:$0xff]
        %v4168 = vld [vmem:[%s5 + $0x58] sm:$0xff]
        %v4169 = vld [vmem:[%s5 + $0x60] sm:$0xff]
        %v4170 = vld [vmem:[%s5 + $0x68] sm:$0xff]
        %v4171 = vld [vmem:[%s5 + $0x70] sm:$0xff]
        %v4172 = vld [vmem:[%s5 + $0x78] sm:$0xff]
        %v4173 = vld [vmem:[%s5 + $0x80] sm:$0xff]
        %v4174 = vld [vmem:[%s5 + $0x88] sm:$0xff]
        %v4175 = vld [vmem:[%s5 + $0x90] sm:$0xff]
        %v4176 = vld [vmem:[%s5 + $0x98] sm:$0xff]
        %v4177 = vld [vmem:[%s5 + $0xa0] sm:$0xff]
        %v4178 = vld [vmem:[%s5 + $0xa8] sm:$0xff]
        %v4179 = vld [vmem:[%s5 + $0xb0] sm:$0xff]
        %v4180 = vld [vmem:[%s5 + $0xb8] sm:$0xff]
        %v4181 = vld [vmem:[%s5 + $0xc0] sm:$0xff]
        %v4182 = vld [vmem:[%s5 + $0xc8] sm:$0xff]
        %v4183 = vld [vmem:[%s5 + $0xd0] sm:$0xff]
        %v4184 = vld [vmem:[%s5 + $0xd8] sm:$0xff]
        %v4185 = vld [vmem:[%s5 + $0xe0] sm:$0xff]
        %v4186 = vld [vmem:[%s5 + $0xe8] sm:$0xff]
        %v4187 = vld [vmem:[%s5 + $0xf0] sm:$0xff]
        %v4188 = vld [vmem:[%s5 + $0xf8] sm:$0xff]
        %v4189 = vld [vmem:[%s5 + $0x100] sm:$0xff]
        %v4190 = vld [vmem:[%s5 + $0x108] sm:$0xff]
        %v4191 = vld [vmem:[%s5 + $0x110] sm:$0xff]
        %v4192 = vld [vmem:[%s5 + $0x118] sm:$0xff]
        %v4193 = vld [vmem:[%s5 + $0x120] sm:$0xff]
        %v4194 = vld [vmem:[%s5 + $0x128] sm:$0xff]
        %v4195 = vld [vmem:[%s5 + $0x130] sm:$0xff]
        %v4196 = vld [vmem:[%s5 + $0x138] sm:$0xff]
        %v4197 = vld [vmem:[%s5 + $0x140] sm:$0xff]
        %v4198 = vld [vmem:[%s5 + $0x148] sm:$0xff]
        %v4199 = vld [vmem:[%s5 + $0x150] sm:$0xff]
        %v4200 = vld [vmem:[%s5 + $0x158] sm:$0xff]
        %v4201 = vld [vmem:[%s5 + $0x160] sm:$0xff]
        %v4202 = vld [vmem:[%s5 + $0x168] sm:$0xff]
        %v4203 = vld [vmem:[%s5 + $0x170] sm:$0xff]
        %v4204 = vld [vmem:[%s5 + $0x178] sm:$0xff]
        %v4205 = vld [vmem:[%s5 + $0x180] sm:$0xff]
        %v4206 = vld [vmem:[%s5 + $0x188] sm:$0xff]
        %v4207 = vld [vmem:[%s5 + $0x190] sm:$0xff]
        %v4208 = vld [vmem:[%s5 + $0x198] sm:$0xff]
        %v4209 = vld [vmem:[%s5 + $0x1a0] sm:$0xff]
        %v4210 = vld [vmem:[%s5 + $0x1a8] sm:$0xff]
        %v4211 = vld [vmem:[%s5 + $0x1b0] sm:$0xff]
        %v4212 = vld [vmem:[%s5 + $0x1b8] sm:$0xff]
        %v4213 = vld [vmem:[%s5 + $0x1c0] sm:$0xff]
        %v4214 = vld [vmem:[%s5 + $0x1c8] sm:$0xff]
        %v4215 = vld [vmem:[%s5 + $0x1d0] sm:$0xff]
        %v4216 = vld [vmem:[%s5 + $0x1d8] sm:$0xff]
        %v4217 = vld [vmem:[%s5 + $0x1e0] sm:$0xff]
        %v4218 = vld [vmem:[%s5 + $0x1e8] sm:$0xff]
        %v4219 = vld [vmem:[%s5 + $0x1f0] sm:$0xff]
        %v4220 = vld [vmem:[%s5 + $0x1f8] sm:$0xff]
        %v4221 = vld [vmem:[%s5 + $0x200] sm:$0xff]
        %v4222 = vld [vmem:[%s5 + $0x208] sm:$0xff]
        %v4223 = vld [vmem:[%s5 + $0x210] sm:$0xff]
        %v4224 = vld [vmem:[%s5 + $0x218] sm:$0xff]
        %v4225 = vld [vmem:[%s5 + $0x220] sm:$0xff]
        %v4226 = vld [vmem:[%s5 + $0x228] sm:$0xff]
        %v4227 = vld [vmem:[%s5 + $0x230] sm:$0xff]
        %v4228 = vld [vmem:[%s5 + $0x238] sm:$0xff]
        %v4229 = vld [vmem:[%s5 + $0x240] sm:$0xff]
        %v4230 = vld [vmem:[%s5 + $0x248] sm:$0xff]
        %v4231 = vld [vmem:[%s5 + $0x250] sm:$0xff]
        %v4232 = vld [vmem:[%s5 + $0x258] sm:$0xff]
        %v4233 = vld [vmem:[%s5 + $0x260] sm:$0xff]
        %v4234 = vld [vmem:[%s5 + $0x268] sm:$0xff]
        %v4235 = vld [vmem:[%s5 + $0x270] sm:$0xff]
        %v4236 = vld [vmem:[%s5 + $0x278] sm:$0xff]
        %v4237 = vld [vmem:[%s5 + $0x280] sm:$0xff]
        %v4238 = vld [vmem:[%s5 + $0x288] sm:$0xff]
        %v4239 = vld [vmem:[%s5 + $0x290] sm:$0xff]
        %v4240 = vld [vmem:[%s5 + $0x298] sm:$0xff]
        %v4241 = vld [vmem:[%s5 + $0x2a0] sm:$0xff]
        %v4242 = vld [vmem:[%s5 + $0x2a8] sm:$0xff]
        %v4243 = vld [vmem:[%s5 + $0x2b0] sm:$0xff]
        %v4244 = vld [vmem:[%s5 + $0x2b8] sm:$0xff]
        %v4245 = vld [vmem:[%s5 + $0x2c0] sm:$0xff]
        %v4246 = vld [vmem:[%s5 + $0x2c8] sm:$0xff]
        %v4247 = vld [vmem:[%s5 + $0x2d0] sm:$0xff]
        %v4248 = vld [vmem:[%s5 + $0x2d8] sm:$0xff]
        %v4249 = vld [vmem:[%s5 + $0x2e0] sm:$0xff]
        %v4250 = vld [vmem:[%s5 + $0x2e8] sm:$0xff]
        %v4251 = vld [vmem:[%s5 + $0x2f0] sm:$0xff]
        %v4252 = vld [vmem:[%s5 + $0x2f8] sm:$0xff]
        %v4253 = vld [vmem:[%s5 + $0x300] sm:$0xff]
        %v4254 = vld [vmem:[%s5 + $0x308] sm:$0xff]
        %v4255 = vld [vmem:[%s5 + $0x310] sm:$0xff]
        %v4256 = vld [vmem:[%s5 + $0x318] sm:$0xff]
        %v4257 = vld [vmem:[%s5 + $0x320] sm:$0xff]
        %v4258 = vld [vmem:[%s5 + $0x328] sm:$0xff]
        %v4259 = vld [vmem:[%s5 + $0x330] sm:$0xff]
        %v4260 = vld [vmem:[%s5 + $0x338] sm:$0xff]
        %v4261 = vld [vmem:[%s5 + $0x340] sm:$0xff]
        %v4262 = vld [vmem:[%s5 + $0x348] sm:$0xff]
        %v4263 = vld [vmem:[%s5 + $0x350] sm:$0xff]
        %v4264 = vld [vmem:[%s5 + $0x358] sm:$0xff]
        %v4265 = vld [vmem:[%s5 + $0x360] sm:$0xff]
        %v4266 = vld [vmem:[%s5 + $0x368] sm:$0xff]
        %v4267 = vld [vmem:[%s5 + $0x370] sm:$0xff]
        %v4268 = vld [vmem:[%s5 + $0x378] sm:$0xff]
        %v4269 = vld [vmem:[%s5 + $0x380] sm:$0xff]
        %v4270 = vld [vmem:[%s5 + $0x388] sm:$0xff]
        %v4271 = vld [vmem:[%s5 + $0x390] sm:$0xff]
        %v4272 = vld [vmem:[%s5 + $0x398] sm:$0xff]
        %v4273 = vld [vmem:[%s5 + $0x3a0] sm:$0xff]
        %v4274 = vld [vmem:[%s5 + $0x3a8] sm:$0xff]
        %v4275 = vld [vmem:[%s5 + $0x3b0] sm:$0xff]
        %v4276 = vld [vmem:[%s5 + $0x3b8] sm:$0xff]
        %v4277 = vld [vmem:[%s5 + $0x3c0] sm:$0xff]
        %v4278 = vld [vmem:[%s5 + $0x3c8] sm:$0xff]
        %v4279 = vld [vmem:[%s5 + $0x3d0] sm:$0xff]
        %v4280 = vld [vmem:[%s5 + $0x3d8] sm:$0xff]
        %v4281 = vld [vmem:[%s5 + $0x3e0] sm:$0xff]
        %v4282 = vld [vmem:[%s5 + $0x3e8] sm:$0xff]
        %v4283 = vld [vmem:[%s5 + $0x3f0] sm:$0xff]
        %v4284 = vld [vmem:[%s5 + $0x3f8] sm:$0xff]
        %v4285 = vld [vmem:[%s5 + $0x400] sm:$0xff]
        %v4286 = vld [vmem:[%s5 + $0x408] sm:$0xff]
        %v4287 = vld [vmem:[%s5 + $0x410] sm:$0xff]
        %v4288 = vld [vmem:[%s5 + $0x418] sm:$0xff]
        %v4289 = vld [vmem:[%s5 + $0x420] sm:$0xff]
        %v4290 = vld [vmem:[%s5 + $0x428] sm:$0xff]
        %v4291 = vld [vmem:[%s5 + $0x430] sm:$0xff]
        %v4292 = vld [vmem:[%s5 + $0x438] sm:$0xff]
        %v4293 = vld [vmem:[%s5 + $0x440] sm:$0xff]
        %v4294 = vld [vmem:[%s5 + $0x448] sm:$0xff]
        %v4295 = vld [vmem:[%s5 + $0x450] sm:$0xff]
        %v4296 = vld [vmem:[%s5 + $0x458] sm:$0xff]
        %v4297 = vld [vmem:[%s5 + $0x460] sm:$0xff]
        %v4298 = vld [vmem:[%s5 + $0x468] sm:$0xff]
        %v4299 = vld [vmem:[%s5 + $0x470] sm:$0xff]
        %v4300 = vld [vmem:[%s5 + $0x478] sm:$0xff]
        %v4445 = vunpack.c.l.b16 %v4157
        %v4446 = vunpack.c.h.b16 %v4157
        %v4447 = vunpack.c.l.b16 %v4158
        %v4448 = vunpack.c.h.b16 %v4158
        %v4449 = vunpack.c.l.b16 %v4159
        %v4450 = vunpack.c.h.b16 %v4159
        %v4451 = vunpack.c.l.b16 %v4160
        %v4452 = vunpack.c.h.b16 %v4160
        %v4453 = vunpack.c.l.b16 %v4161
        %v4454 = vunpack.c.h.b16 %v4161
        %v4455 = vunpack.c.l.b16 %v4162
        %v4456 = vunpack.c.h.b16 %v4162
        %v4457 = vunpack.c.l.b16 %v4163
        %v4458 = vunpack.c.h.b16 %v4163
        %v4459 = vunpack.c.l.b16 %v4164
        %v4460 = vunpack.c.h.b16 %v4164
        %v4461 = vunpack.c.l.b16 %v4165
        %v4462 = vunpack.c.h.b16 %v4165
        %v4463 = vunpack.c.l.b16 %v4166
        %v4464 = vunpack.c.h.b16 %v4166
        %v4465 = vunpack.c.l.b16 %v4167
        %v4466 = vunpack.c.h.b16 %v4167
        %v4467 = vunpack.c.l.b16 %v4168
        %v4468 = vunpack.c.h.b16 %v4168
        %v4469 = vunpack.c.l.b16 %v4169
        %v4470 = vunpack.c.h.b16 %v4169
        %v4471 = vunpack.c.l.b16 %v4170
        %v4472 = vunpack.c.h.b16 %v4170
        %v4473 = vunpack.c.l.b16 %v4171
        %v4474 = vunpack.c.h.b16 %v4171
        %v4475 = vunpack.c.l.b16 %v4172
        %v4476 = vunpack.c.h.b16 %v4172
        %v4477 = vunpack.c.l.b16 %v4173
        %v4478 = vunpack.c.h.b16 %v4173
        %v4479 = vunpack.c.l.b16 %v4174
        %v4480 = vunpack.c.h.b16 %v4174
        %v4481 = vunpack.c.l.b16 %v4175
        %v4482 = vunpack.c.h.b16 %v4175
        %v4483 = vunpack.c.l.b16 %v4176
        %v4484 = vunpack.c.h.b16 %v4176
        %v4485 = vunpack.c.l.b16 %v4177
        %v4486 = vunpack.c.h.b16 %v4177
        %v4487 = vunpack.c.l.b16 %v4178
        %v4488 = vunpack.c.h.b16 %v4178
        %v4489 = vunpack.c.l.b16 %v4179
        %v4490 = vunpack.c.h.b16 %v4179
        %v4491 = vunpack.c.l.b16 %v4180
        %v4492 = vunpack.c.h.b16 %v4180
        %v4493 = vunpack.c.l.b16 %v4181
        %v4494 = vunpack.c.h.b16 %v4181
        %v4495 = vunpack.c.l.b16 %v4182
        %v4496 = vunpack.c.h.b16 %v4182
        %v4497 = vunpack.c.l.b16 %v4183
        %v4498 = vunpack.c.h.b16 %v4183
        %v4499 = vunpack.c.l.b16 %v4184
        %v4500 = vunpack.c.h.b16 %v4184
        %v4501 = vunpack.c.l.b16 %v4185
        %v4502 = vunpack.c.h.b16 %v4185
        %v4503 = vunpack.c.l.b16 %v4186
        %v4504 = vunpack.c.h.b16 %v4186
        %v4505 = vunpack.c.l.b16 %v4187
        %v4506 = vunpack.c.h.b16 %v4187
        %v4507 = vunpack.c.l.b16 %v4188
        %v4508 = vunpack.c.h.b16 %v4188
        %v4509 = vunpack.c.l.b16 %v4189
        %v4510 = vunpack.c.h.b16 %v4189
        %v4511 = vunpack.c.l.b16 %v4190
        %v4512 = vunpack.c.h.b16 %v4190
        %v4513 = vunpack.c.l.b16 %v4191
        %v4514 = vunpack.c.h.b16 %v4191
        %v4515 = vunpack.c.l.b16 %v4192
        %v4516 = vunpack.c.h.b16 %v4192
        %v4517 = vunpack.c.l.b16 %v4193
        %v4518 = vunpack.c.h.b16 %v4193
        %v4519 = vunpack.c.l.b16 %v4194
        %v4520 = vunpack.c.h.b16 %v4194
        %v4521 = vunpack.c.l.b16 %v4195
        %v4522 = vunpack.c.h.b16 %v4195
        %v4523 = vunpack.c.l.b16 %v4196
        %v4524 = vunpack.c.h.b16 %v4196
        %v4525 = vunpack.c.l.b16 %v4197
        %v4526 = vunpack.c.h.b16 %v4197
        %v4527 = vunpack.c.l.b16 %v4198
        %v4528 = vunpack.c.h.b16 %v4198
        %v4529 = vunpack.c.l.b16 %v4199
        %v4530 = vunpack.c.h.b16 %v4199
        %v4531 = vunpack.c.l.b16 %v4200
        %v4532 = vunpack.c.h.b16 %v4200
        %v4533 = vunpack.c.l.b16 %v4201
        %v4534 = vunpack.c.h.b16 %v4201
        %v4535 = vunpack.c.l.b16 %v4202
        %v4536 = vunpack.c.h.b16 %v4202
        %v4537 = vunpack.c.l.b16 %v4203
        %v4538 = vunpack.c.h.b16 %v4203
        %v4539 = vunpack.c.l.b16 %v4204
        %v4540 = vunpack.c.h.b16 %v4204
        %v4541 = vunpack.c.l.b16 %v4205
        %v4542 = vunpack.c.h.b16 %v4205
        %v4543 = vunpack.c.l.b16 %v4206
        %v4544 = vunpack.c.h.b16 %v4206
        %v4545 = vunpack.c.l.b16 %v4207
        %v4546 = vunpack.c.h.b16 %v4207
        %v4547 = vunpack.c.l.b16 %v4208
        %v4548 = vunpack.c.h.b16 %v4208
        %v4549 = vunpack.c.l.b16 %v4209
        %v4550 = vunpack.c.h.b16 %v4209
        %v4551 = vunpack.c.l.b16 %v4210
        %v4552 = vunpack.c.h.b16 %v4210
        %v4553 = vunpack.c.l.b16 %v4211
        %v4554 = vunpack.c.h.b16 %v4211
        %v4555 = vunpack.c.l.b16 %v4212
        %v4556 = vunpack.c.h.b16 %v4212
        %v4557 = vunpack.c.l.b16 %v4213
        %v4558 = vunpack.c.h.b16 %v4213
        %v4559 = vunpack.c.l.b16 %v4214
        %v4560 = vunpack.c.h.b16 %v4214
        %v4561 = vunpack.c.l.b16 %v4215
        %v4562 = vunpack.c.h.b16 %v4215
        %v4563 = vunpack.c.l.b16 %v4216
        %v4564 = vunpack.c.h.b16 %v4216
        %v4565 = vunpack.c.l.b16 %v4217
        %v4566 = vunpack.c.h.b16 %v4217
        %v4567 = vunpack.c.l.b16 %v4218
        %v4568 = vunpack.c.h.b16 %v4218
        %v4569 = vunpack.c.l.b16 %v4219
        %v4570 = vunpack.c.h.b16 %v4219
        %v4571 = vunpack.c.l.b16 %v4220
        %v4572 = vunpack.c.h.b16 %v4220
        %v4573 = vunpack.c.l.b16 %v4221
        %v4574 = vunpack.c.h.b16 %v4221
        %v4575 = vunpack.c.l.b16 %v4222
        %v4576 = vunpack.c.h.b16 %v4222
        %v4577 = vunpack.c.l.b16 %v4223
        %v4578 = vunpack.c.h.b16 %v4223
        %v4579 = vunpack.c.l.b16 %v4224
        %v4580 = vunpack.c.h.b16 %v4224
        %v4581 = vunpack.c.l.b16 %v4225
        %v4582 = vunpack.c.h.b16 %v4225
        %v4583 = vunpack.c.l.b16 %v4226
        %v4584 = vunpack.c.h.b16 %v4226
        %v4585 = vunpack.c.l.b16 %v4227
        %v4586 = vunpack.c.h.b16 %v4227
        %v4587 = vunpack.c.l.b16 %v4228
        %v4588 = vunpack.c.h.b16 %v4228
        %v4589 = vunpack.c.l.b16 %v4229
        %v4590 = vunpack.c.h.b16 %v4229
        %v4591 = vunpack.c.l.b16 %v4230
        %v4592 = vunpack.c.h.b16 %v4230
        %v4593 = vunpack.c.l.b16 %v4231
        %v4594 = vunpack.c.h.b16 %v4231
        %v4595 = vunpack.c.l.b16 %v4232
        %v4596 = vunpack.c.h.b16 %v4232
        %v4597 = vunpack.c.l.b16 %v4233
        %v4598 = vunpack.c.h.b16 %v4233
        %v4599 = vunpack.c.l.b16 %v4234
        %v4600 = vunpack.c.h.b16 %v4234
        %v4601 = vunpack.c.l.b16 %v4235
        %v4602 = vunpack.c.h.b16 %v4235
        %v4603 = vunpack.c.l.b16 %v4236
        %v4604 = vunpack.c.h.b16 %v4236
        %v4605 = vunpack.c.l.b16 %v4237
        %v4606 = vunpack.c.h.b16 %v4237
        %v4607 = vunpack.c.l.b16 %v4238
        %v4608 = vunpack.c.h.b16 %v4238
        %v4609 = vunpack.c.l.b16 %v4239
        %v4610 = vunpack.c.h.b16 %v4239
        %v4611 = vunpack.c.l.b16 %v4240
        %v4612 = vunpack.c.h.b16 %v4240
        %v4613 = vunpack.c.l.b16 %v4241
        %v4614 = vunpack.c.h.b16 %v4241
        %v4615 = vunpack.c.l.b16 %v4242
        %v4616 = vunpack.c.h.b16 %v4242
        %v4617 = vunpack.c.l.b16 %v4243
        %v4618 = vunpack.c.h.b16 %v4243
        %v4619 = vunpack.c.l.b16 %v4244
        %v4620 = vunpack.c.h.b16 %v4244
        %v4621 = vunpack.c.l.b16 %v4245
        %v4622 = vunpack.c.h.b16 %v4245
        %v4623 = vunpack.c.l.b16 %v4246
        %v4624 = vunpack.c.h.b16 %v4246
        %v4625 = vunpack.c.l.b16 %v4247
        %v4626 = vunpack.c.h.b16 %v4247
        %v4627 = vunpack.c.l.b16 %v4248
        %v4628 = vunpack.c.h.b16 %v4248
        %v4629 = vunpack.c.l.b16 %v4249
        %v4630 = vunpack.c.h.b16 %v4249
        %v4631 = vunpack.c.l.b16 %v4250
        %v4632 = vunpack.c.h.b16 %v4250
        %v4633 = vunpack.c.l.b16 %v4251
        %v4634 = vunpack.c.h.b16 %v4251
        %v4635 = vunpack.c.l.b16 %v4252
        %v4636 = vunpack.c.h.b16 %v4252
        %v4637 = vunpack.c.l.b16 %v4253
        %v4638 = vunpack.c.h.b16 %v4253
        %v4639 = vunpack.c.l.b16 %v4254
        %v4640 = vunpack.c.h.b16 %v4254
        %v4641 = vunpack.c.l.b16 %v4255
        %v4642 = vunpack.c.h.b16 %v4255
        %v4643 = vunpack.c.l.b16 %v4256
        %v4644 = vunpack.c.h.b16 %v4256
        %v4645 = vunpack.c.l.b16 %v4257
        %v4646 = vunpack.c.h.b16 %v4257
        %v4647 = vunpack.c.l.b16 %v4258
        %v4648 = vunpack.c.h.b16 %v4258
        %v4649 = vunpack.c.l.b16 %v4259
        %v4650 = vunpack.c.h.b16 %v4259
        %v4651 = vunpack.c.l.b16 %v4260
        %v4652 = vunpack.c.h.b16 %v4260
        %v4653 = vunpack.c.l.b16 %v4261
        %v4654 = vunpack.c.h.b16 %v4261
        %v4655 = vunpack.c.l.b16 %v4262
        %v4656 = vunpack.c.h.b16 %v4262
        %v4657 = vunpack.c.l.b16 %v4263
        %v4658 = vunpack.c.h.b16 %v4263
        %v4659 = vunpack.c.l.b16 %v4264
        %v4660 = vunpack.c.h.b16 %v4264
        %v4661 = vunpack.c.l.b16 %v4265
        %v4662 = vunpack.c.h.b16 %v4265
        %v4663 = vunpack.c.l.b16 %v4266
        %v4664 = vunpack.c.h.b16 %v4266
        %v4665 = vunpack.c.l.b16 %v4267
        %v4666 = vunpack.c.h.b16 %v4267
        %v4667 = vunpack.c.l.b16 %v4268
        %v4668 = vunpack.c.h.b16 %v4268
        %v4669 = vunpack.c.l.b16 %v4269
        %v4670 = vunpack.c.h.b16 %v4269
        %v4671 = vunpack.c.l.b16 %v4270
        %v4672 = vunpack.c.h.b16 %v4270
        %v4673 = vunpack.c.l.b16 %v4271
        %v4674 = vunpack.c.h.b16 %v4271
        %v4675 = vunpack.c.l.b16 %v4272
        %v4676 = vunpack.c.h.b16 %v4272
        %v4677 = vunpack.c.l.b16 %v4273
        %v4678 = vunpack.c.h.b16 %v4273
        %v4679 = vunpack.c.l.b16 %v4274
        %v4680 = vunpack.c.h.b16 %v4274
        %v4681 = vunpack.c.l.b16 %v4275
        %v4682 = vunpack.c.h.b16 %v4275
        %v4683 = vunpack.c.l.b16 %v4276
        %v4684 = vunpack.c.h.b16 %v4276
        %v4685 = vunpack.c.l.b16 %v4277
        %v4686 = vunpack.c.h.b16 %v4277
        %v4687 = vunpack.c.l.b16 %v4278
        %v4688 = vunpack.c.h.b16 %v4278
        %v4689 = vunpack.c.l.b16 %v4279
        %v4690 = vunpack.c.h.b16 %v4279
        %v4691 = vunpack.c.l.b16 %v4280
        %v4692 = vunpack.c.h.b16 %v4280
        %v4693 = vunpack.c.l.b16 %v4281
        %v4694 = vunpack.c.h.b16 %v4281
        %v4695 = vunpack.c.l.b16 %v4282
        %v4696 = vunpack.c.h.b16 %v4282
        %v4697 = vunpack.c.l.b16 %v4283
        %v4698 = vunpack.c.h.b16 %v4283
        %v4699 = vunpack.c.l.b16 %v4284
        %v4700 = vunpack.c.h.b16 %v4284
        %v4701 = vunpack.c.l.b16 %v4285
        %v4702 = vunpack.c.h.b16 %v4285
        %v4703 = vunpack.c.l.b16 %v4286
        %v4704 = vunpack.c.h.b16 %v4286
        %v4705 = vunpack.c.l.b16 %v4287
        %v4706 = vunpack.c.h.b16 %v4287
        %v4707 = vunpack.c.l.b16 %v4288
        %v4708 = vunpack.c.h.b16 %v4288
        %v4709 = vunpack.c.l.b16 %v4289
        %v4710 = vunpack.c.h.b16 %v4289
        %v4711 = vunpack.c.l.b16 %v4290
        %v4712 = vunpack.c.h.b16 %v4290
        %v4713 = vunpack.c.l.b16 %v4291
        %v4714 = vunpack.c.h.b16 %v4291
        %v4715 = vunpack.c.l.b16 %v4292
        %v4716 = vunpack.c.h.b16 %v4292
        %v4717 = vunpack.c.l.b16 %v4293
        %v4718 = vunpack.c.h.b16 %v4293
        %v4719 = vunpack.c.l.b16 %v4294
        %v4720 = vunpack.c.h.b16 %v4294
        %v4721 = vunpack.c.l.b16 %v4295
        %v4722 = vunpack.c.h.b16 %v4295
        %v4723 = vunpack.c.l.b16 %v4296
        %v4724 = vunpack.c.h.b16 %v4296
        %v4725 = vunpack.c.l.b16 %v4297
        %v4726 = vunpack.c.h.b16 %v4297
        %v4727 = vunpack.c.l.b16 %v4298
        %v4728 = vunpack.c.h.b16 %v4298
        %v4729 = vunpack.c.l.b16 %v4299
        %v4730 = vunpack.c.h.b16 %v4299
        %v4731 = vunpack.c.l.b16 %v4300
        %v4732 = vunpack.c.h.b16 %v4300
        %v4733 = vpack.c.b16 %v4447, %v4445
        %v4734 = vpack.c.b16 %v4448, %v4446
        %v4735 = vpack.c.b16 %v4451, %v4449
        %v4736 = vpack.c.b16 %v4452, %v4450
        %v4737 = vpack.c.b16 %v4455, %v4453
        %v4738 = vpack.c.b16 %v4456, %v4454
        %v4739 = vpack.c.b16 %v4459, %v4457
        %v4740 = vpack.c.b16 %v4460, %v4458
        %v4741 = vpack.c.b16 %v4463, %v4461
        %v4742 = vpack.c.b16 %v4464, %v4462
        %v4743 = vpack.c.b16 %v4467, %v4465
        %v4744 = vpack.c.b16 %v4468, %v4466
        %v4745 = vpack.c.b16 %v4471, %v4469
        %v4746 = vpack.c.b16 %v4472, %v4470
        %v4747 = vpack.c.b16 %v4475, %v4473
        %v4748 = vpack.c.b16 %v4476, %v4474
        %v4749 = vpack.c.b16 %v4479, %v4477
        %v4750 = vpack.c.b16 %v4480, %v4478
        %v4751 = vpack.c.b16 %v4483, %v4481
        %v4752 = vpack.c.b16 %v4484, %v4482
        %v4753 = vpack.c.b16 %v4487, %v4485
        %v4754 = vpack.c.b16 %v4488, %v4486
        %v4755 = vpack.c.b16 %v4491, %v4489
        %v4756 = vpack.c.b16 %v4492, %v4490
        %v4757 = vpack.c.b16 %v4495, %v4493
        %v4758 = vpack.c.b16 %v4496, %v4494
        %v4759 = vpack.c.b16 %v4499, %v4497
        %v4760 = vpack.c.b16 %v4500, %v4498
        %v4761 = vpack.c.b16 %v4503, %v4501
        %v4762 = vpack.c.b16 %v4504, %v4502
        %v4763 = vpack.c.b16 %v4507, %v4505
        %v4764 = vpack.c.b16 %v4508, %v4506
        %v4765 = vpack.c.b16 %v4511, %v4509
        %v4766 = vpack.c.b16 %v4512, %v4510
        %v4767 = vpack.c.b16 %v4515, %v4513
        %v4768 = vpack.c.b16 %v4516, %v4514
        %v4769 = vpack.c.b16 %v4519, %v4517
        %v4770 = vpack.c.b16 %v4520, %v4518
        %v4771 = vpack.c.b16 %v4523, %v4521
        %v4772 = vpack.c.b16 %v4524, %v4522
        %v4773 = vpack.c.b16 %v4527, %v4525
        %v4774 = vpack.c.b16 %v4528, %v4526
        %v4775 = vpack.c.b16 %v4531, %v4529
        %v4776 = vpack.c.b16 %v4532, %v4530
        %v4777 = vpack.c.b16 %v4535, %v4533
        %v4778 = vpack.c.b16 %v4536, %v4534
        %v4779 = vpack.c.b16 %v4539, %v4537
        %v4780 = vpack.c.b16 %v4540, %v4538
        %v4781 = vpack.c.b16 %v4543, %v4541
        %v4782 = vpack.c.b16 %v4544, %v4542
        %v4783 = vpack.c.b16 %v4547, %v4545
        %v4784 = vpack.c.b16 %v4548, %v4546
        %v4785 = vpack.c.b16 %v4551, %v4549
        %v4786 = vpack.c.b16 %v4552, %v4550
        %v4787 = vpack.c.b16 %v4555, %v4553
        %v4788 = vpack.c.b16 %v4556, %v4554
        %v4789 = vpack.c.b16 %v4559, %v4557
        %v4790 = vpack.c.b16 %v4560, %v4558
        %v4791 = vpack.c.b16 %v4563, %v4561
        %v4792 = vpack.c.b16 %v4564, %v4562
        %v4793 = vpack.c.b16 %v4567, %v4565
        %v4794 = vpack.c.b16 %v4568, %v4566
        %v4795 = vpack.c.b16 %v4571, %v4569
        %v4796 = vpack.c.b16 %v4572, %v4570
        %v4797 = vpack.c.b16 %v4575, %v4573
        %v4798 = vpack.c.b16 %v4576, %v4574
        %v4799 = vpack.c.b16 %v4579, %v4577
        %v4800 = vpack.c.b16 %v4580, %v4578
        %v4801 = vpack.c.b16 %v4583, %v4581
        %v4802 = vpack.c.b16 %v4584, %v4582
        %v4803 = vpack.c.b16 %v4587, %v4585
        %v4804 = vpack.c.b16 %v4588, %v4586
        %v4805 = vpack.c.b16 %v4591, %v4589
        %v4806 = vpack.c.b16 %v4592, %v4590
        %v4807 = vpack.c.b16 %v4595, %v4593
        %v4808 = vpack.c.b16 %v4596, %v4594
        %v4809 = vpack.c.b16 %v4599, %v4597
        %v4810 = vpack.c.b16 %v4600, %v4598
        %v4811 = vpack.c.b16 %v4603, %v4601
        %v4812 = vpack.c.b16 %v4604, %v4602
        %v4813 = vpack.c.b16 %v4607, %v4605
        %v4814 = vpack.c.b16 %v4608, %v4606
        %v4815 = vpack.c.b16 %v4611, %v4609
        %v4816 = vpack.c.b16 %v4612, %v4610
        %v4817 = vpack.c.b16 %v4615, %v4613
        %v4818 = vpack.c.b16 %v4616, %v4614
        %v4819 = vpack.c.b16 %v4619, %v4617
        %v4820 = vpack.c.b16 %v4620, %v4618
        %v4821 = vpack.c.b16 %v4623, %v4621
        %v4822 = vpack.c.b16 %v4624, %v4622
        %v4823 = vpack.c.b16 %v4627, %v4625
        %v4824 = vpack.c.b16 %v4628, %v4626
        %v4825 = vpack.c.b16 %v4631, %v4629
        %v4826 = vpack.c.b16 %v4632, %v4630
        %v4827 = vpack.c.b16 %v4635, %v4633
        %v4828 = vpack.c.b16 %v4636, %v4634
        %v4829 = vpack.c.b16 %v4639, %v4637
        %v4830 = vpack.c.b16 %v4640, %v4638
        %v4831 = vpack.c.b16 %v4643, %v4641
        %v4832 = vpack.c.b16 %v4644, %v4642
        %v4833 = vpack.c.b16 %v4647, %v4645
        %v4834 = vpack.c.b16 %v4648, %v4646
        %v4835 = vpack.c.b16 %v4651, %v4649
        %v4836 = vpack.c.b16 %v4652, %v4650
        %v4837 = vpack.c.b16 %v4655, %v4653
        %v4838 = vpack.c.b16 %v4656, %v4654
        %v4839 = vpack.c.b16 %v4659, %v4657
        %v4840 = vpack.c.b16 %v4660, %v4658
        %v4841 = vpack.c.b16 %v4663, %v4661
        %v4842 = vpack.c.b16 %v4664, %v4662
        %v4843 = vpack.c.b16 %v4667, %v4665
        %v4844 = vpack.c.b16 %v4668, %v4666
        %v4845 = vpack.c.b16 %v4671, %v4669
        %v4846 = vpack.c.b16 %v4672, %v4670
        %v4847 = vpack.c.b16 %v4675, %v4673
        %v4848 = vpack.c.b16 %v4676, %v4674
        %v4849 = vpack.c.b16 %v4679, %v4677
        %v4850 = vpack.c.b16 %v4680, %v4678
        %v4851 = vpack.c.b16 %v4683, %v4681
        %v4852 = vpack.c.b16 %v4684, %v4682
        %v4853 = vpack.c.b16 %v4687, %v4685
        %v4854 = vpack.c.b16 %v4688, %v4686
        %v4855 = vpack.c.b16 %v4691, %v4689
        %v4856 = vpack.c.b16 %v4692, %v4690
        %v4857 = vpack.c.b16 %v4695, %v4693
        %v4858 = vpack.c.b16 %v4696, %v4694
        %v4859 = vpack.c.b16 %v4699, %v4697
        %v4860 = vpack.c.b16 %v4700, %v4698
        %v4861 = vpack.c.b16 %v4703, %v4701
        %v4862 = vpack.c.b16 %v4704, %v4702
        %v4863 = vpack.c.b16 %v4707, %v4705
        %v4864 = vpack.c.b16 %v4708, %v4706
        %v4865 = vpack.c.b16 %v4711, %v4709
        %v4866 = vpack.c.b16 %v4712, %v4710
        %v4867 = vpack.c.b16 %v4715, %v4713
        %v4868 = vpack.c.b16 %v4716, %v4714
        %v4869 = vpack.c.b16 %v4719, %v4717
        %v4870 = vpack.c.b16 %v4720, %v4718
        %v4871 = vpack.c.b16 %v4723, %v4721
        %v4872 = vpack.c.b16 %v4724, %v4722
        %v4873 = vpack.c.b16 %v4727, %v4725
        %v4874 = vpack.c.b16 %v4728, %v4726
        %v4875 = vpack.c.b16 %v4731, %v4729
        %v4876 = vpack.c.b16 %v4732, %v4730
        %5021 = vmatprep.subr.bf16.mxu0 %v4734
        %5022 = vmatpush1.bf16.msra.mxu0 %v4733
        %5023 = vmatprep.subr.bf16.mxu0 %v4736
        %5024 = vmatpush1.bf16.msra.mxu0 %v4735
        %5025 = vmatprep.subr.bf16.mxu0 %v4738
        %5026 = vmatpush1.bf16.msra.mxu0 %v4737
        %5027 = vmatprep.subr.bf16.mxu0 %v4740
        %5028 = vmatpush1.bf16.msra.mxu0 %v4739
        %5029 = vmatprep.subr.bf16.mxu0 %v4742
        %5030 = vmatpush1.bf16.msra.mxu0 %v4741
        %5031 = vmatprep.subr.bf16.mxu0 %v4744
        %5032 = vmatpush1.bf16.msra.mxu0 %v4743
        %5033 = vmatprep.subr.bf16.mxu0 %v4746
        %5034 = vmatpush1.bf16.msra.mxu0 %v4745
        %5035 = vmatprep.subr.bf16.mxu0 %v4748
        %5036 = vmatpush1.bf16.msra.mxu0 %v4747
        %5037 = vmatprep.subr.bf16.mxu0 %v4750
        %5038 = vmatpush1.bf16.msra.mxu0 %v4749
        %5039 = vmatprep.subr.bf16.mxu0 %v4752
        %5040 = vmatpush1.bf16.msra.mxu0 %v4751
        %5041 = vmatprep.subr.bf16.mxu0 %v4754
        %5042 = vmatpush1.bf16.msra.mxu0 %v4753
        %5043 = vmatprep.subr.bf16.mxu0 %v4756
        %5044 = vmatpush1.bf16.msra.mxu0 %v4755
        %5045 = vmatprep.subr.bf16.mxu0 %v4758
        %5046 = vmatpush1.bf16.msra.mxu0 %v4757
        %5047 = vmatprep.subr.bf16.mxu0 %v4760
        %5048 = vmatpush1.bf16.msra.mxu0 %v4759
        %5049 = vmatprep.subr.bf16.mxu0 %v4762
        %5050 = vmatpush1.bf16.msra.mxu0 %v4761
        %5051 = vmatprep.subr.bf16.mxu0 %v4764
        %5052 = vmatpush1.bf16.msra.mxu0 %v4763
        %5053 = vmatprep.mubr.bf16.mxu0 0
        %5054 = vmatmul.mubr.bf16.gmra.mrb[0].mxu0 0
        %v5055 = vpop.f32.mrb[0].mxu0
        %v5056 = vadd.f32 %v3194, %v5055
        %v5057 = vpop.f32.mrb[0].mxu0
        %v5058 = vadd.f32 %v3196, %v5057
        %v5059 = vpop.f32.mrb[0].mxu0
        %v5060 = vadd.f32 %v3198, %v5059
        %v5061 = vpop.f32.mrb[0].mxu0
        %v5062 = vadd.f32 %v3200, %v5061
        %5063 = vmatprep.mubr.bf16.mxu0 %v444
        %5064 = vmatmul.mubr.bf16.gmra.mrb[0].mxu0 %v850
        %v5065 = vpop.f32.mrb[0].mxu0
        %v5066 = vadd.f32 %v3204, %v5065
        %v5067 = vpop.f32.mrb[0].mxu0
        %v5068 = vadd.f32 %v3206, %v5067
        %v5069 = vpop.f32.mrb[0].mxu0
        %v5070 = vadd.f32 %v3208, %v5069
        %v5071 = vpop.f32.mrb[0].mxu0
        %v5072 = vadd.f32 %v3210, %v5071
        %5073 = vmatprep.mubr.bf16.mxu0 %v445
        %5074 = vmatmul.mubr.bf16.gmra.mrb[0].mxu0 %v851
        %v5075 = vpop.f32.mrb[0].mxu0
        %v5076 = vadd.f32 %v3214, %v5075
        %v5077 = vpop.f32.mrb[0].mxu0
        %v5078 = vadd.f32 %v3216, %v5077
        %v5079 = vpop.f32.mrb[0].mxu0
        %v5080 = vadd.f32 %v3218, %v5079
        %v5081 = vpop.f32.mrb[0].mxu0
        %v5082 = vadd.f32 %v3220, %v5081
        %5083 = vmatprep.mubr.bf16.mxu0 %v446
        %5084 = vmatmul.mubr.bf16.gmra.mrb[0].mxu0 %v852
        %v5085 = vpop.f32.mrb[0].mxu0
        %v5086 = vadd.f32 %v3224, %v5085
        %v5087 = vpop.f32.mrb[0].mxu0
        %v5088 = vadd.f32 %v3226, %v5087
        %v5089 = vpop.f32.mrb[0].mxu0
        %v5090 = vadd.f32 %v3228, %v5089
        %v5091 = vpop.f32.mrb[0].mxu0
        %v5092 = vadd.f32 %v3230, %v5091
        %5093 = vmatprep.mubr.bf16.mxu0 %v447
        %5094 = vmatmul.mubr.bf16.gmra.mrb[0].mxu0 %v853
        %v5095 = vpop.f32.mrb[0].mxu0
        %v5096 = vadd.f32 %v3234, %v5095
        %v5097 = vpop.f32.mrb[0].mxu0
        %v5098 = vadd.f32 %v3236, %v5097
        %v5099 = vpop.f32.mrb[0].mxu0
        %v5100 = vadd.f32 %v3238, %v5099
        %v5101 = vpop.f32.mrb[0].mxu0
        %v5102 = vadd.f32 %v3240, %v5101
        %5103 = vmatprep.mubr.bf16.mxu0 %v448
        %5104 = vmatmul.mubr.bf16.gmra.mrb[0].mxu0 %v854
        %v5105 = vpop.f32.mrb[0].mxu0
        %v5106 = vadd.f32 %v3244, %v5105
        %v5107 = vpop.f32.mrb[0].mxu0
        %v5108 = vadd.f32 %v3246, %v5107
        %v5109 = vpop.f32.mrb[0].mxu0
        %v5110 = vadd.f32 %v3248, %v5109
        %v5111 = vpop.f32.mrb[0].mxu0
        %v5112 = vadd.f32 %v3250, %v5111
        %5113 = vmatprep.mubr.bf16.mxu0 %v449
        %5114 = vmatmul.mubr.bf16.gmra.mrb[0].mxu0 %v855
        %v5115 = vpop.f32.mrb[0].mxu0
        %v5116 = vadd.f32 %v3254, %v5115
        %v5117 = vpop.f32.mrb[0].mxu0
        %v5118 = vadd.f32 %v3256, %v5117
        %v5119 = vpop.f32.mrb[0].mxu0
        %v5120 = vadd.f32 %v3258, %v5119
        %v5121 = vpop.f32.mrb[0].mxu0
        %v5122 = vadd.f32 %v3260, %v5121
        %5123 = vmatprep.mubr.bf16.mxu0 %v450
        %5124 = vmatmul.mubr.bf16.gmra.mrb[0].mxu0 %v856
        %v5125 = vpop.f32.mrb[0].mxu0
        %v5126 = vadd.f32 %v3264, %v5125
        %v5127 = vpop.f32.mrb[0].mxu0
        %v5128 = vadd.f32 %v3266, %v5127
        %v5129 = vpop.f32.mrb[0].mxu0
        %v5130 = vadd.f32 %v3268, %v5129
        %v5131 = vpop.f32.mrb[0].mxu0
        %v5132 = vadd.f32 %v3270, %v5131
        %5133 = vmatprep.mubr.bf16.mxu0 %v451
        %5134 = vmatmul.mubr.bf16.gmra.mrb[0].mxu0 %v857
        %v5135 = vpop.f32.mrb[0].mxu0
        %v5136 = vadd.f32 %v3274, %v5135
        %v5137 = vpop.f32.mrb[0].mxu0
        %v5138 = vadd.f32 %v3276, %v5137
        %v5139 = vpop.f32.mrb[0].mxu0
        %v5140 = vadd.f32 %v3278, %v5139
        %v5141 = vpop.f32.mrb[0].mxu0
        %v5142 = vadd.f32 %v3280, %v5141
        %5143 = vmatprep.mubr.bf16.mxu0 %v452
        %5144 = vmatmul.mubr.bf16.gmra.mrb[0].mxu0 %v858
        %v5145 = vpop.f32.mrb[0].mxu0
        %v5146 = vadd.f32 %v3284, %v5145
        %v5147 = vpop.f32.mrb[0].mxu0
        %v5148 = vadd.f32 %v3286, %v5147
        %v5149 = vpop.f32.mrb[0].mxu0
        %v5150 = vadd.f32 %v3288, %v5149
        %v5151 = vpop.f32.mrb[0].mxu0
        %v5152 = vadd.f32 %v3290, %v5151
        %5153 = vmatprep.mubr.bf16.mxu0 %v453
        %5154 = vmatmul.mubr.bf16.gmra.mrb[0].mxu0 %v859
        %v5155 = vpop.f32.mrb[0].mxu0
        %v5156 = vadd.f32 %v3294, %v5155
        %v5157 = vpop.f32.mrb[0].mxu0
        %v5158 = vadd.f32 %v3296, %v5157
        %v5159 = vpop.f32.mrb[0].mxu0
        %v5160 = vadd.f32 %v3298, %v5159
        %v5161 = vpop.f32.mrb[0].mxu0
        %v5162 = vadd.f32 %v3300, %v5161
        %5163 = vmatprep.mubr.bf16.mxu0 %v454
        %5164 = vmatmul.mubr.bf16.gmra.mrb[0].mxu0 %v860
        %v5165 = vpop.f32.mrb[0].mxu0
        %v5166 = vadd.f32 %v3304, %v5165
        %v5167 = vpop.f32.mrb[0].mxu0
        %v5168 = vadd.f32 %v3306, %v5167
        %v5169 = vpop.f32.mrb[0].mxu0
        %v5170 = vadd.f32 %v3308, %v5169
        %v5171 = vpop.f32.mrb[0].mxu0
        %v5172 = vadd.f32 %v3310, %v5171
        %5173 = vmatprep.mubr.bf16.mxu0 %v455
        %5174 = vmatmul.mubr.bf16.gmra.mrb[0].mxu0 %v861
        %v5175 = vpop.f32.mrb[0].mxu0
        %v5176 = vadd.f32 %v3314, %v5175
        %v5177 = vpop.f32.mrb[0].mxu0
        %v5178 = vadd.f32 %v3316, %v5177
        %v5179 = vpop.f32.mrb[0].mxu0
        %v5180 = vadd.f32 %v3318, %v5179
        %v5181 = vpop.f32.mrb[0].mxu0
        %v5182 = vadd.f32 %v3320, %v5181
        %5183 = vmatprep.mubr.bf16.mxu0 %v456
        %5184 = vmatmul.mubr.bf16.gmra.mrb[0].mxu0 %v862
        %v5185 = vpop.f32.mrb[0].mxu0
        %v5186 = vadd.f32 %v3324, %v5185
        %v5187 = vpop.f32.mrb[0].mxu0
        %v5188 = vadd.f32 %v3326, %v5187
        %v5189 = vpop.f32.mrb[0].mxu0
        %v5190 = vadd.f32 %v3328, %v5189
        %v5191 = vpop.f32.mrb[0].mxu0
        %v5192 = vadd.f32 %v3330, %v5191
        %5193 = vmatprep.mubr.bf16.mxu0 %v457
        %5194 = vmatmul.mubr.bf16.gmra.mrb[0].mxu0 %v863
        %v5195 = vpop.f32.mrb[0].mxu0
        %v5196 = vadd.f32 %v3334, %v5195
        %v5197 = vpop.f32.mrb[0].mxu0
        %v5198 = vadd.f32 %v3336, %v5197
        %v5199 = vpop.f32.mrb[0].mxu0
        %v5200 = vadd.f32 %v3338, %v5199
        %v5201 = vpop.f32.mrb[0].mxu0
        %v5202 = vadd.f32 %v3340, %v5201
        %5203 = vmatprep.mubr.bf16.mxu0 %v458
        %5204 = vmatmul.mubr.bf16.gmra.mrb[0].mxu0 %v864
        %v5205 = vpop.f32.mrb[0].mxu0
        %v5206 = vadd.f32 %v3344, %v5205
        %v5207 = vpop.f32.mrb[0].mxu0
        %v5208 = vadd.f32 %v3346, %v5207
        %v5209 = vpop.f32.mrb[0].mxu0
        %v5210 = vadd.f32 %v3348, %v5209
        %v5211 = vpop.f32.mrb[0].mxu0
        %v5212 = vadd.f32 %v3350, %v5211
        %5213 = vdwg.mxu0
        %5214 = vmatprep.subr.bf16.mxu0 %v4766
        %5215 = vmatpush1.bf16.msra.mxu0 %v4765
        %5216 = vmatprep.subr.bf16.mxu0 %v4768
        %5217 = vmatpush1.bf16.msra.mxu0 %v4767
        %5218 = vmatprep.subr.bf16.mxu0 %v4770
        %5219 = vmatpush1.bf16.msra.mxu0 %v4769
        %5220 = vmatprep.subr.bf16.mxu0 %v4772
        %5221 = vmatpush1.bf16.msra.mxu0 %v4771
        %5222 = vmatprep.subr.bf16.mxu0 %v4774
        %5223 = vmatpush1.bf16.msra.mxu0 %v4773
        %5224 = vmatprep.subr.bf16.mxu0 %v4776
        %5225 = vmatpush1.bf16.msra.mxu0 %v4775
        %5226 = vmatprep.subr.bf16.mxu0 %v4778
        %5227 = vmatpush1.bf16.msra.mxu0 %v4777
        %5228 = vmatprep.subr.bf16.mxu0 %v4780
        %5229 = vmatpush1.bf16.msra.mxu0 %v4779
        %5230 = vmatprep.subr.bf16.mxu0 %v4782
        %5231 = vmatpush1.bf16.msra.mxu0 %v4781
        %5232 = vmatprep.subr.bf16.mxu0 %v4784
        %5233 = vmatpush1.bf16.msra.mxu0 %v4783
        %5234 = vmatprep.subr.bf16.mxu0 %v4786
        %5235 = vmatpush1.bf16.msra.mxu0 %v4785
        %5236 = vmatprep.subr.bf16.mxu0 %v4788
        %5237 = vmatpush1.bf16.msra.mxu0 %v4787
        %5238 = vmatprep.subr.bf16.mxu0 %v4790
        %5239 = vmatpush1.bf16.msra.mxu0 %v4789
        %5240 = vmatprep.subr.bf16.mxu0 %v4792
        %5241 = vmatpush1.bf16.msra.mxu0 %v4791
        %5242 = vmatprep.subr.bf16.mxu0 %v4794
        %5243 = vmatpush1.bf16.msra.mxu0 %v4793
        %5244 = vmatprep.subr.bf16.mxu0 %v4796
        %5245 = vmatpush1.bf16.msra.mxu0 %v4795
        %5246 = vmatprep.mubr.bf16.mxu0 %v850
        %5247 = vmatmul.mubr.bf16.gmra.mrb[0].mxu0 0
        %v5248 = vpop.f32.mrb[0].mxu0
        %v5249 = vadd.f32 %v5056, %v5248
        %v5250 = vpop.f32.mrb[0].mxu0
        %v5251 = vadd.f32 %v5058, %v5250
        %v5252 = vpop.f32.mrb[0].mxu0
        %v5253 = vadd.f32 %v5060, %v5252
        %v5254 = vpop.f32.mrb[0].mxu0
        %v5255 = vadd.f32 %v5062, %v5254
        %5256 = vmatprep.mubr.bf16.mxu0 %v851
        %5257 = vmatmul.mubr.bf16.gmra.mrb[0].mxu0 %v914
        %v5258 = vpop.f32.mrb[0].mxu0
        %v5259 = vadd.f32 %v5066, %v5258
        %v5260 = vpop.f32.mrb[0].mxu0
        %v5261 = vadd.f32 %v5068, %v5260
        %v5262 = vpop.f32.mrb[0].mxu0
        %v5263 = vadd.f32 %v5070, %v5262
        %v5264 = vpop.f32.mrb[0].mxu0
        %v5265 = vadd.f32 %v5072, %v5264
        %5266 = vmatprep.mubr.bf16.mxu0 %v852
        %5267 = vmatmul.mubr.bf16.gmra.mrb[0].mxu0 %v915
        %v5268 = vpop.f32.mrb[0].mxu0
        %v5269 = vadd.f32 %v5076, %v5268
        %v5270 = vpop.f32.mrb[0].mxu0
        %v5271 = vadd.f32 %v5078, %v5270
        %v5272 = vpop.f32.mrb[0].mxu0
        %v5273 = vadd.f32 %v5080, %v5272
        %v5274 = vpop.f32.mrb[0].mxu0
        %v5275 = vadd.f32 %v5082, %v5274
        %5276 = vmatprep.mubr.bf16.mxu0 %v853
        %5277 = vmatmul.mubr.bf16.gmra.mrb[0].mxu0 %v916
        %v5278 = vpop.f32.mrb[0].mxu0
        %v5279 = vadd.f32 %v5086, %v5278
        %v5280 = vpop.f32.mrb[0].mxu0
        %v5281 = vadd.f32 %v5088, %v5280
        %v5282 = vpop.f32.mrb[0].mxu0
        %v5283 = vadd.f32 %v5090, %v5282
        %v5284 = vpop.f32.mrb[0].mxu0
        %v5285 = vadd.f32 %v5092, %v5284
        %5286 = vmatprep.mubr.bf16.mxu0 %v854
        %5287 = vmatmul.mubr.bf16.gmra.mrb[0].mxu0 %v917
        %v5288 = vpop.f32.mrb[0].mxu0
        %v5289 = vadd.f32 %v5096, %v5288
        %v5290 = vpop.f32.mrb[0].mxu0
        %v5291 = vadd.f32 %v5098, %v5290
        %v5292 = vpop.f32.mrb[0].mxu0
        %v5293 = vadd.f32 %v5100, %v5292
        %v5294 = vpop.f32.mrb[0].mxu0
        %v5295 = vadd.f32 %v5102, %v5294
        %5296 = vmatprep.mubr.bf16.mxu0 %v855
        %5297 = vmatmul.mubr.bf16.gmra.mrb[0].mxu0 %v918
        %v5298 = vpop.f32.mrb[0].mxu0
        %v5299 = vadd.f32 %v5106, %v5298
        %v5300 = vpop.f32.mrb[0].mxu0
        %v5301 = vadd.f32 %v5108, %v5300
        %v5302 = vpop.f32.mrb[0].mxu0
        %v5303 = vadd.f32 %v5110, %v5302
        %v5304 = vpop.f32.mrb[0].mxu0
        %v5305 = vadd.f32 %v5112, %v5304
        %5306 = vmatprep.mubr.bf16.mxu0 %v856
        %5307 = vmatmul.mubr.bf16.gmra.mrb[0].mxu0 %v919
        %v5308 = vpop.f32.mrb[0].mxu0
        %v5309 = vadd.f32 %v5116, %v5308
        %v5310 = vpop.f32.mrb[0].mxu0
        %v5311 = vadd.f32 %v5118, %v5310
        %v5312 = vpop.f32.mrb[0].mxu0
        %v5313 = vadd.f32 %v5120, %v5312
        %v5314 = vpop.f32.mrb[0].mxu0
        %v5315 = vadd.f32 %v5122, %v5314
        %5316 = vmatprep.mubr.bf16.mxu0 %v857
        %5317 = vmatmul.mubr.bf16.gmra.mrb[0].mxu0 %v920
        %v5318 = vpop.f32.mrb[0].mxu0
        %v5319 = vadd.f32 %v5126, %v5318
        %v5320 = vpop.f32.mrb[0].mxu0
        %v5321 = vadd.f32 %v5128, %v5320
        %v5322 = vpop.f32.mrb[0].mxu0
        %v5323 = vadd.f32 %v5130, %v5322
        %v5324 = vpop.f32.mrb[0].mxu0
        %v5325 = vadd.f32 %v5132, %v5324
        %5326 = vmatprep.mubr.bf16.mxu0 %v858
        %5327 = vmatmul.mubr.bf16.gmra.mrb[0].mxu0 %v921
        %v5328 = vpop.f32.mrb[0].mxu0
        %v5329 = vadd.f32 %v5136, %v5328
        %v5330 = vpop.f32.mrb[0].mxu0
        %v5331 = vadd.f32 %v5138, %v5330
        %v5332 = vpop.f32.mrb[0].mxu0
        %v5333 = vadd.f32 %v5140, %v5332
        %v5334 = vpop.f32.mrb[0].mxu0
        %v5335 = vadd.f32 %v5142, %v5334
        %5336 = vmatprep.mubr.bf16.mxu0 %v859
        %5337 = vmatmul.mubr.bf16.gmra.mrb[0].mxu0 %v922
        %v5338 = vpop.f32.mrb[0].mxu0
        %v5339 = vadd.f32 %v5146, %v5338
        %v5340 = vpop.f32.mrb[0].mxu0
        %v5341 = vadd.f32 %v5148, %v5340
        %v5342 = vpop.f32.mrb[0].mxu0
        %v5343 = vadd.f32 %v5150, %v5342
        %v5344 = vpop.f32.mrb[0].mxu0
        %v5345 = vadd.f32 %v5152, %v5344
        %5346 = vmatprep.mubr.bf16.mxu0 %v860
        %5347 = vmatmul.mubr.bf16.gmra.mrb[0].mxu0 %v923
        %v5348 = vpop.f32.mrb[0].mxu0
        %v5349 = vadd.f32 %v5156, %v5348
        %v5350 = vpop.f32.mrb[0].mxu0
        %v5351 = vadd.f32 %v5158, %v5350
        %v5352 = vpop.f32.mrb[0].mxu0
        %v5353 = vadd.f32 %v5160, %v5352
        %v5354 = vpop.f32.mrb[0].mxu0
        %v5355 = vadd.f32 %v5162, %v5354
        %5356 = vmatprep.mubr.bf16.mxu0 %v861
        %5357 = vmatmul.mubr.bf16.gmra.mrb[0].mxu0 %v924
        %v5358 = vpop.f32.mrb[0].mxu0
        %v5359 = vadd.f32 %v5166, %v5358
        %v5360 = vpop.f32.mrb[0].mxu0
        %v5361 = vadd.f32 %v5168, %v5360
        %v5362 = vpop.f32.mrb[0].mxu0
        %v5363 = vadd.f32 %v5170, %v5362
        %v5364 = vpop.f32.mrb[0].mxu0
        %v5365 = vadd.f32 %v5172, %v5364
        %5366 = vmatprep.mubr.bf16.mxu0 %v862
        %5367 = vmatmul.mubr.bf16.gmra.mrb[0].mxu0 %v925
        %v5368 = vpop.f32.mrb[0].mxu0
        %v5369 = vadd.f32 %v5176, %v5368
        %v5370 = vpop.f32.mrb[0].mxu0
        %v5371 = vadd.f32 %v5178, %v5370
        %v5372 = vpop.f32.mrb[0].mxu0
        %v5373 = vadd.f32 %v5180, %v5372
        %v5374 = vpop.f32.mrb[0].mxu0
        %v5375 = vadd.f32 %v5182, %v5374
        %5376 = vmatprep.mubr.bf16.mxu0 %v863
        %5377 = vmatmul.mubr.bf16.gmra.mrb[0].mxu0 %v926
        %v5378 = vpop.f32.mrb[0].mxu0
        %v5379 = vadd.f32 %v5186, %v5378
        %v5380 = vpop.f32.mrb[0].mxu0
        %v5381 = vadd.f32 %v5188, %v5380
        %v5382 = vpop.f32.mrb[0].mxu0
        %v5383 = vadd.f32 %v5190, %v5382
        %v5384 = vpop.f32.mrb[0].mxu0
        %v5385 = vadd.f32 %v5192, %v5384
        %5386 = vmatprep.mubr.bf16.mxu0 %v864
        %5387 = vmatmul.mubr.bf16.gmra.mrb[0].mxu0 %v927
        %v5388 = vpop.f32.mrb[0].mxu0
        %v5389 = vadd.f32 %v5196, %v5388
        %v5390 = vpop.f32.mrb[0].mxu0
        %v5391 = vadd.f32 %v5198, %v5390
        %v5392 = vpop.f32.mrb[0].mxu0
        %v5393 = vadd.f32 %v5200, %v5392
        %v5394 = vpop.f32.mrb[0].mxu0
        %v5395 = vadd.f32 %v5202, %v5394
        %5396 = vmatprep.mubr.bf16.mxu0 %v865
        %5397 = vmatmul.mubr.bf16.gmra.mrb[0].mxu0 %v928
        %v5398 = vpop.f32.mrb[0].mxu0
        %v5399 = vadd.f32 %v5206, %v5398
        %v5400 = vpop.f32.mrb[0].mxu0
        %v5401 = vadd.f32 %v5208, %v5400
        %v5402 = vpop.f32.mrb[0].mxu0
        %v5403 = vadd.f32 %v5210, %v5402
        %v5404 = vpop.f32.mrb[0].mxu0
        %v5405 = vadd.f32 %v5212, %v5404
        %5406 = vdwg.mxu0
        %5407 = vmatprep.subr.bf16.mxu0 %v4798
        %5408 = vmatpush1.bf16.msra.mxu0 %v4797
        %5409 = vmatprep.subr.bf16.mxu0 %v4800
        %5410 = vmatpush1.bf16.msra.mxu0 %v4799
        %5411 = vmatprep.subr.bf16.mxu0 %v4802
        %5412 = vmatpush1.bf16.msra.mxu0 %v4801
        %5413 = vmatprep.subr.bf16.mxu0 %v4804
        %5414 = vmatpush1.bf16.msra.mxu0 %v4803
        %5415 = vmatprep.subr.bf16.mxu0 %v4806
        %5416 = vmatpush1.bf16.msra.mxu0 %v4805
        %5417 = vmatprep.subr.bf16.mxu0 %v4808
        %5418 = vmatpush1.bf16.msra.mxu0 %v4807
        %5419 = vmatprep.subr.bf16.mxu0 %v4810
        %5420 = vmatpush1.bf16.msra.mxu0 %v4809
        %5421 = vmatprep.subr.bf16.mxu0 %v4812
        %5422 = vmatpush1.bf16.msra.mxu0 %v4811
        %5423 = vmatprep.subr.bf16.mxu0 %v4814
        %5424 = vmatpush1.bf16.msra.mxu0 %v4813
        %5425 = vmatprep.subr.bf16.mxu0 %v4816
        %5426 = vmatpush1.bf16.msra.mxu0 %v4815
        %5427 = vmatprep.subr.bf16.mxu0 %v4818
        %5428 = vmatpush1.bf16.msra.mxu0 %v4817
        %5429 = vmatprep.subr.bf16.mxu0 %v4820
        %5430 = vmatpush1.bf16.msra.mxu0 %v4819
        %5431 = vmatprep.subr.bf16.mxu0 %v4822
        %5432 = vmatpush1.bf16.msra.mxu0 %v4821
        %5433 = vmatprep.subr.bf16.mxu0 %v4824
        %5434 = vmatpush1.bf16.msra.mxu0 %v4823
        %5435 = vmatprep.subr.bf16.mxu0 %v4826
        %5436 = vmatpush1.bf16.msra.mxu0 %v4825
        %5437 = vmatprep.subr.bf16.mxu0 %v4828
        %5438 = vmatpush1.bf16.msra.mxu0 %v4827
        %5439 = vmatprep.mubr.bf16.mxu0 %v914
        %5440 = vmatmul.mubr.bf16.gmra.mrb[0].mxu0 %v444
        %v5441 = vpop.f32.mrb[0].mxu0
        %v5442 = vadd.f32 %v5249, %v5441
        %v5443 = vpop.f32.mrb[0].mxu0
        %v5444 = vadd.f32 %v5251, %v5443
        %v5445 = vpop.f32.mrb[0].mxu0
        %v5446 = vadd.f32 %v5253, %v5445
        %v5447 = vpop.f32.mrb[0].mxu0
        %v5448 = vadd.f32 %v5255, %v5447
        %5449 = vmatprep.mubr.bf16.mxu0 %v915
        %5450 = vmatmul.mubr.bf16.gmra.mrb[0].mxu0 %v445
        %v5451 = vpop.f32.mrb[0].mxu0
        %v5452 = vadd.f32 %v5259, %v5451
        %v5453 = vpop.f32.mrb[0].mxu0
        %v5454 = vadd.f32 %v5261, %v5453
        %v5455 = vpop.f32.mrb[0].mxu0
        %v5456 = vadd.f32 %v5263, %v5455
        %v5457 = vpop.f32.mrb[0].mxu0
        %v5458 = vadd.f32 %v5265, %v5457
        %5459 = vmatprep.mubr.bf16.mxu0 %v916
        %5460 = vmatmul.mubr.bf16.gmra.mrb[0].mxu0 %v446
        %v5461 = vpop.f32.mrb[0].mxu0
        %v5462 = vadd.f32 %v5269, %v5461
        %v5463 = vpop.f32.mrb[0].mxu0
        %v5464 = vadd.f32 %v5271, %v5463
        %v5465 = vpop.f32.mrb[0].mxu0
        %v5466 = vadd.f32 %v5273, %v5465
        %v5467 = vpop.f32.mrb[0].mxu0
        %v5468 = vadd.f32 %v5275, %v5467
        %5469 = vmatprep.mubr.bf16.mxu0 %v917
        %5470 = vmatmul.mubr.bf16.gmra.mrb[0].mxu0 %v447
        %v5471 = vpop.f32.mrb[0].mxu0
        %v5472 = vadd.f32 %v5279, %v5471
        %v5473 = vpop.f32.mrb[0].mxu0
        %v5474 = vadd.f32 %v5281, %v5473
        %v5475 = vpop.f32.mrb[0].mxu0
        %v5476 = vadd.f32 %v5283, %v5475
        %v5477 = vpop.f32.mrb[0].mxu0
        %v5478 = vadd.f32 %v5285, %v5477
        %5479 = vmatprep.mubr.bf16.mxu0 %v918
        %5480 = vmatmul.mubr.bf16.gmra.mrb[0].mxu0 %v448
        %v5481 = vpop.f32.mrb[0].mxu0
        %v5482 = vadd.f32 %v5289, %v5481
        %v5483 = vpop.f32.mrb[0].mxu0
        %v5484 = vadd.f32 %v5291, %v5483
        %v5485 = vpop.f32.mrb[0].mxu0
        %v5486 = vadd.f32 %v5293, %v5485
        %v5487 = vpop.f32.mrb[0].mxu0
        %v5488 = vadd.f32 %v5295, %v5487
        %5489 = vmatprep.mubr.bf16.mxu0 %v919
        %5490 = vmatmul.mubr.bf16.gmra.mrb[0].mxu0 %v449
        %v5491 = vpop.f32.mrb[0].mxu0
        %v5492 = vadd.f32 %v5299, %v5491
        %v5493 = vpop.f32.mrb[0].mxu0
        %v5494 = vadd.f32 %v5301, %v5493
        %v5495 = vpop.f32.mrb[0].mxu0
        %v5496 = vadd.f32 %v5303, %v5495
        %v5497 = vpop.f32.mrb[0].mxu0
        %v5498 = vadd.f32 %v5305, %v5497
        %5499 = vmatprep.mubr.bf16.mxu0 %v920
        %5500 = vmatmul.mubr.bf16.gmra.mrb[0].mxu0 %v450
        %v5501 = vpop.f32.mrb[0].mxu0
        %v5502 = vadd.f32 %v5309, %v5501
        %v5503 = vpop.f32.mrb[0].mxu0
        %v5504 = vadd.f32 %v5311, %v5503
        %v5505 = vpop.f32.mrb[0].mxu0
        %v5506 = vadd.f32 %v5313, %v5505
        %v5507 = vpop.f32.mrb[0].mxu0
        %v5508 = vadd.f32 %v5315, %v5507
        %5509 = vmatprep.mubr.bf16.mxu0 %v921
        %5510 = vmatmul.mubr.bf16.gmra.mrb[0].mxu0 %v451
        %v5511 = vpop.f32.mrb[0].mxu0
        %v5512 = vadd.f32 %v5319, %v5511
        %v5513 = vpop.f32.mrb[0].mxu0
        %v5514 = vadd.f32 %v5321, %v5513
        %v5515 = vpop.f32.mrb[0].mxu0
        %v5516 = vadd.f32 %v5323, %v5515
        %v5517 = vpop.f32.mrb[0].mxu0
        %v5518 = vadd.f32 %v5325, %v5517
        %5519 = vmatprep.mubr.bf16.mxu0 %v922
        %5520 = vmatmul.mubr.bf16.gmra.mrb[0].mxu0 %v452
        %v5521 = vpop.f32.mrb[0].mxu0
        %v5522 = vadd.f32 %v5329, %v5521
        %v5523 = vpop.f32.mrb[0].mxu0
        %v5524 = vadd.f32 %v5331, %v5523
        %v5525 = vpop.f32.mrb[0].mxu0
        %v5526 = vadd.f32 %v5333, %v5525
        %v5527 = vpop.f32.mrb[0].mxu0
        %v5528 = vadd.f32 %v5335, %v5527
        %5529 = vmatprep.mubr.bf16.mxu0 %v923
        %5530 = vmatmul.mubr.bf16.gmra.mrb[0].mxu0 %v453
        %v5531 = vpop.f32.mrb[0].mxu0
        %v5532 = vadd.f32 %v5339, %v5531
        %v5533 = vpop.f32.mrb[0].mxu0
        %v5534 = vadd.f32 %v5341, %v5533
        %v5535 = vpop.f32.mrb[0].mxu0
        %v5536 = vadd.f32 %v5343, %v5535
        %v5537 = vpop.f32.mrb[0].mxu0
        %v5538 = vadd.f32 %v5345, %v5537
        %5539 = vmatprep.mubr.bf16.mxu0 %v924
        %5540 = vmatmul.mubr.bf16.gmra.mrb[0].mxu0 %v454
        %v5541 = vpop.f32.mrb[0].mxu0
        %v5542 = vadd.f32 %v5349, %v5541
        %v5543 = vpop.f32.mrb[0].mxu0
        %v5544 = vadd.f32 %v5351, %v5543
        %v5545 = vpop.f32.mrb[0].mxu0
        %v5546 = vadd.f32 %v5353, %v5545
        %v5547 = vpop.f32.mrb[0].mxu0
        %v5548 = vadd.f32 %v5355, %v5547
        %5549 = vmatprep.mubr.bf16.mxu0 %v925
        %5550 = vmatmul.mubr.bf16.gmra.mrb[0].mxu0 %v455
        %v5551 = vpop.f32.mrb[0].mxu0
        %v5552 = vadd.f32 %v5359, %v5551
        %v5553 = vpop.f32.mrb[0].mxu0
        %v5554 = vadd.f32 %v5361, %v5553
        %v5555 = vpop.f32.mrb[0].mxu0
        %v5556 = vadd.f32 %v5363, %v5555
        %v5557 = vpop.f32.mrb[0].mxu0
        %v5558 = vadd.f32 %v5365, %v5557
        %5559 = vmatprep.mubr.bf16.mxu0 %v926
        %5560 = vmatmul.mubr.bf16.gmra.mrb[0].mxu0 %v456
        %v5561 = vpop.f32.mrb[0].mxu0
        %v5562 = vadd.f32 %v5369, %v5561
        %v5563 = vpop.f32.mrb[0].mxu0
        %v5564 = vadd.f32 %v5371, %v5563
        %v5565 = vpop.f32.mrb[0].mxu0
        %v5566 = vadd.f32 %v5373, %v5565
        %v5567 = vpop.f32.mrb[0].mxu0
        %v5568 = vadd.f32 %v5375, %v5567
        %5569 = vmatprep.mubr.bf16.mxu0 %v927
        %5570 = vmatmul.mubr.bf16.gmra.mrb[0].mxu0 %v457
        %v5571 = vpop.f32.mrb[0].mxu0
        %v5572 = vadd.f32 %v5379, %v5571
        %v5573 = vpop.f32.mrb[0].mxu0
        %v5574 = vadd.f32 %v5381, %v5573
        %v5575 = vpop.f32.mrb[0].mxu0
        %v5576 = vadd.f32 %v5383, %v5575
        %v5577 = vpop.f32.mrb[0].mxu0
        %v5578 = vadd.f32 %v5385, %v5577
        %5579 = vmatprep.mubr.bf16.mxu0 %v928
        %5580 = vmatmul.mubr.bf16.gmra.mrb[0].mxu0 %v458
        %v5581 = vpop.f32.mrb[0].mxu0
        %v5582 = vadd.f32 %v5389, %v5581
        %v5583 = vpop.f32.mrb[0].mxu0
        %v5584 = vadd.f32 %v5391, %v5583
        %v5585 = vpop.f32.mrb[0].mxu0
        %v5586 = vadd.f32 %v5393, %v5585
        %v5587 = vpop.f32.mrb[0].mxu0
        %v5588 = vadd.f32 %v5395, %v5587
        %5589 = vmatprep.mubr.bf16.mxu0 %v929
        %5590 = vmatmul.mubr.bf16.gmra.mrb[0].mxu0 %v459
        %v5591 = vpop.f32.mrb[0].mxu0
        %v5592 = vadd.f32 %v5399, %v5591
        %v5593 = vpop.f32.mrb[0].mxu0
        %v5594 = vadd.f32 %v5401, %v5593
        %v5595 = vpop.f32.mrb[0].mxu0
        %v5596 = vadd.f32 %v5403, %v5595
        %v5597 = vpop.f32.mrb[0].mxu0
        %v5598 = vadd.f32 %v5405, %v5597
        %5599 = vdwg.mxu0
        %5600 = vmatprep.subr.bf16.mxu0 %v4830
        %5601 = vmatpush1.bf16.msra.mxu0 %v4829
        %5602 = vmatprep.subr.bf16.mxu0 %v4832
        %5603 = vmatpush1.bf16.msra.mxu0 %v4831
        %5604 = vmatprep.subr.bf16.mxu0 %v4834
        %5605 = vmatpush1.bf16.msra.mxu0 %v4833
        %5606 = vmatprep.subr.bf16.mxu0 %v4836
        %5607 = vmatpush1.bf16.msra.mxu0 %v4835
        %5608 = vmatprep.subr.bf16.mxu0 %v4838
        %5609 = vmatpush1.bf16.msra.mxu0 %v4837
        %5610 = vmatprep.subr.bf16.mxu0 %v4840
        %5611 = vmatpush1.bf16.msra.mxu0 %v4839
        %5612 = vmatprep.subr.bf16.mxu0 %v4842
        %5613 = vmatpush1.bf16.msra.mxu0 %v4841
        %5614 = vmatprep.subr.bf16.mxu0 %v4844
        %5615 = vmatpush1.bf16.msra.mxu0 %v4843
        %5616 = vmatprep.subr.bf16.mxu0 %v4846
        %5617 = vmatpush1.bf16.msra.mxu0 %v4845
        %5618 = vmatprep.subr.bf16.mxu0 %v4848
        %5619 = vmatpush1.bf16.msra.mxu0 %v4847
        %5620 = vmatprep.subr.bf16.mxu0 %v4850
        %5621 = vmatpush1.bf16.msra.mxu0 %v4849
        %5622 = vmatprep.subr.bf16.mxu0 %v4852
        %5623 = vmatpush1.bf16.msra.mxu0 %v4851
        %5624 = vmatprep.subr.bf16.mxu0 %v4854
        %5625 = vmatpush1.bf16.msra.mxu0 %v4853
        %5626 = vmatprep.subr.bf16.mxu0 %v4856
        %5627 = vmatpush1.bf16.msra.mxu0 %v4855
        %5628 = vmatprep.subr.bf16.mxu0 %v4858
        %5629 = vmatpush1.bf16.msra.mxu0 %v4857
        %5630 = vmatprep.subr.bf16.mxu0 %v4860
        %5631 = vmatpush1.bf16.msra.mxu0 %v4859
        %5632 = vmatprep.mubr.bf16.mxu0 %v445
        %5633 = vmatmul.mubr.bf16.gmra.mrb[0].mxu0 %v851
        %v5634 = vpop.f32.mrb[0].mxu0
        %v5635 = vadd.f32 %v5442, %v5634
        %v5636 = vpop.f32.mrb[0].mxu0
        %v5637 = vadd.f32 %v5444, %v5636
        %v5638 = vpop.f32.mrb[0].mxu0
        %v5639 = vadd.f32 %v5446, %v5638
        %v5640 = vpop.f32.mrb[0].mxu0
        %v5641 = vadd.f32 %v5448, %v5640
        %5642 = vmatprep.mubr.bf16.mxu0 %v446
        %5643 = vmatmul.mubr.bf16.gmra.mrb[0].mxu0 %v852
        %v5644 = vpop.f32.mrb[0].mxu0
        %v5645 = vadd.f32 %v5452, %v5644
        %v5646 = vpop.f32.mrb[0].mxu0
        %v5647 = vadd.f32 %v5454, %v5646
        %v5648 = vpop.f32.mrb[0].mxu0
        %v5649 = vadd.f32 %v5456, %v5648
        %v5650 = vpop.f32.mrb[0].mxu0
        %v5651 = vadd.f32 %v5458, %v5650
        %5652 = vmatprep.mubr.bf16.mxu0 %v447
        %5653 = vmatmul.mubr.bf16.gmra.mrb[0].mxu0 %v853
        %v5654 = vpop.f32.mrb[0].mxu0
        %v5655 = vadd.f32 %v5462, %v5654
        %v5656 = vpop.f32.mrb[0].mxu0
        %v5657 = vadd.f32 %v5464, %v5656
        %v5658 = vpop.f32.mrb[0].mxu0
        %v5659 = vadd.f32 %v5466, %v5658
        %v5660 = vpop.f32.mrb[0].mxu0
        %v5661 = vadd.f32 %v5468, %v5660
        %5662 = vmatprep.mubr.bf16.mxu0 %v448
        %5663 = vmatmul.mubr.bf16.gmra.mrb[0].mxu0 %v854
        %v5664 = vpop.f32.mrb[0].mxu0
        %v5665 = vadd.f32 %v5472, %v5664
        %v5666 = vpop.f32.mrb[0].mxu0
        %v5667 = vadd.f32 %v5474, %v5666
        %v5668 = vpop.f32.mrb[0].mxu0
        %v5669 = vadd.f32 %v5476, %v5668
        %v5670 = vpop.f32.mrb[0].mxu0
        %v5671 = vadd.f32 %v5478, %v5670
        %5672 = vmatprep.mubr.bf16.mxu0 %v449
        %5673 = vmatmul.mubr.bf16.gmra.mrb[0].mxu0 %v855
        %v5674 = vpop.f32.mrb[0].mxu0
        %v5675 = vadd.f32 %v5482, %v5674
        %v5676 = vpop.f32.mrb[0].mxu0
        %v5677 = vadd.f32 %v5484, %v5676
        %v5678 = vpop.f32.mrb[0].mxu0
        %v5679 = vadd.f32 %v5486, %v5678
        %v5680 = vpop.f32.mrb[0].mxu0
        %v5681 = vadd.f32 %v5488, %v5680
        %5682 = vmatprep.mubr.bf16.mxu0 %v450
        %5683 = vmatmul.mubr.bf16.gmra.mrb[0].mxu0 %v856
        %v5684 = vpop.f32.mrb[0].mxu0
        %v5685 = vadd.f32 %v5492, %v5684
        %v5686 = vpop.f32.mrb[0].mxu0
        %v5687 = vadd.f32 %v5494, %v5686
        %v5688 = vpop.f32.mrb[0].mxu0
        %v5689 = vadd.f32 %v5496, %v5688
        %v5690 = vpop.f32.mrb[0].mxu0
        %v5691 = vadd.f32 %v5498, %v5690
        %5692 = vmatprep.mubr.bf16.mxu0 %v451
        %5693 = vmatmul.mubr.bf16.gmra.mrb[0].mxu0 %v857
        %v5694 = vpop.f32.mrb[0].mxu0
        %v5695 = vadd.f32 %v5502, %v5694
        %v5696 = vpop.f32.mrb[0].mxu0
        %v5697 = vadd.f32 %v5504, %v5696
        %v5698 = vpop.f32.mrb[0].mxu0
        %v5699 = vadd.f32 %v5506, %v5698
        %v5700 = vpop.f32.mrb[0].mxu0
        %v5701 = vadd.f32 %v5508, %v5700
        %5702 = vmatprep.mubr.bf16.mxu0 %v452
        %5703 = vmatmul.mubr.bf16.gmra.mrb[0].mxu0 %v858
        %v5704 = vpop.f32.mrb[0].mxu0
        %v5705 = vadd.f32 %v5512, %v5704
        %v5706 = vpop.f32.mrb[0].mxu0
        %v5707 = vadd.f32 %v5514, %v5706
        %v5708 = vpop.f32.mrb[0].mxu0
        %v5709 = vadd.f32 %v5516, %v5708
        %v5710 = vpop.f32.mrb[0].mxu0
        %v5711 = vadd.f32 %v5518, %v5710
        %5712 = vmatprep.mubr.bf16.mxu0 %v453
        %5713 = vmatmul.mubr.bf16.gmra.mrb[0].mxu0 %v859
        %v5714 = vpop.f32.mrb[0].mxu0
        %v5715 = vadd.f32 %v5522, %v5714
        %v5716 = vpop.f32.mrb[0].mxu0
        %v5717 = vadd.f32 %v5524, %v5716
        %v5718 = vpop.f32.mrb[0].mxu0
        %v5719 = vadd.f32 %v5526, %v5718
        %v5720 = vpop.f32.mrb[0].mxu0
        %v5721 = vadd.f32 %v5528, %v5720
        %5722 = vmatprep.mubr.bf16.mxu0 %v454
        %5723 = vmatmul.mubr.bf16.gmra.mrb[0].mxu0 %v860
        %v5724 = vpop.f32.mrb[0].mxu0
        %v5725 = vadd.f32 %v5532, %v5724
        %v5726 = vpop.f32.mrb[0].mxu0
        %v5727 = vadd.f32 %v5534, %v5726
        %v5728 = vpop.f32.mrb[0].mxu0
        %v5729 = vadd.f32 %v5536, %v5728
        %v5730 = vpop.f32.mrb[0].mxu0
        %v5731 = vadd.f32 %v5538, %v5730
        %5732 = vmatprep.mubr.bf16.mxu0 %v455
        %5733 = vmatmul.mubr.bf16.gmra.mrb[0].mxu0 %v861
        %v5734 = vpop.f32.mrb[0].mxu0
        %v5735 = vadd.f32 %v5542, %v5734
        %v5736 = vpop.f32.mrb[0].mxu0
        %v5737 = vadd.f32 %v5544, %v5736
        %v5738 = vpop.f32.mrb[0].mxu0
        %v5739 = vadd.f32 %v5546, %v5738
        %v5740 = vpop.f32.mrb[0].mxu0
        %v5741 = vadd.f32 %v5548, %v5740
        %5742 = vmatprep.mubr.bf16.mxu0 %v456
        %5743 = vmatmul.mubr.bf16.gmra.mrb[0].mxu0 %v862
        %v5744 = vpop.f32.mrb[0].mxu0
        %v5745 = vadd.f32 %v5552, %v5744
        %v5746 = vpop.f32.mrb[0].mxu0
        %v5747 = vadd.f32 %v5554, %v5746
        %v5748 = vpop.f32.mrb[0].mxu0
        %v5749 = vadd.f32 %v5556, %v5748
        %v5750 = vpop.f32.mrb[0].mxu0
        %v5751 = vadd.f32 %v5558, %v5750
        %5752 = vmatprep.mubr.bf16.mxu0 %v457
        %5753 = vmatmul.mubr.bf16.gmra.mrb[0].mxu0 %v863
        %v5754 = vpop.f32.mrb[0].mxu0
        %v5755 = vadd.f32 %v5562, %v5754
        %v5756 = vpop.f32.mrb[0].mxu0
        %v5757 = vadd.f32 %v5564, %v5756
        %v5758 = vpop.f32.mrb[0].mxu0
        %v5759 = vadd.f32 %v5566, %v5758
        %v5760 = vpop.f32.mrb[0].mxu0
        %v5761 = vadd.f32 %v5568, %v5760
        %5762 = vmatprep.mubr.bf16.mxu0 %v458
        %5763 = vmatmul.mubr.bf16.gmra.mrb[0].mxu0 %v864
        %v5764 = vpop.f32.mrb[0].mxu0
        %v5765 = vadd.f32 %v5572, %v5764
        %v5766 = vpop.f32.mrb[0].mxu0
        %v5767 = vadd.f32 %v5574, %v5766
        %v5768 = vpop.f32.mrb[0].mxu0
        %v5769 = vadd.f32 %v5576, %v5768
        %v5770 = vpop.f32.mrb[0].mxu0
        %v5771 = vadd.f32 %v5578, %v5770
        %5772 = vmatprep.mubr.bf16.mxu0 %v459
        %5773 = vmatmul.mubr.bf16.gmra.mrb[0].mxu0 %v865
        %v5774 = vpop.f32.mrb[0].mxu0
        %v5775 = vadd.f32 %v5582, %v5774
        %v5776 = vpop.f32.mrb[0].mxu0
        %v5777 = vadd.f32 %v5584, %v5776
        %v5778 = vpop.f32.mrb[0].mxu0
        %v5779 = vadd.f32 %v5586, %v5778
        %v5780 = vpop.f32.mrb[0].mxu0
        %v5781 = vadd.f32 %v5588, %v5780
        %5782 = vmatprep.mubr.bf16.mxu0 0
        %5783 = vmatmul.mubr.bf16.gmra.mrb[0].mxu0 0
        %v5784 = vpop.f32.mrb[0].mxu0
        %v5785 = vadd.f32 %v5592, %v5784
        %v5786 = vpop.f32.mrb[0].mxu0
        %v5787 = vadd.f32 %v5594, %v5786
        %v5788 = vpop.f32.mrb[0].mxu0
        %v5789 = vadd.f32 %v5596, %v5788
        %v5790 = vpop.f32.mrb[0].mxu0
        %v5791 = vadd.f32 %v5598, %v5790
        %5792 = vdwg.mxu0
        %5793 = vmatprep.subr.bf16.mxu0 %v4862
        %5794 = vmatpush1.bf16.msra.mxu0 %v4861
        %5795 = vmatprep.subr.bf16.mxu0 %v4864
        %5796 = vmatpush1.bf16.msra.mxu0 %v4863
        %5797 = vmatprep.subr.bf16.mxu0 %v4866
        %5798 = vmatpush1.bf16.msra.mxu0 %v4865
        %5799 = vmatprep.subr.bf16.mxu0 %v4868
        %5800 = vmatpush1.bf16.msra.mxu0 %v4867
        %5801 = vmatprep.subr.bf16.mxu0 %v4870
        %5802 = vmatpush1.bf16.msra.mxu0 %v4869
        %5803 = vmatprep.subr.bf16.mxu0 %v4872
        %5804 = vmatpush1.bf16.msra.mxu0 %v4871
        %5805 = vmatprep.subr.bf16.mxu0 %v4874
        %5806 = vmatpush1.bf16.msra.mxu0 %v4873
        %5807 = vmatprep.subr.bf16.mxu0 %v4876
        %5808 = vmatpush1.bf16.msra.mxu0 %v4875
        %5809 = vmatprep.subr.bf16.mxu0 0
        %5810 = vmatpush1.bf16.msra.mxu0 0
        %5811 = vmatprep.subr.bf16.mxu0 0
        %5812 = vmatpush1.bf16.msra.mxu0 0
        %5813 = vmatprep.subr.bf16.mxu0 0
        %5814 = vmatpush1.bf16.msra.mxu0 0
        %5815 = vmatprep.subr.bf16.mxu0 0
        %5816 = vmatpush1.bf16.msra.mxu0 0
        %5817 = vmatprep.subr.bf16.mxu0 0
        %5818 = vmatpush1.bf16.msra.mxu0 0
        %5819 = vmatprep.subr.bf16.mxu0 0
        %5820 = vmatpush1.bf16.msra.mxu0 0
        %5821 = vmatprep.subr.bf16.mxu0 0
        %5822 = vmatpush1.bf16.msra.mxu0 0
        %5823 = vmatprep.subr.bf16.mxu0 0
        %5824 = vmatpush1.bf16.msra.mxu0 0
        %5825 = vmatprep.mubr.bf16.mxu0 0
        %5826 = vmatmul.mubr.bf16.gmra.mrb[0].mxu0 %v915
        %v5827 = vpop.f32.mrb[0].mxu0
        %v5828 = vadd.f32 %v5635, %v5827
        %v5829 = vpop.f32.mrb[0].mxu0
        %v5830 = vadd.f32 %v5637, %v5829
        %v5831 = vpop.f32.mrb[0].mxu0
        %v5832 = vadd.f32 %v5639, %v5831
        %v5833 = vpop.f32.mrb[0].mxu0
        %v5834 = vadd.f32 %v5641, %v5833
        %5835 = vmatprep.mubr.bf16.mxu0 0
        %5836 = vmatmul.mubr.bf16.gmra.mrb[0].mxu0 %v916
        %v5837 = vpop.f32.mrb[0].mxu0
        %v5838 = vadd.f32 %v5645, %v5837
        %v5839 = vpop.f32.mrb[0].mxu0
        %v5840 = vadd.f32 %v5647, %v5839
        %v5841 = vpop.f32.mrb[0].mxu0
        %v5842 = vadd.f32 %v5649, %v5841
        %v5843 = vpop.f32.mrb[0].mxu0
        %v5844 = vadd.f32 %v5651, %v5843
        %5845 = vmatprep.mubr.bf16.mxu0 0
        %5846 = vmatmul.mubr.bf16.gmra.mrb[0].mxu0 %v917
        %v5847 = vpop.f32.mrb[0].mxu0
        %v5848 = vadd.f32 %v5655, %v5847
        %v5849 = vpop.f32.mrb[0].mxu0
        %v5850 = vadd.f32 %v5657, %v5849
        %v5851 = vpop.f32.mrb[0].mxu0
        %v5852 = vadd.f32 %v5659, %v5851
        %v5853 = vpop.f32.mrb[0].mxu0
        %v5854 = vadd.f32 %v5661, %v5853
        %5855 = vmatprep.mubr.bf16.mxu0 0
        %5856 = vmatmul.mubr.bf16.gmra.mrb[0].mxu0 %v918
        %v5857 = vpop.f32.mrb[0].mxu0
        %v5858 = vadd.f32 %v5665, %v5857
        %v5859 = vpop.f32.mrb[0].mxu0
        %v5860 = vadd.f32 %v5667, %v5859
        %v5861 = vpop.f32.mrb[0].mxu0
        %v5862 = vadd.f32 %v5669, %v5861
        %v5863 = vpop.f32.mrb[0].mxu0
        %v5864 = vadd.f32 %v5671, %v5863
        %5865 = vmatprep.mubr.bf16.mxu0 0
        %5866 = vmatmul.mubr.bf16.gmra.mrb[0].mxu0 %v919
        %v5867 = vpop.f32.mrb[0].mxu0
        %v5868 = vadd.f32 %v5675, %v5867
        %v5869 = vpop.f32.mrb[0].mxu0
        %v5870 = vadd.f32 %v5677, %v5869
        %v5871 = vpop.f32.mrb[0].mxu0
        %v5872 = vadd.f32 %v5679, %v5871
        %v5873 = vpop.f32.mrb[0].mxu0
        %v5874 = vadd.f32 %v5681, %v5873
        %5875 = vmatprep.mubr.bf16.mxu0 0
        %5876 = vmatmul.mubr.bf16.gmra.mrb[0].mxu0 %v920
        %v5877 = vpop.f32.mrb[0].mxu0
        %v5878 = vadd.f32 %v5685, %v5877
        %v5879 = vpop.f32.mrb[0].mxu0
        %v5880 = vadd.f32 %v5687, %v5879
        %v5881 = vpop.f32.mrb[0].mxu0
        %v5882 = vadd.f32 %v5689, %v5881
        %v5883 = vpop.f32.mrb[0].mxu0
        %v5884 = vadd.f32 %v5691, %v5883
        %5885 = vmatprep.mubr.bf16.mxu0 0
        %5886 = vmatmul.mubr.bf16.gmra.mrb[0].mxu0 %v921
        %v5887 = vpop.f32.mrb[0].mxu0
        %v5888 = vadd.f32 %v5695, %v5887
        %v5889 = vpop.f32.mrb[0].mxu0
        %v5890 = vadd.f32 %v5697, %v5889
        %v5891 = vpop.f32.mrb[0].mxu0
        %v5892 = vadd.f32 %v5699, %v5891
        %v5893 = vpop.f32.mrb[0].mxu0
        %v5894 = vadd.f32 %v5701, %v5893
        %5895 = vmatprep.mubr.bf16.mxu0 0
        %5896 = vmatmul.mubr.bf16.gmra.mrb[0].mxu0 %v922
        %v5897 = vpop.f32.mrb[0].mxu0
        %v5898 = vadd.f32 %v5705, %v5897
        %v5899 = vpop.f32.mrb[0].mxu0
        %v5900 = vadd.f32 %v5707, %v5899
        %v5901 = vpop.f32.mrb[0].mxu0
        %v5902 = vadd.f32 %v5709, %v5901
        %v5903 = vpop.f32.mrb[0].mxu0
        %v5904 = vadd.f32 %v5711, %v5903
        %5905 = vmatprep.mubr.bf16.mxu0 0
        %5906 = vmatmul.mubr.bf16.gmra.mrb[0].mxu0 %v923
        %v5907 = vpop.f32.mrb[0].mxu0
        %v5908 = vadd.f32 %v5715, %v5907
        %v5909 = vpop.f32.mrb[0].mxu0
        %v5910 = vadd.f32 %v5717, %v5909
        %v5911 = vpop.f32.mrb[0].mxu0
        %v5912 = vadd.f32 %v5719, %v5911
        %v5913 = vpop.f32.mrb[0].mxu0
        %v5914 = vadd.f32 %v5721, %v5913
        %5915 = vmatprep.mubr.bf16.mxu0 0
        %5916 = vmatmul.mubr.bf16.gmra.mrb[0].mxu0 %v924
        %v5917 = vpop.f32.mrb[0].mxu0
        %v5918 = vadd.f32 %v5725, %v5917
        %v5919 = vpop.f32.mrb[0].mxu0
        %v5920 = vadd.f32 %v5727, %v5919
        %v5921 = vpop.f32.mrb[0].mxu0
        %v5922 = vadd.f32 %v5729, %v5921
        %v5923 = vpop.f32.mrb[0].mxu0
        %v5924 = vadd.f32 %v5731, %v5923
        %5925 = vmatprep.mubr.bf16.mxu0 0
        %5926 = vmatmul.mubr.bf16.gmra.mrb[0].mxu0 %v925
        %v5927 = vpop.f32.mrb[0].mxu0
        %v5928 = vadd.f32 %v5735, %v5927
        %v5929 = vpop.f32.mrb[0].mxu0
        %v5930 = vadd.f32 %v5737, %v5929
        %v5931 = vpop.f32.mrb[0].mxu0
        %v5932 = vadd.f32 %v5739, %v5931
        %v5933 = vpop.f32.mrb[0].mxu0
        %v5934 = vadd.f32 %v5741, %v5933
        %5935 = vmatprep.mubr.bf16.mxu0 0
        %5936 = vmatmul.mubr.bf16.gmra.mrb[0].mxu0 %v926
        %v5937 = vpop.f32.mrb[0].mxu0
        %v5938 = vadd.f32 %v5745, %v5937
        %v5939 = vpop.f32.mrb[0].mxu0
        %v5940 = vadd.f32 %v5747, %v5939
        %v5941 = vpop.f32.mrb[0].mxu0
        %v5942 = vadd.f32 %v5749, %v5941
        %v5943 = vpop.f32.mrb[0].mxu0
        %v5944 = vadd.f32 %v5751, %v5943
        %5945 = vmatprep.mubr.bf16.mxu0 0
        %5946 = vmatmul.mubr.bf16.gmra.mrb[0].mxu0 %v927
        %v5947 = vpop.f32.mrb[0].mxu0
        %v5948 = vadd.f32 %v5755, %v5947
        %v5949 = vpop.f32.mrb[0].mxu0
        %v5950 = vadd.f32 %v5757, %v5949
        %v5951 = vpop.f32.mrb[0].mxu0
        %v5952 = vadd.f32 %v5759, %v5951
        %v5953 = vpop.f32.mrb[0].mxu0
        %v5954 = vadd.f32 %v5761, %v5953
        %5955 = vmatprep.mubr.bf16.mxu0 0
        %5956 = vmatmul.mubr.bf16.gmra.mrb[0].mxu0 %v928
        %v5957 = vpop.f32.mrb[0].mxu0
        %v5958 = vadd.f32 %v5765, %v5957
        %v5959 = vpop.f32.mrb[0].mxu0
        %v5960 = vadd.f32 %v5767, %v5959
        %v5961 = vpop.f32.mrb[0].mxu0
        %v5962 = vadd.f32 %v5769, %v5961
        %v5963 = vpop.f32.mrb[0].mxu0
        %v5964 = vadd.f32 %v5771, %v5963
        %5965 = vmatprep.mubr.bf16.mxu0 0
        %5966 = vmatmul.mubr.bf16.gmra.mrb[0].mxu0 %v929
        %v5967 = vpop.f32.mrb[0].mxu0
        %v5968 = vadd.f32 %v5775, %v5967
        %v5969 = vpop.f32.mrb[0].mxu0
        %v5970 = vadd.f32 %v5777, %v5969
        %v5971 = vpop.f32.mrb[0].mxu0
        %v5972 = vadd.f32 %v5779, %v5971
        %v5973 = vpop.f32.mrb[0].mxu0
        %v5974 = vadd.f32 %v5781, %v5973
        %5975 = vmatprep.mubr.bf16.mxu0 0
        %5976 = vmatmul.mubr.bf16.gmra.mrb[0].mxu0 0
        %v5977 = vpop.f32.mrb[0].mxu0
        %v5978 = vadd.f32 %v5785, %v5977
        %v5979 = vpop.f32.mrb[0].mxu0
        %v5980 = vadd.f32 %v5787, %v5979
        %v5981 = vpop.f32.mrb[0].mxu0
        %v5982 = vadd.f32 %v5789, %v5981
        %v5983 = vpop.f32.mrb[0].mxu0
        %v5984 = vadd.f32 %v5791, %v5983
        %5985 = vdwg.mxu0
        %v5986 = vld [vmem:[%s400] sm:$0xff]
        %v5987 = vld [vmem:[%s400 + $0x8] sm:$0xff]
        %v5988 = vld [vmem:[%s400 + $0x10] sm:$0xff]
        %v5989 = vld [vmem:[%s400 + $0x18] sm:$0xff]
        %v5990 = vld [vmem:[%s400 + $0x20] sm:$0xff]
        %v5991 = vld [vmem:[%s400 + $0x28] sm:$0xff]
        %v5992 = vld [vmem:[%s400 + $0x30] sm:$0xff]
        %v5993 = vld [vmem:[%s400 + $0x38] sm:$0xff]
        %v5994 = vld [vmem:[%s400 + $0x40] sm:$0xff]
        %v5995 = vld [vmem:[%s400 + $0x48] sm:$0xff]
        %v5996 = vld [vmem:[%s400 + $0x50] sm:$0xff]
        %v5997 = vld [vmem:[%s400 + $0x58] sm:$0xff]
        %v5998 = vld [vmem:[%s400 + $0x60] sm:$0xff]
        %v5999 = vld [vmem:[%s400 + $0x68] sm:$0xff]
        %v6000 = vld [vmem:[%s400 + $0x70] sm:$0xff]
        %v6001 = vld [vmem:[%s400 + $0x78] sm:$0xff]
        %v6002 = vld [vmem:[%s400 + $0x80] sm:$0xff]
        %v6003 = vld [vmem:[%s400 + $0x88] sm:$0xff]
        %v6004 = vld [vmem:[%s400 + $0x90] sm:$0xff]
        %v6005 = vld [vmem:[%s400 + $0x98] sm:$0xff]
        %v6006 = vld [vmem:[%s400 + $0xa0] sm:$0xff]
        %v6007 = vld [vmem:[%s400 + $0xa8] sm:$0xff]
        %v6008 = vld [vmem:[%s400 + $0xb0] sm:$0xff]
        %v6009 = vld [vmem:[%s400 + $0xb8] sm:$0xff]
        %v6010 = vld [vmem:[%s400 + $0xc0] sm:$0xff]
        %v6011 = vld [vmem:[%s400 + $0xc8] sm:$0xff]
        %v6012 = vld [vmem:[%s400 + $0xd0] sm:$0xff]
        %v6013 = vld [vmem:[%s400 + $0xd8] sm:$0xff]
        %v6014 = vld [vmem:[%s400 + $0xe0] sm:$0xff]
        %v6015 = vld [vmem:[%s400 + $0xe8] sm:$0xff]
        %v6016 = vld [vmem:[%s400 + $0xf0] sm:$0xff]
        %v6017 = vld [vmem:[%s400 + $0xf8] sm:$0xff]
        %v6018 = vadd.f32 %v5828, %v5986
        %v6019 = vadd.f32 %v5832, %v5987
        %v6020 = vadd.f32 %v5838, %v5988
        %v6021 = vadd.f32 %v5842, %v5989
        %v6022 = vadd.f32 %v5848, %v5990
        %v6023 = vadd.f32 %v5852, %v5991
        %v6024 = vadd.f32 %v5858, %v5992
        %v6025 = vadd.f32 %v5862, %v5993
        %v6026 = vadd.f32 %v5868, %v5994
        %v6027 = vadd.f32 %v5872, %v5995
        %v6028 = vadd.f32 %v5878, %v5996
        %v6029 = vadd.f32 %v5882, %v5997
        %v6030 = vadd.f32 %v5888, %v5998
        %v6031 = vadd.f32 %v5892, %v5999
        %v6032 = vadd.f32 %v5898, %v6000
        %v6033 = vadd.f32 %v5902, %v6001
        %v6034 = vadd.f32 %v5908, %v6002
        %v6035 = vadd.f32 %v5912, %v6003
        %v6036 = vadd.f32 %v5918, %v6004
        %v6037 = vadd.f32 %v5922, %v6005
        %v6038 = vadd.f32 %v5928, %v6006
        %v6039 = vadd.f32 %v5932, %v6007
        %v6040 = vadd.f32 %v5938, %v6008
        %v6041 = vadd.f32 %v5942, %v6009
        %v6042 = vadd.f32 %v5948, %v6010
        %v6043 = vadd.f32 %v5952, %v6011
        %v6044 = vadd.f32 %v5958, %v6012
        %v6045 = vadd.f32 %v5962, %v6013
        %v6046 = vadd.f32 %v5968, %v6014
        %v6047 = vadd.f32 %v5972, %v6015
        %v6048 = vadd.f32 %v5978, %v6016
        %v6049 = vadd.f32 %v5982, %v6017
        %v6050 = vmul.f32 %v6018, 0.5
        %v6051 = vmul.f32 %v6019, 0.5
        %v6052 = vmul.f32 %v6020, 0.5
        %v6053 = vmul.f32 %v6021, 0.5
        %v6054 = vmul.f32 %v6022, 0.5
        %v6055 = vmul.f32 %v6023, 0.5
        %v6056 = vmul.f32 %v6024, 0.5
        %v6057 = vmul.f32 %v6025, 0.5
        %v6058 = vmul.f32 %v6026, 0.5
        %v6059 = vmul.f32 %v6027, 0.5
        %v6060 = vmul.f32 %v6028, 0.5
        %v6061 = vmul.f32 %v6029, 0.5
        %v6062 = vmul.f32 %v6030, 0.5
        %v6063 = vmul.f32 %v6031, 0.5
        %v6064 = vmul.f32 %v6032, 0.5
        %v6065 = vmul.f32 %v6033, 0.5
        %v6066 = vmul.f32 %v6034, 0.5
        %v6067 = vmul.f32 %v6035, 0.5
        %v6068 = vmul.f32 %v6036, 0.5
        %v6069 = vmul.f32 %v6037, 0.5
        %v6070 = vmul.f32 %v6038, 0.5
        %v6071 = vmul.f32 %v6039, 0.5
        %v6072 = vmul.f32 %v6040, 0.5
        %v6073 = vmul.f32 %v6041, 0.5
        %v6074 = vmul.f32 %v6042, 0.5
        %v6075 = vmul.f32 %v6043, 0.5
        %v6076 = vmul.f32 %v6044, 0.5
        %v6077 = vmul.f32 %v6045, 0.5
        %v6078 = vmul.f32 %v6046, 0.5
        %v6079 = vmul.f32 %v6047, 0.5
        %v6080 = vmul.f32 %v6048, 0.5
        %v6081 = vmul.f32 %v6049, 0.5
        %v6082 = vtanh.pop %v6050
        %v6083 = vtanh.pop %v6051
        %v6084 = vtanh.pop %v6052
        %v6085 = vtanh.pop %v6053
        %v6086 = vtanh.pop %v6054
        %v6087 = vtanh.pop %v6055
        %v6088 = vtanh.pop %v6056
        %v6089 = vtanh.pop %v6057
        %v6090 = vtanh.pop %v6058
        %v6091 = vtanh.pop %v6059
        %v6092 = vtanh.pop %v6060
        %v6093 = vtanh.pop %v6061
        %v6094 = vtanh.pop %v6062
        %v6095 = vtanh.pop %v6063
        %v6096 = vtanh.pop %v6064
        %v6097 = vtanh.pop %v6065
        %v6098 = vtanh.pop %v6066
        %v6099 = vtanh.pop %v6067
        %v6100 = vtanh.pop %v6068
        %v6101 = vtanh.pop %v6069
        %v6102 = vtanh.pop %v6070
        %v6103 = vtanh.pop %v6071
        %v6104 = vtanh.pop %v6072
        %v6105 = vtanh.pop %v6073
        %v6106 = vtanh.pop %v6074
        %v6107 = vtanh.pop %v6075
        %v6108 = vtanh.pop %v6076
        %v6109 = vtanh.pop %v6077
        %v6110 = vtanh.pop %v6078
        %v6111 = vtanh.pop %v6079
        %v6112 = vtanh.pop %v6080
        %v6113 = vtanh.pop %v6081
        %v6114 = vadd.f32 %v6082, 1.0
        %v6115 = vadd.f32 %v6083, 1.0
        %v6116 = vadd.f32 %v6084, 1.0
        %v6117 = vadd.f32 %v6085, 1.0
        %v6118 = vadd.f32 %v6086, 1.0
        %v6119 = vadd.f32 %v6087, 1.0
        %v6120 = vadd.f32 %v6088, 1.0
        %v6121 = vadd.f32 %v6089, 1.0
        %v6122 = vadd.f32 %v6090, 1.0
        %v6123 = vadd.f32 %v6091, 1.0
        %v6124 = vadd.f32 %v6092, 1.0
        %v6125 = vadd.f32 %v6093, 1.0
        %v6126 = vadd.f32 %v6094, 1.0
        %v6127 = vadd.f32 %v6095, 1.0
        %v6128 = vadd.f32 %v6096, 1.0
        %v6129 = vadd.f32 %v6097, 1.0
        %v6130 = vadd.f32 %v6098, 1.0
        %v6131 = vadd.f32 %v6099, 1.0
        %v6132 = vadd.f32 %v6100, 1.0
        %v6133 = vadd.f32 %v6101, 1.0
        %v6134 = vadd.f32 %v6102, 1.0
        %v6135 = vadd.f32 %v6103, 1.0
        %v6136 = vadd.f32 %v6104, 1.0
        %v6137 = vadd.f32 %v6105, 1.0
        %v6138 = vadd.f32 %v6106, 1.0
        %v6139 = vadd.f32 %v6107, 1.0
        %v6140 = vadd.f32 %v6108, 1.0
        %v6141 = vadd.f32 %v6109, 1.0
        %v6142 = vadd.f32 %v6110, 1.0
        %v6143 = vadd.f32 %v6111, 1.0
        %v6144 = vadd.f32 %v6112, 1.0
        %v6145 = vadd.f32 %v6113, 1.0
        %v6146 = vmul.f32 %v6114, 0.5
        %v6147 = vmul.f32 %v6115, 0.5
        %v6148 = vmul.f32 %v6116, 0.5
        %v6149 = vmul.f32 %v6117, 0.5
        %v6150 = vmul.f32 %v6118, 0.5
        %v6151 = vmul.f32 %v6119, 0.5
        %v6152 = vmul.f32 %v6120, 0.5
        %v6153 = vmul.f32 %v6121, 0.5
        %v6154 = vmul.f32 %v6122, 0.5
        %v6155 = vmul.f32 %v6123, 0.5
        %v6156 = vmul.f32 %v6124, 0.5
        %v6157 = vmul.f32 %v6125, 0.5
        %v6158 = vmul.f32 %v6126, 0.5
        %v6159 = vmul.f32 %v6127, 0.5
        %v6160 = vmul.f32 %v6128, 0.5
        %v6161 = vmul.f32 %v6129, 0.5
        %v6162 = vmul.f32 %v6130, 0.5
        %v6163 = vmul.f32 %v6131, 0.5
        %v6164 = vmul.f32 %v6132, 0.5
        %v6165 = vmul.f32 %v6133, 0.5
        %v6166 = vmul.f32 %v6134, 0.5
        %v6167 = vmul.f32 %v6135, 0.5
        %v6168 = vmul.f32 %v6136, 0.5
        %v6169 = vmul.f32 %v6137, 0.5
        %v6170 = vmul.f32 %v6138, 0.5
        %v6171 = vmul.f32 %v6139, 0.5
        %v6172 = vmul.f32 %v6140, 0.5
        %v6173 = vmul.f32 %v6141, 0.5
        %v6174 = vmul.f32 %v6142, 0.5
        %v6175 = vmul.f32 %v6143, 0.5
        %v6176 = vmul.f32 %v6144, 0.5
        %v6177 = vmul.f32 %v6145, 0.5
        %v6178 = vld [vmem:[%s405] sm:$0xff]
        %v6179 = vld [vmem:[%s405 + $0x8] sm:$0xff]
        %v6180 = vld [vmem:[%s405 + $0x10] sm:$0xff]
        %v6181 = vld [vmem:[%s405 + $0x18] sm:$0xff]
        %v6182 = vld [vmem:[%s405 + $0x20] sm:$0xff]
        %v6183 = vld [vmem:[%s405 + $0x28] sm:$0xff]
        %v6184 = vld [vmem:[%s405 + $0x30] sm:$0xff]
        %v6185 = vld [vmem:[%s405 + $0x38] sm:$0xff]
        %v6186 = vld [vmem:[%s405 + $0x40] sm:$0xff]
        %v6187 = vld [vmem:[%s405 + $0x48] sm:$0xff]
        %v6188 = vld [vmem:[%s405 + $0x50] sm:$0xff]
        %v6189 = vld [vmem:[%s405 + $0x58] sm:$0xff]
        %v6190 = vld [vmem:[%s405 + $0x60] sm:$0xff]
        %v6191 = vld [vmem:[%s405 + $0x68] sm:$0xff]
        %v6192 = vld [vmem:[%s405 + $0x70] sm:$0xff]
        %v6193 = vld [vmem:[%s405 + $0x78] sm:$0xff]
        %v6194 = vld [vmem:[%s405 + $0x80] sm:$0xff]
        %v6195 = vld [vmem:[%s405 + $0x88] sm:$0xff]
        %v6196 = vld [vmem:[%s405 + $0x90] sm:$0xff]
        %v6197 = vld [vmem:[%s405 + $0x98] sm:$0xff]
        %v6198 = vld [vmem:[%s405 + $0xa0] sm:$0xff]
        %v6199 = vld [vmem:[%s405 + $0xa8] sm:$0xff]
        %v6200 = vld [vmem:[%s405 + $0xb0] sm:$0xff]
        %v6201 = vld [vmem:[%s405 + $0xb8] sm:$0xff]
        %v6202 = vld [vmem:[%s405 + $0xc0] sm:$0xff]
        %v6203 = vld [vmem:[%s405 + $0xc8] sm:$0xff]
        %v6204 = vld [vmem:[%s405 + $0xd0] sm:$0xff]
        %v6205 = vld [vmem:[%s405 + $0xd8] sm:$0xff]
        %v6206 = vld [vmem:[%s405 + $0xe0] sm:$0xff]
        %v6207 = vld [vmem:[%s405 + $0xe8] sm:$0xff]
        %v6208 = vld [vmem:[%s405 + $0xf0] sm:$0xff]
        %v6209 = vld [vmem:[%s405 + $0xf8] sm:$0xff]
        %v6210 = vadd.f32 %v5830, %v6178
        %v6211 = vadd.f32 %v5834, %v6179
        %v6212 = vadd.f32 %v5840, %v6180
        %v6213 = vadd.f32 %v5844, %v6181
        %v6214 = vadd.f32 %v5850, %v6182
        %v6215 = vadd.f32 %v5854, %v6183
        %v6216 = vadd.f32 %v5860, %v6184
        %v6217 = vadd.f32 %v5864, %v6185
        %v6218 = vadd.f32 %v5870, %v6186
        %v6219 = vadd.f32 %v5874, %v6187
        %v6220 = vadd.f32 %v5880, %v6188
        %v6221 = vadd.f32 %v5884, %v6189
        %v6222 = vadd.f32 %v5890, %v6190
        %v6223 = vadd.f32 %v5894, %v6191
        %v6224 = vadd.f32 %v5900, %v6192
        %v6225 = vadd.f32 %v5904, %v6193
        %v6226 = vadd.f32 %v5910, %v6194
        %v6227 = vadd.f32 %v5914, %v6195
        %v6228 = vadd.f32 %v5920, %v6196
        %v6229 = vadd.f32 %v5924, %v6197
        %v6230 = vadd.f32 %v5930, %v6198
        %v6231 = vadd.f32 %v5934, %v6199
        %v6232 = vadd.f32 %v5940, %v6200
        %v6233 = vadd.f32 %v5944, %v6201
        %v6234 = vadd.f32 %v5950, %v6202
        %v6235 = vadd.f32 %v5954, %v6203
        %v6236 = vadd.f32 %v5960, %v6204
        %v6237 = vadd.f32 %v5964, %v6205
        %v6238 = vadd.f32 %v5970, %v6206
        %v6239 = vadd.f32 %v5974, %v6207
        %v6240 = vadd.f32 %v5980, %v6208
        %v6241 = vadd.f32 %v5984, %v6209
        %v6242 = vmul.f32 %v6210, 0.5
        %v6243 = vmul.f32 %v6211, 0.5
        %v6244 = vmul.f32 %v6212, 0.5
        %v6245 = vmul.f32 %v6213, 0.5
        %v6246 = vmul.f32 %v6214, 0.5
        %v6247 = vmul.f32 %v6215, 0.5
        %v6248 = vmul.f32 %v6216, 0.5
        %v6249 = vmul.f32 %v6217, 0.5
        %v6250 = vmul.f32 %v6218, 0.5
        %v6251 = vmul.f32 %v6219, 0.5
        %v6252 = vmul.f32 %v6220, 0.5
        %v6253 = vmul.f32 %v6221, 0.5
        %v6254 = vmul.f32 %v6222, 0.5
        %v6255 = vmul.f32 %v6223, 0.5
        %v6256 = vmul.f32 %v6224, 0.5
        %v6257 = vmul.f32 %v6225, 0.5
        %v6258 = vmul.f32 %v6226, 0.5
        %v6259 = vmul.f32 %v6227, 0.5
        %v6260 = vmul.f32 %v6228, 0.5
        %v6261 = vmul.f32 %v6229, 0.5
        %v6262 = vmul.f32 %v6230, 0.5
        %v6263 = vmul.f32 %v6231, 0.5
        %v6264 = vmul.f32 %v6232, 0.5
        %v6265 = vmul.f32 %v6233, 0.5
        %v6266 = vmul.f32 %v6234, 0.5
        %v6267 = vmul.f32 %v6235, 0.5
        %v6268 = vmul.f32 %v6236, 0.5
        %v6269 = vmul.f32 %v6237, 0.5
        %v6270 = vmul.f32 %v6238, 0.5
        %v6271 = vmul.f32 %v6239, 0.5
        %v6272 = vmul.f32 %v6240, 0.5
        %v6273 = vmul.f32 %v6241, 0.5
        %v6274 = vtanh.pop %v6242
        %v6275 = vtanh.pop %v6243
        %v6276 = vtanh.pop %v6244
        %v6277 = vtanh.pop %v6245
        %v6278 = vtanh.pop %v6246
        %v6279 = vtanh.pop %v6247
        %v6280 = vtanh.pop %v6248
        %v6281 = vtanh.pop %v6249
        %v6282 = vtanh.pop %v6250
        %v6283 = vtanh.pop %v6251
        %v6284 = vtanh.pop %v6252
        %v6285 = vtanh.pop %v6253
        %v6286 = vtanh.pop %v6254
        %v6287 = vtanh.pop %v6255
        %v6288 = vtanh.pop %v6256
        %v6289 = vtanh.pop %v6257
        %v6290 = vtanh.pop %v6258
        %v6291 = vtanh.pop %v6259
        %v6292 = vtanh.pop %v6260
        %v6293 = vtanh.pop %v6261
        %v6294 = vtanh.pop %v6262
        %v6295 = vtanh.pop %v6263
        %v6296 = vtanh.pop %v6264
        %v6297 = vtanh.pop %v6265
        %v6298 = vtanh.pop %v6266
        %v6299 = vtanh.pop %v6267
        %v6300 = vtanh.pop %v6268
        %v6301 = vtanh.pop %v6269
        %v6302 = vtanh.pop %v6270
        %v6303 = vtanh.pop %v6271
        %v6304 = vtanh.pop %v6272
        %v6305 = vtanh.pop %v6273
        %v6306 = vadd.f32 %v6274, 1.0
        %v6307 = vadd.f32 %v6275, 1.0
        %v6308 = vadd.f32 %v6276, 1.0
        %v6309 = vadd.f32 %v6277, 1.0
        %v6310 = vadd.f32 %v6278, 1.0
        %v6311 = vadd.f32 %v6279, 1.0
        %v6312 = vadd.f32 %v6280, 1.0
        %v6313 = vadd.f32 %v6281, 1.0
        %v6314 = vadd.f32 %v6282, 1.0
        %v6315 = vadd.f32 %v6283, 1.0
        %v6316 = vadd.f32 %v6284, 1.0
        %v6317 = vadd.f32 %v6285, 1.0
        %v6318 = vadd.f32 %v6286, 1.0
        %v6319 = vadd.f32 %v6287, 1.0
        %v6320 = vadd.f32 %v6288, 1.0
        %v6321 = vadd.f32 %v6289, 1.0
        %v6322 = vadd.f32 %v6290, 1.0
        %v6323 = vadd.f32 %v6291, 1.0
        %v6324 = vadd.f32 %v6292, 1.0
        %v6325 = vadd.f32 %v6293, 1.0
        %v6326 = vadd.f32 %v6294, 1.0
        %v6327 = vadd.f32 %v6295, 1.0
        %v6328 = vadd.f32 %v6296, 1.0
        %v6329 = vadd.f32 %v6297, 1.0
        %v6330 = vadd.f32 %v6298, 1.0
        %v6331 = vadd.f32 %v6299, 1.0
        %v6332 = vadd.f32 %v6300, 1.0
        %v6333 = vadd.f32 %v6301, 1.0
        %v6334 = vadd.f32 %v6302, 1.0
        %v6335 = vadd.f32 %v6303, 1.0
        %v6336 = vadd.f32 %v6304, 1.0
        %v6337 = vadd.f32 %v6305, 1.0
        %v6338 = vmul.f32 %v6306, 0.5
        %v6339 = vmul.f32 %v6307, 0.5
        %v6340 = vmul.f32 %v6308, 0.5
        %v6341 = vmul.f32 %v6309, 0.5
        %v6342 = vmul.f32 %v6310, 0.5
        %v6343 = vmul.f32 %v6311, 0.5
        %v6344 = vmul.f32 %v6312, 0.5
        %v6345 = vmul.f32 %v6313, 0.5
        %v6346 = vmul.f32 %v6314, 0.5
        %v6347 = vmul.f32 %v6315, 0.5
        %v6348 = vmul.f32 %v6316, 0.5
        %v6349 = vmul.f32 %v6317, 0.5
        %v6350 = vmul.f32 %v6318, 0.5
        %v6351 = vmul.f32 %v6319, 0.5
        %v6352 = vmul.f32 %v6320, 0.5
        %v6353 = vmul.f32 %v6321, 0.5
        %v6354 = vmul.f32 %v6322, 0.5
        %v6355 = vmul.f32 %v6323, 0.5
        %v6356 = vmul.f32 %v6324, 0.5
        %v6357 = vmul.f32 %v6325, 0.5
        %v6358 = vmul.f32 %v6326, 0.5
        %v6359 = vmul.f32 %v6327, 0.5
        %v6360 = vmul.f32 %v6328, 0.5
        %v6361 = vmul.f32 %v6329, 0.5
        %v6362 = vmul.f32 %v6330, 0.5
        %v6363 = vmul.f32 %v6331, 0.5
        %v6364 = vmul.f32 %v6332, 0.5
        %v6365 = vmul.f32 %v6333, 0.5
        %v6366 = vmul.f32 %v6334, 0.5
        %v6367 = vmul.f32 %v6335, 0.5
        %v6368 = vmul.f32 %v6336, 0.5
        %v6369 = vmul.f32 %v6337, 0.5
        %v6370 = vmul.f32 %v6338, %v412
        %v6371 = vmul.f32 %v6339, %v413
        %v6372 = vmul.f32 %v6340, %v414
        %v6373 = vmul.f32 %v6341, %v415
        %v6374 = vmul.f32 %v6342, %v416
        %v6375 = vmul.f32 %v6343, %v417
        %v6376 = vmul.f32 %v6344, %v418
        %v6377 = vmul.f32 %v6345, %v419
        %v6378 = vmul.f32 %v6346, %v420
        %v6379 = vmul.f32 %v6347, %v421
        %v6380 = vmul.f32 %v6348, %v422
        %v6381 = vmul.f32 %v6349, %v423
        %v6382 = vmul.f32 %v6350, %v424
        %v6383 = vmul.f32 %v6351, %v425
        %v6384 = vmul.f32 %v6352, %v426
        %v6385 = vmul.f32 %v6353, %v427
        %v6386 = vmul.f32 %v6354, %v428
        %v6387 = vmul.f32 %v6355, %v429
        %v6388 = vmul.f32 %v6356, %v430
        %v6389 = vmul.f32 %v6357, %v431
        %v6390 = vmul.f32 %v6358, %v432
        %v6391 = vmul.f32 %v6359, %v433
        %v6392 = vmul.f32 %v6360, %v434
        %v6393 = vmul.f32 %v6361, %v435
        %v6394 = vmul.f32 %v6362, %v436
        %v6395 = vmul.f32 %v6363, %v437
        %v6396 = vmul.f32 %v6364, %v438
        %v6397 = vmul.f32 %v6365, %v439
        %v6398 = vmul.f32 %v6366, %v440
        %v6399 = vmul.f32 %v6367, %v441
        %v6400 = vmul.f32 %v6368, %v442
        %v6401 = vmul.f32 %v6369, %v443
        %v6402 = vpack.c.bf16 %v6371, %v6370
        %v6403 = vpack.c.bf16 %v6373, %v6372
        %v6404 = vpack.c.bf16 %v6375, %v6374
        %v6405 = vpack.c.bf16 %v6377, %v6376
        %v6406 = vpack.c.bf16 %v6379, %v6378
        %v6407 = vpack.c.bf16 %v6381, %v6380
        %v6408 = vpack.c.bf16 %v6383, %v6382
        %v6409 = vpack.c.bf16 %v6385, %v6384
        %v6410 = vpack.c.bf16 %v6387, %v6386
        %v6411 = vpack.c.bf16 %v6389, %v6388
        %v6412 = vpack.c.bf16 %v6391, %v6390
        %v6413 = vpack.c.bf16 %v6393, %v6392
        %v6414 = vpack.c.bf16 %v6395, %v6394
        %v6415 = vpack.c.bf16 %v6397, %v6396
        %v6416 = vpack.c.bf16 %v6399, %v6398
        %v6417 = vpack.c.bf16 %v6401, %v6400
        %v6419 = vshrl.u32 %v6402, 16
        %v6421 = vrot.slane %v6419, 7
        %v6422 = vshll.u32 %v6402, 16
        %v6424 = vor.u32 %v6421, %v6422
        %v6426 = vshrl.u32 %v6403, 16
        %v6428 = vrot.slane %v6426, 7
        %v6429 = vshll.u32 %v6403, 16
        %v6431 = vor.u32 %v6428, %v6429
        %v6433 = vshrl.u32 %v6404, 16
        %v6435 = vrot.slane %v6433, 7
        %v6436 = vshll.u32 %v6404, 16
        %v6438 = vor.u32 %v6435, %v6436
        %v6440 = vshrl.u32 %v6405, 16
        %v6442 = vrot.slane %v6440, 7
        %v6443 = vshll.u32 %v6405, 16
        %v6445 = vor.u32 %v6442, %v6443
        %v6447 = vshrl.u32 %v6406, 16
        %v6449 = vrot.slane %v6447, 7
        %v6450 = vshll.u32 %v6406, 16
        %v6452 = vor.u32 %v6449, %v6450
        %v6454 = vshrl.u32 %v6407, 16
        %v6456 = vrot.slane %v6454, 7
        %v6457 = vshll.u32 %v6407, 16
        %v6459 = vor.u32 %v6456, %v6457
        %v6461 = vshrl.u32 %v6408, 16
        %v6463 = vrot.slane %v6461, 7
        %v6464 = vshll.u32 %v6408, 16
        %v6466 = vor.u32 %v6463, %v6464
        %v6468 = vshrl.u32 %v6409, 16
        %v6470 = vrot.slane %v6468, 7
        %v6471 = vshll.u32 %v6409, 16
        %v6473 = vor.u32 %v6470, %v6471
        %v6475 = vshrl.u32 %v6410, 16
        %v6477 = vrot.slane %v6475, 7
        %v6478 = vshll.u32 %v6410, 16
        %v6480 = vor.u32 %v6477, %v6478
        %v6482 = vshrl.u32 %v6411, 16
        %v6484 = vrot.slane %v6482, 7
        %v6485 = vshll.u32 %v6411, 16
        %v6487 = vor.u32 %v6484, %v6485
        %v6489 = vshrl.u32 %v6412, 16
        %v6491 = vrot.slane %v6489, 7
        %v6492 = vshll.u32 %v6412, 16
        %v6494 = vor.u32 %v6491, %v6492
        %v6496 = vshrl.u32 %v6413, 16
        %v6498 = vrot.slane %v6496, 7
        %v6499 = vshll.u32 %v6413, 16
        %v6501 = vor.u32 %v6498, %v6499
        %v6503 = vshrl.u32 %v6414, 16
        %v6505 = vrot.slane %v6503, 7
        %v6506 = vshll.u32 %v6414, 16
        %v6508 = vor.u32 %v6505, %v6506
        %v6510 = vshrl.u32 %v6415, 16
        %v6512 = vrot.slane %v6510, 7
        %v6513 = vshll.u32 %v6415, 16
        %v6515 = vor.u32 %v6512, %v6513
        %v6517 = vshrl.u32 %v6416, 16
        %v6519 = vrot.slane %v6517, 7
        %v6520 = vshll.u32 %v6416, 16
        %v6522 = vor.u32 %v6519, %v6520
        %v6524 = vshrl.u32 %v6417, 16
        %v6526 = vrot.slane %v6524, 7
        %v6527 = vshll.u32 %v6417, 16
        %v6529 = vor.u32 %v6526, %v6527
        %v6546 = vsel %vm638, 0, %v6424
        %v6547 = vsel %vm638, 0, %v6431
        %v6548 = vsel %vm638, 0, %v6438
        %v6549 = vsel %vm638, 0, %v6445
        %v6550 = vsel %vm638, 0, %v6452
        %v6551 = vsel %vm638, 0, %v6459
        %v6552 = vsel %vm638, 0, %v6466
        %v6553 = vsel %vm638, 0, %v6473
        %v6554 = vsel %vm638, 0, %v6480
        %v6555 = vsel %vm638, 0, %v6487
        %v6556 = vsel %vm638, 0, %v6494
        %v6557 = vsel %vm638, 0, %v6501
        %v6558 = vsel %vm638, 0, %v6508
        %v6559 = vsel %vm638, 0, %v6515
        %v6560 = vsel %vm638, 0, %v6522
        %v6561 = vsel %vm638, 0, %v6529
        %v6562 = vrot.slane %v6422, 1
        %v6563 = vor.u32 %v6419, %v6562
        %v6564 = vrot.slane %v6429, 1
        %v6565 = vor.u32 %v6426, %v6564
        %v6566 = vrot.slane %v6436, 1
        %v6567 = vor.u32 %v6433, %v6566
        %v6568 = vrot.slane %v6443, 1
        %v6569 = vor.u32 %v6440, %v6568
        %v6570 = vrot.slane %v6450, 1
        %v6571 = vor.u32 %v6447, %v6570
        %v6572 = vrot.slane %v6457, 1
        %v6573 = vor.u32 %v6454, %v6572
        %v6574 = vrot.slane %v6464, 1
        %v6575 = vor.u32 %v6461, %v6574
        %v6576 = vrot.slane %v6471, 1
        %v6577 = vor.u32 %v6468, %v6576
        %v6578 = vrot.slane %v6478, 1
        %v6579 = vor.u32 %v6475, %v6578
        %v6580 = vrot.slane %v6485, 1
        %v6581 = vor.u32 %v6482, %v6580
        %v6582 = vrot.slane %v6492, 1
        %v6583 = vor.u32 %v6489, %v6582
        %v6584 = vrot.slane %v6499, 1
        %v6585 = vor.u32 %v6496, %v6584
        %v6586 = vrot.slane %v6506, 1
        %v6587 = vor.u32 %v6503, %v6586
        %v6588 = vrot.slane %v6513, 1
        %v6589 = vor.u32 %v6510, %v6588
        %v6590 = vrot.slane %v6520, 1
        %v6591 = vor.u32 %v6517, %v6590
        %v6592 = vrot.slane %v6527, 1
        %v6593 = vor.u32 %v6524, %v6592
        %v6610 = vsel %vm705, %v6563, 0
        %v6611 = vsel %vm705, %v6565, 0
        %v6612 = vsel %vm705, %v6567, 0
        %v6613 = vsel %vm705, %v6569, 0
        %v6614 = vsel %vm705, %v6571, 0
        %v6615 = vsel %vm705, %v6573, 0
        %v6616 = vsel %vm705, %v6575, 0
        %v6617 = vsel %vm705, %v6577, 0
        %v6618 = vsel %vm705, %v6579, 0
        %v6619 = vsel %vm705, %v6581, 0
        %v6620 = vsel %vm705, %v6583, 0
        %v6621 = vsel %vm705, %v6585, 0
        %v6622 = vsel %vm705, %v6587, 0
        %v6623 = vsel %vm705, %v6589, 0
        %v6624 = vsel %vm705, %v6591, 0
        %v6625 = vsel %vm705, %v6593, 0
        %v6626 = vld [vmem:[%s7] sm:$0xf]
        %v6627 = vld [vmem:[%s7 + $0x4] sm:$0xf]
        %v6628 = vld [vmem:[%s7 + $0x8] sm:$0xf]
        %v6629 = vld [vmem:[%s7 + $0xc] sm:$0xf]
        %v6630 = vld [vmem:[%s7 + $0x10] sm:$0xf]
        %v6631 = vld [vmem:[%s7 + $0x14] sm:$0xf]
        %v6632 = vld [vmem:[%s7 + $0x18] sm:$0xf]
        %v6633 = vld [vmem:[%s7 + $0x1c] sm:$0xf]
        %v6634 = vld [vmem:[%s7 + $0x20] sm:$0xf]
        %v6635 = vld [vmem:[%s7 + $0x24] sm:$0xf]
        %v6636 = vld [vmem:[%s7 + $0x28] sm:$0xf]
        %v6637 = vld [vmem:[%s7 + $0x2c] sm:$0xf]
        %v6638 = vld [vmem:[%s7 + $0x30] sm:$0xf]
        %v6639 = vld [vmem:[%s7 + $0x34] sm:$0xf]
        %v6640 = vld [vmem:[%s7 + $0x38] sm:$0xf]
        %v6641 = vld [vmem:[%s7 + $0x3c] sm:$0xf]
        %v6642 = vld [vmem:[%s7 + $0x40] sm:$0xf]
        %v6643 = vld [vmem:[%s7 + $0x44] sm:$0xf]
        %v6644 = vld [vmem:[%s7 + $0x48] sm:$0xf]
        %v6645 = vld [vmem:[%s7 + $0x4c] sm:$0xf]
        %v6646 = vld [vmem:[%s7 + $0x50] sm:$0xf]
        %v6647 = vld [vmem:[%s7 + $0x54] sm:$0xf]
        %v6648 = vld [vmem:[%s7 + $0x58] sm:$0xf]
        %v6649 = vld [vmem:[%s7 + $0x5c] sm:$0xf]
        %v6650 = vld [vmem:[%s7 + $0x60] sm:$0xf]
        %v6651 = vld [vmem:[%s7 + $0x64] sm:$0xf]
        %v6652 = vld [vmem:[%s7 + $0x68] sm:$0xf]
        %v6653 = vld [vmem:[%s7 + $0x6c] sm:$0xf]
        %v6654 = vld [vmem:[%s7 + $0x70] sm:$0xf]
        %v6655 = vld [vmem:[%s7 + $0x74] sm:$0xf]
        %v6656 = vld [vmem:[%s7 + $0x78] sm:$0xf]
        %v6657 = vld [vmem:[%s7 + $0x7c] sm:$0xf]
        %v6658 = vld [vmem:[%s7 + $0x80] sm:$0xf]
        %v6659 = vld [vmem:[%s7 + $0x84] sm:$0xf]
        %v6660 = vld [vmem:[%s7 + $0x88] sm:$0xf]
        %v6661 = vld [vmem:[%s7 + $0x8c] sm:$0xf]
        %v6662 = vld [vmem:[%s7 + $0x90] sm:$0xf]
        %v6663 = vld [vmem:[%s7 + $0x94] sm:$0xf]
        %v6664 = vld [vmem:[%s7 + $0x98] sm:$0xf]
        %v6665 = vld [vmem:[%s7 + $0x9c] sm:$0xf]
        %v6666 = vld [vmem:[%s7 + $0xa0] sm:$0xf]
        %v6667 = vld [vmem:[%s7 + $0xa4] sm:$0xf]
        %v6668 = vld [vmem:[%s7 + $0xa8] sm:$0xf]
        %v6669 = vld [vmem:[%s7 + $0xac] sm:$0xf]
        %v6670 = vld [vmem:[%s7 + $0xb0] sm:$0xf]
        %v6671 = vld [vmem:[%s7 + $0xb4] sm:$0xf]
        %v6672 = vld [vmem:[%s7 + $0xb8] sm:$0xf]
        %v6673 = vld [vmem:[%s7 + $0xbc] sm:$0xf]
        %v6674 = vld [vmem:[%s7 + $0xc0] sm:$0xf]
        %v6675 = vld [vmem:[%s7 + $0xc4] sm:$0xf]
        %v6676 = vld [vmem:[%s7 + $0xc8] sm:$0xf]
        %v6677 = vld [vmem:[%s7 + $0xcc] sm:$0xf]
        %v6678 = vld [vmem:[%s7 + $0xd0] sm:$0xf]
        %v6679 = vld [vmem:[%s7 + $0xd4] sm:$0xf]
        %v6680 = vld [vmem:[%s7 + $0xd8] sm:$0xf]
        %v6681 = vld [vmem:[%s7 + $0xdc] sm:$0xf]
        %v6682 = vld [vmem:[%s7 + $0xe0] sm:$0xf]
        %v6683 = vld [vmem:[%s7 + $0xe4] sm:$0xf]
        %v6684 = vld [vmem:[%s7 + $0xe8] sm:$0xf]
        %v6685 = vld [vmem:[%s7 + $0xec] sm:$0xf]
        %v6686 = vld [vmem:[%s7 + $0xf0] sm:$0xf]
        %v6687 = vld [vmem:[%s7 + $0xf4] sm:$0xf]
        %v6688 = vld [vmem:[%s7 + $0xf8] sm:$0xf]
        %v6689 = vld [vmem:[%s7 + $0xfc] sm:$0xf]
        %v6690 = vld [vmem:[%s7 + $0x100] sm:$0xf]
        %v6691 = vld [vmem:[%s7 + $0x104] sm:$0xf]
        %v6692 = vld [vmem:[%s7 + $0x108] sm:$0xf]
        %v6693 = vld [vmem:[%s7 + $0x10c] sm:$0xf]
        %v6694 = vld [vmem:[%s7 + $0x110] sm:$0xf]
        %v6695 = vld [vmem:[%s7 + $0x114] sm:$0xf]
        %v6696 = vld [vmem:[%s7 + $0x118] sm:$0xf]
        %v6697 = vld [vmem:[%s7 + $0x11c] sm:$0xf]
        %v6698 = vld [vmem:[%s7 + $0x120] sm:$0xf]
        %v6699 = vld [vmem:[%s7 + $0x124] sm:$0xf]
        %v6700 = vld [vmem:[%s7 + $0x128] sm:$0xf]
        %v6701 = vld [vmem:[%s7 + $0x12c] sm:$0xf]
        %v6702 = vld [vmem:[%s7 + $0x130] sm:$0xf]
        %v6703 = vld [vmem:[%s7 + $0x134] sm:$0xf]
        %v6704 = vld [vmem:[%s7 + $0x138] sm:$0xf]
        %v6705 = vld [vmem:[%s7 + $0x13c] sm:$0xf]
        %v6706 = vld [vmem:[%s7 + $0x140] sm:$0xf]
        %v6707 = vld [vmem:[%s7 + $0x144] sm:$0xf]
        %v6708 = vld [vmem:[%s7 + $0x148] sm:$0xf]
        %v6709 = vld [vmem:[%s7 + $0x14c] sm:$0xf]
        %v6710 = vld [vmem:[%s7 + $0x150] sm:$0xf]
        %v6711 = vld [vmem:[%s7 + $0x154] sm:$0xf]
        %v6712 = vld [vmem:[%s7 + $0x158] sm:$0xf]
        %v6713 = vld [vmem:[%s7 + $0x15c] sm:$0xf]
        %v6714 = vld [vmem:[%s7 + $0x160] sm:$0xf]
        %v6715 = vld [vmem:[%s7 + $0x164] sm:$0xf]
        %v6716 = vld [vmem:[%s7 + $0x168] sm:$0xf]
        %v6717 = vld [vmem:[%s7 + $0x16c] sm:$0xf]
        %v6718 = vld [vmem:[%s7 + $0x170] sm:$0xf]
        %v6719 = vld [vmem:[%s7 + $0x174] sm:$0xf]
        %v6720 = vld [vmem:[%s7 + $0x178] sm:$0xf]
        %v6721 = vld [vmem:[%s7 + $0x17c] sm:$0xf]
        %v6722 = vld [vmem:[%s7 + $0x180] sm:$0xf]
        %v6723 = vld [vmem:[%s7 + $0x184] sm:$0xf]
        %v6724 = vld [vmem:[%s7 + $0x188] sm:$0xf]
        %v6725 = vld [vmem:[%s7 + $0x18c] sm:$0xf]
        %v6726 = vld [vmem:[%s7 + $0x190] sm:$0xf]
        %v6727 = vld [vmem:[%s7 + $0x194] sm:$0xf]
        %v6728 = vld [vmem:[%s7 + $0x198] sm:$0xf]
        %v6729 = vld [vmem:[%s7 + $0x19c] sm:$0xf]
        %v6730 = vld [vmem:[%s7 + $0x1a0] sm:$0xf]
        %v6731 = vld [vmem:[%s7 + $0x1a4] sm:$0xf]
        %v6732 = vld [vmem:[%s7 + $0x1a8] sm:$0xf]
        %v6733 = vld [vmem:[%s7 + $0x1ac] sm:$0xf]
        %v6734 = vld [vmem:[%s7 + $0x1b0] sm:$0xf]
        %v6735 = vld [vmem:[%s7 + $0x1b4] sm:$0xf]
        %v6736 = vld [vmem:[%s7 + $0x1b8] sm:$0xf]
        %v6737 = vld [vmem:[%s7 + $0x1bc] sm:$0xf]
        %v6738 = vld [vmem:[%s7 + $0x1c0] sm:$0xf]
        %v6739 = vld [vmem:[%s7 + $0x1c4] sm:$0xf]
        %v6740 = vld [vmem:[%s7 + $0x1c8] sm:$0xf]
        %v6741 = vld [vmem:[%s7 + $0x1cc] sm:$0xf]
        %v6742 = vld [vmem:[%s7 + $0x1d0] sm:$0xf]
        %v6743 = vld [vmem:[%s7 + $0x1d4] sm:$0xf]
        %v6744 = vld [vmem:[%s7 + $0x1d8] sm:$0xf]
        %v6745 = vld [vmem:[%s7 + $0x1dc] sm:$0xf]
        %v6746 = vld [vmem:[%s7 + $0x1e0] sm:$0xf]
        %v6747 = vld [vmem:[%s7 + $0x1e4] sm:$0xf]
        %v6748 = vld [vmem:[%s7 + $0x1e8] sm:$0xf]
        %v6749 = vld [vmem:[%s7 + $0x1ec] sm:$0xf]
        %v6750 = vld [vmem:[%s7 + $0x1f0] sm:$0xf]
        %v6751 = vld [vmem:[%s7 + $0x1f4] sm:$0xf]
        %v6752 = vld [vmem:[%s7 + $0x1f8] sm:$0xf]
        %v6753 = vld [vmem:[%s7 + $0x1fc] sm:$0xf]
        %v6754 = vld [vmem:[%s7 + $0x200] sm:$0xf]
        %v6755 = vld [vmem:[%s7 + $0x204] sm:$0xf]
        %v6756 = vld [vmem:[%s7 + $0x208] sm:$0xf]
        %v6757 = vld [vmem:[%s7 + $0x20c] sm:$0xf]
        %v6758 = vld [vmem:[%s7 + $0x210] sm:$0xf]
        %v6759 = vld [vmem:[%s7 + $0x214] sm:$0xf]
        %v6760 = vld [vmem:[%s7 + $0x218] sm:$0xf]
        %v6761 = vld [vmem:[%s7 + $0x21c] sm:$0xf]
        %v6762 = vld [vmem:[%s7 + $0x220] sm:$0xf]
        %v6763 = vld [vmem:[%s7 + $0x224] sm:$0xf]
        %v6764 = vld [vmem:[%s7 + $0x228] sm:$0xf]
        %v6765 = vld [vmem:[%s7 + $0x22c] sm:$0xf]
        %v6766 = vld [vmem:[%s7 + $0x230] sm:$0xf]
        %v6767 = vld [vmem:[%s7 + $0x234] sm:$0xf]
        %v6768 = vld [vmem:[%s7 + $0x238] sm:$0xf]
        %v6769 = vld [vmem:[%s7 + $0x23c] sm:$0xf]
        %v6914 = vunpack.c.l.b16 %v6626
        %v6915 = vunpack.c.l.b16 %v6627
        %v6916 = vunpack.c.l.b16 %v6628
        %v6917 = vunpack.c.l.b16 %v6629
        %v6918 = vunpack.c.l.b16 %v6630
        %v6919 = vunpack.c.l.b16 %v6631
        %v6920 = vunpack.c.l.b16 %v6632
        %v6921 = vunpack.c.l.b16 %v6633
        %v6922 = vunpack.c.l.b16 %v6634
        %v6923 = vunpack.c.l.b16 %v6635
        %v6924 = vunpack.c.l.b16 %v6636
        %v6925 = vunpack.c.l.b16 %v6637
        %v6926 = vunpack.c.l.b16 %v6638
        %v6927 = vunpack.c.l.b16 %v6639
        %v6928 = vunpack.c.l.b16 %v6640
        %v6929 = vunpack.c.l.b16 %v6641
        %v6930 = vunpack.c.l.b16 %v6642
        %v6931 = vunpack.c.l.b16 %v6643
        %v6932 = vunpack.c.l.b16 %v6644
        %v6933 = vunpack.c.l.b16 %v6645
        %v6934 = vunpack.c.l.b16 %v6646
        %v6935 = vunpack.c.l.b16 %v6647
        %v6936 = vunpack.c.l.b16 %v6648
        %v6937 = vunpack.c.l.b16 %v6649
        %v6938 = vunpack.c.l.b16 %v6650
        %v6939 = vunpack.c.l.b16 %v6651
        %v6940 = vunpack.c.l.b16 %v6652
        %v6941 = vunpack.c.l.b16 %v6653
        %v6942 = vunpack.c.l.b16 %v6654
        %v6943 = vunpack.c.l.b16 %v6655
        %v6944 = vunpack.c.l.b16 %v6656
        %v6945 = vunpack.c.l.b16 %v6657
        %v6946 = vunpack.c.l.b16 %v6658
        %v6947 = vunpack.c.l.b16 %v6659
        %v6948 = vunpack.c.l.b16 %v6660
        %v6949 = vunpack.c.l.b16 %v6661
        %v6950 = vunpack.c.l.b16 %v6662
        %v6951 = vunpack.c.l.b16 %v6663
        %v6952 = vunpack.c.l.b16 %v6664
        %v6953 = vunpack.c.l.b16 %v6665
        %v6954 = vunpack.c.l.b16 %v6666
        %v6955 = vunpack.c.l.b16 %v6667
        %v6956 = vunpack.c.l.b16 %v6668
        %v6957 = vunpack.c.l.b16 %v6669
        %v6958 = vunpack.c.l.b16 %v6670
        %v6959 = vunpack.c.l.b16 %v6671
        %v6960 = vunpack.c.l.b16 %v6672
        %v6961 = vunpack.c.l.b16 %v6673
        %v6962 = vunpack.c.l.b16 %v6674
        %v6963 = vunpack.c.l.b16 %v6675
        %v6964 = vunpack.c.l.b16 %v6676
        %v6965 = vunpack.c.l.b16 %v6677
        %v6966 = vunpack.c.l.b16 %v6678
        %v6967 = vunpack.c.l.b16 %v6679
        %v6968 = vunpack.c.l.b16 %v6680
        %v6969 = vunpack.c.l.b16 %v6681
        %v6970 = vunpack.c.l.b16 %v6682
        %v6971 = vunpack.c.l.b16 %v6683
        %v6972 = vunpack.c.l.b16 %v6684
        %v6973 = vunpack.c.l.b16 %v6685
        %v6974 = vunpack.c.l.b16 %v6686
        %v6975 = vunpack.c.l.b16 %v6687
        %v6976 = vunpack.c.l.b16 %v6688
        %v6977 = vunpack.c.l.b16 %v6689
        %v6978 = vunpack.c.l.b16 %v6690
        %v6979 = vunpack.c.l.b16 %v6691
        %v6980 = vunpack.c.l.b16 %v6692
        %v6981 = vunpack.c.l.b16 %v6693
        %v6982 = vunpack.c.l.b16 %v6694
        %v6983 = vunpack.c.l.b16 %v6695
        %v6984 = vunpack.c.l.b16 %v6696
        %v6985 = vunpack.c.l.b16 %v6697
        %v6986 = vunpack.c.l.b16 %v6698
        %v6987 = vunpack.c.l.b16 %v6699
        %v6988 = vunpack.c.l.b16 %v6700
        %v6989 = vunpack.c.l.b16 %v6701
        %v6990 = vunpack.c.l.b16 %v6702
        %v6991 = vunpack.c.l.b16 %v6703
        %v6992 = vunpack.c.l.b16 %v6704
        %v6993 = vunpack.c.l.b16 %v6705
        %v6994 = vunpack.c.l.b16 %v6706
        %v6995 = vunpack.c.l.b16 %v6707
        %v6996 = vunpack.c.l.b16 %v6708
        %v6997 = vunpack.c.l.b16 %v6709
        %v6998 = vunpack.c.l.b16 %v6710
        %v6999 = vunpack.c.l.b16 %v6711
        %v7000 = vunpack.c.l.b16 %v6712
        %v7001 = vunpack.c.l.b16 %v6713
        %v7002 = vunpack.c.l.b16 %v6714
        %v7003 = vunpack.c.l.b16 %v6715
        %v7004 = vunpack.c.l.b16 %v6716
        %v7005 = vunpack.c.l.b16 %v6717
        %v7006 = vunpack.c.l.b16 %v6718
        %v7007 = vunpack.c.l.b16 %v6719
        %v7008 = vunpack.c.l.b16 %v6720
        %v7009 = vunpack.c.l.b16 %v6721
        %v7010 = vunpack.c.l.b16 %v6722
        %v7011 = vunpack.c.l.b16 %v6723
        %v7012 = vunpack.c.l.b16 %v6724
        %v7013 = vunpack.c.l.b16 %v6725
        %v7014 = vunpack.c.l.b16 %v6726
        %v7015 = vunpack.c.l.b16 %v6727
        %v7016 = vunpack.c.l.b16 %v6728
        %v7017 = vunpack.c.l.b16 %v6729
        %v7018 = vunpack.c.l.b16 %v6730
        %v7019 = vunpack.c.l.b16 %v6731
        %v7020 = vunpack.c.l.b16 %v6732
        %v7021 = vunpack.c.l.b16 %v6733
        %v7022 = vunpack.c.l.b16 %v6734
        %v7023 = vunpack.c.l.b16 %v6735
        %v7024 = vunpack.c.l.b16 %v6736
        %v7025 = vunpack.c.l.b16 %v6737
        %v7026 = vunpack.c.l.b16 %v6738
        %v7027 = vunpack.c.l.b16 %v6739
        %v7028 = vunpack.c.l.b16 %v6740
        %v7029 = vunpack.c.l.b16 %v6741
        %v7030 = vunpack.c.l.b16 %v6742
        %v7031 = vunpack.c.l.b16 %v6743
        %v7032 = vunpack.c.l.b16 %v6744
        %v7033 = vunpack.c.l.b16 %v6745
        %v7034 = vunpack.c.l.b16 %v6746
        %v7035 = vunpack.c.l.b16 %v6747
        %v7036 = vunpack.c.l.b16 %v6748
        %v7037 = vunpack.c.l.b16 %v6749
        %v7038 = vunpack.c.l.b16 %v6750
        %v7039 = vunpack.c.l.b16 %v6751
        %v7040 = vunpack.c.l.b16 %v6752
        %v7041 = vunpack.c.l.b16 %v6753
        %v7042 = vunpack.c.l.b16 %v6754
        %v7043 = vunpack.c.l.b16 %v6755
        %v7044 = vunpack.c.l.b16 %v6756
        %v7045 = vunpack.c.l.b16 %v6757
        %v7046 = vunpack.c.l.b16 %v6758
        %v7047 = vunpack.c.l.b16 %v6759
        %v7048 = vunpack.c.l.b16 %v6760
        %v7049 = vunpack.c.l.b16 %v6761
        %v7050 = vunpack.c.l.b16 %v6762
        %v7051 = vunpack.c.l.b16 %v6763
        %v7052 = vunpack.c.l.b16 %v6764
        %v7053 = vunpack.c.l.b16 %v6765
        %v7054 = vunpack.c.l.b16 %v6766
        %v7055 = vunpack.c.l.b16 %v6767
        %v7056 = vunpack.c.l.b16 %v6768
        %v7057 = vunpack.c.l.b16 %v6769
        %v7058 = vpack.c.b16 %v6915, %v6914
        %v7059 = vpack.c.b16 %v6917, %v6916
        %v7060 = vpack.c.b16 %v6919, %v6918
        %v7061 = vpack.c.b16 %v6921, %v6920
        %v7062 = vpack.c.b16 %v6923, %v6922
        %v7063 = vpack.c.b16 %v6925, %v6924
        %v7064 = vpack.c.b16 %v6927, %v6926
        %v7065 = vpack.c.b16 %v6929, %v6928
        %v7066 = vpack.c.b16 %v6931, %v6930
        %v7067 = vpack.c.b16 %v6933, %v6932
        %v7068 = vpack.c.b16 %v6935, %v6934
        %v7069 = vpack.c.b16 %v6937, %v6936
        %v7070 = vpack.c.b16 %v6939, %v6938
        %v7071 = vpack.c.b16 %v6941, %v6940
        %v7072 = vpack.c.b16 %v6943, %v6942
        %v7073 = vpack.c.b16 %v6945, %v6944
        %v7074 = vpack.c.b16 %v6947, %v6946
        %v7075 = vpack.c.b16 %v6949, %v6948
        %v7076 = vpack.c.b16 %v6951, %v6950
        %v7077 = vpack.c.b16 %v6953, %v6952
        %v7078 = vpack.c.b16 %v6955, %v6954
        %v7079 = vpack.c.b16 %v6957, %v6956
        %v7080 = vpack.c.b16 %v6959, %v6958
        %v7081 = vpack.c.b16 %v6961, %v6960
        %v7082 = vpack.c.b16 %v6963, %v6962
        %v7083 = vpack.c.b16 %v6965, %v6964
        %v7084 = vpack.c.b16 %v6967, %v6966
        %v7085 = vpack.c.b16 %v6969, %v6968
        %v7086 = vpack.c.b16 %v6971, %v6970
        %v7087 = vpack.c.b16 %v6973, %v6972
        %v7088 = vpack.c.b16 %v6975, %v6974
        %v7089 = vpack.c.b16 %v6977, %v6976
        %v7090 = vpack.c.b16 %v6979, %v6978
        %v7091 = vpack.c.b16 %v6981, %v6980
        %v7092 = vpack.c.b16 %v6983, %v6982
        %v7093 = vpack.c.b16 %v6985, %v6984
        %v7094 = vpack.c.b16 %v6987, %v6986
        %v7095 = vpack.c.b16 %v6989, %v6988
        %v7096 = vpack.c.b16 %v6991, %v6990
        %v7097 = vpack.c.b16 %v6993, %v6992
        %v7098 = vpack.c.b16 %v6995, %v6994
        %v7099 = vpack.c.b16 %v6997, %v6996
        %v7100 = vpack.c.b16 %v6999, %v6998
        %v7101 = vpack.c.b16 %v7001, %v7000
        %v7102 = vpack.c.b16 %v7003, %v7002
        %v7103 = vpack.c.b16 %v7005, %v7004
        %v7104 = vpack.c.b16 %v7007, %v7006
        %v7105 = vpack.c.b16 %v7009, %v7008
        %v7106 = vpack.c.b16 %v7011, %v7010
        %v7107 = vpack.c.b16 %v7013, %v7012
        %v7108 = vpack.c.b16 %v7015, %v7014
        %v7109 = vpack.c.b16 %v7017, %v7016
        %v7110 = vpack.c.b16 %v7019, %v7018
        %v7111 = vpack.c.b16 %v7021, %v7020
        %v7112 = vpack.c.b16 %v7023, %v7022
        %v7113 = vpack.c.b16 %v7025, %v7024
        %v7114 = vpack.c.b16 %v7027, %v7026
        %v7115 = vpack.c.b16 %v7029, %v7028
        %v7116 = vpack.c.b16 %v7031, %v7030
        %v7117 = vpack.c.b16 %v7033, %v7032
        %v7118 = vpack.c.b16 %v7035, %v7034
        %v7119 = vpack.c.b16 %v7037, %v7036
        %v7120 = vpack.c.b16 %v7039, %v7038
        %v7121 = vpack.c.b16 %v7041, %v7040
        %v7122 = vpack.c.b16 %v7043, %v7042
        %v7123 = vpack.c.b16 %v7045, %v7044
        %v7124 = vpack.c.b16 %v7047, %v7046
        %v7125 = vpack.c.b16 %v7049, %v7048
        %v7126 = vpack.c.b16 %v7051, %v7050
        %v7127 = vpack.c.b16 %v7053, %v7052
        %v7128 = vpack.c.b16 %v7055, %v7054
        %v7129 = vpack.c.b16 %v7057, %v7056
        %7202 = vmatprep.subr.bf16.mxu0 0
        %7203 = vmatpush1.bf16.msra.mxu0 %v7058
        %7204 = vmatprep.subr.bf16.mxu0 0
        %7205 = vmatpush1.bf16.msra.mxu0 %v7059
        %7206 = vmatprep.subr.bf16.mxu0 0
        %7207 = vmatpush1.bf16.msra.mxu0 %v7060
        %7208 = vmatprep.subr.bf16.mxu0 0
        %7209 = vmatpush1.bf16.msra.mxu0 %v7061
        %7210 = vmatprep.subr.bf16.mxu0 0
        %7211 = vmatpush1.bf16.msra.mxu0 %v7062
        %7212 = vmatprep.subr.bf16.mxu0 0
        %7213 = vmatpush1.bf16.msra.mxu0 %v7063
        %7214 = vmatprep.subr.bf16.mxu0 0
        %7215 = vmatpush1.bf16.msra.mxu0 %v7064
        %7216 = vmatprep.subr.bf16.mxu0 0
        %7217 = vmatpush1.bf16.msra.mxu0 %v7065
        %7218 = vmatprep.subr.bf16.mxu0 0
        %7219 = vmatpush1.bf16.msra.mxu0 %v7066
        %7220 = vmatprep.subr.bf16.mxu0 0
        %7221 = vmatpush1.bf16.msra.mxu0 %v7067
        %7222 = vmatprep.subr.bf16.mxu0 0
        %7223 = vmatpush1.bf16.msra.mxu0 %v7068
        %7224 = vmatprep.subr.bf16.mxu0 0
        %7225 = vmatpush1.bf16.msra.mxu0 %v7069
        %7226 = vmatprep.subr.bf16.mxu0 0
        %7227 = vmatpush1.bf16.msra.mxu0 %v7070
        %7228 = vmatprep.subr.bf16.mxu0 0
        %7229 = vmatpush1.bf16.msra.mxu0 %v7071
        %7230 = vmatprep.subr.bf16.mxu0 0
        %7231 = vmatpush1.bf16.msra.mxu0 %v7072
        %7232 = vmatprep.subr.bf16.mxu0 0
        %7233 = vmatpush1.bf16.msra.mxu0 %v7073
        %7234 = vmatprep.mubr.bf16.mxu0 0
        %7235 = vmatmul.mubr.bf16.gmra.mrb[0].mxu0 0
        %v7236 = vpop.f32.mrb[0].mxu0
        %v7237 = vadd.f32 %v4031, %v7236
        %v7238 = vpop.f32.mrb[0].mxu0
        %v7239 = vpop.f32.mrb[0].mxu0
        %v7240 = vadd.f32 %v4034, %v7239
        %v7241 = vpop.f32.mrb[0].mxu0
        %7242 = vmatprep.mubr.bf16.mxu0 %v6402
        %7243 = vmatmul.mubr.bf16.gmra.mrb[0].mxu0 %v6546
        %v7244 = vpop.f32.mrb[0].mxu0
        %v7245 = vadd.f32 %v4039, %v7244
        %v7246 = vpop.f32.mrb[0].mxu0
        %v7247 = vpop.f32.mrb[0].mxu0
        %v7248 = vadd.f32 %v4042, %v7247
        %v7249 = vpop.f32.mrb[0].mxu0
        %7250 = vmatprep.mubr.bf16.mxu0 %v6403
        %7251 = vmatmul.mubr.bf16.gmra.mrb[0].mxu0 %v6547
        %v7252 = vpop.f32.mrb[0].mxu0
        %v7253 = vadd.f32 %v4047, %v7252
        %v7254 = vpop.f32.mrb[0].mxu0
        %v7255 = vpop.f32.mrb[0].mxu0
        %v7256 = vadd.f32 %v4050, %v7255
        %v7257 = vpop.f32.mrb[0].mxu0
        %7258 = vmatprep.mubr.bf16.mxu0 %v6404
        %7259 = vmatmul.mubr.bf16.gmra.mrb[0].mxu0 %v6548
        %v7260 = vpop.f32.mrb[0].mxu0
        %v7261 = vadd.f32 %v4055, %v7260
        %v7262 = vpop.f32.mrb[0].mxu0
        %v7263 = vpop.f32.mrb[0].mxu0
        %v7264 = vadd.f32 %v4058, %v7263
        %v7265 = vpop.f32.mrb[0].mxu0
        %7266 = vmatprep.mubr.bf16.mxu0 %v6405
        %7267 = vmatmul.mubr.bf16.gmra.mrb[0].mxu0 %v6549
        %v7268 = vpop.f32.mrb[0].mxu0
        %v7269 = vadd.f32 %v4063, %v7268
        %v7270 = vpop.f32.mrb[0].mxu0
        %v7271 = vpop.f32.mrb[0].mxu0
        %v7272 = vadd.f32 %v4066, %v7271
        %v7273 = vpop.f32.mrb[0].mxu0
        %7274 = vmatprep.mubr.bf16.mxu0 %v6406
        %7275 = vmatmul.mubr.bf16.gmra.mrb[0].mxu0 %v6550
        %v7276 = vpop.f32.mrb[0].mxu0
        %v7277 = vadd.f32 %v4071, %v7276
        %v7278 = vpop.f32.mrb[0].mxu0
        %v7279 = vpop.f32.mrb[0].mxu0
        %v7280 = vadd.f32 %v4074, %v7279
        %v7281 = vpop.f32.mrb[0].mxu0
        %7282 = vmatprep.mubr.bf16.mxu0 %v6407
        %7283 = vmatmul.mubr.bf16.gmra.mrb[0].mxu0 %v6551
        %v7284 = vpop.f32.mrb[0].mxu0
        %v7285 = vadd.f32 %v4079, %v7284
        %v7286 = vpop.f32.mrb[0].mxu0
        %v7287 = vpop.f32.mrb[0].mxu0
        %v7288 = vadd.f32 %v4082, %v7287
        %v7289 = vpop.f32.mrb[0].mxu0
        %7290 = vmatprep.mubr.bf16.mxu0 %v6408
        %7291 = vmatmul.mubr.bf16.gmra.mrb[0].mxu0 %v6552
        %v7292 = vpop.f32.mrb[0].mxu0
        %v7293 = vadd.f32 %v4087, %v7292
        %v7294 = vpop.f32.mrb[0].mxu0
        %v7295 = vpop.f32.mrb[0].mxu0
        %v7296 = vadd.f32 %v4090, %v7295
        %v7297 = vpop.f32.mrb[0].mxu0
        %7298 = vmatprep.mubr.bf16.mxu0 %v6409
        %7299 = vmatmul.mubr.bf16.gmra.mrb[0].mxu0 %v6553
        %v7300 = vpop.f32.mrb[0].mxu0
        %v7301 = vadd.f32 %v4095, %v7300
        %v7302 = vpop.f32.mrb[0].mxu0
        %v7303 = vpop.f32.mrb[0].mxu0
        %v7304 = vadd.f32 %v4098, %v7303
        %v7305 = vpop.f32.mrb[0].mxu0
        %7306 = vmatprep.mubr.bf16.mxu0 %v6410
        %7307 = vmatmul.mubr.bf16.gmra.mrb[0].mxu0 %v6554
        %v7308 = vpop.f32.mrb[0].mxu0
        %v7309 = vadd.f32 %v4103, %v7308
        %v7310 = vpop.f32.mrb[0].mxu0
        %v7311 = vpop.f32.mrb[0].mxu0
        %v7312 = vadd.f32 %v4106, %v7311
        %v7313 = vpop.f32.mrb[0].mxu0
        %7314 = vmatprep.mubr.bf16.mxu0 %v6411
        %7315 = vmatmul.mubr.bf16.gmra.mrb[0].mxu0 %v6555
        %v7316 = vpop.f32.mrb[0].mxu0
        %v7317 = vadd.f32 %v4111, %v7316
        %v7318 = vpop.f32.mrb[0].mxu0
        %v7319 = vpop.f32.mrb[0].mxu0
        %v7320 = vadd.f32 %v4114, %v7319
        %v7321 = vpop.f32.mrb[0].mxu0
        %7322 = vmatprep.mubr.bf16.mxu0 %v6412
        %7323 = vmatmul.mubr.bf16.gmra.mrb[0].mxu0 %v6556
        %v7324 = vpop.f32.mrb[0].mxu0
        %v7325 = vadd.f32 %v4119, %v7324
        %v7326 = vpop.f32.mrb[0].mxu0
        %v7327 = vpop.f32.mrb[0].mxu0
        %v7328 = vadd.f32 %v4122, %v7327
        %v7329 = vpop.f32.mrb[0].mxu0
        %7330 = vmatprep.mubr.bf16.mxu0 %v6413
        %7331 = vmatmul.mubr.bf16.gmra.mrb[0].mxu0 %v6557
        %v7332 = vpop.f32.mrb[0].mxu0
        %v7333 = vadd.f32 %v4127, %v7332
        %v7334 = vpop.f32.mrb[0].mxu0
        %v7335 = vpop.f32.mrb[0].mxu0
        %v7336 = vadd.f32 %v4130, %v7335
        %v7337 = vpop.f32.mrb[0].mxu0
        %7338 = vmatprep.mubr.bf16.mxu0 %v6414
        %7339 = vmatmul.mubr.bf16.gmra.mrb[0].mxu0 %v6558
        %v7340 = vpop.f32.mrb[0].mxu0
        %v7341 = vadd.f32 %v4135, %v7340
        %v7342 = vpop.f32.mrb[0].mxu0
        %v7343 = vpop.f32.mrb[0].mxu0
        %v7344 = vadd.f32 %v4138, %v7343
        %v7345 = vpop.f32.mrb[0].mxu0
        %7346 = vmatprep.mubr.bf16.mxu0 %v6415
        %7347 = vmatmul.mubr.bf16.gmra.mrb[0].mxu0 %v6559
        %v7348 = vpop.f32.mrb[0].mxu0
        %v7349 = vadd.f32 %v4143, %v7348
        %v7350 = vpop.f32.mrb[0].mxu0
        %v7351 = vpop.f32.mrb[0].mxu0
        %v7352 = vadd.f32 %v4146, %v7351
        %v7353 = vpop.f32.mrb[0].mxu0
        %7354 = vmatprep.mubr.bf16.mxu0 %v6416
        %7355 = vmatmul.mubr.bf16.gmra.mrb[0].mxu0 %v6560
        %v7356 = vpop.f32.mrb[0].mxu0
        %v7357 = vadd.f32 %v4151, %v7356
        %v7358 = vpop.f32.mrb[0].mxu0
        %v7359 = vpop.f32.mrb[0].mxu0
        %v7360 = vadd.f32 %v4154, %v7359
        %v7361 = vpop.f32.mrb[0].mxu0
        %7362 = vdwg.mxu0
        %7363 = vmatprep.subr.bf16.mxu0 0
        %7364 = vmatpush1.bf16.msra.mxu0 %v7074
        %7365 = vmatprep.subr.bf16.mxu0 0
        %7366 = vmatpush1.bf16.msra.mxu0 %v7075
        %7367 = vmatprep.subr.bf16.mxu0 0
        %7368 = vmatpush1.bf16.msra.mxu0 %v7076
        %7369 = vmatprep.subr.bf16.mxu0 0
        %7370 = vmatpush1.bf16.msra.mxu0 %v7077
        %7371 = vmatprep.subr.bf16.mxu0 0
        %7372 = vmatpush1.bf16.msra.mxu0 %v7078
        %7373 = vmatprep.subr.bf16.mxu0 0
        %7374 = vmatpush1.bf16.msra.mxu0 %v7079
        %7375 = vmatprep.subr.bf16.mxu0 0
        %7376 = vmatpush1.bf16.msra.mxu0 %v7080
        %7377 = vmatprep.subr.bf16.mxu0 0
        %7378 = vmatpush1.bf16.msra.mxu0 %v7081
        %7379 = vmatprep.subr.bf16.mxu0 0
        %7380 = vmatpush1.bf16.msra.mxu0 %v7082
        %7381 = vmatprep.subr.bf16.mxu0 0
        %7382 = vmatpush1.bf16.msra.mxu0 %v7083
        %7383 = vmatprep.subr.bf16.mxu0 0
        %7384 = vmatpush1.bf16.msra.mxu0 %v7084
        %7385 = vmatprep.subr.bf16.mxu0 0
        %7386 = vmatpush1.bf16.msra.mxu0 %v7085
        %7387 = vmatprep.subr.bf16.mxu0 0
        %7388 = vmatpush1.bf16.msra.mxu0 %v7086
        %7389 = vmatprep.subr.bf16.mxu0 0
        %7390 = vmatpush1.bf16.msra.mxu0 %v7087
        %7391 = vmatprep.subr.bf16.mxu0 0
        %7392 = vmatpush1.bf16.msra.mxu0 %v7088
        %7393 = vmatprep.subr.bf16.mxu0 0
        %7394 = vmatpush1.bf16.msra.mxu0 %v7089
        %7395 = vmatprep.mubr.bf16.mxu0 %v6546
        %7396 = vmatmul.mubr.bf16.gmra.mrb[0].mxu0 0
        %v7397 = vpop.f32.mrb[0].mxu0
        %v7398 = vadd.f32 %v7237, %v7397
        %v7399 = vpop.f32.mrb[0].mxu0
        %v7400 = vpop.f32.mrb[0].mxu0
        %v7401 = vadd.f32 %v7240, %v7400
        %v7402 = vpop.f32.mrb[0].mxu0
        %7403 = vmatprep.mubr.bf16.mxu0 %v6547
        %7404 = vmatmul.mubr.bf16.gmra.mrb[0].mxu0 %v6610
        %v7405 = vpop.f32.mrb[0].mxu0
        %v7406 = vadd.f32 %v7245, %v7405
        %v7407 = vpop.f32.mrb[0].mxu0
        %v7408 = vpop.f32.mrb[0].mxu0
        %v7409 = vadd.f32 %v7248, %v7408
        %v7410 = vpop.f32.mrb[0].mxu0
        %7411 = vmatprep.mubr.bf16.mxu0 %v6548
        %7412 = vmatmul.mubr.bf16.gmra.mrb[0].mxu0 %v6611
        %v7413 = vpop.f32.mrb[0].mxu0
        %v7414 = vadd.f32 %v7253, %v7413
        %v7415 = vpop.f32.mrb[0].mxu0
        %v7416 = vpop.f32.mrb[0].mxu0
        %v7417 = vadd.f32 %v7256, %v7416
        %v7418 = vpop.f32.mrb[0].mxu0
        %7419 = vmatprep.mubr.bf16.mxu0 %v6549
        %7420 = vmatmul.mubr.bf16.gmra.mrb[0].mxu0 %v6612
        %v7421 = vpop.f32.mrb[0].mxu0
        %v7422 = vadd.f32 %v7261, %v7421
        %v7423 = vpop.f32.mrb[0].mxu0
        %v7424 = vpop.f32.mrb[0].mxu0
        %v7425 = vadd.f32 %v7264, %v7424
        %v7426 = vpop.f32.mrb[0].mxu0
        %7427 = vmatprep.mubr.bf16.mxu0 %v6550
        %7428 = vmatmul.mubr.bf16.gmra.mrb[0].mxu0 %v6613
        %v7429 = vpop.f32.mrb[0].mxu0
        %v7430 = vadd.f32 %v7269, %v7429
        %v7431 = vpop.f32.mrb[0].mxu0
        %v7432 = vpop.f32.mrb[0].mxu0
        %v7433 = vadd.f32 %v7272, %v7432
        %v7434 = vpop.f32.mrb[0].mxu0
        %7435 = vmatprep.mubr.bf16.mxu0 %v6551
        %7436 = vmatmul.mubr.bf16.gmra.mrb[0].mxu0 %v6614
        %v7437 = vpop.f32.mrb[0].mxu0
        %v7438 = vadd.f32 %v7277, %v7437
        %v7439 = vpop.f32.mrb[0].mxu0
        %v7440 = vpop.f32.mrb[0].mxu0
        %v7441 = vadd.f32 %v7280, %v7440
        %v7442 = vpop.f32.mrb[0].mxu0
        %7443 = vmatprep.mubr.bf16.mxu0 %v6552
        %7444 = vmatmul.mubr.bf16.gmra.mrb[0].mxu0 %v6615
        %v7445 = vpop.f32.mrb[0].mxu0
        %v7446 = vadd.f32 %v7285, %v7445
        %v7447 = vpop.f32.mrb[0].mxu0
        %v7448 = vpop.f32.mrb[0].mxu0
        %v7449 = vadd.f32 %v7288, %v7448
        %v7450 = vpop.f32.mrb[0].mxu0
        %7451 = vmatprep.mubr.bf16.mxu0 %v6553
        %7452 = vmatmul.mubr.bf16.gmra.mrb[0].mxu0 %v6616
        %v7453 = vpop.f32.mrb[0].mxu0
        %v7454 = vadd.f32 %v7293, %v7453
        %v7455 = vpop.f32.mrb[0].mxu0
        %v7456 = vpop.f32.mrb[0].mxu0
        %v7457 = vadd.f32 %v7296, %v7456
        %v7458 = vpop.f32.mrb[0].mxu0
        %7459 = vmatprep.mubr.bf16.mxu0 %v6554
        %7460 = vmatmul.mubr.bf16.gmra.mrb[0].mxu0 %v6617
        %v7461 = vpop.f32.mrb[0].mxu0
        %v7462 = vadd.f32 %v7301, %v7461
        %v7463 = vpop.f32.mrb[0].mxu0
        %v7464 = vpop.f32.mrb[0].mxu0
        %v7465 = vadd.f32 %v7304, %v7464
        %v7466 = vpop.f32.mrb[0].mxu0
        %7467 = vmatprep.mubr.bf16.mxu0 %v6555
        %7468 = vmatmul.mubr.bf16.gmra.mrb[0].mxu0 %v6618
        %v7469 = vpop.f32.mrb[0].mxu0
        %v7470 = vadd.f32 %v7309, %v7469
        %v7471 = vpop.f32.mrb[0].mxu0
        %v7472 = vpop.f32.mrb[0].mxu0
        %v7473 = vadd.f32 %v7312, %v7472
        %v7474 = vpop.f32.mrb[0].mxu0
        %7475 = vmatprep.mubr.bf16.mxu0 %v6556
        %7476 = vmatmul.mubr.bf16.gmra.mrb[0].mxu0 %v6619
        %v7477 = vpop.f32.mrb[0].mxu0
        %v7478 = vadd.f32 %v7317, %v7477
        %v7479 = vpop.f32.mrb[0].mxu0
        %v7480 = vpop.f32.mrb[0].mxu0
        %v7481 = vadd.f32 %v7320, %v7480
        %v7482 = vpop.f32.mrb[0].mxu0
        %7483 = vmatprep.mubr.bf16.mxu0 %v6557
        %7484 = vmatmul.mubr.bf16.gmra.mrb[0].mxu0 %v6620
        %v7485 = vpop.f32.mrb[0].mxu0
        %v7486 = vadd.f32 %v7325, %v7485
        %v7487 = vpop.f32.mrb[0].mxu0
        %v7488 = vpop.f32.mrb[0].mxu0
        %v7489 = vadd.f32 %v7328, %v7488
        %v7490 = vpop.f32.mrb[0].mxu0
        %7491 = vmatprep.mubr.bf16.mxu0 %v6558
        %7492 = vmatmul.mubr.bf16.gmra.mrb[0].mxu0 %v6621
        %v7493 = vpop.f32.mrb[0].mxu0
        %v7494 = vadd.f32 %v7333, %v7493
        %v7495 = vpop.f32.mrb[0].mxu0
        %v7496 = vpop.f32.mrb[0].mxu0
        %v7497 = vadd.f32 %v7336, %v7496
        %v7498 = vpop.f32.mrb[0].mxu0
        %7499 = vmatprep.mubr.bf16.mxu0 %v6559
        %7500 = vmatmul.mubr.bf16.gmra.mrb[0].mxu0 %v6622
        %v7501 = vpop.f32.mrb[0].mxu0
        %v7502 = vadd.f32 %v7341, %v7501
        %v7503 = vpop.f32.mrb[0].mxu0
        %v7504 = vpop.f32.mrb[0].mxu0
        %v7505 = vadd.f32 %v7344, %v7504
        %v7506 = vpop.f32.mrb[0].mxu0
        %7507 = vmatprep.mubr.bf16.mxu0 %v6560
        %7508 = vmatmul.mubr.bf16.gmra.mrb[0].mxu0 %v6623
        %v7509 = vpop.f32.mrb[0].mxu0
        %v7510 = vadd.f32 %v7349, %v7509
        %v7511 = vpop.f32.mrb[0].mxu0
        %v7512 = vpop.f32.mrb[0].mxu0
        %v7513 = vadd.f32 %v7352, %v7512
        %v7514 = vpop.f32.mrb[0].mxu0
        %7515 = vmatprep.mubr.bf16.mxu0 %v6561
        %7516 = vmatmul.mubr.bf16.gmra.mrb[0].mxu0 %v6624
        %v7517 = vpop.f32.mrb[0].mxu0
        %v7518 = vadd.f32 %v7357, %v7517
        %v7519 = vpop.f32.mrb[0].mxu0
        %v7520 = vpop.f32.mrb[0].mxu0
        %v7521 = vadd.f32 %v7360, %v7520
        %v7522 = vpop.f32.mrb[0].mxu0
        %7523 = vdwg.mxu0
        %7524 = vmatprep.subr.bf16.mxu0 0
        %7525 = vmatpush1.bf16.msra.mxu0 %v7090
        %7526 = vmatprep.subr.bf16.mxu0 0
        %7527 = vmatpush1.bf16.msra.mxu0 %v7091
        %7528 = vmatprep.subr.bf16.mxu0 0
        %7529 = vmatpush1.bf16.msra.mxu0 %v7092
        %7530 = vmatprep.subr.bf16.mxu0 0
        %7531 = vmatpush1.bf16.msra.mxu0 %v7093
        %7532 = vmatprep.subr.bf16.mxu0 0
        %7533 = vmatpush1.bf16.msra.mxu0 %v7094
        %7534 = vmatprep.subr.bf16.mxu0 0
        %7535 = vmatpush1.bf16.msra.mxu0 %v7095
        %7536 = vmatprep.subr.bf16.mxu0 0
        %7537 = vmatpush1.bf16.msra.mxu0 %v7096
        %7538 = vmatprep.subr.bf16.mxu0 0
        %7539 = vmatpush1.bf16.msra.mxu0 %v7097
        %7540 = vmatprep.subr.bf16.mxu0 0
        %7541 = vmatpush1.bf16.msra.mxu0 %v7098
        %7542 = vmatprep.subr.bf16.mxu0 0
        %7543 = vmatpush1.bf16.msra.mxu0 %v7099
        %7544 = vmatprep.subr.bf16.mxu0 0
        %7545 = vmatpush1.bf16.msra.mxu0 %v7100
        %7546 = vmatprep.subr.bf16.mxu0 0
        %7547 = vmatpush1.bf16.msra.mxu0 %v7101
        %7548 = vmatprep.subr.bf16.mxu0 0
        %7549 = vmatpush1.bf16.msra.mxu0 %v7102
        %7550 = vmatprep.subr.bf16.mxu0 0
        %7551 = vmatpush1.bf16.msra.mxu0 %v7103
        %7552 = vmatprep.subr.bf16.mxu0 0
        %7553 = vmatpush1.bf16.msra.mxu0 %v7104
        %7554 = vmatprep.subr.bf16.mxu0 0
        %7555 = vmatpush1.bf16.msra.mxu0 %v7105
        %7556 = vmatprep.mubr.bf16.mxu0 %v6610
        %7557 = vmatmul.mubr.bf16.gmra.mrb[0].mxu0 %v6402
        %v7558 = vpop.f32.mrb[0].mxu0
        %v7559 = vadd.f32 %v7398, %v7558
        %v7560 = vpop.f32.mrb[0].mxu0
        %v7561 = vpop.f32.mrb[0].mxu0
        %v7562 = vadd.f32 %v7401, %v7561
        %v7563 = vpop.f32.mrb[0].mxu0
        %7564 = vmatprep.mubr.bf16.mxu0 %v6611
        %7565 = vmatmul.mubr.bf16.gmra.mrb[0].mxu0 %v6403
        %v7566 = vpop.f32.mrb[0].mxu0
        %v7567 = vadd.f32 %v7406, %v7566
        %v7568 = vpop.f32.mrb[0].mxu0
        %v7569 = vpop.f32.mrb[0].mxu0
        %v7570 = vadd.f32 %v7409, %v7569
        %v7571 = vpop.f32.mrb[0].mxu0
        %7572 = vmatprep.mubr.bf16.mxu0 %v6612
        %7573 = vmatmul.mubr.bf16.gmra.mrb[0].mxu0 %v6404
        %v7574 = vpop.f32.mrb[0].mxu0
        %v7575 = vadd.f32 %v7414, %v7574
        %v7576 = vpop.f32.mrb[0].mxu0
        %v7577 = vpop.f32.mrb[0].mxu0
        %v7578 = vadd.f32 %v7417, %v7577
        %v7579 = vpop.f32.mrb[0].mxu0
        %7580 = vmatprep.mubr.bf16.mxu0 %v6613
        %7581 = vmatmul.mubr.bf16.gmra.mrb[0].mxu0 %v6405
        %v7582 = vpop.f32.mrb[0].mxu0
        %v7583 = vadd.f32 %v7422, %v7582
        %v7584 = vpop.f32.mrb[0].mxu0
        %v7585 = vpop.f32.mrb[0].mxu0
        %v7586 = vadd.f32 %v7425, %v7585
        %v7587 = vpop.f32.mrb[0].mxu0
        %7588 = vmatprep.mubr.bf16.mxu0 %v6614
        %7589 = vmatmul.mubr.bf16.gmra.mrb[0].mxu0 %v6406
        %v7590 = vpop.f32.mrb[0].mxu0
        %v7591 = vadd.f32 %v7430, %v7590
        %v7592 = vpop.f32.mrb[0].mxu0
        %v7593 = vpop.f32.mrb[0].mxu0
        %v7594 = vadd.f32 %v7433, %v7593
        %v7595 = vpop.f32.mrb[0].mxu0
        %7596 = vmatprep.mubr.bf16.mxu0 %v6615
        %7597 = vmatmul.mubr.bf16.gmra.mrb[0].mxu0 %v6407
        %v7598 = vpop.f32.mrb[0].mxu0
        %v7599 = vadd.f32 %v7438, %v7598
        %v7600 = vpop.f32.mrb[0].mxu0
        %v7601 = vpop.f32.mrb[0].mxu0
        %v7602 = vadd.f32 %v7441, %v7601
        %v7603 = vpop.f32.mrb[0].mxu0
        %7604 = vmatprep.mubr.bf16.mxu0 %v6616
        %7605 = vmatmul.mubr.bf16.gmra.mrb[0].mxu0 %v6408
        %v7606 = vpop.f32.mrb[0].mxu0
        %v7607 = vadd.f32 %v7446, %v7606
        %v7608 = vpop.f32.mrb[0].mxu0
        %v7609 = vpop.f32.mrb[0].mxu0
        %v7610 = vadd.f32 %v7449, %v7609
        %v7611 = vpop.f32.mrb[0].mxu0
        %7612 = vmatprep.mubr.bf16.mxu0 %v6617
        %7613 = vmatmul.mubr.bf16.gmra.mrb[0].mxu0 %v6409
        %v7614 = vpop.f32.mrb[0].mxu0
        %v7615 = vadd.f32 %v7454, %v7614
        %v7616 = vpop.f32.mrb[0].mxu0
        %v7617 = vpop.f32.mrb[0].mxu0
        %v7618 = vadd.f32 %v7457, %v7617
        %v7619 = vpop.f32.mrb[0].mxu0
        %7620 = vmatprep.mubr.bf16.mxu0 %v6618
        %7621 = vmatmul.mubr.bf16.gmra.mrb[0].mxu0 %v6410
        %v7622 = vpop.f32.mrb[0].mxu0
        %v7623 = vadd.f32 %v7462, %v7622
        %v7624 = vpop.f32.mrb[0].mxu0
        %v7625 = vpop.f32.mrb[0].mxu0
        %v7626 = vadd.f32 %v7465, %v7625
        %v7627 = vpop.f32.mrb[0].mxu0
        %7628 = vmatprep.mubr.bf16.mxu0 %v6619
        %7629 = vmatmul.mubr.bf16.gmra.mrb[0].mxu0 %v6411
        %v7630 = vpop.f32.mrb[0].mxu0
        %v7631 = vadd.f32 %v7470, %v7630
        %v7632 = vpop.f32.mrb[0].mxu0
        %v7633 = vpop.f32.mrb[0].mxu0
        %v7634 = vadd.f32 %v7473, %v7633
        %v7635 = vpop.f32.mrb[0].mxu0
        %7636 = vmatprep.mubr.bf16.mxu0 %v6620
        %7637 = vmatmul.mubr.bf16.gmra.mrb[0].mxu0 %v6412
        %v7638 = vpop.f32.mrb[0].mxu0
        %v7639 = vadd.f32 %v7478, %v7638
        %v7640 = vpop.f32.mrb[0].mxu0
        %v7641 = vpop.f32.mrb[0].mxu0
        %v7642 = vadd.f32 %v7481, %v7641
        %v7643 = vpop.f32.mrb[0].mxu0
        %7644 = vmatprep.mubr.bf16.mxu0 %v6621
        %7645 = vmatmul.mubr.bf16.gmra.mrb[0].mxu0 %v6413
        %v7646 = vpop.f32.mrb[0].mxu0
        %v7647 = vadd.f32 %v7486, %v7646
        %v7648 = vpop.f32.mrb[0].mxu0
        %v7649 = vpop.f32.mrb[0].mxu0
        %v7650 = vadd.f32 %v7489, %v7649
        %v7651 = vpop.f32.mrb[0].mxu0
        %7652 = vmatprep.mubr.bf16.mxu0 %v6622
        %7653 = vmatmul.mubr.bf16.gmra.mrb[0].mxu0 %v6414
        %v7654 = vpop.f32.mrb[0].mxu0
        %v7655 = vadd.f32 %v7494, %v7654
        %v7656 = vpop.f32.mrb[0].mxu0
        %v7657 = vpop.f32.mrb[0].mxu0
        %v7658 = vadd.f32 %v7497, %v7657
        %v7659 = vpop.f32.mrb[0].mxu0
        %7660 = vmatprep.mubr.bf16.mxu0 %v6623
        %7661 = vmatmul.mubr.bf16.gmra.mrb[0].mxu0 %v6415
        %v7662 = vpop.f32.mrb[0].mxu0
        %v7663 = vadd.f32 %v7502, %v7662
        %v7664 = vpop.f32.mrb[0].mxu0
        %v7665 = vpop.f32.mrb[0].mxu0
        %v7666 = vadd.f32 %v7505, %v7665
        %v7667 = vpop.f32.mrb[0].mxu0
        %7668 = vmatprep.mubr.bf16.mxu0 %v6624
        %7669 = vmatmul.mubr.bf16.gmra.mrb[0].mxu0 %v6416
        %v7670 = vpop.f32.mrb[0].mxu0
        %v7671 = vadd.f32 %v7510, %v7670
        %v7672 = vpop.f32.mrb[0].mxu0
        %v7673 = vpop.f32.mrb[0].mxu0
        %v7674 = vadd.f32 %v7513, %v7673
        %v7675 = vpop.f32.mrb[0].mxu0
        %7676 = vmatprep.mubr.bf16.mxu0 %v6625
        %7677 = vmatmul.mubr.bf16.gmra.mrb[0].mxu0 %v6417
        %v7678 = vpop.f32.mrb[0].mxu0
        %v7679 = vadd.f32 %v7518, %v7678
        %v7680 = vpop.f32.mrb[0].mxu0
        %v7681 = vpop.f32.mrb[0].mxu0
        %v7682 = vadd.f32 %v7521, %v7681
        %v7683 = vpop.f32.mrb[0].mxu0
        %7684 = vdwg.mxu0
        %7685 = vmatprep.subr.bf16.mxu0 0
        %7686 = vmatpush1.bf16.msra.mxu0 %v7106
        %7687 = vmatprep.subr.bf16.mxu0 0
        %7688 = vmatpush1.bf16.msra.mxu0 %v7107
        %7689 = vmatprep.subr.bf16.mxu0 0
        %7690 = vmatpush1.bf16.msra.mxu0 %v7108
        %7691 = vmatprep.subr.bf16.mxu0 0
        %7692 = vmatpush1.bf16.msra.mxu0 %v7109
        %7693 = vmatprep.subr.bf16.mxu0 0
        %7694 = vmatpush1.bf16.msra.mxu0 %v7110
        %7695 = vmatprep.subr.bf16.mxu0 0
        %7696 = vmatpush1.bf16.msra.mxu0 %v7111
        %7697 = vmatprep.subr.bf16.mxu0 0
        %7698 = vmatpush1.bf16.msra.mxu0 %v7112
        %7699 = vmatprep.subr.bf16.mxu0 0
        %7700 = vmatpush1.bf16.msra.mxu0 %v7113
        %7701 = vmatprep.subr.bf16.mxu0 0
        %7702 = vmatpush1.bf16.msra.mxu0 %v7114
        %7703 = vmatprep.subr.bf16.mxu0 0
        %7704 = vmatpush1.bf16.msra.mxu0 %v7115
        %7705 = vmatprep.subr.bf16.mxu0 0
        %7706 = vmatpush1.bf16.msra.mxu0 %v7116
        %7707 = vmatprep.subr.bf16.mxu0 0
        %7708 = vmatpush1.bf16.msra.mxu0 %v7117
        %7709 = vmatprep.subr.bf16.mxu0 0
        %7710 = vmatpush1.bf16.msra.mxu0 %v7118
        %7711 = vmatprep.subr.bf16.mxu0 0
        %7712 = vmatpush1.bf16.msra.mxu0 %v7119
        %7713 = vmatprep.subr.bf16.mxu0 0
        %7714 = vmatpush1.bf16.msra.mxu0 %v7120
        %7715 = vmatprep.subr.bf16.mxu0 0
        %7716 = vmatpush1.bf16.msra.mxu0 %v7121
        %7717 = vmatprep.mubr.bf16.mxu0 %v6403
        %7718 = vmatmul.mubr.bf16.gmra.mrb[0].mxu0 %v6547
        %v7719 = vpop.f32.mrb[0].mxu0
        %v7720 = vadd.f32 %v7559, %v7719
        %v7721 = vpop.f32.mrb[0].mxu0
        %v7722 = vpop.f32.mrb[0].mxu0
        %v7723 = vadd.f32 %v7562, %v7722
        %v7724 = vpop.f32.mrb[0].mxu0
        %7725 = vmatprep.mubr.bf16.mxu0 %v6404
        %7726 = vmatmul.mubr.bf16.gmra.mrb[0].mxu0 %v6548
        %v7727 = vpop.f32.mrb[0].mxu0
        %v7728 = vadd.f32 %v7567, %v7727
        %v7729 = vpop.f32.mrb[0].mxu0
        %v7730 = vpop.f32.mrb[0].mxu0
        %v7731 = vadd.f32 %v7570, %v7730
        %v7732 = vpop.f32.mrb[0].mxu0
        %7733 = vmatprep.mubr.bf16.mxu0 %v6405
        %7734 = vmatmul.mubr.bf16.gmra.mrb[0].mxu0 %v6549
        %v7735 = vpop.f32.mrb[0].mxu0
        %v7736 = vadd.f32 %v7575, %v7735
        %v7737 = vpop.f32.mrb[0].mxu0
        %v7738 = vpop.f32.mrb[0].mxu0
        %v7739 = vadd.f32 %v7578, %v7738
        %v7740 = vpop.f32.mrb[0].mxu0
        %7741 = vmatprep.mubr.bf16.mxu0 %v6406
        %7742 = vmatmul.mubr.bf16.gmra.mrb[0].mxu0 %v6550
        %v7743 = vpop.f32.mrb[0].mxu0
        %v7744 = vadd.f32 %v7583, %v7743
        %v7745 = vpop.f32.mrb[0].mxu0
        %v7746 = vpop.f32.mrb[0].mxu0
        %v7747 = vadd.f32 %v7586, %v7746
        %v7748 = vpop.f32.mrb[0].mxu0
        %7749 = vmatprep.mubr.bf16.mxu0 %v6407
        %7750 = vmatmul.mubr.bf16.gmra.mrb[0].mxu0 %v6551
        %v7751 = vpop.f32.mrb[0].mxu0
        %v7752 = vadd.f32 %v7591, %v7751
        %v7753 = vpop.f32.mrb[0].mxu0
        %v7754 = vpop.f32.mrb[0].mxu0
        %v7755 = vadd.f32 %v7594, %v7754
        %v7756 = vpop.f32.mrb[0].mxu0
        %7757 = vmatprep.mubr.bf16.mxu0 %v6408
        %7758 = vmatmul.mubr.bf16.gmra.mrb[0].mxu0 %v6552
        %v7759 = vpop.f32.mrb[0].mxu0
        %v7760 = vadd.f32 %v7599, %v7759
        %v7761 = vpop.f32.mrb[0].mxu0
        %v7762 = vpop.f32.mrb[0].mxu0
        %v7763 = vadd.f32 %v7602, %v7762
        %v7764 = vpop.f32.mrb[0].mxu0
        %7765 = vmatprep.mubr.bf16.mxu0 %v6409
        %7766 = vmatmul.mubr.bf16.gmra.mrb[0].mxu0 %v6553
        %v7767 = vpop.f32.mrb[0].mxu0
        %v7768 = vadd.f32 %v7607, %v7767
        %v7769 = vpop.f32.mrb[0].mxu0
        %v7770 = vpop.f32.mrb[0].mxu0
        %v7771 = vadd.f32 %v7610, %v7770
        %v7772 = vpop.f32.mrb[0].mxu0
        %7773 = vmatprep.mubr.bf16.mxu0 %v6410
        %7774 = vmatmul.mubr.bf16.gmra.mrb[0].mxu0 %v6554
        %v7775 = vpop.f32.mrb[0].mxu0
        %v7776 = vadd.f32 %v7615, %v7775
        %v7777 = vpop.f32.mrb[0].mxu0
        %v7778 = vpop.f32.mrb[0].mxu0
        %v7779 = vadd.f32 %v7618, %v7778
        %v7780 = vpop.f32.mrb[0].mxu0
        %7781 = vmatprep.mubr.bf16.mxu0 %v6411
        %7782 = vmatmul.mubr.bf16.gmra.mrb[0].mxu0 %v6555
        %v7783 = vpop.f32.mrb[0].mxu0
        %v7784 = vadd.f32 %v7623, %v7783
        %v7785 = vpop.f32.mrb[0].mxu0
        %v7786 = vpop.f32.mrb[0].mxu0
        %v7787 = vadd.f32 %v7626, %v7786
        %v7788 = vpop.f32.mrb[0].mxu0
        %7789 = vmatprep.mubr.bf16.mxu0 %v6412
        %7790 = vmatmul.mubr.bf16.gmra.mrb[0].mxu0 %v6556
        %v7791 = vpop.f32.mrb[0].mxu0
        %v7792 = vadd.f32 %v7631, %v7791
        %v7793 = vpop.f32.mrb[0].mxu0
        %v7794 = vpop.f32.mrb[0].mxu0
        %v7795 = vadd.f32 %v7634, %v7794
        %v7796 = vpop.f32.mrb[0].mxu0
        %7797 = vmatprep.mubr.bf16.mxu0 %v6413
        %7798 = vmatmul.mubr.bf16.gmra.mrb[0].mxu0 %v6557
        %v7799 = vpop.f32.mrb[0].mxu0
        %v7800 = vadd.f32 %v7639, %v7799
        %v7801 = vpop.f32.mrb[0].mxu0
        %v7802 = vpop.f32.mrb[0].mxu0
        %v7803 = vadd.f32 %v7642, %v7802
        %v7804 = vpop.f32.mrb[0].mxu0
        %7805 = vmatprep.mubr.bf16.mxu0 %v6414
        %7806 = vmatmul.mubr.bf16.gmra.mrb[0].mxu0 %v6558
        %v7807 = vpop.f32.mrb[0].mxu0
        %v7808 = vadd.f32 %v7647, %v7807
        %v7809 = vpop.f32.mrb[0].mxu0
        %v7810 = vpop.f32.mrb[0].mxu0
        %v7811 = vadd.f32 %v7650, %v7810
        %v7812 = vpop.f32.mrb[0].mxu0
        %7813 = vmatprep.mubr.bf16.mxu0 %v6415
        %7814 = vmatmul.mubr.bf16.gmra.mrb[0].mxu0 %v6559
        %v7815 = vpop.f32.mrb[0].mxu0
        %v7816 = vadd.f32 %v7655, %v7815
        %v7817 = vpop.f32.mrb[0].mxu0
        %v7818 = vpop.f32.mrb[0].mxu0
        %v7819 = vadd.f32 %v7658, %v7818
        %v7820 = vpop.f32.mrb[0].mxu0
        %7821 = vmatprep.mubr.bf16.mxu0 %v6416
        %7822 = vmatmul.mubr.bf16.gmra.mrb[0].mxu0 %v6560
        %v7823 = vpop.f32.mrb[0].mxu0
        %v7824 = vadd.f32 %v7663, %v7823
        %v7825 = vpop.f32.mrb[0].mxu0
        %v7826 = vpop.f32.mrb[0].mxu0
        %v7827 = vadd.f32 %v7666, %v7826
        %v7828 = vpop.f32.mrb[0].mxu0
        %7829 = vmatprep.mubr.bf16.mxu0 %v6417
        %7830 = vmatmul.mubr.bf16.gmra.mrb[0].mxu0 %v6561
        %v7831 = vpop.f32.mrb[0].mxu0
        %v7832 = vadd.f32 %v7671, %v7831
        %v7833 = vpop.f32.mrb[0].mxu0
        %v7834 = vpop.f32.mrb[0].mxu0
        %v7835 = vadd.f32 %v7674, %v7834
        %v7836 = vpop.f32.mrb[0].mxu0
        %7837 = vmatprep.mubr.bf16.mxu0 0
        %7838 = vmatmul.mubr.bf16.gmra.mrb[0].mxu0 0
        %v7839 = vpop.f32.mrb[0].mxu0
        %v7840 = vadd.f32 %v7679, %v7839
        %v7841 = vpop.f32.mrb[0].mxu0
        %v7842 = vpop.f32.mrb[0].mxu0
        %v7843 = vadd.f32 %v7682, %v7842
        %v7844 = vpop.f32.mrb[0].mxu0
        %7845 = vdwg.mxu0
        %7846 = vmatprep.subr.bf16.mxu0 0
        %7847 = vmatpush1.bf16.msra.mxu0 %v7122
        %7848 = vmatprep.subr.bf16.mxu0 0
        %7849 = vmatpush1.bf16.msra.mxu0 %v7123
        %7850 = vmatprep.subr.bf16.mxu0 0
        %7851 = vmatpush1.bf16.msra.mxu0 %v7124
        %7852 = vmatprep.subr.bf16.mxu0 0
        %7853 = vmatpush1.bf16.msra.mxu0 %v7125
        %7854 = vmatprep.subr.bf16.mxu0 0
        %7855 = vmatpush1.bf16.msra.mxu0 %v7126
        %7856 = vmatprep.subr.bf16.mxu0 0
        %7857 = vmatpush1.bf16.msra.mxu0 %v7127
        %7858 = vmatprep.subr.bf16.mxu0 0
        %7859 = vmatpush1.bf16.msra.mxu0 %v7128
        %7860 = vmatprep.subr.bf16.mxu0 0
        %7861 = vmatpush1.bf16.msra.mxu0 %v7129
        %7862 = vmatprep.subr.bf16.mxu0 0
        %7863 = vmatpush1.bf16.msra.mxu0 0
        %7864 = vmatprep.subr.bf16.mxu0 0
        %7865 = vmatpush1.bf16.msra.mxu0 0
        %7866 = vmatprep.subr.bf16.mxu0 0
        %7867 = vmatpush1.bf16.msra.mxu0 0
        %7868 = vmatprep.subr.bf16.mxu0 0
        %7869 = vmatpush1.bf16.msra.mxu0 0
        %7870 = vmatprep.subr.bf16.mxu0 0
        %7871 = vmatpush1.bf16.msra.mxu0 0
        %7872 = vmatprep.subr.bf16.mxu0 0
        %7873 = vmatpush1.bf16.msra.mxu0 0
        %7874 = vmatprep.subr.bf16.mxu0 0
        %7875 = vmatpush1.bf16.msra.mxu0 0
        %7876 = vmatprep.subr.bf16.mxu0 0
        %7877 = vmatpush1.bf16.msra.mxu0 0
        %7878 = vmatprep.mubr.bf16.mxu0 0
        %7879 = vmatmul.mubr.bf16.gmra.mrb[0].mxu0 %v6611
        %v7880 = vpop.f32.mrb[0].mxu0
        %v7881 = vadd.f32 %v7720, %v7880
        %v7882 = vpop.f32.mrb[0].mxu0
        %v7883 = vpop.f32.mrb[0].mxu0
        %v7884 = vadd.f32 %v7723, %v7883
        %v7885 = vpop.f32.mrb[0].mxu0
        %7886 = vmatprep.mubr.bf16.mxu0 0
        %7887 = vmatmul.mubr.bf16.gmra.mrb[0].mxu0 %v6612
        %v7888 = vpop.f32.mrb[0].mxu0
        %v7889 = vadd.f32 %v7728, %v7888
        %v7890 = vpop.f32.mrb[0].mxu0
        %v7891 = vpop.f32.mrb[0].mxu0
        %v7892 = vadd.f32 %v7731, %v7891
        %v7893 = vpop.f32.mrb[0].mxu0
        %7894 = vmatprep.mubr.bf16.mxu0 0
        %7895 = vmatmul.mubr.bf16.gmra.mrb[0].mxu0 %v6613
        %v7896 = vpop.f32.mrb[0].mxu0
        %v7897 = vadd.f32 %v7736, %v7896
        %v7898 = vpop.f32.mrb[0].mxu0
        %v7899 = vpop.f32.mrb[0].mxu0
        %v7900 = vadd.f32 %v7739, %v7899
        %v7901 = vpop.f32.mrb[0].mxu0
        %7902 = vmatprep.mubr.bf16.mxu0 0
        %7903 = vmatmul.mubr.bf16.gmra.mrb[0].mxu0 %v6614
        %v7904 = vpop.f32.mrb[0].mxu0
        %v7905 = vadd.f32 %v7744, %v7904
        %v7906 = vpop.f32.mrb[0].mxu0
        %v7907 = vpop.f32.mrb[0].mxu0
        %v7908 = vadd.f32 %v7747, %v7907
        %v7909 = vpop.f32.mrb[0].mxu0
        %7910 = vmatprep.mubr.bf16.mxu0 0
        %7911 = vmatmul.mubr.bf16.gmra.mrb[0].mxu0 %v6615
        %v7912 = vpop.f32.mrb[0].mxu0
        %v7913 = vadd.f32 %v7752, %v7912
        %v7914 = vpop.f32.mrb[0].mxu0
        %v7915 = vpop.f32.mrb[0].mxu0
        %v7916 = vadd.f32 %v7755, %v7915
        %v7917 = vpop.f32.mrb[0].mxu0
        %7918 = vmatprep.mubr.bf16.mxu0 0
        %7919 = vmatmul.mubr.bf16.gmra.mrb[0].mxu0 %v6616
        %v7920 = vpop.f32.mrb[0].mxu0
        %v7921 = vadd.f32 %v7760, %v7920
        %v7922 = vpop.f32.mrb[0].mxu0
        %v7923 = vpop.f32.mrb[0].mxu0
        %v7924 = vadd.f32 %v7763, %v7923
        %v7925 = vpop.f32.mrb[0].mxu0
        %7926 = vmatprep.mubr.bf16.mxu0 0
        %7927 = vmatmul.mubr.bf16.gmra.mrb[0].mxu0 %v6617
        %v7928 = vpop.f32.mrb[0].mxu0
        %v7929 = vadd.f32 %v7768, %v7928
        %v7930 = vpop.f32.mrb[0].mxu0
        %v7931 = vpop.f32.mrb[0].mxu0
        %v7932 = vadd.f32 %v7771, %v7931
        %v7933 = vpop.f32.mrb[0].mxu0
        %7934 = vmatprep.mubr.bf16.mxu0 0
        %7935 = vmatmul.mubr.bf16.gmra.mrb[0].mxu0 %v6618
        %v7936 = vpop.f32.mrb[0].mxu0
        %v7937 = vadd.f32 %v7776, %v7936
        %v7938 = vpop.f32.mrb[0].mxu0
        %v7939 = vpop.f32.mrb[0].mxu0
        %v7940 = vadd.f32 %v7779, %v7939
        %v7941 = vpop.f32.mrb[0].mxu0
        %7942 = vmatprep.mubr.bf16.mxu0 0
        %7943 = vmatmul.mubr.bf16.gmra.mrb[0].mxu0 %v6619
        %v7944 = vpop.f32.mrb[0].mxu0
        %v7945 = vadd.f32 %v7784, %v7944
        %v7946 = vpop.f32.mrb[0].mxu0
        %v7947 = vpop.f32.mrb[0].mxu0
        %v7948 = vadd.f32 %v7787, %v7947
        %v7949 = vpop.f32.mrb[0].mxu0
        %7950 = vmatprep.mubr.bf16.mxu0 0
        %7951 = vmatmul.mubr.bf16.gmra.mrb[0].mxu0 %v6620
        %v7952 = vpop.f32.mrb[0].mxu0
        %v7953 = vadd.f32 %v7792, %v7952
        %v7954 = vpop.f32.mrb[0].mxu0
        %v7955 = vpop.f32.mrb[0].mxu0
        %v7956 = vadd.f32 %v7795, %v7955
        %v7957 = vpop.f32.mrb[0].mxu0
        %7958 = vmatprep.mubr.bf16.mxu0 0
        %7959 = vmatmul.mubr.bf16.gmra.mrb[0].mxu0 %v6621
        %v7960 = vpop.f32.mrb[0].mxu0
        %v7961 = vadd.f32 %v7800, %v7960
        %v7962 = vpop.f32.mrb[0].mxu0
        %v7963 = vpop.f32.mrb[0].mxu0
        %v7964 = vadd.f32 %v7803, %v7963
        %v7965 = vpop.f32.mrb[0].mxu0
        %7966 = vmatprep.mubr.bf16.mxu0 0
        %7967 = vmatmul.mubr.bf16.gmra.mrb[0].mxu0 %v6622
        %v7968 = vpop.f32.mrb[0].mxu0
        %v7969 = vadd.f32 %v7808, %v7968
        %v7970 = vpop.f32.mrb[0].mxu0
        %v7971 = vpop.f32.mrb[0].mxu0
        %v7972 = vadd.f32 %v7811, %v7971
        %v7973 = vpop.f32.mrb[0].mxu0
        %7974 = vmatprep.mubr.bf16.mxu0 0
        %7975 = vmatmul.mubr.bf16.gmra.mrb[0].mxu0 %v6623
        %v7976 = vpop.f32.mrb[0].mxu0
        %v7977 = vadd.f32 %v7816, %v7976
        %v7978 = vpop.f32.mrb[0].mxu0
        %v7979 = vpop.f32.mrb[0].mxu0
        %v7980 = vadd.f32 %v7819, %v7979
        %v7981 = vpop.f32.mrb[0].mxu0
        %7982 = vmatprep.mubr.bf16.mxu0 0
        %7983 = vmatmul.mubr.bf16.gmra.mrb[0].mxu0 %v6624
        %v7984 = vpop.f32.mrb[0].mxu0
        %v7985 = vadd.f32 %v7824, %v7984
        %v7986 = vpop.f32.mrb[0].mxu0
        %v7987 = vpop.f32.mrb[0].mxu0
        %v7988 = vadd.f32 %v7827, %v7987
        %v7989 = vpop.f32.mrb[0].mxu0
        %7990 = vmatprep.mubr.bf16.mxu0 0
        %7991 = vmatmul.mubr.bf16.gmra.mrb[0].mxu0 %v6625
        %v7992 = vpop.f32.mrb[0].mxu0
        %v7993 = vadd.f32 %v7832, %v7992
        %v7994 = vpop.f32.mrb[0].mxu0
        %v7995 = vpop.f32.mrb[0].mxu0
        %v7996 = vadd.f32 %v7835, %v7995
        %v7997 = vpop.f32.mrb[0].mxu0
        %7998 = vmatprep.mubr.bf16.mxu0 0
        %7999 = vmatmul.mubr.bf16.gmra.mrb[0].mxu0 0
        %v8000 = vpop.f32.mrb[0].mxu0
        %v8001 = vadd.f32 %v7840, %v8000
        %v8002 = vpop.f32.mrb[0].mxu0
        %v8003 = vpop.f32.mrb[0].mxu0
        %v8004 = vadd.f32 %v7843, %v8003
        %v8005 = vpop.f32.mrb[0].mxu0
        %8006 = vdwg.mxu0
        %v8007 = vld [vmem:[%s410] sm:$0xff]
        %v8008 = vld [vmem:[%s410 + $0x8] sm:$0xff]
        %v8009 = vld [vmem:[%s410 + $0x10] sm:$0xff]
        %v8010 = vld [vmem:[%s410 + $0x18] sm:$0xff]
        %v8011 = vld [vmem:[%s410 + $0x20] sm:$0xff]
        %v8012 = vld [vmem:[%s410 + $0x28] sm:$0xff]
        %v8013 = vld [vmem:[%s410 + $0x30] sm:$0xff]
        %v8014 = vld [vmem:[%s410 + $0x38] sm:$0xff]
        %v8015 = vld [vmem:[%s410 + $0x40] sm:$0xff]
        %v8016 = vld [vmem:[%s410 + $0x48] sm:$0xff]
        %v8017 = vld [vmem:[%s410 + $0x50] sm:$0xff]
        %v8018 = vld [vmem:[%s410 + $0x58] sm:$0xff]
        %v8019 = vld [vmem:[%s410 + $0x60] sm:$0xff]
        %v8020 = vld [vmem:[%s410 + $0x68] sm:$0xff]
        %v8021 = vld [vmem:[%s410 + $0x70] sm:$0xff]
        %v8022 = vld [vmem:[%s410 + $0x78] sm:$0xff]
        %v8023 = vld [vmem:[%s410 + $0x80] sm:$0xff]
        %v8024 = vld [vmem:[%s410 + $0x88] sm:$0xff]
        %v8025 = vld [vmem:[%s410 + $0x90] sm:$0xff]
        %v8026 = vld [vmem:[%s410 + $0x98] sm:$0xff]
        %v8027 = vld [vmem:[%s410 + $0xa0] sm:$0xff]
        %v8028 = vld [vmem:[%s410 + $0xa8] sm:$0xff]
        %v8029 = vld [vmem:[%s410 + $0xb0] sm:$0xff]
        %v8030 = vld [vmem:[%s410 + $0xb8] sm:$0xff]
        %v8031 = vld [vmem:[%s410 + $0xc0] sm:$0xff]
        %v8032 = vld [vmem:[%s410 + $0xc8] sm:$0xff]
        %v8033 = vld [vmem:[%s410 + $0xd0] sm:$0xff]
        %v8034 = vld [vmem:[%s410 + $0xd8] sm:$0xff]
        %v8035 = vld [vmem:[%s410 + $0xe0] sm:$0xff]
        %v8036 = vld [vmem:[%s410 + $0xe8] sm:$0xff]
        %v8037 = vld [vmem:[%s410 + $0xf0] sm:$0xff]
        %v8038 = vld [vmem:[%s410 + $0xf8] sm:$0xff]
        %v8039 = vadd.f32 %v7881, %v8007
        %v8040 = vadd.f32 %v7884, %v8008
        %v8041 = vadd.f32 %v7889, %v8009
        %v8042 = vadd.f32 %v7892, %v8010
        %v8043 = vadd.f32 %v7897, %v8011
        %v8044 = vadd.f32 %v7900, %v8012
        %v8045 = vadd.f32 %v7905, %v8013
        %v8046 = vadd.f32 %v7908, %v8014
        %v8047 = vadd.f32 %v7913, %v8015
        %v8048 = vadd.f32 %v7916, %v8016
        %v8049 = vadd.f32 %v7921, %v8017
        %v8050 = vadd.f32 %v7924, %v8018
        %v8051 = vadd.f32 %v7929, %v8019
        %v8052 = vadd.f32 %v7932, %v8020
        %v8053 = vadd.f32 %v7937, %v8021
        %v8054 = vadd.f32 %v7940, %v8022
        %v8055 = vadd.f32 %v7945, %v8023
        %v8056 = vadd.f32 %v7948, %v8024
        %v8057 = vadd.f32 %v7953, %v8025
        %v8058 = vadd.f32 %v7956, %v8026
        %v8059 = vadd.f32 %v7961, %v8027
        %v8060 = vadd.f32 %v7964, %v8028
        %v8061 = vadd.f32 %v7969, %v8029
        %v8062 = vadd.f32 %v7972, %v8030
        %v8063 = vadd.f32 %v7977, %v8031
        %v8064 = vadd.f32 %v7980, %v8032
        %v8065 = vadd.f32 %v7985, %v8033
        %v8066 = vadd.f32 %v7988, %v8034
        %v8067 = vadd.f32 %v7993, %v8035
        %v8068 = vadd.f32 %v7996, %v8036
        %v8069 = vadd.f32 %v8001, %v8037
        %v8070 = vadd.f32 %v8004, %v8038
        %v8071 = vtanh.pop %v8039
        %v8072 = vtanh.pop %v8040
        %v8073 = vtanh.pop %v8041
        %v8074 = vtanh.pop %v8042
        %v8075 = vtanh.pop %v8043
        %v8076 = vtanh.pop %v8044
        %v8077 = vtanh.pop %v8045
        %v8078 = vtanh.pop %v8046
        %v8079 = vtanh.pop %v8047
        %v8080 = vtanh.pop %v8048
        %v8081 = vtanh.pop %v8049
        %v8082 = vtanh.pop %v8050
        %v8083 = vtanh.pop %v8051
        %v8084 = vtanh.pop %v8052
        %v8085 = vtanh.pop %v8053
        %v8086 = vtanh.pop %v8054
        %v8087 = vtanh.pop %v8055
        %v8088 = vtanh.pop %v8056
        %v8089 = vtanh.pop %v8057
        %v8090 = vtanh.pop %v8058
        %v8091 = vtanh.pop %v8059
        %v8092 = vtanh.pop %v8060
        %v8093 = vtanh.pop %v8061
        %v8094 = vtanh.pop %v8062
        %v8095 = vtanh.pop %v8063
        %v8096 = vtanh.pop %v8064
        %v8097 = vtanh.pop %v8065
        %v8098 = vtanh.pop %v8066
        %v8099 = vtanh.pop %v8067
        %v8100 = vtanh.pop %v8068
        %v8101 = vtanh.pop %v8069
        %v8102 = vtanh.pop %v8070
        %v8103 = vsub.f32 %v8071, %v412
        %v8104 = vsub.f32 %v8072, %v413
        %v8105 = vsub.f32 %v8073, %v414
        %v8106 = vsub.f32 %v8074, %v415
        %v8107 = vsub.f32 %v8075, %v416
        %v8108 = vsub.f32 %v8076, %v417
        %v8109 = vsub.f32 %v8077, %v418
        %v8110 = vsub.f32 %v8078, %v419
        %v8111 = vsub.f32 %v8079, %v420
        %v8112 = vsub.f32 %v8080, %v421
        %v8113 = vsub.f32 %v8081, %v422
        %v8114 = vsub.f32 %v8082, %v423
        %v8115 = vsub.f32 %v8083, %v424
        %v8116 = vsub.f32 %v8084, %v425
        %v8117 = vsub.f32 %v8085, %v426
        %v8118 = vsub.f32 %v8086, %v427
        %v8119 = vsub.f32 %v8087, %v428
        %v8120 = vsub.f32 %v8088, %v429
        %v8121 = vsub.f32 %v8089, %v430
        %v8122 = vsub.f32 %v8090, %v431
        %v8123 = vsub.f32 %v8091, %v432
        %v8124 = vsub.f32 %v8092, %v433
        %v8125 = vsub.f32 %v8093, %v434
        %v8126 = vsub.f32 %v8094, %v435
        %v8127 = vsub.f32 %v8095, %v436
        %v8128 = vsub.f32 %v8096, %v437
        %v8129 = vsub.f32 %v8097, %v438
        %v8130 = vsub.f32 %v8098, %v439
        %v8131 = vsub.f32 %v8099, %v440
        %v8132 = vsub.f32 %v8100, %v441
        %v8133 = vsub.f32 %v8101, %v442
        %v8134 = vsub.f32 %v8102, %v443
        %v8135 = vmul.f32 %v6146, %v8103
        %v8136 = vmul.f32 %v6147, %v8104
        %v8137 = vmul.f32 %v6148, %v8105
        %v8138 = vmul.f32 %v6149, %v8106
        %v8139 = vmul.f32 %v6150, %v8107
        %v8140 = vmul.f32 %v6151, %v8108
        %v8141 = vmul.f32 %v6152, %v8109
        %v8142 = vmul.f32 %v6153, %v8110
        %v8143 = vmul.f32 %v6154, %v8111
        %v8144 = vmul.f32 %v6155, %v8112
        %v8145 = vmul.f32 %v6156, %v8113
        %v8146 = vmul.f32 %v6157, %v8114
        %v8147 = vmul.f32 %v6158, %v8115
        %v8148 = vmul.f32 %v6159, %v8116
        %v8149 = vmul.f32 %v6160, %v8117
        %v8150 = vmul.f32 %v6161, %v8118
        %v8151 = vmul.f32 %v6162, %v8119
        %v8152 = vmul.f32 %v6163, %v8120
        %v8153 = vmul.f32 %v6164, %v8121
        %v8154 = vmul.f32 %v6165, %v8122
        %v8155 = vmul.f32 %v6166, %v8123
        %v8156 = vmul.f32 %v6167, %v8124
        %v8157 = vmul.f32 %v6168, %v8125
        %v8158 = vmul.f32 %v6169, %v8126
        %v8159 = vmul.f32 %v6170, %v8127
        %v8160 = vmul.f32 %v6171, %v8128
        %v8161 = vmul.f32 %v6172, %v8129
        %v8162 = vmul.f32 %v6173, %v8130
        %v8163 = vmul.f32 %v6174, %v8131
        %v8164 = vmul.f32 %v6175, %v8132
        %v8165 = vmul.f32 %v6176, %v8133
        %v8166 = vmul.f32 %v6177, %v8134
        %v8167 = vadd.f32 %v412, %v8135
        %v8168 = vadd.f32 %v413, %v8136
        %v8169 = vadd.f32 %v414, %v8137
        %v8170 = vadd.f32 %v415, %v8138
        %v8171 = vadd.f32 %v416, %v8139
        %v8172 = vadd.f32 %v417, %v8140
        %v8173 = vadd.f32 %v418, %v8141
        %v8174 = vadd.f32 %v419, %v8142
        %v8175 = vadd.f32 %v420, %v8143
        %v8176 = vadd.f32 %v421, %v8144
        %v8177 = vadd.f32 %v422, %v8145
        %v8178 = vadd.f32 %v423, %v8146
        %v8179 = vadd.f32 %v424, %v8147
        %v8180 = vadd.f32 %v425, %v8148
        %v8181 = vadd.f32 %v426, %v8149
        %v8182 = vadd.f32 %v427, %v8150
        %v8183 = vadd.f32 %v428, %v8151
        %v8184 = vadd.f32 %v429, %v8152
        %v8185 = vadd.f32 %v430, %v8153
        %v8186 = vadd.f32 %v431, %v8154
        %v8187 = vadd.f32 %v432, %v8155
        %v8188 = vadd.f32 %v433, %v8156
        %v8189 = vadd.f32 %v434, %v8157
        %v8190 = vadd.f32 %v435, %v8158
        %v8191 = vadd.f32 %v436, %v8159
        %v8192 = vadd.f32 %v437, %v8160
        %v8193 = vadd.f32 %v438, %v8161
        %v8194 = vadd.f32 %v439, %v8162
        %v8195 = vadd.f32 %v440, %v8163
        %v8196 = vadd.f32 %v441, %v8164
        %v8197 = vadd.f32 %v442, %v8165
        %v8198 = vadd.f32 %v443, %v8166
        %8199 = vst [vmem:[%s385] sm:$0xff] %v8167
        %8200 = vst [vmem:[%s385 + $0x8] sm:$0xff] %v8168
        %8201 = vst [vmem:[%s385 + $0x10] sm:$0xff] %v8169
        %8202 = vst [vmem:[%s385 + $0x18] sm:$0xff] %v8170
        %8203 = vst [vmem:[%s385 + $0x20] sm:$0xff] %v8171
        %8204 = vst [vmem:[%s385 + $0x28] sm:$0xff] %v8172
        %8205 = vst [vmem:[%s385 + $0x30] sm:$0xff] %v8173
        %8206 = vst [vmem:[%s385 + $0x38] sm:$0xff] %v8174
        %8207 = vst [vmem:[%s385 + $0x40] sm:$0xff] %v8175
        %8208 = vst [vmem:[%s385 + $0x48] sm:$0xff] %v8176
        %8209 = vst [vmem:[%s385 + $0x50] sm:$0xff] %v8177
        %8210 = vst [vmem:[%s385 + $0x58] sm:$0xff] %v8178
        %8211 = vst [vmem:[%s385 + $0x60] sm:$0xff] %v8179
        %8212 = vst [vmem:[%s385 + $0x68] sm:$0xff] %v8180
        %8213 = vst [vmem:[%s385 + $0x70] sm:$0xff] %v8181
        %8214 = vst [vmem:[%s385 + $0x78] sm:$0xff] %v8182
        %8215 = vst [vmem:[%s385 + $0x80] sm:$0xff] %v8183
        %8216 = vst [vmem:[%s385 + $0x88] sm:$0xff] %v8184
        %8217 = vst [vmem:[%s385 + $0x90] sm:$0xff] %v8185
        %8218 = vst [vmem:[%s385 + $0x98] sm:$0xff] %v8186
        %8219 = vst [vmem:[%s385 + $0xa0] sm:$0xff] %v8187
        %8220 = vst [vmem:[%s385 + $0xa8] sm:$0xff] %v8188
        %8221 = vst [vmem:[%s385 + $0xb0] sm:$0xff] %v8189
        %8222 = vst [vmem:[%s385 + $0xb8] sm:$0xff] %v8190
        %8223 = vst [vmem:[%s385 + $0xc0] sm:$0xff] %v8191
        %8224 = vst [vmem:[%s385 + $0xc8] sm:$0xff] %v8192
        %8225 = vst [vmem:[%s385 + $0xd0] sm:$0xff] %v8193
        %8226 = vst [vmem:[%s385 + $0xd8] sm:$0xff] %v8194
        %8227 = vst [vmem:[%s385 + $0xe0] sm:$0xff] %v8195
        %8228 = vst [vmem:[%s385 + $0xe8] sm:$0xff] %v8196
        %8229 = vst [vmem:[%s385 + $0xf0] sm:$0xff] %v8197
        %8230 = vst [vmem:[%s385 + $0xf8] sm:$0xff] %v8198
        %s8231 = sand.u32 %s245, 1
        %s8232 = scalar_lea.sflag [#allocation3], %s8231
        %s8233 = sand.u32 %s245, 1
        %s8234 = smul.addr %s8233, 256
        %s8235 = scalar_lea.vmem [#allocation2], %s8234
        // Predicated region
        $region57: #{conv_gru.1} parent=55 // pred_check
          %p8236 = pneg %p255
        $region58: #{conv_gru.1} parent=55 // pred_check_branch
          %8238 = sbr.rel (%p8236) target = $region60
        $region59: #{conv_gru.1} parent=55 // pred_region
          %s8240 = ssub.s32 4096, 4096
          %8241 = vsyncadd %s8232, %s8240
          %s8242 = smul.addr %s23, 32
          %s8243 = smul.addr %s8242, 128
          %s8244 = scalar_lea.hbm %s9, %s8243
          %s8245 = sshll.u32 %s8235, 4
          %s8246 = int_to_ptr.vmem [resolvable:$true] %s8245
          %8251 = dma.vmem_to_hbm [thread:$0]  %s8246, 4096, %s8244, %s8232, 128, 128, 8
        $region60: #{conv_gru.1} parent=55 // pred_fallthru
          _
      $region56: #{conv_gru.1} parent=5 // pred_fallthru
        _
      %p8252 = scmp.le.s32.totalorder 2, %s18
      // Predicated region
      $region61: #{conv_gru.1} parent=5 // pred_check
        %p8253 = pneg %p8252
      $region62: #{conv_gru.1} parent=5 // pred_check_branch
        %8255 = sbr.rel (%p8253) target = $region64
      $region63: #{conv_gru.1} parent=5 // pred_region
        %s8256 = ssub.s32 %s18, 2
        // Predicated region
        $region65: #{conv_gru.1} parent=63 // pred_check
          %p8257 = pneg %p261
        $region66: #{conv_gru.1} parent=63 // pred_check_branch
          %8259 = sbr.rel (%p8257) target = $region68
        $region67: #{conv_gru.1} parent=63 // pred_region
          %s8260 = sand.u32 %s246, 1
          %s8261 = scalar_lea.sflag [#allocation3], %s8260
          %s8262 = sand.u32 %s246, 1
          %s8263 = smul.addr %s8262, 256
          %s8264 = scalar_lea.vmem [#allocation2], %s8263
          %8265 = dma.done %s8261, 4096
        $region68: #{conv_gru.1} parent=63 // pred_fallthru
          _
      $region64: #{conv_gru.1} parent=5 // pred_fallthru
        _
    $region6: #{conv_gru.1} parent=1 // loop_footer
      %s22 = sadd.s32 1, %s18
    $region7: #{conv_gru.1} parent=1 // loop_footer_branch
      %17 = sbr.rel target = $region3
    $region8: #{conv_gru.1} parent=1 // loop_exit
      _
    %8266 = vsyncpa [#allocation3], 1
    %s8267 = scalar_lea.sflag [#allocation3], 1
    %8268 = vsyncpa %s8267, 1

</llo_original>
